<compile_context>
chip_gen: v5e
topology: v5e:2x2
jax: 0.10.0
libtpu: 0.0.40
codegen_flags: <defaults>
</compile_context>

<pallas_src>
import numpy as np
import jax
import jax.numpy as jnp
from jax import lax
from jax.experimental import pallas as pl
from jax.experimental.pallas import tpu as pltpu


# ---------------------------------------------------------------------------
# Packed-parameter slab layouts (lane offsets).
# ---------------------------------------------------------------------------
K1P = 160                                   # conv1 contraction 7*22=154 -> 160
# P16 : (16, 246) = [ w1 | G3 | w3b | b1 | g1 | be1 | b3 | g3 | be3 ]
P16_W1, P16_G3, P16_W3 = 0, K1P, K1P + 16
P16_B1, P16_GA1, P16_BE1 = K1P + 80, K1P + 81, K1P + 82
P16_B3, P16_GA3, P16_BE3 = K1P + 83, K1P + 84, K1P + 85
P16_W = K1P + 86
# P64 : (64, 579) = [ w2b | G2 | b2 | g2 | be2 ]
P64_W2, P64_G2 = 0, 512
P64_B2, P64_GA2, P64_BE2 = 576, 577, 578
P64_W = 579


# ---------------------------------------------------------------------------
# Fused kernel
# ---------------------------------------------------------------------------
def _make_kernel(N, T):
    W2 = T + 2                     # conv2 output width ((T+33) - 32 + 1)
    L2 = N * W2
    PW = (W2 - 2) // 4 + 1         # pool2 / conv3 output width (101 @ T=400)
    L3 = N * PW
    XQW = PW + 3                   # width-padded pool2 map (ZeroPad2d (2,1,.,.))
    P3W = (PW - 4) // 4 + 1        # pool3 output width (25 @ T=400)

    def elu(v):
        return jnp.where(v > 0, v, jnp.exp(jnp.minimum(v, 0.0)) - 1.0)

    def kernel(a1_ref, p16_ref, p64_ref, sel2_ref, sel3_ref, out_ref,
               xp_ref, s2_ref, e2_ref, xq_ref, s3_ref):
        f32 = jnp.float32

        # ---------------- parameter unpacking (two packed slabs) -----------
        w1   = p16_ref[:, P16_W1:P16_W1 + K1P]      # (16, 160)
        G3   = p16_ref[:, P16_G3:P16_G3 + 16]       # (16, 16) same-channel mask
        w3b  = p16_ref[:, P16_W3:P16_W3 + 64]       # (16, 64)  cols = (dw, ci, u)
        b1   = p16_ref[:, P16_B1:P16_B1 + 1]
        ga1  = p16_ref[:, P16_GA1:P16_GA1 + 1]
        be1  = p16_ref[:, P16_BE1:P16_BE1 + 1]
        b3r  = p16_ref[:, P16_B3:P16_B3 + 1]
        ga3r = p16_ref[:, P16_GA3:P16_GA3 + 1]
        be3r = p16_ref[:, P16_BE3:P16_BE3 + 1]

        w2b  = p64_ref[:, P64_W2:P64_W2 + 512]      # (64, 512) cols = (dw, q)
        G2   = p64_ref[:, P64_G2:P64_G2 + 64]       # (64, 64)  same-channel mask
        b2r  = p64_ref[:, P64_B2:P64_B2 + 1]
        ga2r = p64_ref[:, P64_GA2:P64_GA2 + 1]
        be2r = p64_ref[:, P64_BE2:P64_BE2 + 1]

        # ---------------- stage 1: conv1 + ELU + BN1 (one batched matmul) --
        z1 = jnp.dot(w1, a1_ref[...], preferred_element_type=f32) + b1
        e1 = elu(z1)                                           # (16, N*T)
        inv1 = 1.0 / float(N * T)
        mu1 = jnp.sum(e1, axis=1, keepdims=True) * inv1
        var1 = jnp.maximum(
            jnp.sum(e1 * e1, axis=1, keepdims=True) * inv1 - mu1 * mu1, 0.0)
        sc1 = ga1 * lax.rsqrt(var1)                            # eps = 0.0
        f1 = e1 * sc1 + (be1 - mu1 * sc1)                      # BN1 output

        # ------- permute(0,3,1,2) + ZeroPad2d((16,17,0,1)) -> xp[n]=(16,T+33)
        # The all-zero bottom pad row is dropped (its conv2 taps are omitted
        # from w2b).  Only the pad columns are zero-filled.
        for n in range(N):
            xp_ref[n, 0:16, 0:16] = jnp.zeros((16, 16), f32)
            xp_ref[n, 0:16, 16 + T:33 + T] = jnp.zeros((16, 17), f32)
            xp_ref[n, 0:16, 16:16 + T] = f1[:, n * T:(n + 1) * T]

        # ---------------- stage 2: conv2 as ONE batched banded matmul ------
        # s2[16*dw + q, n*W2 + w] = xp[n, q, w + dw]; every row/col written,
        # so no zero-init of s2 is needed.
        for dw in range(32):
            for n in range(N):
                s2_ref[16 * dw:16 * dw + 16, n * W2:(n + 1) * W2] = \
                    xp_ref[n, 0:16, dw:dw + W2]

        e2 = elu(jnp.dot(w2b, s2_ref[...], preferred_element_type=f32) + b2r)
        e2_ref[...] = e2                                       # (64, N*W2)

        # ---------------- BN2: wide reduction + same-channel group matmul --
        inv2 = 1.0 / float(N * 16 * W2)
        rs2 = jnp.sum(e2, axis=1, keepdims=True)               # (64, 1)
        rq2 = jnp.sum(e2 * e2, axis=1, keepdims=True)          # (64, 1)
        st2 = jnp.dot(G2, jnp.concatenate([rs2, rq2], axis=1),
                      preferred_element_type=f32) * inv2       # (64, 2)
        mu2 = st2[:, 0:1]
        var2 = jnp.maximum(st2[:, 1:2] - mu2 * mu2, 0.0)
        sc2 = ga2r * lax.rsqrt(var2)
        of2 = be2r - mu2 * sc2

        # -------- BN2 affine + MaxPool2d(2,4) + ZeroPad2d((2,1,4,3)) -------
        # Rows 0:16 / 16:32 of e2 hold the first / second row of every pool
        # window (wrapper row ordering), so the height max is one wide op.
        a2 = e2_ref[0:32, :] * sc2[0:32, :] + of2[0:32, :]
        hm2 = jnp.maximum(a2[0:16, :], a2[16:32, :])           # (16, L2)
        wm2 = jnp.maximum(hm2[:, 0:L2 - 1], hm2[:, 1:L2])      # (16, L2-1)
        # stride-4 lane pick + width zero-pad via constant 0/1 matmul
        xq_ref[...] = jnp.dot(wm2, sel2_ref[...], preferred_element_type=f32)

        # ---------------- stage 3: conv3 as ONE batched matmul -------------
        # s3 rows (dw, ci, u); one coalesced 16-row slab copy per (n, dw).
        for dw in range(4):
            for n in range(N):
                s3_ref[16 * dw:16 * dw + 16, n * PW:(n + 1) * PW] = \
                    xq_ref[:, n * XQW + dw:n * XQW + dw + PW]

        e3 = elu(jnp.dot(w3b, s3_ref[...], preferred_element_type=f32) + b3r)

        # ---------------- BN3 -----------------------------------------------
        inv3 = 1.0 / float(N * 4 * PW)
        rs3 = jnp.sum(e3, axis=1, keepdims=True)
        rq3 = jnp.sum(e3 * e3, axis=1, keepdims=True)
        st3 = jnp.dot(G3, jnp.concatenate([rs3, rq3], axis=1),
                      preferred_element_type=f32) * inv3
        mu3 = st3[:, 0:1]
        var3 = jnp.maximum(st3[:, 1:2] - mu3 * mu3, 0.0)
        sc3 = ga3r * lax.rsqrt(var3)
        of3 = be3r - mu3 * sc3

        # -------- BN3 affine + MaxPool2d((2,4)) + lane-dense output --------
        a3 = e3 * sc3 + of3                                    # (16, L3)
        hm3 = jnp.maximum(a3[0:8, :], a3[8:16, :])             # (8, L3)
        wm3 = jnp.maximum(
            jnp.maximum(hm3[:, 0:L3 - 3], hm3[:, 1:L3 - 2]),
            jnp.maximum(hm3[:, 2:L3 - 1], hm3[:, 3:L3]))       # (8, L3-3)
        out_ref[...] = jnp.dot(wm3, sel3_ref[...], preferred_element_type=f32)

    return kernel


# ---------------------------------------------------------------------------
# Parameters (deterministic synthetic init, shapes from EEG_Net.__init__)
# ---------------------------------------------------------------------------
def init_params(key):
    ks = jax.random.split(key, 12)

    def rnd(k, shape, scale=0.1):
        return scale * jax.random.normal(k, shape, jnp.float32)

    return {
        "w1": rnd(ks[0], (16, 7, 1, 22)), "b1": rnd(ks[1], (16,)),
        "g1": 1.0 + rnd(ks[2], (16,)),    "beta1": rnd(ks[3], (16,)),
        "w2": rnd(ks[4], (4, 1, 2, 32)),  "b2": rnd(ks[5], (4,)),
        "g2": 1.0 + rnd(ks[6], (4,)),     "beta2": rnd(ks[7], (4,)),
        "w3": rnd(ks[8], (4, 4, 8, 4)),   "b3": rnd(ks[9], (4,)),
        "g3": 1.0 + rnd(ks[10], (4,)),    "beta3": rnd(ks[11], (4,)),
    }


# ---------------------------------------------------------------------------
# Forward pass: wrapper prepares lane-dense operands / constant selection
# matrices, one pallas_call runs the whole network.
# ---------------------------------------------------------------------------
@jax.jit
def eeg_net_forward(x, p):
    N, Cin, T, Wd = x.shape                      # (N, 7, T, 22)
    K1 = Cin * Wd                                # 154
    W2 = T + 2
    L2 = N * W2
    PW = (W2 - 2) // 4 + 1
    L3 = N * PW
    XQW = PW + 3
    P3W = (PW - 4) // 4 + 1
    f32 = jnp.float32

    # ---- conv1 operand: rows (ci, kw), cols (n, t); K padded to 160 --------
    a1 = x.astype(f32).transpose(1, 3, 0, 2).reshape(K1, N * T)
    a1 = jnp.pad(a1, ((0, K1P - K1), (0, 0)))
    w1p = jnp.pad(p["w1"].astype(f32).reshape(16, K1), ((0, 0), (0, K1P - K1)))

    # ---- conv2 rows ordered (pool-pair A | pool-pair B | stats-only rest) --
    co2, h2 = [], []
    for co in range(4):
        for i in range(4):
            co2.append(co); h2.append(4 * i)            # rows  0..15: h = 4i
    for co in range(4):
        for i in range(4):
            co2.append(co); h2.append(4 * i + 1)        # rows 16..31: h = 4i+1
    for co in range(4):
        for h in (2, 3, 6, 7, 10, 11, 14, 15):
            co2.append(co); h2.append(h)                # rows 32..63: unused by pool
    co2 = np.asarray(co2); h2 = np.asarray(h2)

    q = np.arange(16)
    d0 = (q[None, :] == h2[:, None]).astype(np.float32)          # dh = 0 band
    d1 = (q[None, :] == h2[:, None] + 1).astype(np.float32)      # dh = 1 band
    w20 = p["w2"].astype(f32)[:, 0, 0, :][co2]                   # (64, 32)
    w21 = p["w2"].astype(f32)[:, 0, 1, :][co2]
    w2b = (w20[:, :, None] * d0[:, None, :] +
           w21[:, :, None] * d1[:, None, :]).reshape(64, 512)    # cols (dw, q)
    G2 = jnp.asarray((co2[:, None] == co2[None, :]).astype(np.float32))
    p64 = jnp.concatenate(
        [w2b, G2,
         p["b2"].astype(f32)[co2].reshape(64, 1),
         p["g2"].astype(f32)[co2].reshape(64, 1),
         p["beta2"].astype(f32)[co2].reshape(64, 1)], axis=1)    # (64, 579)

    # ---- conv3 rows (pool-pair A | pool-pair B); ZeroPad2d rows folded in --
    co3, h3 = [], []
    for co in range(4):
        for i in range(2):
            co3.append(co); h3.append(2 * i)             # rows 0..7 : h3 = 2i
    for co in range(4):
        for i in range(2):
            co3.append(co); h3.append(2 * i + 1)         # rows 8..15: h3 = 2i+1
    co3 = np.asarray(co3); h3 = np.asarray(h3)

    u = np.arange(4)
    dh_idx = u[None, :] + 4 - h3[:, None]                # (16, 4), values 1..7
    w3full = p["w3"].astype(f32)                         # (co, ci, dh, dw)
    w3sel = w3full[co3[:, None, None, None],
                   np.arange(4)[None, :, None, None],
                   dh_idx[:, None, :, None],
                   np.arange(4)[None, None, None, :]]    # (r3, ci, u, dw)
    w3b = w3sel.transpose(0, 3, 1, 2).reshape(16, 64)    # cols (dw, ci, u)
    G3 = jnp.asarray((co3[:, None] == co3[None, :]).astype(np.float32))
    p16 = jnp.concatenate(
        [w1p, G3, w3b,
         p["b1"].astype(f32).reshape(16, 1),
         p["g1"].astype(f32).reshape(16, 1),
         p["beta1"].astype(f32).reshape(16, 1),
         p["b3"].astype(f32)[co3].reshape(16, 1),
         p["g3"].astype(f32)[co3].reshape(16, 1),
         p["beta3"].astype(f32)[co3].reshape(16, 1)], axis=1)    # (16, 246)

    # ---- constant stride-4 selection matrices (pool2 -> padded xq, pool3) --
    sel2 = np.zeros((L2 - 1, N * XQW), np.float32)
    for n in range(N):
        for j in range(PW):
            sel2[n * W2 + 4 * j, n * XQW + 2 + j] = 1.0
    sel3 = np.zeros((L3 - 3, N * P3W), np.float32)
    for n in range(N):
        for j in range(P3W):
            sel3[n * PW + 4 * j, n * P3W + j] = 1.0
    sel2 = jnp.asarray(sel2)
    sel3 = jnp.asarray(sel3)

    vm = pl.BlockSpec(memory_space=pltpu.MemorySpace.VMEM)
    p3 = pl.pallas_call(
        _make_kernel(N, T),
        out_shape=jax.ShapeDtypeStruct((8, N * P3W), f32),
        in_specs=[vm] * 5,
        out_specs=vm,
        scratch_shapes=[
            pltpu.VMEM((N, 16, T + 33), f32),    # xp : padded conv1 feature map
            pltpu.VMEM((512, L2), f32),          # s2 : batched conv2 windows
            pltpu.VMEM((64, L2), f32),           # e2 : ELU(conv2)
            pltpu.VMEM((16, N * XQW), f32),      # xq : pooled + width-padded map
            pltpu.VMEM((64, L3), f32),           # s3 : batched conv3 windows
        ],
    )(a1, p16, p64, sel2, sel3)

    # rows of p3 are (co, i); undo the lane-batched layout outside the kernel.
    return p3.reshape(8, N, P3W).transpose(1, 0, 2).reshape(N, 8 * P3W)


if __name__ == "__main__":
    key = jax.random.PRNGKey(0)
    kx, kp = jax.random.split(key)
    # Smallest shape consistent with the module's final view(-1, 4*2*25):
    # (N, 7, 400, 22) -> output (N, 200).
    x = jax.random.normal(kx, (2, 7, 400, 22), jnp.float32)
    params = init_params(kp)

    out = eeg_net_forward(x, params)
    out = jax.block_until_ready(out)

    assert out.shape == (2, 200), out.shape
    assert bool(jnp.isfinite(out).all())
    print("KERNEL_OK")
</pallas_src>

<mosaic_0001>
module attributes {stable_mosaic.version = 11 : i64} {
  func.func @kernel(%arg0: memref<160x800xf32, #tpu.memory_space<vmem>>, %arg1: memref<16x246xf32, #tpu.memory_space<vmem>>, %arg2: memref<64x579xf32, #tpu.memory_space<vmem>>, %arg3: memref<803x208xf32, #tpu.memory_space<vmem>>, %arg4: memref<199x50xf32, #tpu.memory_space<vmem>>, %arg5: memref<8x50xf32, #tpu.memory_space<vmem>>, %arg6: memref<2x16x433xf32, #tpu.memory_space<vmem>>, %arg7: memref<512x804xf32, #tpu.memory_space<vmem>>, %arg8: memref<64x804xf32, #tpu.memory_space<vmem>>, %arg9: memref<16x208xf32, #tpu.memory_space<vmem>>, %arg10: memref<64x202xf32, #tpu.memory_space<vmem>>) attributes {dimension_semantics = [], scalar_prefetch = 0 : i64, scratch_operands = 5 : i64, tpu.core_type = #tpu.core_type<tc>} {
    %c0 = arith.constant 0 : index
    %c0_0 = arith.constant 0 : index
    %0 = vector.load %arg1[%c0, %c0_0] : memref<16x246xf32, #tpu.memory_space<vmem>>, vector<16x160xf32>
    %c0_1 = arith.constant 0 : index
    %c160 = arith.constant 160 : index
    %1 = vector.load %arg1[%c0_1, %c160] : memref<16x246xf32, #tpu.memory_space<vmem>>, vector<16x16xf32>
    %c0_2 = arith.constant 0 : index
    %c176 = arith.constant 176 : index
    %2 = vector.load %arg1[%c0_2, %c176] : memref<16x246xf32, #tpu.memory_space<vmem>>, vector<16x64xf32>
    %c0_3 = arith.constant 0 : index
    %c240 = arith.constant 240 : index
    %3 = vector.load %arg1[%c0_3, %c240] : memref<16x246xf32, #tpu.memory_space<vmem>>, vector<16x1xf32>
    %c0_4 = arith.constant 0 : index
    %c241 = arith.constant 241 : index
    %4 = vector.load %arg1[%c0_4, %c241] : memref<16x246xf32, #tpu.memory_space<vmem>>, vector<16x1xf32>
    %c0_5 = arith.constant 0 : index
    %c242 = arith.constant 242 : index
    %5 = vector.load %arg1[%c0_5, %c242] : memref<16x246xf32, #tpu.memory_space<vmem>>, vector<16x1xf32>
    %c0_6 = arith.constant 0 : index
    %c243 = arith.constant 243 : index
    %6 = vector.load %arg1[%c0_6, %c243] : memref<16x246xf32, #tpu.memory_space<vmem>>, vector<16x1xf32>
    %c0_7 = arith.constant 0 : index
    %c244 = arith.constant 244 : index
    %7 = vector.load %arg1[%c0_7, %c244] : memref<16x246xf32, #tpu.memory_space<vmem>>, vector<16x1xf32>
    %c0_8 = arith.constant 0 : index
    %c245 = arith.constant 245 : index
    %8 = vector.load %arg1[%c0_8, %c245] : memref<16x246xf32, #tpu.memory_space<vmem>>, vector<16x1xf32>
    %c0_9 = arith.constant 0 : index
    %c0_10 = arith.constant 0 : index
    %9 = vector.load %arg2[%c0_9, %c0_10] : memref<64x579xf32, #tpu.memory_space<vmem>>, vector<64x512xf32>
    %c0_11 = arith.constant 0 : index
    %c512 = arith.constant 512 : index
    %10 = vector.load %arg2[%c0_11, %c512] : memref<64x579xf32, #tpu.memory_space<vmem>>, vector<64x64xf32>
    %c0_12 = arith.constant 0 : index
    %c576 = arith.constant 576 : index
    %11 = vector.load %arg2[%c0_12, %c576] : memref<64x579xf32, #tpu.memory_space<vmem>>, vector<64x1xf32>
    %c0_13 = arith.constant 0 : index
    %c577 = arith.constant 577 : index
    %12 = vector.load %arg2[%c0_13, %c577] : memref<64x579xf32, #tpu.memory_space<vmem>>, vector<64x1xf32>
    %c0_14 = arith.constant 0 : index
    %c578 = arith.constant 578 : index
    %13 = vector.load %arg2[%c0_14, %c578] : memref<64x579xf32, #tpu.memory_space<vmem>>, vector<64x1xf32>
    %c0_15 = arith.constant 0 : index
    %c0_16 = arith.constant 0 : index
    %14 = vector.load %arg0[%c0_15, %c0_16] : memref<160x800xf32, #tpu.memory_space<vmem>>, vector<160x800xf32>
    %cst = arith.constant dense<0.000000e+00> : vector<16x800xf32>
    %15 = tpu.matmul %0, %14, %cst {dimension_numbers = #tpu.dot_dimension_numbers<[1], [0], [0], [1], [0, 0, 1, 1], [], []>} : vector<16x160xf32>, vector<160x800xf32>, vector<16x800xf32> -> vector<16x800xf32>
    %16 = vector.broadcast %3 : vector<16x1xf32> to vector<16x800xf32>
    %17 = arith.addf %15, %16 : vector<16x800xf32>
    %cst_17 = arith.constant 0.000000e+00 : f32
    %18 = vector.broadcast %cst_17 : f32 to vector<16x800xf32>
    %19 = arith.cmpf ogt, %17, %18 : vector<16x800xf32>
    %cst_18 = arith.constant 0.000000e+00 : f32
    %20 = vector.broadcast %cst_18 : f32 to vector<16x800xf32>
    %21 = arith.minimumf %17, %20 : vector<16x800xf32>
    %22 = math.exp %21 : vector<16x800xf32>
    %cst_19 = arith.constant 1.000000e+00 : f32
    %23 = vector.broadcast %cst_19 : f32 to vector<16x800xf32>
    %24 = arith.subf %22, %23 : vector<16x800xf32>
    %25 = arith.select %19, %17, %24 : vector<16x800xi1>, vector<16x800xf32>
    %cst_20 = arith.constant dense<0.000000e+00> : vector<16xf32>
    %26 = vector.multi_reduction <add>, %25, %cst_20 [1] : vector<16x800xf32> to vector<16xf32>
    %27 = vector.shape_cast %26 : vector<16xf32> to vector<16x1xf32>
    %cst_21 = arith.constant 1.250000e-03 : f32
    %28 = vector.broadcast %cst_21 : f32 to vector<16x1xf32>
    %29 = arith.mulf %27, %28 : vector<16x1xf32>
    %30 = arith.mulf %25, %25 : vector<16x800xf32>
    %cst_22 = arith.constant dense<0.000000e+00> : vector<16xf32>
    %31 = vector.multi_reduction <add>, %30, %cst_22 [1] : vector<16x800xf32> to vector<16xf32>
    %32 = vector.shape_cast %31 : vector<16xf32> to vector<16x1xf32>
    %cst_23 = arith.constant 1.250000e-03 : f32
    %33 = vector.broadcast %cst_23 : f32 to vector<16x1xf32>
    %34 = arith.mulf %32, %33 : vector<16x1xf32>
    %35 = arith.mulf %29, %29 : vector<16x1xf32>
    %36 = arith.subf %34, %35 : vector<16x1xf32>
    %cst_24 = arith.constant 0.000000e+00 : f32
    %37 = vector.broadcast %cst_24 : f32 to vector<16x1xf32>
    %38 = arith.maximumf %36, %37 : vector<16x1xf32>
    %39 = math.rsqrt %38 : vector<16x1xf32>
    %40 = arith.mulf %4, %39 : vector<16x1xf32>
    %41 = vector.broadcast %40 : vector<16x1xf32> to vector<16x800xf32>
    %42 = arith.mulf %25, %41 : vector<16x800xf32>
    %43 = arith.mulf %29, %40 : vector<16x1xf32>
    %44 = arith.subf %5, %43 : vector<16x1xf32>
    %45 = vector.broadcast %44 : vector<16x1xf32> to vector<16x800xf32>
    %46 = arith.addf %42, %45 : vector<16x800xf32>
    %cst_25 = arith.constant 0.000000e+00 : f32
    %47 = vector.broadcast %cst_25 : f32 to vector<16x16xf32>
    %c0_26 = arith.constant 0 : index
    %c0_27 = arith.constant 0 : index
    %c0_28 = arith.constant 0 : index
    %48 = vector.load %arg6[%c0_26, %c0_27, %c0_28] : memref<2x16x433xf32, #tpu.memory_space<vmem>>, vector<1x16x16xf32>
    %49 = vector.shape_cast %48 : vector<1x16x16xf32> to vector<16x16xf32>
    %50 = vector.shape_cast %47 : vector<16x16xf32> to vector<1x16x16xf32>
    tpu.vector_store %arg6[%c0_26, %c0_27, %c0_28], %50 {strides = array<i32>} : memref<2x16x433xf32, #tpu.memory_space<vmem>>, vector<1x16x16xf32>,
    %cst_29 = arith.constant 0.000000e+00 : f32
    %51 = vector.broadcast %cst_29 : f32 to vector<16x17xf32>
    %c0_30 = arith.constant 0 : index
    %c0_31 = arith.constant 0 : index
    %c416 = arith.constant 416 : index
    %52 = vector.load %arg6[%c0_30, %c0_31, %c416] : memref<2x16x433xf32, #tpu.memory_space<vmem>>, vector<1x16x17xf32>
    %53 = vector.shape_cast %52 : vector<1x16x17xf32> to vector<16x17xf32>
    %54 = vector.shape_cast %51 : vector<16x17xf32> to vector<1x16x17xf32>
    tpu.vector_store %arg6[%c0_30, %c0_31, %c416], %54 {strides = array<i32>} : memref<2x16x433xf32, #tpu.memory_space<vmem>>, vector<1x16x17xf32>,
    %55 = vector.extract_strided_slice %46 {offsets = [0, 0], sizes = [16, 400], strides = [1, 1]} : vector<16x800xf32> to vector<16x400xf32>
    %c0_32 = arith.constant 0 : index
    %c0_33 = arith.constant 0 : index
    %c16 = arith.constant 16 : index
    %56 = vector.load %arg6[%c0_32, %c0_33, %c16] : memref<2x16x433xf32, #tpu.memory_space<vmem>>, vector<1x16x400xf32>
    %57 = vector.shape_cast %56 : vector<1x16x400xf32> to vector<16x400xf32>
    %58 = vector.shape_cast %55 : vector<16x400xf32> to vector<1x16x400xf32>
    tpu.vector_store %arg6[%c0_32, %c0_33, %c16], %58 {strides = array<i32>} : memref<2x16x433xf32, #tpu.memory_space<vmem>>, vector<1x16x400xf32>,
    %cst_34 = arith.constant 0.000000e+00 : f32
    %59 = vector.broadcast %cst_34 : f32 to vector<16x16xf32>
    %c1 = arith.constant 1 : index
    %c0_35 = arith.constant 0 : index
    %c0_36 = arith.constant 0 : index
    %60 = vector.load %arg6[%c1, %c0_35, %c0_36] : memref<2x16x433xf32, #tpu.memory_space<vmem>>, vector<1x16x16xf32>
    %61 = vector.shape_cast %60 : vector<1x16x16xf32> to vector<16x16xf32>
    %62 = vector.shape_cast %59 : vector<16x16xf32> to vector<1x16x16xf32>
    tpu.vector_store %arg6[%c1, %c0_35, %c0_36], %62 {strides = array<i32>} : memref<2x16x433xf32, #tpu.memory_space<vmem>>, vector<1x16x16xf32>,
    %cst_37 = arith.constant 0.000000e+00 : f32
    %63 = vector.broadcast %cst_37 : f32 to vector<16x17xf32>
    %c1_38 = arith.constant 1 : index
    %c0_39 = arith.constant 0 : index
    %c416_40 = arith.constant 416 : index
    %64 = vector.load %arg6[%c1_38, %c0_39, %c416_40] : memref<2x16x433xf32, #tpu.memory_space<vmem>>, vector<1x16x17xf32>
    %65 = vector.shape_cast %64 : vector<1x16x17xf32> to vector<16x17xf32>
    %66 = vector.shape_cast %63 : vector<16x17xf32> to vector<1x16x17xf32>
    tpu.vector_store %arg6[%c1_38, %c0_39, %c416_40], %66 {strides = array<i32>} : memref<2x16x433xf32, #tpu.memory_space<vmem>>, vector<1x16x17xf32>,
    %67 = vector.extract_strided_slice %46 {offsets = [0, 400], sizes = [16, 400], strides = [1, 1]} : vector<16x800xf32> to vector<16x400xf32>
    %c1_41 = arith.constant 1 : index
    %c0_42 = arith.constant 0 : index
    %c16_43 = arith.constant 16 : index
    %68 = vector.load %arg6[%c1_41, %c0_42, %c16_43] : memref<2x16x433xf32, #tpu.memory_space<vmem>>, vector<1x16x400xf32>
    %69 = vector.shape_cast %68 : vector<1x16x400xf32> to vector<16x400xf32>
    %70 = vector.shape_cast %67 : vector<16x400xf32> to vector<1x16x400xf32>
    tpu.vector_store %arg6[%c1_41, %c0_42, %c16_43], %70 {strides = array<i32>} : memref<2x16x433xf32, #tpu.memory_space<vmem>>, vector<1x16x400xf32>,
    %c0_44 = arith.constant 0 : index
    %c0_45 = arith.constant 0 : index
    %c0_46 = arith.constant 0 : index
    %71 = vector.load %arg6[%c0_44, %c0_45, %c0_46] : memref<2x16x433xf32, #tpu.memory_space<vmem>>, vector<1x16x402xf32>
    %72 = vector.shape_cast %71 : vector<1x16x402xf32> to vector<16x402xf32>
    %c0_47 = arith.constant 0 : index
    %c0_48 = arith.constant 0 : index
    %73 = vector.load %arg7[%c0_47, %c0_48] : memref<512x804xf32, #tpu.memory_space<vmem>>, vector<16x402xf32>
    tpu.vector_store %arg7[%c0_47, %c0_48], %72 {strides = array<i32>} : memref<512x804xf32, #tpu.memory_space<vmem>>, vector<16x402xf32>,
    %c1_49 = arith.constant 1 : index
    %c0_50 = arith.constant 0 : index
    %c0_51 = arith.constant 0 : index
    %74 = vector.load %arg6[%c1_49, %c0_50, %c0_51] : memref<2x16x433xf32, #tpu.memory_space<vmem>>, vector<1x16x402xf32>
    %75 = vector.shape_cast %74 : vector<1x16x402xf32> to vector<16x402xf32>
    %c0_52 = arith.constant 0 : index
    %c402 = arith.constant 402 : index
    %76 = vector.load %arg7[%c0_52, %c402] : memref<512x804xf32, #tpu.memory_space<vmem>>, vector<16x402xf32>
    tpu.vector_store %arg7[%c0_52, %c402], %75 {strides = array<i32>} : memref<512x804xf32, #tpu.memory_space<vmem>>, vector<16x402xf32>,
    %c0_53 = arith.constant 0 : index
    %c0_54 = arith.constant 0 : index
    %c1_55 = arith.constant 1 : index
    %77 = vector.load %arg6[%c0_53, %c0_54, %c1_55] : memref<2x16x433xf32, #tpu.memory_space<vmem>>, vector<1x16x402xf32>
    %78 = vector.shape_cast %77 : vector<1x16x402xf32> to vector<16x402xf32>
    %c16_56 = arith.constant 16 : index
    %c0_57 = arith.constant 0 : index
    %79 = vector.load %arg7[%c16_56, %c0_57] : memref<512x804xf32, #tpu.memory_space<vmem>>, vector<16x402xf32>
    tpu.vector_store %arg7[%c16_56, %c0_57], %78 {strides = array<i32>} : memref<512x804xf32, #tpu.memory_space<vmem>>, vector<16x402xf32>,
    %c1_58 = arith.constant 1 : index
    %c0_59 = arith.constant 0 : index
    %c1_60 = arith.constant 1 : index
    %80 = vector.load %arg6[%c1_58, %c0_59, %c1_60] : memref<2x16x433xf32, #tpu.memory_space<vmem>>, vector<1x16x402xf32>
    %81 = vector.shape_cast %80 : vector<1x16x402xf32> to vector<16x402xf32>
    %c16_61 = arith.constant 16 : index
    %c402_62 = arith.constant 402 : index
    %82 = vector.load %arg7[%c16_61, %c402_62] : memref<512x804xf32, #tpu.memory_space<vmem>>, vector<16x402xf32>
    tpu.vector_store %arg7[%c16_61, %c402_62], %81 {strides = array<i32>} : memref<512x804xf32, #tpu.memory_space<vmem>>, vector<16x402xf32>,
    %c0_63 = arith.constant 0 : index
    %c0_64 = arith.constant 0 : index
    %c2 = arith.constant 2 : index
    %83 = vector.load %arg6[%c0_63, %c0_64, %c2] : memref<2x16x433xf32, #tpu.memory_space<vmem>>, vector<1x16x402xf32>
    %84 = vector.shape_cast %83 : vector<1x16x402xf32> to vector<16x402xf32>
    %c32 = arith.constant 32 : index
    %c0_65 = arith.constant 0 : index
    %85 = vector.load %arg7[%c32, %c0_65] : memref<512x804xf32, #tpu.memory_space<vmem>>, vector<16x402xf32>
    tpu.vector_store %arg7[%c32, %c0_65], %84 {strides = array<i32>} : memref<512x804xf32, #tpu.memory_space<vmem>>, vector<16x402xf32>,
    %c1_66 = arith.constant 1 : index
    %c0_67 = arith.constant 0 : index
    %c2_68 = arith.constant 2 : index
    %86 = vector.load %arg6[%c1_66, %c0_67, %c2_68] : memref<2x16x433xf32, #tpu.memory_space<vmem>>, vector<1x16x402xf32>
    %87 = vector.shape_cast %86 : vector<1x16x402xf32> to vector<16x402xf32>
    %c32_69 = arith.constant 32 : index
    %c402_70 = arith.constant 402 : index
    %88 = vector.load %arg7[%c32_69, %c402_70] : memref<512x804xf32, #tpu.memory_space<vmem>>, vector<16x402xf32>
    tpu.vector_store %arg7[%c32_69, %c402_70], %87 {strides = array<i32>} : memref<512x804xf32, #tpu.memory_space<vmem>>, vector<16x402xf32>,
    %c0_71 = arith.constant 0 : index
    %c0_72 = arith.constant 0 : index
    %c3 = arith.constant 3 : index
    %89 = vector.load %arg6[%c0_71, %c0_72, %c3] : memref<2x16x433xf32, #tpu.memory_space<vmem>>, vector<1x16x402xf32>
    %90 = vector.shape_cast %89 : vector<1x16x402xf32> to vector<16x402xf32>
    %c48 = arith.constant 48 : index
    %c0_73 = arith.constant 0 : index
    %91 = vector.load %arg7[%c48, %c0_73] : memref<512x804xf32, #tpu.memory_space<vmem>>, vector<16x402xf32>
    tpu.vector_store %arg7[%c48, %c0_73], %90 {strides = array<i32>} : memref<512x804xf32, #tpu.memory_space<vmem>>, vector<16x402xf32>,
    %c1_74 = arith.constant 1 : index
    %c0_75 = arith.constant 0 : index
    %c3_76 = arith.constant 3 : index
    %92 = vector.load %arg6[%c1_74, %c0_75, %c3_76] : memref<2x16x433xf32, #tpu.memory_space<vmem>>, vector<1x16x402xf32>
    %93 = vector.shape_cast %92 : vector<1x16x402xf32> to vector<16x402xf32>
    %c48_77 = arith.constant 48 : index
    %c402_78 = arith.constant 402 : index
    %94 = vector.load %arg7[%c48_77, %c402_78] : memref<512x804xf32, #tpu.memory_space<vmem>>, vector<16x402xf32>
    tpu.vector_store %arg7[%c48_77, %c402_78], %93 {strides = array<i32>} : memref<512x804xf32, #tpu.memory_space<vmem>>, vector<16x402xf32>,
    %c0_79 = arith.constant 0 : index
    %c0_80 = arith.constant 0 : index
    %c4 = arith.constant 4 : index
    %95 = vector.load %arg6[%c0_79, %c0_80, %c4] : memref<2x16x433xf32, #tpu.memory_space<vmem>>, vector<1x16x402xf32>
    %96 = vector.shape_cast %95 : vector<1x16x402xf32> to vector<16x402xf32>
    %c64 = arith.constant 64 : index
    %c0_81 = arith.constant 0 : index
    %97 = vector.load %arg7[%c64, %c0_81] : memref<512x804xf32, #tpu.memory_space<vmem>>, vector<16x402xf32>
    tpu.vector_store %arg7[%c64, %c0_81], %96 {strides = array<i32>} : memref<512x804xf32, #tpu.memory_space<vmem>>, vector<16x402xf32>,
    %c1_82 = arith.constant 1 : index
    %c0_83 = arith.constant 0 : index
    %c4_84 = arith.constant 4 : index
    %98 = vector.load %arg6[%c1_82, %c0_83, %c4_84] : memref<2x16x433xf32, #tpu.memory_space<vmem>>, vector<1x16x402xf32>
    %99 = vector.shape_cast %98 : vector<1x16x402xf32> to vector<16x402xf32>
    %c64_85 = arith.constant 64 : index
    %c402_86 = arith.constant 402 : index
    %100 = vector.load %arg7[%c64_85, %c402_86] : memref<512x804xf32, #tpu.memory_space<vmem>>, vector<16x402xf32>
    tpu.vector_store %arg7[%c64_85, %c402_86], %99 {strides = array<i32>} : memref<512x804xf32, #tpu.memory_space<vmem>>, vector<16x402xf32>,
    %c0_87 = arith.constant 0 : index
    %c0_88 = arith.constant 0 : index
    %c5 = arith.constant 5 : index
    %101 = vector.load %arg6[%c0_87, %c0_88, %c5] : memref<2x16x433xf32, #tpu.memory_space<vmem>>, vector<1x16x402xf32>
    %102 = vector.shape_cast %101 : vector<1x16x402xf32> to vector<16x402xf32>
    %c80 = arith.constant 80 : index
    %c0_89 = arith.constant 0 : index
    %103 = vector.load %arg7[%c80, %c0_89] : memref<512x804xf32, #tpu.memory_space<vmem>>, vector<16x402xf32>
    tpu.vector_store %arg7[%c80, %c0_89], %102 {strides = array<i32>} : memref<512x804xf32, #tpu.memory_space<vmem>>, vector<16x402xf32>,
    %c1_90 = arith.constant 1 : index
    %c0_91 = arith.constant 0 : index
    %c5_92 = arith.constant 5 : index
    %104 = vector.load %arg6[%c1_90, %c0_91, %c5_92] : memref<2x16x433xf32, #tpu.memory_space<vmem>>, vector<1x16x402xf32>
    %105 = vector.shape_cast %104 : vector<1x16x402xf32> to vector<16x402xf32>
    %c80_93 = arith.constant 80 : index
    %c402_94 = arith.constant 402 : index
    %106 = vector.load %arg7[%c80_93, %c402_94] : memref<512x804xf32, #tpu.memory_space<vmem>>, vector<16x402xf32>
    tpu.vector_store %arg7[%c80_93, %c402_94], %105 {strides = array<i32>} : memref<512x804xf32, #tpu.memory_space<vmem>>, vector<16x402xf32>,
    %c0_95 = arith.constant 0 : index
    %c0_96 = arith.constant 0 : index
    %c6 = arith.constant 6 : index
    %107 = vector.load %arg6[%c0_95, %c0_96, %c6] : memref<2x16x433xf32, #tpu.memory_space<vmem>>, vector<1x16x402xf32>
    %108 = vector.shape_cast %107 : vector<1x16x402xf32> to vector<16x402xf32>
    %c96 = arith.constant 96 : index
    %c0_97 = arith.constant 0 : index
    %109 = vector.load %arg7[%c96, %c0_97] : memref<512x804xf32, #tpu.memory_space<vmem>>, vector<16x402xf32>
    tpu.vector_store %arg7[%c96, %c0_97], %108 {strides = array<i32>} : memref<512x804xf32, #tpu.memory_space<vmem>>, vector<16x402xf32>,
    %c1_98 = arith.constant 1 : index
    %c0_99 = arith.constant 0 : index
    %c6_100 = arith.constant 6 : index
    %110 = vector.load %arg6[%c1_98, %c0_99, %c6_100] : memref<2x16x433xf32, #tpu.memory_space<vmem>>, vector<1x16x402xf32>
    %111 = vector.shape_cast %110 : vector<1x16x402xf32> to vector<16x402xf32>
    %c96_101 = arith.constant 96 : index
    %c402_102 = arith.constant 402 : index
    %112 = vector.load %arg7[%c96_101, %c402_102] : memref<512x804xf32, #tpu.memory_space<vmem>>, vector<16x402xf32>
    tpu.vector_store %arg7[%c96_101, %c402_102], %111 {strides = array<i32>} : memref<512x804xf32, #tpu.memory_space<vmem>>, vector<16x402xf32>,
    %c0_103 = arith.constant 0 : index
    %c0_104 = arith.constant 0 : index
    %c7 = arith.constant 7 : index
    %113 = vector.load %arg6[%c0_103, %c0_104, %c7] : memref<2x16x433xf32, #tpu.memory_space<vmem>>, vector<1x16x402xf32>
    %114 = vector.shape_cast %113 : vector<1x16x402xf32> to vector<16x402xf32>
    %c112 = arith.constant 112 : index
    %c0_105 = arith.constant 0 : index
    %115 = vector.load %arg7[%c112, %c0_105] : memref<512x804xf32, #tpu.memory_space<vmem>>, vector<16x402xf32>
    tpu.vector_store %arg7[%c112, %c0_105], %114 {strides = array<i32>} : memref<512x804xf32, #tpu.memory_space<vmem>>, vector<16x402xf32>,
    %c1_106 = arith.constant 1 : index
    %c0_107 = arith.constant 0 : index
    %c7_108 = arith.constant 7 : index
    %116 = vector.load %arg6[%c1_106, %c0_107, %c7_108] : memref<2x16x433xf32, #tpu.memory_space<vmem>>, vector<1x16x402xf32>
    %117 = vector.shape_cast %116 : vector<1x16x402xf32> to vector<16x402xf32>
    %c112_109 = arith.constant 112 : index
    %c402_110 = arith.constant 402 : index
    %118 = vector.load %arg7[%c112_109, %c402_110] : memref<512x804xf32, #tpu.memory_space<vmem>>, vector<16x402xf32>
    tpu.vector_store %arg7[%c112_109, %c402_110], %117 {strides = array<i32>} : memref<512x804xf32, #tpu.memory_space<vmem>>, vector<16x402xf32>,
    %c0_111 = arith.constant 0 : index
    %c0_112 = arith.constant 0 : index
    %c8 = arith.constant 8 : index
    %119 = vector.load %arg6[%c0_111, %c0_112, %c8] : memref<2x16x433xf32, #tpu.memory_space<vmem>>, vector<1x16x402xf32>
    %120 = vector.shape_cast %119 : vector<1x16x402xf32> to vector<16x402xf32>
    %c128 = arith.constant 128 : index
    %c0_113 = arith.constant 0 : index
    %121 = vector.load %arg7[%c128, %c0_113] : memref<512x804xf32, #tpu.memory_space<vmem>>, vector<16x402xf32>
    tpu.vector_store %arg7[%c128, %c0_113], %120 {strides = array<i32>} : memref<512x804xf32, #tpu.memory_space<vmem>>, vector<16x402xf32>,
    %c1_114 = arith.constant 1 : index
    %c0_115 = arith.constant 0 : index
    %c8_116 = arith.constant 8 : index
    %122 = vector.load %arg6[%c1_114, %c0_115, %c8_116] : memref<2x16x433xf32, #tpu.memory_space<vmem>>, vector<1x16x402xf32>
    %123 = vector.shape_cast %122 : vector<1x16x402xf32> to vector<16x402xf32>
    %c128_117 = arith.constant 128 : index
    %c402_118 = arith.constant 402 : index
    %124 = vector.load %arg7[%c128_117, %c402_118] : memref<512x804xf32, #tpu.memory_space<vmem>>, vector<16x402xf32>
    tpu.vector_store %arg7[%c128_117, %c402_118], %123 {strides = array<i32>} : memref<512x804xf32, #tpu.memory_space<vmem>>, vector<16x402xf32>,
    %c0_119 = arith.constant 0 : index
    %c0_120 = arith.constant 0 : index
    %c9 = arith.constant 9 : index
    %125 = vector.load %arg6[%c0_119, %c0_120, %c9] : memref<2x16x433xf32, #tpu.memory_space<vmem>>, vector<1x16x402xf32>
    %126 = vector.shape_cast %125 : vector<1x16x402xf32> to vector<16x402xf32>
    %c144 = arith.constant 144 : index
    %c0_121 = arith.constant 0 : index
    %127 = vector.load %arg7[%c144, %c0_121] : memref<512x804xf32, #tpu.memory_space<vmem>>, vector<16x402xf32>
    tpu.vector_store %arg7[%c144, %c0_121], %126 {strides = array<i32>} : memref<512x804xf32, #tpu.memory_space<vmem>>, vector<16x402xf32>,
    %c1_122 = arith.constant 1 : index
    %c0_123 = arith.constant 0 : index
    %c9_124 = arith.constant 9 : index
    %128 = vector.load %arg6[%c1_122, %c0_123, %c9_124] : memref<2x16x433xf32, #tpu.memory_space<vmem>>, vector<1x16x402xf32>
    %129 = vector.shape_cast %128 : vector<1x16x402xf32> to vector<16x402xf32>
    %c144_125 = arith.constant 144 : index
    %c402_126 = arith.constant 402 : index
    %130 = vector.load %arg7[%c144_125, %c402_126] : memref<512x804xf32, #tpu.memory_space<vmem>>, vector<16x402xf32>
    tpu.vector_store %arg7[%c144_125, %c402_126], %129 {strides = array<i32>} : memref<512x804xf32, #tpu.memory_space<vmem>>, vector<16x402xf32>,
    %c0_127 = arith.constant 0 : index
    %c0_128 = arith.constant 0 : index
    %c10 = arith.constant 10 : index
    %131 = vector.load %arg6[%c0_127, %c0_128, %c10] : memref<2x16x433xf32, #tpu.memory_space<vmem>>, vector<1x16x402xf32>
    %132 = vector.shape_cast %131 : vector<1x16x402xf32> to vector<16x402xf32>
    %c160_129 = arith.constant 160 : index
    %c0_130 = arith.constant 0 : index
    %133 = vector.load %arg7[%c160_129, %c0_130] : memref<512x804xf32, #tpu.memory_space<vmem>>, vector<16x402xf32>
    tpu.vector_store %arg7[%c160_129, %c0_130], %132 {strides = array<i32>} : memref<512x804xf32, #tpu.memory_space<vmem>>, vector<16x402xf32>,
    %c1_131 = arith.constant 1 : index
    %c0_132 = arith.constant 0 : index
    %c10_133 = arith.constant 10 : index
    %134 = vector.load %arg6[%c1_131, %c0_132, %c10_133] : memref<2x16x433xf32, #tpu.memory_space<vmem>>, vector<1x16x402xf32>
    %135 = vector.shape_cast %134 : vector<1x16x402xf32> to vector<16x402xf32>
    %c160_134 = arith.constant 160 : index
    %c402_135 = arith.constant 402 : index
    %136 = vector.load %arg7[%c160_134, %c402_135] : memref<512x804xf32, #tpu.memory_space<vmem>>, vector<16x402xf32>
    tpu.vector_store %arg7[%c160_134, %c402_135], %135 {strides = array<i32>} : memref<512x804xf32, #tpu.memory_space<vmem>>, vector<16x402xf32>,
    %c0_136 = arith.constant 0 : index
    %c0_137 = arith.constant 0 : index
    %c11 = arith.constant 11 : index
    %137 = vector.load %arg6[%c0_136, %c0_137, %c11] : memref<2x16x433xf32, #tpu.memory_space<vmem>>, vector<1x16x402xf32>
    %138 = vector.shape_cast %137 : vector<1x16x402xf32> to vector<16x402xf32>
    %c176_138 = arith.constant 176 : index
    %c0_139 = arith.constant 0 : index
    %139 = vector.load %arg7[%c176_138, %c0_139] : memref<512x804xf32, #tpu.memory_space<vmem>>, vector<16x402xf32>
    tpu.vector_store %arg7[%c176_138, %c0_139], %138 {strides = array<i32>} : memref<512x804xf32, #tpu.memory_space<vmem>>, vector<16x402xf32>,
    %c1_140 = arith.constant 1 : index
    %c0_141 = arith.constant 0 : index
    %c11_142 = arith.constant 11 : index
    %140 = vector.load %arg6[%c1_140, %c0_141, %c11_142] : memref<2x16x433xf32, #tpu.memory_space<vmem>>, vector<1x16x402xf32>
    %141 = vector.shape_cast %140 : vector<1x16x402xf32> to vector<16x402xf32>
    %c176_143 = arith.constant 176 : index
    %c402_144 = arith.constant 402 : index
    %142 = vector.load %arg7[%c176_143, %c402_144] : memref<512x804xf32, #tpu.memory_space<vmem>>, vector<16x402xf32>
    tpu.vector_store %arg7[%c176_143, %c402_144], %141 {strides = array<i32>} : memref<512x804xf32, #tpu.memory_space<vmem>>, vector<16x402xf32>,
    %c0_145 = arith.constant 0 : index
    %c0_146 = arith.constant 0 : index
    %c12 = arith.constant 12 : index
    %143 = vector.load %arg6[%c0_145, %c0_146, %c12] : memref<2x16x433xf32, #tpu.memory_space<vmem>>, vector<1x16x402xf32>
    %144 = vector.shape_cast %143 : vector<1x16x402xf32> to vector<16x402xf32>
    %c192 = arith.constant 192 : index
    %c0_147 = arith.constant 0 : index
    %145 = vector.load %arg7[%c192, %c0_147] : memref<512x804xf32, #tpu.memory_space<vmem>>, vector<16x402xf32>
    tpu.vector_store %arg7[%c192, %c0_147], %144 {strides = array<i32>} : memref<512x804xf32, #tpu.memory_space<vmem>>, vector<16x402xf32>,
    %c1_148 = arith.constant 1 : index
    %c0_149 = arith.constant 0 : index
    %c12_150 = arith.constant 12 : index
    %146 = vector.load %arg6[%c1_148, %c0_149, %c12_150] : memref<2x16x433xf32, #tpu.memory_space<vmem>>, vector<1x16x402xf32>
    %147 = vector.shape_cast %146 : vector<1x16x402xf32> to vector<16x402xf32>
    %c192_151 = arith.constant 192 : index
    %c402_152 = arith.constant 402 : index
    %148 = vector.load %arg7[%c192_151, %c402_152] : memref<512x804xf32, #tpu.memory_space<vmem>>, vector<16x402xf32>
    tpu.vector_store %arg7[%c192_151, %c402_152], %147 {strides = array<i32>} : memref<512x804xf32, #tpu.memory_space<vmem>>, vector<16x402xf32>,
    %c0_153 = arith.constant 0 : index
    %c0_154 = arith.constant 0 : index
    %c13 = arith.constant 13 : index
    %149 = vector.load %arg6[%c0_153, %c0_154, %c13] : memref<2x16x433xf32, #tpu.memory_space<vmem>>, vector<1x16x402xf32>
    %150 = vector.shape_cast %149 : vector<1x16x402xf32> to vector<16x402xf32>
    %c208 = arith.constant 208 : index
    %c0_155 = arith.constant 0 : index
    %151 = vector.load %arg7[%c208, %c0_155] : memref<512x804xf32, #tpu.memory_space<vmem>>, vector<16x402xf32>
    tpu.vector_store %arg7[%c208, %c0_155], %150 {strides = array<i32>} : memref<512x804xf32, #tpu.memory_space<vmem>>, vector<16x402xf32>,
    %c1_156 = arith.constant 1 : index
    %c0_157 = arith.constant 0 : index
    %c13_158 = arith.constant 13 : index
    %152 = vector.load %arg6[%c1_156, %c0_157, %c13_158] : memref<2x16x433xf32, #tpu.memory_space<vmem>>, vector<1x16x402xf32>
    %153 = vector.shape_cast %152 : vector<1x16x402xf32> to vector<16x402xf32>
    %c208_159 = arith.constant 208 : index
    %c402_160 = arith.constant 402 : index
    %154 = vector.load %arg7[%c208_159, %c402_160] : memref<512x804xf32, #tpu.memory_space<vmem>>, vector<16x402xf32>
    tpu.vector_store %arg7[%c208_159, %c402_160], %153 {strides = array<i32>} : memref<512x804xf32, #tpu.memory_space<vmem>>, vector<16x402xf32>,
    %c0_161 = arith.constant 0 : index
    %c0_162 = arith.constant 0 : index
    %c14 = arith.constant 14 : index
    %155 = vector.load %arg6[%c0_161, %c0_162, %c14] : memref<2x16x433xf32, #tpu.memory_space<vmem>>, vector<1x16x402xf32>
    %156 = vector.shape_cast %155 : vector<1x16x402xf32> to vector<16x402xf32>
    %c224 = arith.constant 224 : index
    %c0_163 = arith.constant 0 : index
    %157 = vector.load %arg7[%c224, %c0_163] : memref<512x804xf32, #tpu.memory_space<vmem>>, vector<16x402xf32>
    tpu.vector_store %arg7[%c224, %c0_163], %156 {strides = array<i32>} : memref<512x804xf32, #tpu.memory_space<vmem>>, vector<16x402xf32>,
    %c1_164 = arith.constant 1 : index
    %c0_165 = arith.constant 0 : index
    %c14_166 = arith.constant 14 : index
    %158 = vector.load %arg6[%c1_164, %c0_165, %c14_166] : memref<2x16x433xf32, #tpu.memory_space<vmem>>, vector<1x16x402xf32>
    %159 = vector.shape_cast %158 : vector<1x16x402xf32> to vector<16x402xf32>
    %c224_167 = arith.constant 224 : index
    %c402_168 = arith.constant 402 : index
    %160 = vector.load %arg7[%c224_167, %c402_168] : memref<512x804xf32, #tpu.memory_space<vmem>>, vector<16x402xf32>
    tpu.vector_store %arg7[%c224_167, %c402_168], %159 {strides = array<i32>} : memref<512x804xf32, #tpu.memory_space<vmem>>, vector<16x402xf32>,
    %c0_169 = arith.constant 0 : index
    %c0_170 = arith.constant 0 : index
    %c15 = arith.constant 15 : index
    %161 = vector.load %arg6[%c0_169, %c0_170, %c15] : memref<2x16x433xf32, #tpu.memory_space<vmem>>, vector<1x16x402xf32>
    %162 = vector.shape_cast %161 : vector<1x16x402xf32> to vector<16x402xf32>
    %c240_171 = arith.constant 240 : index
    %c0_172 = arith.constant 0 : index
    %163 = vector.load %arg7[%c240_171, %c0_172] : memref<512x804xf32, #tpu.memory_space<vmem>>, vector<16x402xf32>
    tpu.vector_store %arg7[%c240_171, %c0_172], %162 {strides = array<i32>} : memref<512x804xf32, #tpu.memory_space<vmem>>, vector<16x402xf32>,
    %c1_173 = arith.constant 1 : index
    %c0_174 = arith.constant 0 : index
    %c15_175 = arith.constant 15 : index
    %164 = vector.load %arg6[%c1_173, %c0_174, %c15_175] : memref<2x16x433xf32, #tpu.memory_space<vmem>>, vector<1x16x402xf32>
    %165 = vector.shape_cast %164 : vector<1x16x402xf32> to vector<16x402xf32>
    %c240_176 = arith.constant 240 : index
    %c402_177 = arith.constant 402 : index
    %166 = vector.load %arg7[%c240_176, %c402_177] : memref<512x804xf32, #tpu.memory_space<vmem>>, vector<16x402xf32>
    tpu.vector_store %arg7[%c240_176, %c402_177], %165 {strides = array<i32>} : memref<512x804xf32, #tpu.memory_space<vmem>>, vector<16x402xf32>,
    %c0_178 = arith.constant 0 : index
    %c0_179 = arith.constant 0 : index
    %c16_180 = arith.constant 16 : index
    %167 = vector.load %arg6[%c0_178, %c0_179, %c16_180] : memref<2x16x433xf32, #tpu.memory_space<vmem>>, vector<1x16x402xf32>
    %168 = vector.shape_cast %167 : vector<1x16x402xf32> to vector<16x402xf32>
    %c256 = arith.constant 256 : index
    %c0_181 = arith.constant 0 : index
    %169 = vector.load %arg7[%c256, %c0_181] : memref<512x804xf32, #tpu.memory_space<vmem>>, vector<16x402xf32>
    tpu.vector_store %arg7[%c256, %c0_181], %168 {strides = array<i32>} : memref<512x804xf32, #tpu.memory_space<vmem>>, vector<16x402xf32>,
    %c1_182 = arith.constant 1 : index
    %c0_183 = arith.constant 0 : index
    %c16_184 = arith.constant 16 : index
    %170 = vector.load %arg6[%c1_182, %c0_183, %c16_184] : memref<2x16x433xf32, #tpu.memory_space<vmem>>, vector<1x16x402xf32>
    %171 = vector.shape_cast %170 : vector<1x16x402xf32> to vector<16x402xf32>
    %c256_185 = arith.constant 256 : index
    %c402_186 = arith.constant 402 : index
    %172 = vector.load %arg7[%c256_185, %c402_186] : memref<512x804xf32, #tpu.memory_space<vmem>>, vector<16x402xf32>
    tpu.vector_store %arg7[%c256_185, %c402_186], %171 {strides = array<i32>} : memref<512x804xf32, #tpu.memory_space<vmem>>, vector<16x402xf32>,
    %c0_187 = arith.constant 0 : index
    %c0_188 = arith.constant 0 : index
    %c17 = arith.constant 17 : index
    %173 = vector.load %arg6[%c0_187, %c0_188, %c17] : memref<2x16x433xf32, #tpu.memory_space<vmem>>, vector<1x16x402xf32>
    %174 = vector.shape_cast %173 : vector<1x16x402xf32> to vector<16x402xf32>
    %c272 = arith.constant 272 : index
    %c0_189 = arith.constant 0 : index
    %175 = vector.load %arg7[%c272, %c0_189] : memref<512x804xf32, #tpu.memory_space<vmem>>, vector<16x402xf32>
    tpu.vector_store %arg7[%c272, %c0_189], %174 {strides = array<i32>} : memref<512x804xf32, #tpu.memory_space<vmem>>, vector<16x402xf32>,
    %c1_190 = arith.constant 1 : index
    %c0_191 = arith.constant 0 : index
    %c17_192 = arith.constant 17 : index
    %176 = vector.load %arg6[%c1_190, %c0_191, %c17_192] : memref<2x16x433xf32, #tpu.memory_space<vmem>>, vector<1x16x402xf32>
    %177 = vector.shape_cast %176 : vector<1x16x402xf32> to vector<16x402xf32>
    %c272_193 = arith.constant 272 : index
    %c402_194 = arith.constant 402 : index
    %178 = vector.load %arg7[%c272_193, %c402_194] : memref<512x804xf32, #tpu.memory_space<vmem>>, vector<16x402xf32>
    tpu.vector_store %arg7[%c272_193, %c402_194], %177 {strides = array<i32>} : memref<512x804xf32, #tpu.memory_space<vmem>>, vector<16x402xf32>,
    %c0_195 = arith.constant 0 : index
    %c0_196 = arith.constant 0 : index
    %c18 = arith.constant 18 : index
    %179 = vector.load %arg6[%c0_195, %c0_196, %c18] : memref<2x16x433xf32, #tpu.memory_space<vmem>>, vector<1x16x402xf32>
    %180 = vector.shape_cast %179 : vector<1x16x402xf32> to vector<16x402xf32>
    %c288 = arith.constant 288 : index
    %c0_197 = arith.constant 0 : index
    %181 = vector.load %arg7[%c288, %c0_197] : memref<512x804xf32, #tpu.memory_space<vmem>>, vector<16x402xf32>
    tpu.vector_store %arg7[%c288, %c0_197], %180 {strides = array<i32>} : memref<512x804xf32, #tpu.memory_space<vmem>>, vector<16x402xf32>,
    %c1_198 = arith.constant 1 : index
    %c0_199 = arith.constant 0 : index
    %c18_200 = arith.constant 18 : index
    %182 = vector.load %arg6[%c1_198, %c0_199, %c18_200] : memref<2x16x433xf32, #tpu.memory_space<vmem>>, vector<1x16x402xf32>
    %183 = vector.shape_cast %182 : vector<1x16x402xf32> to vector<16x402xf32>
    %c288_201 = arith.constant 288 : index
    %c402_202 = arith.constant 402 : index
    %184 = vector.load %arg7[%c288_201, %c402_202] : memref<512x804xf32, #tpu.memory_space<vmem>>, vector<16x402xf32>
    tpu.vector_store %arg7[%c288_201, %c402_202], %183 {strides = array<i32>} : memref<512x804xf32, #tpu.memory_space<vmem>>, vector<16x402xf32>,
    %c0_203 = arith.constant 0 : index
    %c0_204 = arith.constant 0 : index
    %c19 = arith.constant 19 : index
    %185 = vector.load %arg6[%c0_203, %c0_204, %c19] : memref<2x16x433xf32, #tpu.memory_space<vmem>>, vector<1x16x402xf32>
    %186 = vector.shape_cast %185 : vector<1x16x402xf32> to vector<16x402xf32>
    %c304 = arith.constant 304 : index
    %c0_205 = arith.constant 0 : index
    %187 = vector.load %arg7[%c304, %c0_205] : memref<512x804xf32, #tpu.memory_space<vmem>>, vector<16x402xf32>
    tpu.vector_store %arg7[%c304, %c0_205], %186 {strides = array<i32>} : memref<512x804xf32, #tpu.memory_space<vmem>>, vector<16x402xf32>,
    %c1_206 = arith.constant 1 : index
    %c0_207 = arith.constant 0 : index
    %c19_208 = arith.constant 19 : index
    %188 = vector.load %arg6[%c1_206, %c0_207, %c19_208] : memref<2x16x433xf32, #tpu.memory_space<vmem>>, vector<1x16x402xf32>
    %189 = vector.shape_cast %188 : vector<1x16x402xf32> to vector<16x402xf32>
    %c304_209 = arith.constant 304 : index
    %c402_210 = arith.constant 402 : index
    %190 = vector.load %arg7[%c304_209, %c402_210] : memref<512x804xf32, #tpu.memory_space<vmem>>, vector<16x402xf32>
    tpu.vector_store %arg7[%c304_209, %c402_210], %189 {strides = array<i32>} : memref<512x804xf32, #tpu.memory_space<vmem>>, vector<16x402xf32>,
    %c0_211 = arith.constant 0 : index
    %c0_212 = arith.constant 0 : index
    %c20 = arith.constant 20 : index
    %191 = vector.load %arg6[%c0_211, %c0_212, %c20] : memref<2x16x433xf32, #tpu.memory_space<vmem>>, vector<1x16x402xf32>
    %192 = vector.shape_cast %191 : vector<1x16x402xf32> to vector<16x402xf32>
    %c320 = arith.constant 320 : index
    %c0_213 = arith.constant 0 : index
    %193 = vector.load %arg7[%c320, %c0_213] : memref<512x804xf32, #tpu.memory_space<vmem>>, vector<16x402xf32>
    tpu.vector_store %arg7[%c320, %c0_213], %192 {strides = array<i32>} : memref<512x804xf32, #tpu.memory_space<vmem>>, vector<16x402xf32>,
    %c1_214 = arith.constant 1 : index
    %c0_215 = arith.constant 0 : index
    %c20_216 = arith.constant 20 : index
    %194 = vector.load %arg6[%c1_214, %c0_215, %c20_216] : memref<2x16x433xf32, #tpu.memory_space<vmem>>, vector<1x16x402xf32>
    %195 = vector.shape_cast %194 : vector<1x16x402xf32> to vector<16x402xf32>
    %c320_217 = arith.constant 320 : index
    %c402_218 = arith.constant 402 : index
    %196 = vector.load %arg7[%c320_217, %c402_218] : memref<512x804xf32, #tpu.memory_space<vmem>>, vector<16x402xf32>
    tpu.vector_store %arg7[%c320_217, %c402_218], %195 {strides = array<i32>} : memref<512x804xf32, #tpu.memory_space<vmem>>, vector<16x402xf32>,
    %c0_219 = arith.constant 0 : index
    %c0_220 = arith.constant 0 : index
    %c21 = arith.constant 21 : index
    %197 = vector.load %arg6[%c0_219, %c0_220, %c21] : memref<2x16x433xf32, #tpu.memory_space<vmem>>, vector<1x16x402xf32>
    %198 = vector.shape_cast %197 : vector<1x16x402xf32> to vector<16x402xf32>
    %c336 = arith.constant 336 : index
    %c0_221 = arith.constant 0 : index
    %199 = vector.load %arg7[%c336, %c0_221] : memref<512x804xf32, #tpu.memory_space<vmem>>, vector<16x402xf32>
    tpu.vector_store %arg7[%c336, %c0_221], %198 {strides = array<i32>} : memref<512x804xf32, #tpu.memory_space<vmem>>, vector<16x402xf32>,
    %c1_222 = arith.constant 1 : index
    %c0_223 = arith.constant 0 : index
    %c21_224 = arith.constant 21 : index
    %200 = vector.load %arg6[%c1_222, %c0_223, %c21_224] : memref<2x16x433xf32, #tpu.memory_space<vmem>>, vector<1x16x402xf32>
    %201 = vector.shape_cast %200 : vector<1x16x402xf32> to vector<16x402xf32>
    %c336_225 = arith.constant 336 : index
    %c402_226 = arith.constant 402 : index
    %202 = vector.load %arg7[%c336_225, %c402_226] : memref<512x804xf32, #tpu.memory_space<vmem>>, vector<16x402xf32>
    tpu.vector_store %arg7[%c336_225, %c402_226], %201 {strides = array<i32>} : memref<512x804xf32, #tpu.memory_space<vmem>>, vector<16x402xf32>,
    %c0_227 = arith.constant 0 : index
    %c0_228 = arith.constant 0 : index
    %c22 = arith.constant 22 : index
    %203 = vector.load %arg6[%c0_227, %c0_228, %c22] : memref<2x16x433xf32, #tpu.memory_space<vmem>>, vector<1x16x402xf32>
    %204 = vector.shape_cast %203 : vector<1x16x402xf32> to vector<16x402xf32>
    %c352 = arith.constant 352 : index
    %c0_229 = arith.constant 0 : index
    %205 = vector.load %arg7[%c352, %c0_229] : memref<512x804xf32, #tpu.memory_space<vmem>>, vector<16x402xf32>
    tpu.vector_store %arg7[%c352, %c0_229], %204 {strides = array<i32>} : memref<512x804xf32, #tpu.memory_space<vmem>>, vector<16x402xf32>,
    %c1_230 = arith.constant 1 : index
    %c0_231 = arith.constant 0 : index
    %c22_232 = arith.constant 22 : index
    %206 = vector.load %arg6[%c1_230, %c0_231, %c22_232] : memref<2x16x433xf32, #tpu.memory_space<vmem>>, vector<1x16x402xf32>
    %207 = vector.shape_cast %206 : vector<1x16x402xf32> to vector<16x402xf32>
    %c352_233 = arith.constant 352 : index
    %c402_234 = arith.constant 402 : index
    %208 = vector.load %arg7[%c352_233, %c402_234] : memref<512x804xf32, #tpu.memory_space<vmem>>, vector<16x402xf32>
    tpu.vector_store %arg7[%c352_233, %c402_234], %207 {strides = array<i32>} : memref<512x804xf32, #tpu.memory_space<vmem>>, vector<16x402xf32>,
    %c0_235 = arith.constant 0 : index
    %c0_236 = arith.constant 0 : index
    %c23 = arith.constant 23 : index
    %209 = vector.load %arg6[%c0_235, %c0_236, %c23] : memref<2x16x433xf32, #tpu.memory_space<vmem>>, vector<1x16x402xf32>
    %210 = vector.shape_cast %209 : vector<1x16x402xf32> to vector<16x402xf32>
    %c368 = arith.constant 368 : index
    %c0_237 = arith.constant 0 : index
    %211 = vector.load %arg7[%c368, %c0_237] : memref<512x804xf32, #tpu.memory_space<vmem>>, vector<16x402xf32>
    tpu.vector_store %arg7[%c368, %c0_237], %210 {strides = array<i32>} : memref<512x804xf32, #tpu.memory_space<vmem>>, vector<16x402xf32>,
    %c1_238 = arith.constant 1 : index
    %c0_239 = arith.constant 0 : index
    %c23_240 = arith.constant 23 : index
    %212 = vector.load %arg6[%c1_238, %c0_239, %c23_240] : memref<2x16x433xf32, #tpu.memory_space<vmem>>, vector<1x16x402xf32>
    %213 = vector.shape_cast %212 : vector<1x16x402xf32> to vector<16x402xf32>
    %c368_241 = arith.constant 368 : index
    %c402_242 = arith.constant 402 : index
    %214 = vector.load %arg7[%c368_241, %c402_242] : memref<512x804xf32, #tpu.memory_space<vmem>>, vector<16x402xf32>
    tpu.vector_store %arg7[%c368_241, %c402_242], %213 {strides = array<i32>} : memref<512x804xf32, #tpu.memory_space<vmem>>, vector<16x402xf32>,
    %c0_243 = arith.constant 0 : index
    %c0_244 = arith.constant 0 : index
    %c24 = arith.constant 24 : index
    %215 = vector.load %arg6[%c0_243, %c0_244, %c24] : memref<2x16x433xf32, #tpu.memory_space<vmem>>, vector<1x16x402xf32>
    %216 = vector.shape_cast %215 : vector<1x16x402xf32> to vector<16x402xf32>
    %c384 = arith.constant 384 : index
    %c0_245 = arith.constant 0 : index
    %217 = vector.load %arg7[%c384, %c0_245] : memref<512x804xf32, #tpu.memory_space<vmem>>, vector<16x402xf32>
    tpu.vector_store %arg7[%c384, %c0_245], %216 {strides = array<i32>} : memref<512x804xf32, #tpu.memory_space<vmem>>, vector<16x402xf32>,
    %c1_246 = arith.constant 1 : index
    %c0_247 = arith.constant 0 : index
    %c24_248 = arith.constant 24 : index
    %218 = vector.load %arg6[%c1_246, %c0_247, %c24_248] : memref<2x16x433xf32, #tpu.memory_space<vmem>>, vector<1x16x402xf32>
    %219 = vector.shape_cast %218 : vector<1x16x402xf32> to vector<16x402xf32>
    %c384_249 = arith.constant 384 : index
    %c402_250 = arith.constant 402 : index
    %220 = vector.load %arg7[%c384_249, %c402_250] : memref<512x804xf32, #tpu.memory_space<vmem>>, vector<16x402xf32>
    tpu.vector_store %arg7[%c384_249, %c402_250], %219 {strides = array<i32>} : memref<512x804xf32, #tpu.memory_space<vmem>>, vector<16x402xf32>,
    %c0_251 = arith.constant 0 : index
    %c0_252 = arith.constant 0 : index
    %c25 = arith.constant 25 : index
    %221 = vector.load %arg6[%c0_251, %c0_252, %c25] : memref<2x16x433xf32, #tpu.memory_space<vmem>>, vector<1x16x402xf32>
    %222 = vector.shape_cast %221 : vector<1x16x402xf32> to vector<16x402xf32>
    %c400 = arith.constant 400 : index
    %c0_253 = arith.constant 0 : index
    %223 = vector.load %arg7[%c400, %c0_253] : memref<512x804xf32, #tpu.memory_space<vmem>>, vector<16x402xf32>
    tpu.vector_store %arg7[%c400, %c0_253], %222 {strides = array<i32>} : memref<512x804xf32, #tpu.memory_space<vmem>>, vector<16x402xf32>,
    %c1_254 = arith.constant 1 : index
    %c0_255 = arith.constant 0 : index
    %c25_256 = arith.constant 25 : index
    %224 = vector.load %arg6[%c1_254, %c0_255, %c25_256] : memref<2x16x433xf32, #tpu.memory_space<vmem>>, vector<1x16x402xf32>
    %225 = vector.shape_cast %224 : vector<1x16x402xf32> to vector<16x402xf32>
    %c400_257 = arith.constant 400 : index
    %c402_258 = arith.constant 402 : index
    %226 = vector.load %arg7[%c400_257, %c402_258] : memref<512x804xf32, #tpu.memory_space<vmem>>, vector<16x402xf32>
    tpu.vector_store %arg7[%c400_257, %c402_258], %225 {strides = array<i32>} : memref<512x804xf32, #tpu.memory_space<vmem>>, vector<16x402xf32>,
    %c0_259 = arith.constant 0 : index
    %c0_260 = arith.constant 0 : index
    %c26 = arith.constant 26 : index
    %227 = vector.load %arg6[%c0_259, %c0_260, %c26] : memref<2x16x433xf32, #tpu.memory_space<vmem>>, vector<1x16x402xf32>
    %228 = vector.shape_cast %227 : vector<1x16x402xf32> to vector<16x402xf32>
    %c416_261 = arith.constant 416 : index
    %c0_262 = arith.constant 0 : index
    %229 = vector.load %arg7[%c416_261, %c0_262] : memref<512x804xf32, #tpu.memory_space<vmem>>, vector<16x402xf32>
    tpu.vector_store %arg7[%c416_261, %c0_262], %228 {strides = array<i32>} : memref<512x804xf32, #tpu.memory_space<vmem>>, vector<16x402xf32>,
    %c1_263 = arith.constant 1 : index
    %c0_264 = arith.constant 0 : index
    %c26_265 = arith.constant 26 : index
    %230 = vector.load %arg6[%c1_263, %c0_264, %c26_265] : memref<2x16x433xf32, #tpu.memory_space<vmem>>, vector<1x16x402xf32>
    %231 = vector.shape_cast %230 : vector<1x16x402xf32> to vector<16x402xf32>
    %c416_266 = arith.constant 416 : index
    %c402_267 = arith.constant 402 : index
    %232 = vector.load %arg7[%c416_266, %c402_267] : memref<512x804xf32, #tpu.memory_space<vmem>>, vector<16x402xf32>
    tpu.vector_store %arg7[%c416_266, %c402_267], %231 {strides = array<i32>} : memref<512x804xf32, #tpu.memory_space<vmem>>, vector<16x402xf32>,
    %c0_268 = arith.constant 0 : index
    %c0_269 = arith.constant 0 : index
    %c27 = arith.constant 27 : index
    %233 = vector.load %arg6[%c0_268, %c0_269, %c27] : memref<2x16x433xf32, #tpu.memory_space<vmem>>, vector<1x16x402xf32>
    %234 = vector.shape_cast %233 : vector<1x16x402xf32> to vector<16x402xf32>
    %c432 = arith.constant 432 : index
    %c0_270 = arith.constant 0 : index
    %235 = vector.load %arg7[%c432, %c0_270] : memref<512x804xf32, #tpu.memory_space<vmem>>, vector<16x402xf32>
    tpu.vector_store %arg7[%c432, %c0_270], %234 {strides = array<i32>} : memref<512x804xf32, #tpu.memory_space<vmem>>, vector<16x402xf32>,
    %c1_271 = arith.constant 1 : index
    %c0_272 = arith.constant 0 : index
    %c27_273 = arith.constant 27 : index
    %236 = vector.load %arg6[%c1_271, %c0_272, %c27_273] : memref<2x16x433xf32, #tpu.memory_space<vmem>>, vector<1x16x402xf32>
    %237 = vector.shape_cast %236 : vector<1x16x402xf32> to vector<16x402xf32>
    %c432_274 = arith.constant 432 : index
    %c402_275 = arith.constant 402 : index
    %238 = vector.load %arg7[%c432_274, %c402_275] : memref<512x804xf32, #tpu.memory_space<vmem>>, vector<16x402xf32>
    tpu.vector_store %arg7[%c432_274, %c402_275], %237 {strides = array<i32>} : memref<512x804xf32, #tpu.memory_space<vmem>>, vector<16x402xf32>,
    %c0_276 = arith.constant 0 : index
    %c0_277 = arith.constant 0 : index
    %c28 = arith.constant 28 : index
    %239 = vector.load %arg6[%c0_276, %c0_277, %c28] : memref<2x16x433xf32, #tpu.memory_space<vmem>>, vector<1x16x402xf32>
    %240 = vector.shape_cast %239 : vector<1x16x402xf32> to vector<16x402xf32>
    %c448 = arith.constant 448 : index
    %c0_278 = arith.constant 0 : index
    %241 = vector.load %arg7[%c448, %c0_278] : memref<512x804xf32, #tpu.memory_space<vmem>>, vector<16x402xf32>
    tpu.vector_store %arg7[%c448, %c0_278], %240 {strides = array<i32>} : memref<512x804xf32, #tpu.memory_space<vmem>>, vector<16x402xf32>,
    %c1_279 = arith.constant 1 : index
    %c0_280 = arith.constant 0 : index
    %c28_281 = arith.constant 28 : index
    %242 = vector.load %arg6[%c1_279, %c0_280, %c28_281] : memref<2x16x433xf32, #tpu.memory_space<vmem>>, vector<1x16x402xf32>
    %243 = vector.shape_cast %242 : vector<1x16x402xf32> to vector<16x402xf32>
    %c448_282 = arith.constant 448 : index
    %c402_283 = arith.constant 402 : index
    %244 = vector.load %arg7[%c448_282, %c402_283] : memref<512x804xf32, #tpu.memory_space<vmem>>, vector<16x402xf32>
    tpu.vector_store %arg7[%c448_282, %c402_283], %243 {strides = array<i32>} : memref<512x804xf32, #tpu.memory_space<vmem>>, vector<16x402xf32>,
    %c0_284 = arith.constant 0 : index
    %c0_285 = arith.constant 0 : index
    %c29 = arith.constant 29 : index
    %245 = vector.load %arg6[%c0_284, %c0_285, %c29] : memref<2x16x433xf32, #tpu.memory_space<vmem>>, vector<1x16x402xf32>
    %246 = vector.shape_cast %245 : vector<1x16x402xf32> to vector<16x402xf32>
    %c464 = arith.constant 464 : index
    %c0_286 = arith.constant 0 : index
    %247 = vector.load %arg7[%c464, %c0_286] : memref<512x804xf32, #tpu.memory_space<vmem>>, vector<16x402xf32>
    tpu.vector_store %arg7[%c464, %c0_286], %246 {strides = array<i32>} : memref<512x804xf32, #tpu.memory_space<vmem>>, vector<16x402xf32>,
    %c1_287 = arith.constant 1 : index
    %c0_288 = arith.constant 0 : index
    %c29_289 = arith.constant 29 : index
    %248 = vector.load %arg6[%c1_287, %c0_288, %c29_289] : memref<2x16x433xf32, #tpu.memory_space<vmem>>, vector<1x16x402xf32>
    %249 = vector.shape_cast %248 : vector<1x16x402xf32> to vector<16x402xf32>
    %c464_290 = arith.constant 464 : index
    %c402_291 = arith.constant 402 : index
    %250 = vector.load %arg7[%c464_290, %c402_291] : memref<512x804xf32, #tpu.memory_space<vmem>>, vector<16x402xf32>
    tpu.vector_store %arg7[%c464_290, %c402_291], %249 {strides = array<i32>} : memref<512x804xf32, #tpu.memory_space<vmem>>, vector<16x402xf32>,
    %c0_292 = arith.constant 0 : index
    %c0_293 = arith.constant 0 : index
    %c30 = arith.constant 30 : index
    %251 = vector.load %arg6[%c0_292, %c0_293, %c30] : memref<2x16x433xf32, #tpu.memory_space<vmem>>, vector<1x16x402xf32>
    %252 = vector.shape_cast %251 : vector<1x16x402xf32> to vector<16x402xf32>
    %c480 = arith.constant 480 : index
    %c0_294 = arith.constant 0 : index
    %253 = vector.load %arg7[%c480, %c0_294] : memref<512x804xf32, #tpu.memory_space<vmem>>, vector<16x402xf32>
    tpu.vector_store %arg7[%c480, %c0_294], %252 {strides = array<i32>} : memref<512x804xf32, #tpu.memory_space<vmem>>, vector<16x402xf32>,
    %c1_295 = arith.constant 1 : index
    %c0_296 = arith.constant 0 : index
    %c30_297 = arith.constant 30 : index
    %254 = vector.load %arg6[%c1_295, %c0_296, %c30_297] : memref<2x16x433xf32, #tpu.memory_space<vmem>>, vector<1x16x402xf32>
    %255 = vector.shape_cast %254 : vector<1x16x402xf32> to vector<16x402xf32>
    %c480_298 = arith.constant 480 : index
    %c402_299 = arith.constant 402 : index
    %256 = vector.load %arg7[%c480_298, %c402_299] : memref<512x804xf32, #tpu.memory_space<vmem>>, vector<16x402xf32>
    tpu.vector_store %arg7[%c480_298, %c402_299], %255 {strides = array<i32>} : memref<512x804xf32, #tpu.memory_space<vmem>>, vector<16x402xf32>,
    %c0_300 = arith.constant 0 : index
    %c0_301 = arith.constant 0 : index
    %c31 = arith.constant 31 : index
    %257 = vector.load %arg6[%c0_300, %c0_301, %c31] : memref<2x16x433xf32, #tpu.memory_space<vmem>>, vector<1x16x402xf32>
    %258 = vector.shape_cast %257 : vector<1x16x402xf32> to vector<16x402xf32>
    %c496 = arith.constant 496 : index
    %c0_302 = arith.constant 0 : index
    %259 = vector.load %arg7[%c496, %c0_302] : memref<512x804xf32, #tpu.memory_space<vmem>>, vector<16x402xf32>
    tpu.vector_store %arg7[%c496, %c0_302], %258 {strides = array<i32>} : memref<512x804xf32, #tpu.memory_space<vmem>>, vector<16x402xf32>,
    %c1_303 = arith.constant 1 : index
    %c0_304 = arith.constant 0 : index
    %c31_305 = arith.constant 31 : index
    %260 = vector.load %arg6[%c1_303, %c0_304, %c31_305] : memref<2x16x433xf32, #tpu.memory_space<vmem>>, vector<1x16x402xf32>
    %261 = vector.shape_cast %260 : vector<1x16x402xf32> to vector<16x402xf32>
    %c496_306 = arith.constant 496 : index
    %c402_307 = arith.constant 402 : index
    %262 = vector.load %arg7[%c496_306, %c402_307] : memref<512x804xf32, #tpu.memory_space<vmem>>, vector<16x402xf32>
    tpu.vector_store %arg7[%c496_306, %c402_307], %261 {strides = array<i32>} : memref<512x804xf32, #tpu.memory_space<vmem>>, vector<16x402xf32>,
    %c0_308 = arith.constant 0 : index
    %c0_309 = arith.constant 0 : index
    %263 = vector.load %arg7[%c0_308, %c0_309] : memref<512x804xf32, #tpu.memory_space<vmem>>, vector<512x804xf32>
    %cst_310 = arith.constant dense<0.000000e+00> : vector<64x804xf32>
    %264 = tpu.matmul %9, %263, %cst_310 {dimension_numbers = #tpu.dot_dimension_numbers<[1], [0], [0], [1], [0, 0, 1, 1], [], []>} : vector<64x512xf32>, vector<512x804xf32>, vector<64x804xf32> -> vector<64x804xf32>
    %265 = vector.broadcast %11 : vector<64x1xf32> to vector<64x804xf32>
    %266 = arith.addf %264, %265 : vector<64x804xf32>
    %cst_311 = arith.constant 0.000000e+00 : f32
    %267 = vector.broadcast %cst_311 : f32 to vector<64x804xf32>
    %268 = arith.cmpf ogt, %266, %267 : vector<64x804xf32>
    %cst_312 = arith.constant 0.000000e+00 : f32
    %269 = vector.broadcast %cst_312 : f32 to vector<64x804xf32>
    %270 = arith.minimumf %266, %269 : vector<64x804xf32>
    %271 = math.exp %270 : vector<64x804xf32>
    %cst_313 = arith.constant 1.000000e+00 : f32
    %272 = vector.broadcast %cst_313 : f32 to vector<64x804xf32>
    %273 = arith.subf %271, %272 : vector<64x804xf32>
    %274 = arith.select %268, %266, %273 : vector<64x804xi1>, vector<64x804xf32>
    %c0_314 = arith.constant 0 : index
    %c0_315 = arith.constant 0 : index
    %275 = vector.load %arg8[%c0_314, %c0_315] : memref<64x804xf32, #tpu.memory_space<vmem>>, vector<64x804xf32>
    tpu.vector_store %arg8[%c0_314, %c0_315], %274 {strides = array<i32>} : memref<64x804xf32, #tpu.memory_space<vmem>>, vector<64x804xf32>,
    %cst_316 = arith.constant dense<0.000000e+00> : vector<64xf32>
    %276 = vector.multi_reduction <add>, %274, %cst_316 [1] : vector<64x804xf32> to vector<64xf32>
    %277 = vector.shape_cast %276 : vector<64xf32> to vector<64x1xf32>
    %278 = arith.mulf %274, %274 : vector<64x804xf32>
    %cst_317 = arith.constant dense<0.000000e+00> : vector<64xf32>
    %279 = vector.multi_reduction <add>, %278, %cst_317 [1] : vector<64x804xf32> to vector<64xf32>
    %280 = vector.shape_cast %279 : vector<64xf32> to vector<64x1xf32>
    %281 = tpu.concatenate %277, %280 in 1 : vector<64x1xf32>, vector<64x1xf32> -> vector<64x2xf32>
    %cst_318 = arith.constant dense<0.000000e+00> : vector<64x2xf32>
    %282 = tpu.matmul %10, %281, %cst_318 {dimension_numbers = #tpu.dot_dimension_numbers<[1], [0], [0], [1], [0, 0, 1, 1], [], []>} : vector<64x64xf32>, vector<64x2xf32>, vector<64x2xf32> -> vector<64x2xf32>
    %cst_319 = arith.constant 7.77363166E-5 : f32
    %283 = vector.broadcast %cst_319 : f32 to vector<64x2xf32>
    %284 = arith.mulf %282, %283 : vector<64x2xf32>
    %285 = vector.extract_strided_slice %284 {offsets = [0, 0], sizes = [64, 1], strides = [1, 1]} : vector<64x2xf32> to vector<64x1xf32>
    %286 = vector.extract_strided_slice %284 {offsets = [0, 1], sizes = [64, 1], strides = [1, 1]} : vector<64x2xf32> to vector<64x1xf32>
    %287 = arith.mulf %285, %285 : vector<64x1xf32>
    %288 = arith.subf %286, %287 : vector<64x1xf32>
    %cst_320 = arith.constant 0.000000e+00 : f32
    %289 = vector.broadcast %cst_320 : f32 to vector<64x1xf32>
    %290 = arith.maximumf %288, %289 : vector<64x1xf32>
    %291 = math.rsqrt %290 : vector<64x1xf32>
    %292 = arith.mulf %12, %291 : vector<64x1xf32>
    %293 = arith.mulf %285, %292 : vector<64x1xf32>
    %294 = arith.subf %13, %293 : vector<64x1xf32>
    %c0_321 = arith.constant 0 : index
    %c0_322 = arith.constant 0 : index
    %295 = vector.load %arg8[%c0_321, %c0_322] : memref<64x804xf32, #tpu.memory_space<vmem>>, vector<32x804xf32>
    %296 = vector.extract_strided_slice %292 {offsets = [0, 0], sizes = [32, 1], strides = [1, 1]} : vector<64x1xf32> to vector<32x1xf32>
    %297 = vector.broadcast %296 : vector<32x1xf32> to vector<32x804xf32>
    %298 = arith.mulf %295, %297 : vector<32x804xf32>
    %299 = vector.extract_strided_slice %294 {offsets = [0, 0], sizes = [32, 1], strides = [1, 1]} : vector<64x1xf32> to vector<32x1xf32>
    %300 = vector.broadcast %299 : vector<32x1xf32> to vector<32x804xf32>
    %301 = arith.addf %298, %300 : vector<32x804xf32>
    %302 = vector.extract_strided_slice %301 {offsets = [0, 0], sizes = [16, 804], strides = [1, 1]} : vector<32x804xf32> to vector<16x804xf32>
    %303 = vector.extract_strided_slice %301 {offsets = [16, 0], sizes = [16, 804], strides = [1, 1]} : vector<32x804xf32> to vector<16x804xf32>
    %304 = arith.maximumf %302, %303 : vector<16x804xf32>
    %305 = vector.extract_strided_slice %304 {offsets = [0, 0], sizes = [16, 803], strides = [1, 1]} : vector<16x804xf32> to vector<16x803xf32>
    %306 = vector.extract_strided_slice %304 {offsets = [0, 1], sizes = [16, 803], strides = [1, 1]} : vector<16x804xf32> to vector<16x803xf32>
    %307 = arith.maximumf %305, %306 : vector<16x803xf32>
    %c0_323 = arith.constant 0 : index
    %c0_324 = arith.constant 0 : index
    %308 = vector.load %arg3[%c0_323, %c0_324] : memref<803x208xf32, #tpu.memory_space<vmem>>, vector<803x208xf32>
    %cst_325 = arith.constant dense<0.000000e+00> : vector<16x208xf32>
    %309 = tpu.matmul %307, %308, %cst_325 {dimension_numbers = #tpu.dot_dimension_numbers<[1], [0], [0], [1], [0, 0, 1, 1], [], []>} : vector<16x803xf32>, vector<803x208xf32>, vector<16x208xf32> -> vector<16x208xf32>
    %c0_326 = arith.constant 0 : index
    %c0_327 = arith.constant 0 : index
    %310 = vector.load %arg9[%c0_326, %c0_327] : memref<16x208xf32, #tpu.memory_space<vmem>>, vector<16x208xf32>
    tpu.vector_store %arg9[%c0_326, %c0_327], %309 {strides = array<i32>} : memref<16x208xf32, #tpu.memory_space<vmem>>, vector<16x208xf32>,
    %c0_328 = arith.constant 0 : index
    %c0_329 = arith.constant 0 : index
    %311 = vector.load %arg9[%c0_328, %c0_329] : memref<16x208xf32, #tpu.memory_space<vmem>>, vector<16x101xf32>
    %c0_330 = arith.constant 0 : index
    %c0_331 = arith.constant 0 : index
    %312 = vector.load %arg10[%c0_330, %c0_331] : memref<64x202xf32, #tpu.memory_space<vmem>>, vector<16x101xf32>
    tpu.vector_store %arg10[%c0_330, %c0_331], %311 {strides = array<i32>} : memref<64x202xf32, #tpu.memory_space<vmem>>, vector<16x101xf32>,
    %c0_332 = arith.constant 0 : index
    %c104 = arith.constant 104 : index
    %313 = vector.load %arg9[%c0_332, %c104] : memref<16x208xf32, #tpu.memory_space<vmem>>, vector<16x101xf32>
    %c0_333 = arith.constant 0 : index
    %c101 = arith.constant 101 : index
    %314 = vector.load %arg10[%c0_333, %c101] : memref<64x202xf32, #tpu.memory_space<vmem>>, vector<16x101xf32>
    tpu.vector_store %arg10[%c0_333, %c101], %313 {strides = array<i32>} : memref<64x202xf32, #tpu.memory_space<vmem>>, vector<16x101xf32>,
    %c0_334 = arith.constant 0 : index
    %c1_335 = arith.constant 1 : index
    %315 = vector.load %arg9[%c0_334, %c1_335] : memref<16x208xf32, #tpu.memory_space<vmem>>, vector<16x101xf32>
    %c16_336 = arith.constant 16 : index
    %c0_337 = arith.constant 0 : index
    %316 = vector.load %arg10[%c16_336, %c0_337] : memref<64x202xf32, #tpu.memory_space<vmem>>, vector<16x101xf32>
    tpu.vector_store %arg10[%c16_336, %c0_337], %315 {strides = array<i32>} : memref<64x202xf32, #tpu.memory_space<vmem>>, vector<16x101xf32>,
    %c0_338 = arith.constant 0 : index
    %c105 = arith.constant 105 : index
    %317 = vector.load %arg9[%c0_338, %c105] : memref<16x208xf32, #tpu.memory_space<vmem>>, vector<16x101xf32>
    %c16_339 = arith.constant 16 : index
    %c101_340 = arith.constant 101 : index
    %318 = vector.load %arg10[%c16_339, %c101_340] : memref<64x202xf32, #tpu.memory_space<vmem>>, vector<16x101xf32>
    tpu.vector_store %arg10[%c16_339, %c101_340], %317 {strides = array<i32>} : memref<64x202xf32, #tpu.memory_space<vmem>>, vector<16x101xf32>,
    %c0_341 = arith.constant 0 : index
    %c2_342 = arith.constant 2 : index
    %319 = vector.load %arg9[%c0_341, %c2_342] : memref<16x208xf32, #tpu.memory_space<vmem>>, vector<16x101xf32>
    %c32_343 = arith.constant 32 : index
    %c0_344 = arith.constant 0 : index
    %320 = vector.load %arg10[%c32_343, %c0_344] : memref<64x202xf32, #tpu.memory_space<vmem>>, vector<16x101xf32>
    tpu.vector_store %arg10[%c32_343, %c0_344], %319 {strides = array<i32>} : memref<64x202xf32, #tpu.memory_space<vmem>>, vector<16x101xf32>,
    %c0_345 = arith.constant 0 : index
    %c106 = arith.constant 106 : index
    %321 = vector.load %arg9[%c0_345, %c106] : memref<16x208xf32, #tpu.memory_space<vmem>>, vector<16x101xf32>
    %c32_346 = arith.constant 32 : index
    %c101_347 = arith.constant 101 : index
    %322 = vector.load %arg10[%c32_346, %c101_347] : memref<64x202xf32, #tpu.memory_space<vmem>>, vector<16x101xf32>
    tpu.vector_store %arg10[%c32_346, %c101_347], %321 {strides = array<i32>} : memref<64x202xf32, #tpu.memory_space<vmem>>, vector<16x101xf32>,
    %c0_348 = arith.constant 0 : index
    %c3_349 = arith.constant 3 : index
    %323 = vector.load %arg9[%c0_348, %c3_349] : memref<16x208xf32, #tpu.memory_space<vmem>>, vector<16x101xf32>
    %c48_350 = arith.constant 48 : index
    %c0_351 = arith.constant 0 : index
    %324 = vector.load %arg10[%c48_350, %c0_351] : memref<64x202xf32, #tpu.memory_space<vmem>>, vector<16x101xf32>
    tpu.vector_store %arg10[%c48_350, %c0_351], %323 {strides = array<i32>} : memref<64x202xf32, #tpu.memory_space<vmem>>, vector<16x101xf32>,
    %c0_352 = arith.constant 0 : index
    %c107 = arith.constant 107 : index
    %325 = vector.load %arg9[%c0_352, %c107] : memref<16x208xf32, #tpu.memory_space<vmem>>, vector<16x101xf32>
    %c48_353 = arith.constant 48 : index
    %c101_354 = arith.constant 101 : index
    %326 = vector.load %arg10[%c48_353, %c101_354] : memref<64x202xf32, #tpu.memory_space<vmem>>, vector<16x101xf32>
    tpu.vector_store %arg10[%c48_353, %c101_354], %325 {strides = array<i32>} : memref<64x202xf32, #tpu.memory_space<vmem>>, vector<16x101xf32>,
    %c0_355 = arith.constant 0 : index
    %c0_356 = arith.constant 0 : index
    %327 = vector.load %arg10[%c0_355, %c0_356] : memref<64x202xf32, #tpu.memory_space<vmem>>, vector<64x202xf32>
    %cst_357 = arith.constant dense<0.000000e+00> : vector<16x202xf32>
    %328 = tpu.matmul %2, %327, %cst_357 {dimension_numbers = #tpu.dot_dimension_numbers<[1], [0], [0], [1], [0, 0, 1, 1], [], []>} : vector<16x64xf32>, vector<64x202xf32>, vector<16x202xf32> -> vector<16x202xf32>
    %329 = vector.broadcast %6 : vector<16x1xf32> to vector<16x202xf32>
    %330 = arith.addf %328, %329 : vector<16x202xf32>
    %cst_358 = arith.constant 0.000000e+00 : f32
    %331 = vector.broadcast %cst_358 : f32 to vector<16x202xf32>
    %332 = arith.cmpf ogt, %330, %331 : vector<16x202xf32>
    %cst_359 = arith.constant 0.000000e+00 : f32
    %333 = vector.broadcast %cst_359 : f32 to vector<16x202xf32>
    %334 = arith.minimumf %330, %333 : vector<16x202xf32>
    %335 = math.exp %334 : vector<16x202xf32>
    %cst_360 = arith.constant 1.000000e+00 : f32
    %336 = vector.broadcast %cst_360 : f32 to vector<16x202xf32>
    %337 = arith.subf %335, %336 : vector<16x202xf32>
    %338 = arith.select %332, %330, %337 : vector<16x202xi1>, vector<16x202xf32>
    %cst_361 = arith.constant dense<0.000000e+00> : vector<16xf32>
    %339 = vector.multi_reduction <add>, %338, %cst_361 [1] : vector<16x202xf32> to vector<16xf32>
    %340 = vector.shape_cast %339 : vector<16xf32> to vector<16x1xf32>
    %341 = arith.mulf %338, %338 : vector<16x202xf32>
    %cst_362 = arith.constant dense<0.000000e+00> : vector<16xf32>
    %342 = vector.multi_reduction <add>, %341, %cst_362 [1] : vector<16x202xf32> to vector<16xf32>
    %343 = vector.shape_cast %342 : vector<16xf32> to vector<16x1xf32>
    %344 = tpu.concatenate %340, %343 in 1 : vector<16x1xf32>, vector<16x1xf32> -> vector<16x2xf32>
    %cst_363 = arith.constant dense<0.000000e+00> : vector<16x2xf32>
    %345 = tpu.matmul %1, %344, %cst_363 {dimension_numbers = #tpu.dot_dimension_numbers<[1], [0], [0], [1], [0, 0, 1, 1], [], []>} : vector<16x16xf32>, vector<16x2xf32>, vector<16x2xf32> -> vector<16x2xf32>
    %cst_364 = arith.constant 0.00123762374 : f32
    %346 = vector.broadcast %cst_364 : f32 to vector<16x2xf32>
    %347 = arith.mulf %345, %346 : vector<16x2xf32>
    %348 = vector.extract_strided_slice %347 {offsets = [0, 0], sizes = [16, 1], strides = [1, 1]} : vector<16x2xf32> to vector<16x1xf32>
    %349 = vector.extract_strided_slice %347 {offsets = [0, 1], sizes = [16, 1], strides = [1, 1]} : vector<16x2xf32> to vector<16x1xf32>
    %350 = arith.mulf %348, %348 : vector<16x1xf32>
    %351 = arith.subf %349, %350 : vector<16x1xf32>
    %cst_365 = arith.constant 0.000000e+00 : f32
    %352 = vector.broadcast %cst_365 : f32 to vector<16x1xf32>
    %353 = arith.maximumf %351, %352 : vector<16x1xf32>
    %354 = math.rsqrt %353 : vector<16x1xf32>
    %355 = arith.mulf %7, %354 : vector<16x1xf32>
    %356 = arith.mulf %348, %355 : vector<16x1xf32>
    %357 = arith.subf %8, %356 : vector<16x1xf32>
    %358 = vector.broadcast %355 : vector<16x1xf32> to vector<16x202xf32>
    %359 = arith.mulf %338, %358 : vector<16x202xf32>
    %360 = vector.broadcast %357 : vector<16x1xf32> to vector<16x202xf32>
    %361 = arith.addf %359, %360 : vector<16x202xf32>
    %362 = vector.extract_strided_slice %361 {offsets = [0, 0], sizes = [8, 202], strides = [1, 1]} : vector<16x202xf32> to vector<8x202xf32>
    %363 = vector.extract_strided_slice %361 {offsets = [8, 0], sizes = [8, 202], strides = [1, 1]} : vector<16x202xf32> to vector<8x202xf32>
    %364 = arith.maximumf %362, %363 : vector<8x202xf32>
    %365 = vector.extract_strided_slice %364 {offsets = [0, 0], sizes = [8, 199], strides = [1, 1]} : vector<8x202xf32> to vector<8x199xf32>
    %366 = vector.extract_strided_slice %364 {offsets = [0, 1], sizes = [8, 199], strides = [1, 1]} : vector<8x202xf32> to vector<8x199xf32>
    %367 = arith.maximumf %365, %366 : vector<8x199xf32>
    %368 = vector.extract_strided_slice %364 {offsets = [0, 2], sizes = [8, 199], strides = [1, 1]} : vector<8x202xf32> to vector<8x199xf32>
    %369 = vector.extract_strided_slice %364 {offsets = [0, 3], sizes = [8, 199], strides = [1, 1]} : vector<8x202xf32> to vector<8x199xf32>
    %370 = arith.maximumf %368, %369 : vector<8x199xf32>
    %371 = arith.maximumf %367, %370 : vector<8x199xf32>
    %c0_366 = arith.constant 0 : index
    %c0_367 = arith.constant 0 : index
    %372 = vector.load %arg4[%c0_366, %c0_367] : memref<199x50xf32, #tpu.memory_space<vmem>>, vector<199x50xf32>
    %cst_368 = arith.constant dense<0.000000e+00> : vector<8x50xf32>
    %373 = tpu.matmul %371, %372, %cst_368 {dimension_numbers = #tpu.dot_dimension_numbers<[1], [0], [0], [1], [0, 0, 1, 1], [], []>} : vector<8x199xf32>, vector<199x50xf32>, vector<8x50xf32> -> vector<8x50xf32>
    %c0_369 = arith.constant 0 : index
    %c0_370 = arith.constant 0 : index
    %374 = vector.load %arg5[%c0_369, %c0_370] : memref<8x50xf32, #tpu.memory_space<vmem>>, vector<8x50xf32>
    tpu.vector_store %arg5[%c0_369, %c0_370], %373 {strides = array<i32>} : memref<8x50xf32, #tpu.memory_space<vmem>>, vector<8x50xf32>,
    return
  }
}

</mosaic_0001>

<llo_original>
// kernel: eeg_net_forward.1
$region0: #{eeg_net_forward.1}
  #allocation0 [shape = 'u32[]', space=smem, size = 0x4, offset = 0x4, fixed_abs, tag = 'smem constant byte address 0x4 - core index']
  #allocation1 [shape = 'u32[72,128]{1,0:T(1,128)}', space=vmem, size = 0x9000, scoped, tag = 'internal scratch']
  #allocation2 [shape = 'f32[2,16,433]{2,1,0:T(8,128)}', space=vmem, size = 0x10000, scoped, tag = 'scratch operand']
  #allocation3 [shape = 'f32[512,804]{1,0:T(8,128)}', space=vmem, size = 0x1c0000, scoped, tag = 'scratch operand']
  #allocation4 [shape = 'f32[64,804]{1,0:T(8,128)}', space=vmem, size = 0x38000, scoped, tag = 'scratch operand']
  #allocation5 [shape = 'f32[16,208]{1,0:T(8,128)}', space=vmem, size = 0x4000, scoped, tag = 'scratch operand']
  #allocation6 [shape = 'f32[64,202]{1,0:T(8,128)}', space=vmem, size = 0x10000, scoped, tag = 'scratch operand']
  %s0 = inlined_call_operand.vmem [shape: f32[160,800], index: 0, kind: input, shape index: {}]
  %s1 = inlined_call_operand.vmem [shape: f32[16,246], index: 1, kind: input, shape index: {}]
  %s2 = inlined_call_operand.vmem [shape: f32[64,579], index: 2, kind: input, shape index: {}]
  %s3 = inlined_call_operand.vmem [shape: f32[803,208], index: 3, kind: input, shape index: {}]
  %s4 = inlined_call_operand.vmem [shape: f32[199,50], index: 4, kind: input, shape index: {}]
  %s5 = inlined_call_operand.vmem [shape: f32[8,50], index: 5, kind: output, shape index: {}]
  %s6 = sld [smem:[#allocation0]]
  $region30: #{eeg_net_forward.1} parent=0
    _
  %s8 = ssub.s32 1, %s6
  %s9 = scalar_select 0, %s8, %s6
  // Predicated region
  $region2: #{eeg_net_forward.1} parent=0 // pred_check
    _
  $region3: #{eeg_net_forward.1} parent=0 // pred_check_branch
    %11 = sbr.rel (0) target = $region5
  $region4: #{eeg_net_forward.1} parent=0 // pred_region
    _
  $region5: #{eeg_net_forward.1} parent=0 // pred_fallthru
    _
  // Predicated region
  $region6: #{eeg_net_forward.1} parent=0 // pred_check
    _
  $region7: #{eeg_net_forward.1} parent=0 // pred_check_branch
    %13 = sbr.rel (0) target = $region9
  $region8: #{eeg_net_forward.1} parent=0 // pred_region
    _
  $region9: #{eeg_net_forward.1} parent=0 // pred_fallthru
    _
  // Predicated region
  $region10: #{eeg_net_forward.1} parent=0 // pred_check
    _
  $region11: #{eeg_net_forward.1} parent=0 // pred_check_branch
    %15 = sbr.rel (0) target = $region13
  $region12: #{eeg_net_forward.1} parent=0 // pred_region
    _
  $region13: #{eeg_net_forward.1} parent=0 // pred_fallthru
    _
  // Predicated region
  $region14: #{eeg_net_forward.1} parent=0 // pred_check
    _
  $region15: #{eeg_net_forward.1} parent=0 // pred_check_branch
    %17 = sbr.rel (0) target = $region17
  $region16: #{eeg_net_forward.1} parent=0 // pred_region
    _
  $region17: #{eeg_net_forward.1} parent=0 // pred_fallthru
    _
  // Predicated region
  $region18: #{eeg_net_forward.1} parent=0 // pred_check
    _
  $region19: #{eeg_net_forward.1} parent=0 // pred_check_branch
    %19 = sbr.rel (0) target = $region21
  $region20: #{eeg_net_forward.1} parent=0 // pred_region
    _
  $region21: #{eeg_net_forward.1} parent=0 // pred_fallthru
    _
  %v20 = vld [vmem:[%s1] sm:$0xff]
  %v21 = vld [vmem:[%s1 + $0x8] sm:$0xff]
  %v22 = vld [vmem:[%s1 + $0x10] sm:$0xff]
  %v23 = vld [vmem:[%s1 + $0x18] sm:$0xff]
  %v24 = vld [vmem:[%s2] sm:$0xff]
  %v25 = vld [vmem:[%s2 + $0x8] sm:$0xff]
  %v26 = vld [vmem:[%s2 + $0x10] sm:$0xff]
  %v27 = vld [vmem:[%s2 + $0x18] sm:$0xff]
  %v28 = vld [vmem:[%s2 + $0x28] sm:$0xff]
  %v29 = vld [vmem:[%s2 + $0x30] sm:$0xff]
  %v30 = vld [vmem:[%s2 + $0x38] sm:$0xff]
  %v31 = vld [vmem:[%s2 + $0x40] sm:$0xff]
  %v32 = vld [vmem:[%s2 + $0x50] sm:$0xff]
  %v33 = vld [vmem:[%s2 + $0x58] sm:$0xff]
  %v34 = vld [vmem:[%s2 + $0x60] sm:$0xff]
  %v35 = vld [vmem:[%s2 + $0x68] sm:$0xff]
  %v36 = vld [vmem:[%s2 + $0x78] sm:$0xff]
  %v37 = vld [vmem:[%s2 + $0x80] sm:$0xff]
  %v38 = vld [vmem:[%s2 + $0x88] sm:$0xff]
  %v39 = vld [vmem:[%s2 + $0x90] sm:$0xff]
  %v40 = vld [vmem:[%s2 + $0xa0] sm:$0xff]
  %v41 = vld [vmem:[%s2 + $0xa8] sm:$0xff]
  %v42 = vld [vmem:[%s2 + $0xb0] sm:$0xff]
  %v43 = vld [vmem:[%s2 + $0xb8] sm:$0xff]
  %v44 = vld [vmem:[%s2 + $0xc8] sm:$0xff]
  %v45 = vld [vmem:[%s2 + $0xd0] sm:$0xff]
  %v46 = vld [vmem:[%s2 + $0xd8] sm:$0xff]
  %v47 = vld [vmem:[%s2 + $0xe0] sm:$0xff]
  %v48 = vld [vmem:[%s2 + $0xf0] sm:$0xff]
  %v49 = vld [vmem:[%s2 + $0xf8] sm:$0xff]
  %v50 = vld [vmem:[%s2 + $0x100] sm:$0xff]
  %v51 = vld [vmem:[%s2 + $0x108] sm:$0xff]
  %v52 = vld [vmem:[%s2 + $0x118] sm:$0xff]
  %v53 = vld [vmem:[%s2 + $0x120] sm:$0xff]
  %v54 = vld [vmem:[%s2 + $0x128] sm:$0xff]
  %v55 = vld [vmem:[%s2 + $0x130] sm:$0xff]
  %v56 = vld [vmem:[%s2 + $0x20] sm:$0xff]
  %v57 = vld [vmem:[%s2 + $0x48] sm:$0xff]
  %v58 = vld [vmem:[%s2 + $0x70] sm:$0xff]
  %v59 = vld [vmem:[%s2 + $0x98] sm:$0xff]
  %v60 = vld [vmem:[%s2 + $0xc0] sm:$0xff]
  %v61 = vld [vmem:[%s2 + $0xe8] sm:$0xff]
  %v62 = vld [vmem:[%s2 + $0x110] sm:$0xff]
  %v63 = vld [vmem:[%s2 + $0x138] sm:$0xff]
  %v64 = vld [vmem:[%s0] sm:$0xff]
  %v65 = vld [vmem:[%s0 + $0x8] sm:$0xff]
  %v66 = vld [vmem:[%s0 + $0x10] sm:$0xff]
  %v67 = vld [vmem:[%s0 + $0x18] sm:$0xff]
  %v68 = vld [vmem:[%s0 + $0x20] sm:$0xff]
  %v69 = vld [vmem:[%s0 + $0x28] sm:$0xff]
  %v70 = vld [vmem:[%s0 + $0x30] sm:$0xff]
  %v71 = vld [vmem:[%s0 + $0x38] sm:$0xff]
  %v72 = vld [vmem:[%s0 + $0x40] sm:$0xff]
  %v73 = vld [vmem:[%s0 + $0x48] sm:$0xff]
  %v74 = vld [vmem:[%s0 + $0x50] sm:$0xff]
  %v75 = vld [vmem:[%s0 + $0x58] sm:$0xff]
  %v76 = vld [vmem:[%s0 + $0x60] sm:$0xff]
  %v77 = vld [vmem:[%s0 + $0x68] sm:$0xff]
  %v78 = vld [vmem:[%s0 + $0x70] sm:$0xff]
  %v79 = vld [vmem:[%s0 + $0x78] sm:$0xff]
  %v80 = vld [vmem:[%s0 + $0x80] sm:$0xff]
  %v81 = vld [vmem:[%s0 + $0x88] sm:$0xff]
  %v82 = vld [vmem:[%s0 + $0x90] sm:$0xff]
  %v83 = vld [vmem:[%s0 + $0x98] sm:$0xff]
  %v84 = vld [vmem:[%s0 + $0xa0] sm:$0xff]
  %v85 = vld [vmem:[%s0 + $0xa8] sm:$0xff]
  %v86 = vld [vmem:[%s0 + $0xb0] sm:$0xff]
  %v87 = vld [vmem:[%s0 + $0xb8] sm:$0xff]
  %v88 = vld [vmem:[%s0 + $0xc0] sm:$0xff]
  %v89 = vld [vmem:[%s0 + $0xc8] sm:$0xff]
  %v90 = vld [vmem:[%s0 + $0xd0] sm:$0xff]
  %v91 = vld [vmem:[%s0 + $0xd8] sm:$0xff]
  %v92 = vld [vmem:[%s0 + $0xe0] sm:$0xff]
  %v93 = vld [vmem:[%s0 + $0xe8] sm:$0xff]
  %v94 = vld [vmem:[%s0 + $0xf0] sm:$0xff]
  %v95 = vld [vmem:[%s0 + $0xf8] sm:$0xff]
  %v96 = vld [vmem:[%s0 + $0x100] sm:$0xff]
  %v97 = vld [vmem:[%s0 + $0x108] sm:$0xff]
  %v98 = vld [vmem:[%s0 + $0x110] sm:$0xff]
  %v99 = vld [vmem:[%s0 + $0x118] sm:$0xff]
  %v100 = vld [vmem:[%s0 + $0x120] sm:$0xff]
  %v101 = vld [vmem:[%s0 + $0x128] sm:$0xff]
  %v102 = vld [vmem:[%s0 + $0x130] sm:$0xff]
  %v103 = vld [vmem:[%s0 + $0x138] sm:$0xff]
  %v104 = vld [vmem:[%s0 + $0x140] sm:$0xff]
  %v105 = vld [vmem:[%s0 + $0x148] sm:$0xff]
  %v106 = vld [vmem:[%s0 + $0x150] sm:$0xff]
  %v107 = vld [vmem:[%s0 + $0x158] sm:$0xff]
  %v108 = vld [vmem:[%s0 + $0x160] sm:$0xff]
  %v109 = vld [vmem:[%s0 + $0x168] sm:$0xff]
  %v110 = vld [vmem:[%s0 + $0x170] sm:$0xff]
  %v111 = vld [vmem:[%s0 + $0x178] sm:$0xff]
  %v112 = vld [vmem:[%s0 + $0x180] sm:$0xff]
  %v113 = vld [vmem:[%s0 + $0x188] sm:$0xff]
  %v114 = vld [vmem:[%s0 + $0x190] sm:$0xff]
  %v115 = vld [vmem:[%s0 + $0x198] sm:$0xff]
  %v116 = vld [vmem:[%s0 + $0x1a0] sm:$0xff]
  %v117 = vld [vmem:[%s0 + $0x1a8] sm:$0xff]
  %v118 = vld [vmem:[%s0 + $0x1b0] sm:$0xff]
  %v119 = vld [vmem:[%s0 + $0x1b8] sm:$0xff]
  %v120 = vld [vmem:[%s0 + $0x1c0] sm:$0xff]
  %v121 = vld [vmem:[%s0 + $0x1c8] sm:$0xff]
  %v122 = vld [vmem:[%s0 + $0x1d0] sm:$0xff]
  %v123 = vld [vmem:[%s0 + $0x1d8] sm:$0xff]
  %v124 = vld [vmem:[%s0 + $0x1e0] sm:$0xff]
  %v125 = vld [vmem:[%s0 + $0x1e8] sm:$0xff]
  %v126 = vld [vmem:[%s0 + $0x1f0] sm:$0xff]
  %v127 = vld [vmem:[%s0 + $0x1f8] sm:$0xff]
  %v128 = vld [vmem:[%s0 + $0x200] sm:$0xff]
  %v129 = vld [vmem:[%s0 + $0x208] sm:$0xff]
  %v130 = vld [vmem:[%s0 + $0x210] sm:$0xff]
  %v131 = vld [vmem:[%s0 + $0x218] sm:$0xff]
  %v132 = vld [vmem:[%s0 + $0x220] sm:$0xff]
  %v133 = vld [vmem:[%s0 + $0x228] sm:$0xff]
  %v134 = vld [vmem:[%s0 + $0x230] sm:$0xff]
  %v135 = vld [vmem:[%s0 + $0x238] sm:$0xff]
  %v136 = vld [vmem:[%s0 + $0x240] sm:$0xff]
  %v137 = vld [vmem:[%s0 + $0x248] sm:$0xff]
  %v138 = vld [vmem:[%s0 + $0x250] sm:$0xff]
  %v139 = vld [vmem:[%s0 + $0x258] sm:$0xff]
  %v140 = vld [vmem:[%s0 + $0x260] sm:$0xff]
  %v141 = vld [vmem:[%s0 + $0x268] sm:$0xff]
  %v142 = vld [vmem:[%s0 + $0x270] sm:$0xff]
  %v143 = vld [vmem:[%s0 + $0x278] sm:$0xff]
  %v144 = vld [vmem:[%s0 + $0x280] sm:$0xff]
  %v145 = vld [vmem:[%s0 + $0x288] sm:$0xff]
  %v146 = vld [vmem:[%s0 + $0x290] sm:$0xff]
  %v147 = vld [vmem:[%s0 + $0x298] sm:$0xff]
  %v148 = vld [vmem:[%s0 + $0x2a0] sm:$0xff]
  %v149 = vld [vmem:[%s0 + $0x2a8] sm:$0xff]
  %v150 = vld [vmem:[%s0 + $0x2b0] sm:$0xff]
  %v151 = vld [vmem:[%s0 + $0x2b8] sm:$0xff]
  %v152 = vld [vmem:[%s0 + $0x2c0] sm:$0xff]
  %v153 = vld [vmem:[%s0 + $0x2c8] sm:$0xff]
  %v154 = vld [vmem:[%s0 + $0x2d0] sm:$0xff]
  %v155 = vld [vmem:[%s0 + $0x2d8] sm:$0xff]
  %v156 = vld [vmem:[%s0 + $0x2e0] sm:$0xff]
  %v157 = vld [vmem:[%s0 + $0x2e8] sm:$0xff]
  %v158 = vld [vmem:[%s0 + $0x2f0] sm:$0xff]
  %v159 = vld [vmem:[%s0 + $0x2f8] sm:$0xff]
  %v160 = vld [vmem:[%s0 + $0x300] sm:$0xff]
  %v161 = vld [vmem:[%s0 + $0x308] sm:$0xff]
  %v162 = vld [vmem:[%s0 + $0x310] sm:$0xff]
  %v163 = vld [vmem:[%s0 + $0x318] sm:$0xff]
  %v164 = vld [vmem:[%s0 + $0x320] sm:$0xff]
  %v165 = vld [vmem:[%s0 + $0x328] sm:$0xff]
  %v166 = vld [vmem:[%s0 + $0x330] sm:$0xff]
  %v167 = vld [vmem:[%s0 + $0x338] sm:$0xff]
  %v168 = vld [vmem:[%s0 + $0x340] sm:$0xff]
  %v169 = vld [vmem:[%s0 + $0x348] sm:$0xff]
  %v170 = vld [vmem:[%s0 + $0x350] sm:$0xff]
  %v171 = vld [vmem:[%s0 + $0x358] sm:$0xff]
  %v172 = vld [vmem:[%s0 + $0x360] sm:$0xff]
  %v173 = vld [vmem:[%s0 + $0x368] sm:$0xff]
  %v174 = vld [vmem:[%s0 + $0x370] sm:$0xff]
  %v175 = vld [vmem:[%s0 + $0x378] sm:$0xff]
  %v176 = vld [vmem:[%s0 + $0x380] sm:$0xff]
  %v177 = vld [vmem:[%s0 + $0x388] sm:$0xff]
  %v178 = vld [vmem:[%s0 + $0x390] sm:$0xff]
  %v179 = vld [vmem:[%s0 + $0x398] sm:$0xff]
  %v180 = vld [vmem:[%s0 + $0x3a0] sm:$0xff]
  %v181 = vld [vmem:[%s0 + $0x3a8] sm:$0xff]
  %v182 = vld [vmem:[%s0 + $0x3b0] sm:$0xff]
  %v183 = vld [vmem:[%s0 + $0x3b8] sm:$0xff]
  %v184 = vld [vmem:[%s0 + $0x3c0] sm:$0xff]
  %v185 = vld [vmem:[%s0 + $0x3c8] sm:$0xff]
  %v186 = vld [vmem:[%s0 + $0x3d0] sm:$0xff]
  %v187 = vld [vmem:[%s0 + $0x3d8] sm:$0xff]
  %v188 = vld [vmem:[%s0 + $0x3e0] sm:$0xff]
  %v189 = vld [vmem:[%s0 + $0x3e8] sm:$0xff]
  %v190 = vld [vmem:[%s0 + $0x3f0] sm:$0xff]
  %v191 = vld [vmem:[%s0 + $0x3f8] sm:$0xff]
  %v192 = vld [vmem:[%s0 + $0x400] sm:$0xff]
  %v193 = vld [vmem:[%s0 + $0x408] sm:$0xff]
  %v194 = vld [vmem:[%s0 + $0x410] sm:$0xff]
  %v195 = vld [vmem:[%s0 + $0x418] sm:$0xff]
  %v196 = vld [vmem:[%s0 + $0x420] sm:$0xff]
  %v197 = vld [vmem:[%s0 + $0x428] sm:$0xff]
  %v198 = vld [vmem:[%s0 + $0x430] sm:$0xff]
  %v199 = vld [vmem:[%s0 + $0x438] sm:$0xff]
  %v200 = vld [vmem:[%s0 + $0x440] sm:$0xff]
  %v201 = vld [vmem:[%s0 + $0x448] sm:$0xff]
  %v202 = vld [vmem:[%s0 + $0x450] sm:$0xff]
  %v203 = vld [vmem:[%s0 + $0x458] sm:$0xff]
  %205 = vset.pattern.permute.xlu0 112
  %206 = vperm.xlu0 %205, %v21
  %v207 = vpop.permute.xlu0 %206
  %210 = vset.pattern.permute.xlu0 112
  %211 = vperm.xlu0 %210, %v23
  %v212 = vpop.permute.xlu0 %211
  %vm214 = vcmask 261120
  %v215 = vsel %vm214, %v21, 0
  %v217 = vsel %vm214, %v23, 0
  %219 = vmatpush.msra.mxu0 %v169
  %220 = vmatpush.msra.mxu0 %v162
  %221 = vmatpush.msra.mxu0 %v155
  %222 = vmatpush.msra.mxu0 %v148
  %223 = vmatpush.msra.mxu0 %v141
  %224 = vmatpush.msra.mxu0 %v134
  %225 = vmatpush.msra.mxu0 %v127
  %226 = vmatpush.msra.mxu0 %v120
  %227 = vmatpush.msra.mxu0 %v113
  %228 = vmatpush.msra.mxu0 %v106
  %229 = vmatpush.msra.mxu0 %v99
  %230 = vmatpush.msra.mxu0 %v92
  %231 = vmatpush.msra.mxu0 %v85
  %232 = vmatpush.msra.mxu0 %v78
  %233 = vmatpush.msra.mxu0 %v71
  %234 = vmatpush.msra.mxu0 %v64
  %235 = vmatmul.f32.gmra.mxu0 %v20
  %v236 = vpop.f32.mrf.mxu0
  %v237 = vadd.f32 %v207, %v236
  %238 = vmatmul.f32.gmra.mxu0 %v22
  %v239 = vpop.f32.mrf.mxu0
  %v240 = vadd.f32 %v212, %v239
  %241 = vdwg.mxu0
  %242 = vmatpush.msra.mxu0 0.0
  %243 = vmatpush.msra.mxu0 0.0
  %244 = vmatpush.msra.mxu0 0.0
  %245 = vmatpush.msra.mxu0 0.0
  %246 = vmatpush.msra.mxu0 0.0
  %247 = vmatpush.msra.mxu0 0.0
  %248 = vmatpush.msra.mxu0 0.0
  %249 = vmatpush.msra.mxu0 0.0
  %250 = vmatpush.msra.mxu0 0.0
  %251 = vmatpush.msra.mxu0 0.0
  %252 = vmatpush.msra.mxu0 0.0
  %253 = vmatpush.msra.mxu0 0.0
  %254 = vmatpush.msra.mxu0 %v197
  %255 = vmatpush.msra.mxu0 %v190
  %256 = vmatpush.msra.mxu0 %v183
  %257 = vmatpush.msra.mxu0 %v176
  %258 = vmatmul.f32.gmra.mxu0 %v215
  %v259 = vpop.f32.mrf.mxu0
  %v260 = vadd.f32 %v237, %v259
  %261 = vmatmul.f32.gmra.mxu0 %v217
  %v262 = vpop.f32.mrf.mxu0
  %v263 = vadd.f32 %v240, %v262
  %264 = vdwg.mxu0
  %265 = vmatpush.msra.mxu0 %v170
  %266 = vmatpush.msra.mxu0 %v163
  %267 = vmatpush.msra.mxu0 %v156
  %268 = vmatpush.msra.mxu0 %v149
  %269 = vmatpush.msra.mxu0 %v142
  %270 = vmatpush.msra.mxu0 %v135
  %271 = vmatpush.msra.mxu0 %v128
  %272 = vmatpush.msra.mxu0 %v121
  %273 = vmatpush.msra.mxu0 %v114
  %274 = vmatpush.msra.mxu0 %v107
  %275 = vmatpush.msra.mxu0 %v100
  %276 = vmatpush.msra.mxu0 %v93
  %277 = vmatpush.msra.mxu0 %v86
  %278 = vmatpush.msra.mxu0 %v79
  %279 = vmatpush.msra.mxu0 %v72
  %280 = vmatpush.msra.mxu0 %v65
  %281 = vmatmul.f32.gmra.mxu0 %v20
  %v282 = vpop.f32.mrf.mxu0
  %v283 = vadd.f32 %v207, %v282
  %284 = vmatmul.f32.gmra.mxu0 %v22
  %v285 = vpop.f32.mrf.mxu0
  %v286 = vadd.f32 %v212, %v285
  %287 = vdwg.mxu0
  %288 = vmatpush.msra.mxu0 0.0
  %289 = vmatpush.msra.mxu0 0.0
  %290 = vmatpush.msra.mxu0 0.0
  %291 = vmatpush.msra.mxu0 0.0
  %292 = vmatpush.msra.mxu0 0.0
  %293 = vmatpush.msra.mxu0 0.0
  %294 = vmatpush.msra.mxu0 0.0
  %295 = vmatpush.msra.mxu0 0.0
  %296 = vmatpush.msra.mxu0 0.0
  %297 = vmatpush.msra.mxu0 0.0
  %298 = vmatpush.msra.mxu0 0.0
  %299 = vmatpush.msra.mxu0 0.0
  %300 = vmatpush.msra.mxu0 %v198
  %301 = vmatpush.msra.mxu0 %v191
  %302 = vmatpush.msra.mxu0 %v184
  %303 = vmatpush.msra.mxu0 %v177
  %304 = vmatmul.f32.gmra.mxu0 %v215
  %v305 = vpop.f32.mrf.mxu0
  %v306 = vadd.f32 %v283, %v305
  %307 = vmatmul.f32.gmra.mxu0 %v217
  %v308 = vpop.f32.mrf.mxu0
  %v309 = vadd.f32 %v286, %v308
  %310 = vdwg.mxu0
  %311 = vmatpush.msra.mxu0 %v171
  %312 = vmatpush.msra.mxu0 %v164
  %313 = vmatpush.msra.mxu0 %v157
  %314 = vmatpush.msra.mxu0 %v150
  %315 = vmatpush.msra.mxu0 %v143
  %316 = vmatpush.msra.mxu0 %v136
  %317 = vmatpush.msra.mxu0 %v129
  %318 = vmatpush.msra.mxu0 %v122
  %319 = vmatpush.msra.mxu0 %v115
  %320 = vmatpush.msra.mxu0 %v108
  %321 = vmatpush.msra.mxu0 %v101
  %322 = vmatpush.msra.mxu0 %v94
  %323 = vmatpush.msra.mxu0 %v87
  %324 = vmatpush.msra.mxu0 %v80
  %325 = vmatpush.msra.mxu0 %v73
  %326 = vmatpush.msra.mxu0 %v66
  %327 = vmatmul.f32.gmra.mxu0 %v20
  %v328 = vpop.f32.mrf.mxu0
  %v329 = vadd.f32 %v207, %v328
  %330 = vmatmul.f32.gmra.mxu0 %v22
  %v331 = vpop.f32.mrf.mxu0
  %v332 = vadd.f32 %v212, %v331
  %333 = vdwg.mxu0
  %334 = vmatpush.msra.mxu0 0.0
  %335 = vmatpush.msra.mxu0 0.0
  %336 = vmatpush.msra.mxu0 0.0
  %337 = vmatpush.msra.mxu0 0.0
  %338 = vmatpush.msra.mxu0 0.0
  %339 = vmatpush.msra.mxu0 0.0
  %340 = vmatpush.msra.mxu0 0.0
  %341 = vmatpush.msra.mxu0 0.0
  %342 = vmatpush.msra.mxu0 0.0
  %343 = vmatpush.msra.mxu0 0.0
  %344 = vmatpush.msra.mxu0 0.0
  %345 = vmatpush.msra.mxu0 0.0
  %346 = vmatpush.msra.mxu0 %v199
  %347 = vmatpush.msra.mxu0 %v192
  %348 = vmatpush.msra.mxu0 %v185
  %349 = vmatpush.msra.mxu0 %v178
  %350 = vmatmul.f32.gmra.mxu0 %v215
  %v351 = vpop.f32.mrf.mxu0
  %v352 = vadd.f32 %v329, %v351
  %353 = vmatmul.f32.gmra.mxu0 %v217
  %v354 = vpop.f32.mrf.mxu0
  %v355 = vadd.f32 %v332, %v354
  %356 = vdwg.mxu0
  %357 = vmatpush.msra.mxu0 %v172
  %358 = vmatpush.msra.mxu0 %v165
  %359 = vmatpush.msra.mxu0 %v158
  %360 = vmatpush.msra.mxu0 %v151
  %361 = vmatpush.msra.mxu0 %v144
  %362 = vmatpush.msra.mxu0 %v137
  %363 = vmatpush.msra.mxu0 %v130
  %364 = vmatpush.msra.mxu0 %v123
  %365 = vmatpush.msra.mxu0 %v116
  %366 = vmatpush.msra.mxu0 %v109
  %367 = vmatpush.msra.mxu0 %v102
  %368 = vmatpush.msra.mxu0 %v95
  %369 = vmatpush.msra.mxu0 %v88
  %370 = vmatpush.msra.mxu0 %v81
  %371 = vmatpush.msra.mxu0 %v74
  %372 = vmatpush.msra.mxu0 %v67
  %373 = vmatmul.f32.gmra.mxu0 %v20
  %v374 = vpop.f32.mrf.mxu0
  %v375 = vadd.f32 %v207, %v374
  %376 = vmatmul.f32.gmra.mxu0 %v22
  %v377 = vpop.f32.mrf.mxu0
  %v378 = vadd.f32 %v212, %v377
  %379 = vdwg.mxu0
  %380 = vmatpush.msra.mxu0 0.0
  %381 = vmatpush.msra.mxu0 0.0
  %382 = vmatpush.msra.mxu0 0.0
  %383 = vmatpush.msra.mxu0 0.0
  %384 = vmatpush.msra.mxu0 0.0
  %385 = vmatpush.msra.mxu0 0.0
  %386 = vmatpush.msra.mxu0 0.0
  %387 = vmatpush.msra.mxu0 0.0
  %388 = vmatpush.msra.mxu0 0.0
  %389 = vmatpush.msra.mxu0 0.0
  %390 = vmatpush.msra.mxu0 0.0
  %391 = vmatpush.msra.mxu0 0.0
  %392 = vmatpush.msra.mxu0 %v200
  %393 = vmatpush.msra.mxu0 %v193
  %394 = vmatpush.msra.mxu0 %v186
  %395 = vmatpush.msra.mxu0 %v179
  %396 = vmatmul.f32.gmra.mxu0 %v215
  %v397 = vpop.f32.mrf.mxu0
  %v398 = vadd.f32 %v375, %v397
  %399 = vmatmul.f32.gmra.mxu0 %v217
  %v400 = vpop.f32.mrf.mxu0
  %v401 = vadd.f32 %v378, %v400
  %402 = vdwg.mxu0
  %403 = vmatpush.msra.mxu0 %v173
  %404 = vmatpush.msra.mxu0 %v166
  %405 = vmatpush.msra.mxu0 %v159
  %406 = vmatpush.msra.mxu0 %v152
  %407 = vmatpush.msra.mxu0 %v145
  %408 = vmatpush.msra.mxu0 %v138
  %409 = vmatpush.msra.mxu0 %v131
  %410 = vmatpush.msra.mxu0 %v124
  %411 = vmatpush.msra.mxu0 %v117
  %412 = vmatpush.msra.mxu0 %v110
  %413 = vmatpush.msra.mxu0 %v103
  %414 = vmatpush.msra.mxu0 %v96
  %415 = vmatpush.msra.mxu0 %v89
  %416 = vmatpush.msra.mxu0 %v82
  %417 = vmatpush.msra.mxu0 %v75
  %418 = vmatpush.msra.mxu0 %v68
  %419 = vmatmul.f32.gmra.mxu0 %v20
  %v420 = vpop.f32.mrf.mxu0
  %v421 = vadd.f32 %v207, %v420
  %422 = vmatmul.f32.gmra.mxu0 %v22
  %v423 = vpop.f32.mrf.mxu0
  %v424 = vadd.f32 %v212, %v423
  %425 = vdwg.mxu0
  %426 = vmatpush.msra.mxu0 0.0
  %427 = vmatpush.msra.mxu0 0.0
  %428 = vmatpush.msra.mxu0 0.0
  %429 = vmatpush.msra.mxu0 0.0
  %430 = vmatpush.msra.mxu0 0.0
  %431 = vmatpush.msra.mxu0 0.0
  %432 = vmatpush.msra.mxu0 0.0
  %433 = vmatpush.msra.mxu0 0.0
  %434 = vmatpush.msra.mxu0 0.0
  %435 = vmatpush.msra.mxu0 0.0
  %436 = vmatpush.msra.mxu0 0.0
  %437 = vmatpush.msra.mxu0 0.0
  %438 = vmatpush.msra.mxu0 %v201
  %439 = vmatpush.msra.mxu0 %v194
  %440 = vmatpush.msra.mxu0 %v187
  %441 = vmatpush.msra.mxu0 %v180
  %442 = vmatmul.f32.gmra.mxu0 %v215
  %v443 = vpop.f32.mrf.mxu0
  %v444 = vadd.f32 %v421, %v443
  %445 = vmatmul.f32.gmra.mxu0 %v217
  %v446 = vpop.f32.mrf.mxu0
  %v447 = vadd.f32 %v424, %v446
  %448 = vdwg.mxu0
  %449 = vmatpush.msra.mxu0 %v174
  %450 = vmatpush.msra.mxu0 %v167
  %451 = vmatpush.msra.mxu0 %v160
  %452 = vmatpush.msra.mxu0 %v153
  %453 = vmatpush.msra.mxu0 %v146
  %454 = vmatpush.msra.mxu0 %v139
  %455 = vmatpush.msra.mxu0 %v132
  %456 = vmatpush.msra.mxu0 %v125
  %457 = vmatpush.msra.mxu0 %v118
  %458 = vmatpush.msra.mxu0 %v111
  %459 = vmatpush.msra.mxu0 %v104
  %460 = vmatpush.msra.mxu0 %v97
  %461 = vmatpush.msra.mxu0 %v90
  %462 = vmatpush.msra.mxu0 %v83
  %463 = vmatpush.msra.mxu0 %v76
  %464 = vmatpush.msra.mxu0 %v69
  %465 = vmatmul.f32.gmra.mxu0 %v20
  %v466 = vpop.f32.mrf.mxu0
  %v467 = vadd.f32 %v207, %v466
  %468 = vmatmul.f32.gmra.mxu0 %v22
  %v469 = vpop.f32.mrf.mxu0
  %v470 = vadd.f32 %v212, %v469
  %471 = vdwg.mxu0
  %472 = vmatpush.msra.mxu0 0.0
  %473 = vmatpush.msra.mxu0 0.0
  %474 = vmatpush.msra.mxu0 0.0
  %475 = vmatpush.msra.mxu0 0.0
  %476 = vmatpush.msra.mxu0 0.0
  %477 = vmatpush.msra.mxu0 0.0
  %478 = vmatpush.msra.mxu0 0.0
  %479 = vmatpush.msra.mxu0 0.0
  %480 = vmatpush.msra.mxu0 0.0
  %481 = vmatpush.msra.mxu0 0.0
  %482 = vmatpush.msra.mxu0 0.0
  %483 = vmatpush.msra.mxu0 0.0
  %484 = vmatpush.msra.mxu0 %v202
  %485 = vmatpush.msra.mxu0 %v195
  %486 = vmatpush.msra.mxu0 %v188
  %487 = vmatpush.msra.mxu0 %v181
  %488 = vmatmul.f32.gmra.mxu0 %v215
  %v489 = vpop.f32.mrf.mxu0
  %v490 = vadd.f32 %v467, %v489
  %491 = vmatmul.f32.gmra.mxu0 %v217
  %v492 = vpop.f32.mrf.mxu0
  %v493 = vadd.f32 %v470, %v492
  %494 = vdwg.mxu0
  %495 = vmatpush.msra.mxu0 %v175
  %496 = vmatpush.msra.mxu0 %v168
  %497 = vmatpush.msra.mxu0 %v161
  %498 = vmatpush.msra.mxu0 %v154
  %499 = vmatpush.msra.mxu0 %v147
  %500 = vmatpush.msra.mxu0 %v140
  %501 = vmatpush.msra.mxu0 %v133
  %502 = vmatpush.msra.mxu0 %v126
  %503 = vmatpush.msra.mxu0 %v119
  %504 = vmatpush.msra.mxu0 %v112
  %505 = vmatpush.msra.mxu0 %v105
  %506 = vmatpush.msra.mxu0 %v98
  %507 = vmatpush.msra.mxu0 %v91
  %508 = vmatpush.msra.mxu0 %v84
  %509 = vmatpush.msra.mxu0 %v77
  %510 = vmatpush.msra.mxu0 %v70
  %511 = vmatmul.f32.gmra.mxu0 %v20
  %v512 = vpop.f32.mrf.mxu0
  %v513 = vadd.f32 %v207, %v512
  %514 = vmatmul.f32.gmra.mxu0 %v22
  %v515 = vpop.f32.mrf.mxu0
  %v516 = vadd.f32 %v212, %v515
  %517 = vdwg.mxu0
  %518 = vmatpush.msra.mxu0 0.0
  %519 = vmatpush.msra.mxu0 0.0
  %520 = vmatpush.msra.mxu0 0.0
  %521 = vmatpush.msra.mxu0 0.0
  %522 = vmatpush.msra.mxu0 0.0
  %523 = vmatpush.msra.mxu0 0.0
  %524 = vmatpush.msra.mxu0 0.0
  %525 = vmatpush.msra.mxu0 0.0
  %526 = vmatpush.msra.mxu0 0.0
  %527 = vmatpush.msra.mxu0 0.0
  %528 = vmatpush.msra.mxu0 0.0
  %529 = vmatpush.msra.mxu0 0.0
  %530 = vmatpush.msra.mxu0 %v203
  %531 = vmatpush.msra.mxu0 %v196
  %532 = vmatpush.msra.mxu0 %v189
  %533 = vmatpush.msra.mxu0 %v182
  %534 = vmatmul.f32.gmra.mxu0 %v215
  %v535 = vpop.f32.mrf.mxu0
  %v536 = vadd.f32 %v513, %v535
  %537 = vmatmul.f32.gmra.mxu0 %v217
  %v538 = vpop.f32.mrf.mxu0
  %v539 = vadd.f32 %v516, %v538
  %540 = vdwg.mxu0
  %vm541 = vcmp.gt.f32.partialorder %v260, 0.0
  %vm542 = vcmp.gt.f32.partialorder %v306, 0.0
  %vm543 = vcmp.gt.f32.partialorder %v352, 0.0
  %vm544 = vcmp.gt.f32.partialorder %v398, 0.0
  %vm545 = vcmp.gt.f32.partialorder %v444, 0.0
  %vm546 = vcmp.gt.f32.partialorder %v490, 0.0
  %vm547 = vcmp.gt.f32.partialorder %v536, 0.0
  %vm548 = vcmp.gt.f32.partialorder %v263, 0.0
  %vm549 = vcmp.gt.f32.partialorder %v309, 0.0
  %vm550 = vcmp.gt.f32.partialorder %v355, 0.0
  %vm551 = vcmp.gt.f32.partialorder %v401, 0.0
  %vm552 = vcmp.gt.f32.partialorder %v447, 0.0
  %vm553 = vcmp.gt.f32.partialorder %v493, 0.0
  %vm554 = vcmp.gt.f32.partialorder %v539, 0.0
  %v555 = vmin.f32 %v260, 0.0
  %v556 = vmin.f32 %v306, 0.0
  %v557 = vmin.f32 %v352, 0.0
  %v558 = vmin.f32 %v398, 0.0
  %v559 = vmin.f32 %v444, 0.0
  %v560 = vmin.f32 %v490, 0.0
  %v561 = vmin.f32 %v536, 0.0
  %v562 = vmin.f32 %v263, 0.0
  %v563 = vmin.f32 %v309, 0.0
  %v564 = vmin.f32 %v355, 0.0
  %v565 = vmin.f32 %v401, 0.0
  %v566 = vmin.f32 %v447, 0.0
  %v567 = vmin.f32 %v493, 0.0
  %v568 = vmin.f32 %v539, 0.0
  %v569 = vmul.f32 %v555, 1.442695
  %v570 = vpow.pop %v569
  %v571 = vmul.f32 %v556, 1.442695
  %v572 = vpow.pop %v571
  %v573 = vmul.f32 %v557, 1.442695
  %v574 = vpow.pop %v573
  %v575 = vmul.f32 %v558, 1.442695
  %v576 = vpow.pop %v575
  %v577 = vmul.f32 %v559, 1.442695
  %v578 = vpow.pop %v577
  %v579 = vmul.f32 %v560, 1.442695
  %v580 = vpow.pop %v579
  %v581 = vmul.f32 %v561, 1.442695
  %v582 = vpow.pop %v581
  %v583 = vmul.f32 %v562, 1.442695
  %v584 = vpow.pop %v583
  %v585 = vmul.f32 %v563, 1.442695
  %v586 = vpow.pop %v585
  %v587 = vmul.f32 %v564, 1.442695
  %v588 = vpow.pop %v587
  %v589 = vmul.f32 %v565, 1.442695
  %v590 = vpow.pop %v589
  %v591 = vmul.f32 %v566, 1.442695
  %v592 = vpow.pop %v591
  %v593 = vmul.f32 %v567, 1.442695
  %v594 = vpow.pop %v593
  %v595 = vmul.f32 %v568, 1.442695
  %v596 = vpow.pop %v595
  %v597 = vsub.f32 %v570, 1.0
  %v598 = vsub.f32 %v572, 1.0
  %v599 = vsub.f32 %v574, 1.0
  %v600 = vsub.f32 %v576, 1.0
  %v601 = vsub.f32 %v578, 1.0
  %v602 = vsub.f32 %v580, 1.0
  %v603 = vsub.f32 %v582, 1.0
  %v604 = vsub.f32 %v584, 1.0
  %v605 = vsub.f32 %v586, 1.0
  %v606 = vsub.f32 %v588, 1.0
  %v607 = vsub.f32 %v590, 1.0
  %v608 = vsub.f32 %v592, 1.0
  %v609 = vsub.f32 %v594, 1.0
  %v610 = vsub.f32 %v596, 1.0
  %v611 = vsel %vm541, %v260, %v597
  %v612 = vsel %vm542, %v306, %v598
  %v613 = vsel %vm543, %v352, %v599
  %v614 = vsel %vm544, %v398, %v600
  %v615 = vsel %vm545, %v444, %v601
  %v616 = vsel %vm546, %v490, %v602
  %v617 = vsel %vm547, %v536, %v603
  %v618 = vsel %vm548, %v263, %v604
  %v619 = vsel %vm549, %v309, %v605
  %v620 = vsel %vm550, %v355, %v606
  %v621 = vsel %vm551, %v401, %v607
  %v622 = vsel %vm552, %v447, %v608
  %v623 = vsel %vm553, %v493, %v609
  %v624 = vsel %vm554, %v539, %v610
  %v625 = vadd.f32 %v611, %v612
  %v626 = vadd.f32 %v625, %v613
  %v627 = vadd.f32 %v626, %v614
  %v628 = vadd.f32 %v627, %v615
  %v629 = vadd.f32 %v628, %v616
  %v630 = vsel %vm214, %v617, 0.0
  %v631 = vadd.f32 %v629, %v630
  %632 = vadd.xlane.f32.xlu0 %v631
  %v633 = vpop.xlane.xlu0 %632
  %v634 = vadd.f32 %v618, %v619
  %v635 = vadd.f32 %v634, %v620
  %v636 = vadd.f32 %v635, %v621
  %v637 = vadd.f32 %v636, %v622
  %v638 = vadd.f32 %v637, %v623
  %v639 = vsel %vm214, %v624, 0.0
  %v640 = vadd.f32 %v638, %v639
  %641 = vadd.xlane.f32.xlu0 %v640
  %v642 = vpop.xlane.xlu0 %641
  %v643 = vmul.f32 %v633, 0.00125
  %v644 = vmul.f32 %v642, 0.00125
  %v645 = vmul.f32 %v611, %v611
  %v646 = vmul.f32 %v612, %v612
  %v647 = vmul.f32 %v613, %v613
  %v648 = vmul.f32 %v614, %v614
  %v649 = vmul.f32 %v615, %v615
  %v650 = vmul.f32 %v616, %v616
  %v651 = vmul.f32 %v617, %v617
  %v652 = vmul.f32 %v618, %v618
  %v653 = vmul.f32 %v619, %v619
  %v654 = vmul.f32 %v620, %v620
  %v655 = vmul.f32 %v621, %v621
  %v656 = vmul.f32 %v622, %v622
  %v657 = vmul.f32 %v623, %v623
  %v658 = vmul.f32 %v624, %v624
  %v659 = vadd.f32 %v645, %v646
  %v660 = vadd.f32 %v659, %v647
  %v661 = vadd.f32 %v660, %v648
  %v662 = vadd.f32 %v661, %v649
  %v663 = vadd.f32 %v662, %v650
  %v664 = vsel %vm214, %v651, 0.0
  %v665 = vadd.f32 %v663, %v664
  %666 = vadd.xlane.f32.xlu0 %v665
  %v667 = vpop.xlane.xlu0 %666
  %v668 = vadd.f32 %v652, %v653
  %v669 = vadd.f32 %v668, %v654
  %v670 = vadd.f32 %v669, %v655
  %v671 = vadd.f32 %v670, %v656
  %v672 = vadd.f32 %v671, %v657
  %v673 = vsel %vm214, %v658, 0.0
  %v674 = vadd.f32 %v672, %v673
  %675 = vadd.xlane.f32.xlu0 %v674
  %v676 = vpop.xlane.xlu0 %675
  %v677 = vmul.f32 %v667, 0.00125
  %v678 = vmul.f32 %v676, 0.00125
  %v679 = vmul.f32 %v643, %v643
  %v680 = vmul.f32 %v644, %v644
  %v681 = vsub.f32 %v677, %v679
  %v682 = vsub.f32 %v678, %v680
  %v683 = vmax.f32 %v681, 0.0
  %v684 = vmax.f32 %v682, 0.0
  %v685 = vrsqrt.pop %v683
  %v686 = vmul.f32 %v685, %v683
  %v687 = vmul.f32 %v686, %v685
  %v688 = vmul.f32 0.5, %v687
  %v689 = vsub.f32 1.5, %v688
  %v690 = vmul.f32 %v685, %v689
  %vm691 = vweird.f32 %v683
  %vm692 = vweird.f32 %v685
  %vm693 = vmor %vm691, %vm692
  %v694 = vsel %vm693, %v685, %v690
  %v695 = vrsqrt.pop %v684
  %v696 = vmul.f32 %v695, %v684
  %v697 = vmul.f32 %v696, %v695
  %v698 = vmul.f32 0.5, %v697
  %v699 = vsub.f32 1.5, %v698
  %v700 = vmul.f32 %v695, %v699
  %vm701 = vweird.f32 %v684
  %vm702 = vweird.f32 %v695
  %vm703 = vmor %vm701, %vm702
  %v704 = vsel %vm703, %v695, %v700
  %v705 = vmul.f32 %v21, %v694
  %v706 = vmul.f32 %v23, %v704
  %708 = vset.pattern.permute.xlu0 113
  %709 = vperm.xlu0 %708, %v705
  %v710 = vpop.permute.xlu0 %709
  %713 = vset.pattern.permute.xlu0 113
  %714 = vperm.xlu0 %713, %v706
  %v715 = vpop.permute.xlu0 %714
  %v717 = vmul.f32 %v611, %v710
  %v718 = vmul.f32 %v612, %v710
  %v719 = vmul.f32 %v613, %v710
  %v720 = vmul.f32 %v614, %v710
  %v721 = vmul.f32 %v615, %v710
  %v722 = vmul.f32 %v616, %v710
  %v723 = vmul.f32 %v617, %v710
  %v724 = vmul.f32 %v618, %v715
  %v725 = vmul.f32 %v619, %v715
  %v726 = vmul.f32 %v620, %v715
  %v727 = vmul.f32 %v621, %v715
  %v728 = vmul.f32 %v622, %v715
  %v729 = vmul.f32 %v623, %v715
  %v730 = vmul.f32 %v624, %v715
  %v731 = vmul.f32 %v643, %v705
  %v732 = vmul.f32 %v644, %v706
  %735 = vrot.lane.b32.xlu0 %v731, 1
  %v736 = vpop.permute.xlu0 %735
  %737 = vrot.lane.b32.xlu0 %v732, 1
  %v738 = vpop.permute.xlu0 %737
  %v741 = vsub.f32 %v21, %v736
  %v742 = vsub.f32 %v23, %v738
  %744 = vset.pattern.permute.xlu0 114
  %745 = vperm.xlu0 %744, %v741
  %v746 = vpop.permute.xlu0 %745
  %749 = vset.pattern.permute.xlu0 114
  %750 = vperm.xlu0 %749, %v742
  %v751 = vpop.permute.xlu0 %750
  %v753 = vadd.f32 %v717, %v746
  %v754 = vadd.f32 %v718, %v746
  %v755 = vadd.f32 %v719, %v746
  %v756 = vadd.f32 %v720, %v746
  %v757 = vadd.f32 %v721, %v746
  %v758 = vadd.f32 %v722, %v746
  %v759 = vadd.f32 %v723, %v746
  %v760 = vadd.f32 %v724, %v751
  %v761 = vadd.f32 %v725, %v751
  %v762 = vadd.f32 %v726, %v751
  %v763 = vadd.f32 %v727, %v751
  %v764 = vadd.f32 %v728, %v751
  %v765 = vadd.f32 %v729, %v751
  %v766 = vadd.f32 %v730, %v751
  %vm767 = vcmask 130048
  %768 = vst.msk [vmem:[#allocation2] sm:$0xff] %vm767, 0.0
  %769 = vst.msk [vmem:[#allocation2 + $0x20] sm:$0xff] %vm767, 0.0
  %vm770 = vcmask 400640
  %771 = vst.msk [vmem:[#allocation2 + $0x18] sm:$0xff] %vm770, 0.0
  %772 = vst.msk [vmem:[#allocation2 + $0x38] sm:$0xff] %vm770, 0.0
  %781 = vrot.lane.b32.xlu0 %v753, 16
  %v782 = vpop.permute.xlu0 %781
  %783 = vrot.lane.b32.xlu0 %v754, 16
  %v784 = vpop.permute.xlu0 %783
  %785 = vrot.lane.b32.xlu0 %v755, 16
  %v786 = vpop.permute.xlu0 %785
  %787 = vrot.lane.b32.xlu0 %v756, 16
  %v788 = vpop.permute.xlu0 %787
  %789 = vrot.lane.b32.xlu0 %v760, 16
  %v790 = vpop.permute.xlu0 %789
  %791 = vrot.lane.b32.xlu0 %v761, 16
  %v792 = vpop.permute.xlu0 %791
  %793 = vrot.lane.b32.xlu0 %v762, 16
  %v794 = vpop.permute.xlu0 %793
  %795 = vrot.lane.b32.xlu0 %v763, 16
  %v796 = vpop.permute.xlu0 %795
  %v797 = vsel %vm767, %v782, %v784
  %v798 = vsel %vm767, %v784, %v786
  %v799 = vsel %vm767, %v786, %v788
  %v800 = vsel %vm767, %v790, %v792
  %v801 = vsel %vm767, %v792, %v794
  %v802 = vsel %vm767, %v794, %v796
  %vm811 = vcmask 1047680
  %812 = vst.msk [vmem:[#allocation2] sm:$0xff] %vm811, %v782
  %813 = vst [vmem:[#allocation2 + $0x8] sm:$0xff] %v797
  %814 = vst [vmem:[#allocation2 + $0x10] sm:$0xff] %v798
  %815 = vst.msk [vmem:[#allocation2 + $0x18] sm:$0xff] %vm214, %v799
  %816 = vst.msk [vmem:[#allocation2 + $0x20] sm:$0xff] %vm811, %v790
  %817 = vst [vmem:[#allocation2 + $0x28] sm:$0xff] %v800
  %818 = vst [vmem:[#allocation2 + $0x30] sm:$0xff] %v801
  %819 = vst.msk [vmem:[#allocation2 + $0x38] sm:$0xff] %vm214, %v802
  %s820 = scalar_lea.vmem [#allocation2], 64
  %821 = vst.msk [vmem:[%s820] sm:$0xff] %vm767, 0.0
  %822 = vst.msk [vmem:[%s820 + $0x20] sm:$0xff] %vm767, 0.0
  %823 = vst.msk [vmem:[%s820 + $0x18] sm:$0xff] %vm770, 0.0
  %824 = vst.msk [vmem:[%s820 + $0x38] sm:$0xff] %vm770, 0.0
  %825 = vst.msk [vmem:[%s820] sm:$0xff] %vm811, %v756
  %826 = vst [vmem:[%s820 + $0x8] sm:$0xff] %v757
  %827 = vst [vmem:[%s820 + $0x10] sm:$0xff] %v758
  %828 = vst.msk [vmem:[%s820 + $0x18] sm:$0xff] %vm214, %v759
  %829 = vst.msk [vmem:[%s820 + $0x20] sm:$0xff] %vm811, %v763
  %830 = vst [vmem:[%s820 + $0x28] sm:$0xff] %v764
  %831 = vst [vmem:[%s820 + $0x30] sm:$0xff] %v765
  %832 = vst.msk [vmem:[%s820 + $0x38] sm:$0xff] %vm214, %v766
  %v833 = vld [vmem:[#allocation2] sm:$0xff]
  %v834 = vld [vmem:[#allocation2 + $0x8] sm:$0xff]
  %v835 = vld [vmem:[#allocation2 + $0x10] sm:$0xff]
  %v836 = vld [vmem:[#allocation2 + $0x18] sm:$0xff]
  %v837 = vld [vmem:[#allocation2 + $0x20] sm:$0xff]
  %v838 = vld [vmem:[#allocation2 + $0x28] sm:$0xff]
  %v839 = vld [vmem:[#allocation2 + $0x30] sm:$0xff]
  %v840 = vld [vmem:[#allocation2 + $0x38] sm:$0xff]
  %841 = vst [vmem:[#allocation3] sm:$0xff] %v833
  %842 = vst [vmem:[#allocation3 + $0x8] sm:$0xff] %v834
  %843 = vst [vmem:[#allocation3 + $0x10] sm:$0xff] %v835
  %vm844 = vcmask 146432
  %845 = vst.msk [vmem:[#allocation3 + $0x18] sm:$0xff] %vm844, %v836
  %846 = vst [vmem:[#allocation3 + $0x38] sm:$0xff] %v837
  %847 = vst [vmem:[#allocation3 + $0x40] sm:$0xff] %v838
  %848 = vst [vmem:[#allocation3 + $0x48] sm:$0xff] %v839
  %849 = vst.msk [vmem:[#allocation3 + $0x50] sm:$0xff] %vm844, %v840
  %v850 = vld [vmem:[%s820] sm:$0xff]
  %v851 = vld [vmem:[%s820 + $0x8] sm:$0xff]
  %v852 = vld [vmem:[%s820 + $0x10] sm:$0xff]
  %v853 = vld [vmem:[%s820 + $0x18] sm:$0xff]
  %v854 = vld [vmem:[%s820 + $0x20] sm:$0xff]
  %v855 = vld [vmem:[%s820 + $0x28] sm:$0xff]
  %v856 = vld [vmem:[%s820 + $0x30] sm:$0xff]
  %v857 = vld [vmem:[%s820 + $0x38] sm:$0xff]
  %866 = vrot.lane.b32.xlu0 %v850, 18
  %v867 = vpop.permute.xlu0 %866
  %868 = vrot.lane.b32.xlu0 %v851, 18
  %v869 = vpop.permute.xlu0 %868
  %870 = vrot.lane.b32.xlu0 %v852, 18
  %v871 = vpop.permute.xlu0 %870
  %872 = vrot.lane.b32.xlu0 %v853, 18
  %v873 = vpop.permute.xlu0 %872
  %874 = vrot.lane.b32.xlu0 %v854, 18
  %v875 = vpop.permute.xlu0 %874
  %876 = vrot.lane.b32.xlu0 %v855, 18
  %v877 = vpop.permute.xlu0 %876
  %878 = vrot.lane.b32.xlu0 %v856, 18
  %v879 = vpop.permute.xlu0 %878
  %880 = vrot.lane.b32.xlu0 %v857, 18
  %v881 = vpop.permute.xlu0 %880
  %v882 = vsel %vm844, %v867, %v869
  %v883 = vsel %vm844, %v869, %v871
  %v884 = vsel %vm844, %v871, %v873
  %v885 = vsel %vm844, %v875, %v877
  %v886 = vsel %vm844, %v877, %v879
  %v887 = vsel %vm844, %v879, %v881
  %vm896 = vcmask 1047696
  %897 = vst.msk [vmem:[#allocation3 + $0x18] sm:$0xff] %vm896, %v867
  %898 = vst [vmem:[#allocation3 + $0x20] sm:$0xff] %v882
  %899 = vst [vmem:[#allocation3 + $0x28] sm:$0xff] %v883
  %vm900 = vcmask 293888
  %901 = vst.msk [vmem:[#allocation3 + $0x30] sm:$0xff] %vm900, %v884
  %902 = vst.msk [vmem:[#allocation3 + $0x50] sm:$0xff] %vm896, %v875
  %903 = vst [vmem:[#allocation3 + $0x58] sm:$0xff] %v885
  %904 = vst [vmem:[#allocation3 + $0x60] sm:$0xff] %v886
  %905 = vst.msk [vmem:[#allocation3 + $0x68] sm:$0xff] %vm900, %v887
  %v906 = vld [vmem:[#allocation2] sm:$0xff]
  %v907 = vld [vmem:[#allocation2 + $0x8] sm:$0xff]
  %v908 = vld [vmem:[#allocation2 + $0x10] sm:$0xff]
  %v909 = vld [vmem:[#allocation2 + $0x18] sm:$0xff]
  %v910 = vld [vmem:[#allocation2 + $0x20] sm:$0xff]
  %v911 = vld [vmem:[#allocation2 + $0x28] sm:$0xff]
  %v912 = vld [vmem:[#allocation2 + $0x30] sm:$0xff]
  %v913 = vld [vmem:[#allocation2 + $0x38] sm:$0xff]
  %922 = vrot.lane.b32.xlu0 %v906, 127
  %v923 = vpop.permute.xlu0 %922
  %924 = vrot.lane.b32.xlu0 %v907, 127
  %v925 = vpop.permute.xlu0 %924
  %926 = vrot.lane.b32.xlu0 %v908, 127
  %v927 = vpop.permute.xlu0 %926
  %928 = vrot.lane.b32.xlu0 %v909, 127
  %v929 = vpop.permute.xlu0 %928
  %930 = vrot.lane.b32.xlu0 %v910, 127
  %v931 = vpop.permute.xlu0 %930
  %932 = vrot.lane.b32.xlu0 %v911, 127
  %v933 = vpop.permute.xlu0 %932
  %934 = vrot.lane.b32.xlu0 %v912, 127
  %v935 = vpop.permute.xlu0 %934
  %936 = vrot.lane.b32.xlu0 %v913, 127
  %v937 = vpop.permute.xlu0 %936
  %vm938 = vcmask 1039360
  %v939 = vsel %vm938, %v923, %v925
  %v940 = vsel %vm938, %v925, %v927
  %v941 = vsel %vm938, %v927, %v929
  %v942 = vsel %vm938, %v931, %v933
  %v943 = vsel %vm938, %v933, %v935
  %v944 = vsel %vm938, %v935, %v937
  %953 = vst [vmem:[#allocation3 + $0x70] sm:$0xff] %v939
  %954 = vst [vmem:[#allocation3 + $0x78] sm:$0xff] %v940
  %955 = vst [vmem:[#allocation3 + $0x80] sm:$0xff] %v941
  %956 = vst.msk [vmem:[#allocation3 + $0x88] sm:$0xff] %vm844, %v929
  %957 = vst [vmem:[#allocation3 + $0xa8] sm:$0xff] %v942
  %958 = vst [vmem:[#allocation3 + $0xb0] sm:$0xff] %v943
  %959 = vst [vmem:[#allocation3 + $0xb8] sm:$0xff] %v944
  %960 = vst.msk [vmem:[#allocation3 + $0xc0] sm:$0xff] %vm844, %v937
  %v961 = vld [vmem:[%s820] sm:$0xff]
  %v962 = vld [vmem:[%s820 + $0x8] sm:$0xff]
  %v963 = vld [vmem:[%s820 + $0x10] sm:$0xff]
  %v964 = vld [vmem:[%s820 + $0x18] sm:$0xff]
  %v965 = vld [vmem:[%s820 + $0x20] sm:$0xff]
  %v966 = vld [vmem:[%s820 + $0x28] sm:$0xff]
  %v967 = vld [vmem:[%s820 + $0x30] sm:$0xff]
  %v968 = vld [vmem:[%s820 + $0x38] sm:$0xff]
  %977 = vrot.lane.b32.xlu0 %v961, 17
  %v978 = vpop.permute.xlu0 %977
  %979 = vrot.lane.b32.xlu0 %v962, 17
  %v980 = vpop.permute.xlu0 %979
  %981 = vrot.lane.b32.xlu0 %v963, 17
  %v982 = vpop.permute.xlu0 %981
  %983 = vrot.lane.b32.xlu0 %v964, 17
  %v984 = vpop.permute.xlu0 %983
  %985 = vrot.lane.b32.xlu0 %v965, 17
  %v986 = vpop.permute.xlu0 %985
  %987 = vrot.lane.b32.xlu0 %v966, 17
  %v988 = vpop.permute.xlu0 %987
  %989 = vrot.lane.b32.xlu0 %v967, 17
  %v990 = vpop.permute.xlu0 %989
  %991 = vrot.lane.b32.xlu0 %v968, 17
  %v992 = vpop.permute.xlu0 %991
  %vm993 = vcmask 138240
  %v994 = vsel %vm993, %v978, %v980
  %v995 = vsel %vm993, %v980, %v982
  %v996 = vsel %vm993, %v982, %v984
  %v997 = vsel %vm993, %v986, %v988
  %v998 = vsel %vm993, %v988, %v990
  %v999 = vsel %vm993, %v990, %v992
  %1008 = vst.msk [vmem:[#allocation3 + $0x88] sm:$0xff] %vm896, %v978
  %1009 = vst [vmem:[#allocation3 + $0x90] sm:$0xff] %v994
  %1010 = vst [vmem:[#allocation3 + $0x98] sm:$0xff] %v995
  %1011 = vst.msk [vmem:[#allocation3 + $0xa0] sm:$0xff] %vm900, %v996
  %1012 = vst.msk [vmem:[#allocation3 + $0xc0] sm:$0xff] %vm896, %v986
  %1013 = vst [vmem:[#allocation3 + $0xc8] sm:$0xff] %v997
  %1014 = vst [vmem:[#allocation3 + $0xd0] sm:$0xff] %v998
  %1015 = vst.msk [vmem:[#allocation3 + $0xd8] sm:$0xff] %vm900, %v999
  %v1016 = vld [vmem:[#allocation2] sm:$0xff]
  %v1017 = vld [vmem:[#allocation2 + $0x8] sm:$0xff]
  %v1018 = vld [vmem:[#allocation2 + $0x10] sm:$0xff]
  %v1019 = vld [vmem:[#allocation2 + $0x18] sm:$0xff]
  %v1020 = vld [vmem:[#allocation2 + $0x20] sm:$0xff]
  %v1021 = vld [vmem:[#allocation2 + $0x28] sm:$0xff]
  %v1022 = vld [vmem:[#allocation2 + $0x30] sm:$0xff]
  %v1023 = vld [vmem:[#allocation2 + $0x38] sm:$0xff]
  %1032 = vrot.lane.b32.xlu0 %v1016, 126
  %v1033 = vpop.permute.xlu0 %1032
  %1034 = vrot.lane.b32.xlu0 %v1017, 126
  %v1035 = vpop.permute.xlu0 %1034
  %1036 = vrot.lane.b32.xlu0 %v1018, 126
  %v1037 = vpop.permute.xlu0 %1036
  %1038 = vrot.lane.b32.xlu0 %v1019, 126
  %v1039 = vpop.permute.xlu0 %1038
  %1040 = vrot.lane.b32.xlu0 %v1020, 126
  %v1041 = vpop.permute.xlu0 %1040
  %1042 = vrot.lane.b32.xlu0 %v1021, 126
  %v1043 = vpop.permute.xlu0 %1042
  %1044 = vrot.lane.b32.xlu0 %v1022, 126
  %v1045 = vpop.permute.xlu0 %1044
  %1046 = vrot.lane.b32.xlu0 %v1023, 126
  %v1047 = vpop.permute.xlu0 %1046
  %vm1048 = vcmask 1031168
  %v1049 = vsel %vm1048, %v1033, %v1035
  %v1050 = vsel %vm1048, %v1035, %v1037
  %v1051 = vsel %vm1048, %v1037, %v1039
  %v1052 = vsel %vm1048, %v1041, %v1043
  %v1053 = vsel %vm1048, %v1043, %v1045
  %v1054 = vsel %vm1048, %v1045, %v1047
  %1063 = vst [vmem:[#allocation3 + $0xe0] sm:$0xff] %v1049
  %1064 = vst [vmem:[#allocation3 + $0xe8] sm:$0xff] %v1050
  %1065 = vst [vmem:[#allocation3 + $0xf0] sm:$0xff] %v1051
  %1066 = vst.msk [vmem:[#allocation3 + $0xf8] sm:$0xff] %vm844, %v1039
  %1067 = vst [vmem:[#allocation3 + $0x118] sm:$0xff] %v1052
  %1068 = vst [vmem:[#allocation3 + $0x120] sm:$0xff] %v1053
  %1069 = vst [vmem:[#allocation3 + $0x128] sm:$0xff] %v1054
  %1070 = vst.msk [vmem:[#allocation3 + $0x130] sm:$0xff] %vm844, %v1047
  %v1071 = vld [vmem:[%s820] sm:$0xff]
  %v1072 = vld [vmem:[%s820 + $0x8] sm:$0xff]
  %v1073 = vld [vmem:[%s820 + $0x10] sm:$0xff]
  %v1074 = vld [vmem:[%s820 + $0x18] sm:$0xff]
  %v1075 = vld [vmem:[%s820 + $0x20] sm:$0xff]
  %v1076 = vld [vmem:[%s820 + $0x28] sm:$0xff]
  %v1077 = vld [vmem:[%s820 + $0x30] sm:$0xff]
  %v1078 = vld [vmem:[%s820 + $0x38] sm:$0xff]
  %1087 = vrot.lane.b32.xlu0 %v1071, 16
  %v1088 = vpop.permute.xlu0 %1087
  %1089 = vrot.lane.b32.xlu0 %v1072, 16
  %v1090 = vpop.permute.xlu0 %1089
  %1091 = vrot.lane.b32.xlu0 %v1073, 16
  %v1092 = vpop.permute.xlu0 %1091
  %1093 = vrot.lane.b32.xlu0 %v1074, 16
  %v1094 = vpop.permute.xlu0 %1093
  %1095 = vrot.lane.b32.xlu0 %v1075, 16
  %v1096 = vpop.permute.xlu0 %1095
  %1097 = vrot.lane.b32.xlu0 %v1076, 16
  %v1098 = vpop.permute.xlu0 %1097
  %1099 = vrot.lane.b32.xlu0 %v1077, 16
  %v1100 = vpop.permute.xlu0 %1099
  %1101 = vrot.lane.b32.xlu0 %v1078, 16
  %v1102 = vpop.permute.xlu0 %1101
  %v1103 = vsel %vm767, %v1088, %v1090
  %v1104 = vsel %vm767, %v1090, %v1092
  %v1105 = vsel %vm767, %v1092, %v1094
  %v1106 = vsel %vm767, %v1096, %v1098
  %v1107 = vsel %vm767, %v1098, %v1100
  %v1108 = vsel %vm767, %v1100, %v1102
  %1117 = vst.msk [vmem:[#allocation3 + $0xf8] sm:$0xff] %vm896, %v1088
  %1118 = vst [vmem:[#allocation3 + $0x100] sm:$0xff] %v1103
  %1119 = vst [vmem:[#allocation3 + $0x108] sm:$0xff] %v1104
  %1120 = vst.msk [vmem:[#allocation3 + $0x110] sm:$0xff] %vm900, %v1105
  %1121 = vst.msk [vmem:[#allocation3 + $0x130] sm:$0xff] %vm896, %v1096
  %1122 = vst [vmem:[#allocation3 + $0x138] sm:$0xff] %v1106
  %1123 = vst [vmem:[#allocation3 + $0x140] sm:$0xff] %v1107
  %1124 = vst.msk [vmem:[#allocation3 + $0x148] sm:$0xff] %vm900, %v1108
  %v1125 = vld [vmem:[#allocation2] sm:$0xff]
  %v1126 = vld [vmem:[#allocation2 + $0x8] sm:$0xff]
  %v1127 = vld [vmem:[#allocation2 + $0x10] sm:$0xff]
  %v1128 = vld [vmem:[#allocation2 + $0x18] sm:$0xff]
  %v1129 = vld [vmem:[#allocation2 + $0x20] sm:$0xff]
  %v1130 = vld [vmem:[#allocation2 + $0x28] sm:$0xff]
  %v1131 = vld [vmem:[#allocation2 + $0x30] sm:$0xff]
  %v1132 = vld [vmem:[#allocation2 + $0x38] sm:$0xff]
  %1141 = vrot.lane.b32.xlu0 %v1125, 125
  %v1142 = vpop.permute.xlu0 %1141
  %1143 = vrot.lane.b32.xlu0 %v1126, 125
  %v1144 = vpop.permute.xlu0 %1143
  %1145 = vrot.lane.b32.xlu0 %v1127, 125
  %v1146 = vpop.permute.xlu0 %1145
  %1147 = vrot.lane.b32.xlu0 %v1128, 125
  %v1148 = vpop.permute.xlu0 %1147
  %1149 = vrot.lane.b32.xlu0 %v1129, 125
  %v1150 = vpop.permute.xlu0 %1149
  %1151 = vrot.lane.b32.xlu0 %v1130, 125
  %v1152 = vpop.permute.xlu0 %1151
  %1153 = vrot.lane.b32.xlu0 %v1131, 125
  %v1154 = vpop.permute.xlu0 %1153
  %1155 = vrot.lane.b32.xlu0 %v1132, 125
  %v1156 = vpop.permute.xlu0 %1155
  %vm1157 = vcmask 1022976
  %v1158 = vsel %vm1157, %v1142, %v1144
  %v1159 = vsel %vm1157, %v1144, %v1146
  %v1160 = vsel %vm1157, %v1146, %v1148
  %v1161 = vsel %vm1157, %v1150, %v1152
  %v1162 = vsel %vm1157, %v1152, %v1154
  %v1163 = vsel %vm1157, %v1154, %v1156
  %1172 = vst [vmem:[#allocation3 + $0x150] sm:$0xff] %v1158
  %1173 = vst [vmem:[#allocation3 + $0x158] sm:$0xff] %v1159
  %1174 = vst [vmem:[#allocation3 + $0x160] sm:$0xff] %v1160
  %1175 = vst.msk [vmem:[#allocation3 + $0x168] sm:$0xff] %vm844, %v1148
  %1176 = vst [vmem:[#allocation3 + $0x188] sm:$0xff] %v1161
  %1177 = vst [vmem:[#allocation3 + $0x190] sm:$0xff] %v1162
  %1178 = vst [vmem:[#allocation3 + $0x198] sm:$0xff] %v1163
  %1179 = vst.msk [vmem:[#allocation3 + $0x1a0] sm:$0xff] %vm844, %v1156
  %v1180 = vld [vmem:[%s820] sm:$0xff]
  %v1181 = vld [vmem:[%s820 + $0x8] sm:$0xff]
  %v1182 = vld [vmem:[%s820 + $0x10] sm:$0xff]
  %v1183 = vld [vmem:[%s820 + $0x18] sm:$0xff]
  %v1184 = vld [vmem:[%s820 + $0x20] sm:$0xff]
  %v1185 = vld [vmem:[%s820 + $0x28] sm:$0xff]
  %v1186 = vld [vmem:[%s820 + $0x30] sm:$0xff]
  %v1187 = vld [vmem:[%s820 + $0x38] sm:$0xff]
  %1196 = vrot.lane.b32.xlu0 %v1180, 15
  %v1197 = vpop.permute.xlu0 %1196
  %1198 = vrot.lane.b32.xlu0 %v1181, 15
  %v1199 = vpop.permute.xlu0 %1198
  %1200 = vrot.lane.b32.xlu0 %v1182, 15
  %v1201 = vpop.permute.xlu0 %1200
  %1202 = vrot.lane.b32.xlu0 %v1183, 15
  %v1203 = vpop.permute.xlu0 %1202
  %1204 = vrot.lane.b32.xlu0 %v1184, 15
  %v1205 = vpop.permute.xlu0 %1204
  %1206 = vrot.lane.b32.xlu0 %v1185, 15
  %v1207 = vpop.permute.xlu0 %1206
  %1208 = vrot.lane.b32.xlu0 %v1186, 15
  %v1209 = vpop.permute.xlu0 %1208
  %1210 = vrot.lane.b32.xlu0 %v1187, 15
  %v1211 = vpop.permute.xlu0 %1210
  %vm1212 = vcmask 121856
  %v1213 = vsel %vm1212, %v1197, %v1199
  %v1214 = vsel %vm1212, %v1199, %v1201
  %v1215 = vsel %vm1212, %v1201, %v1203
  %v1216 = vsel %vm1212, %v1205, %v1207
  %v1217 = vsel %vm1212, %v1207, %v1209
  %v1218 = vsel %vm1212, %v1209, %v1211
  %1227 = vst.msk [vmem:[#allocation3 + $0x168] sm:$0xff] %vm896, %v1197
  %1228 = vst [vmem:[#allocation3 + $0x170] sm:$0xff] %v1213
  %1229 = vst [vmem:[#allocation3 + $0x178] sm:$0xff] %v1214
  %1230 = vst.msk [vmem:[#allocation3 + $0x180] sm:$0xff] %vm900, %v1215
  %1231 = vst.msk [vmem:[#allocation3 + $0x1a0] sm:$0xff] %vm896, %v1205
  %1232 = vst [vmem:[#allocation3 + $0x1a8] sm:$0xff] %v1216
  %1233 = vst [vmem:[#allocation3 + $0x1b0] sm:$0xff] %v1217
  %1234 = vst.msk [vmem:[#allocation3 + $0x1b8] sm:$0xff] %vm900, %v1218
  %v1235 = vld [vmem:[#allocation2] sm:$0xff]
  %v1236 = vld [vmem:[#allocation2 + $0x8] sm:$0xff]
  %v1237 = vld [vmem:[#allocation2 + $0x10] sm:$0xff]
  %v1238 = vld [vmem:[#allocation2 + $0x18] sm:$0xff]
  %v1239 = vld [vmem:[#allocation2 + $0x20] sm:$0xff]
  %v1240 = vld [vmem:[#allocation2 + $0x28] sm:$0xff]
  %v1241 = vld [vmem:[#allocation2 + $0x30] sm:$0xff]
  %v1242 = vld [vmem:[#allocation2 + $0x38] sm:$0xff]
  %1251 = vrot.lane.b32.xlu0 %v1235, 124
  %v1252 = vpop.permute.xlu0 %1251
  %1253 = vrot.lane.b32.xlu0 %v1236, 124
  %v1254 = vpop.permute.xlu0 %1253
  %1255 = vrot.lane.b32.xlu0 %v1237, 124
  %v1256 = vpop.permute.xlu0 %1255
  %1257 = vrot.lane.b32.xlu0 %v1238, 124
  %v1258 = vpop.permute.xlu0 %1257
  %1259 = vrot.lane.b32.xlu0 %v1239, 124
  %v1260 = vpop.permute.xlu0 %1259
  %1261 = vrot.lane.b32.xlu0 %v1240, 124
  %v1262 = vpop.permute.xlu0 %1261
  %1263 = vrot.lane.b32.xlu0 %v1241, 124
  %v1264 = vpop.permute.xlu0 %1263
  %1265 = vrot.lane.b32.xlu0 %v1242, 124
  %v1266 = vpop.permute.xlu0 %1265
  %vm1267 = vcmask 1014784
  %v1268 = vsel %vm1267, %v1252, %v1254
  %v1269 = vsel %vm1267, %v1254, %v1256
  %v1270 = vsel %vm1267, %v1256, %v1258
  %v1271 = vsel %vm1267, %v1260, %v1262
  %v1272 = vsel %vm1267, %v1262, %v1264
  %v1273 = vsel %vm1267, %v1264, %v1266
  %1282 = vst [vmem:[#allocation3 + $0x1c0] sm:$0xff] %v1268
  %1283 = vst [vmem:[#allocation3 + $0x1c8] sm:$0xff] %v1269
  %1284 = vst [vmem:[#allocation3 + $0x1d0] sm:$0xff] %v1270
  %1285 = vst.msk [vmem:[#allocation3 + $0x1d8] sm:$0xff] %vm844, %v1258
  %1286 = vst [vmem:[#allocation3 + $0x1f8] sm:$0xff] %v1271
  %1287 = vst [vmem:[#allocation3 + $0x200] sm:$0xff] %v1272
  %1288 = vst [vmem:[#allocation3 + $0x208] sm:$0xff] %v1273
  %1289 = vst.msk [vmem:[#allocation3 + $0x210] sm:$0xff] %vm844, %v1266
  %v1290 = vld [vmem:[%s820] sm:$0xff]
  %v1291 = vld [vmem:[%s820 + $0x8] sm:$0xff]
  %v1292 = vld [vmem:[%s820 + $0x10] sm:$0xff]
  %v1293 = vld [vmem:[%s820 + $0x18] sm:$0xff]
  %v1294 = vld [vmem:[%s820 + $0x20] sm:$0xff]
  %v1295 = vld [vmem:[%s820 + $0x28] sm:$0xff]
  %v1296 = vld [vmem:[%s820 + $0x30] sm:$0xff]
  %v1297 = vld [vmem:[%s820 + $0x38] sm:$0xff]
  %1306 = vrot.lane.b32.xlu0 %v1290, 14
  %v1307 = vpop.permute.xlu0 %1306
  %1308 = vrot.lane.b32.xlu0 %v1291, 14
  %v1309 = vpop.permute.xlu0 %1308
  %1310 = vrot.lane.b32.xlu0 %v1292, 14
  %v1311 = vpop.permute.xlu0 %1310
  %1312 = vrot.lane.b32.xlu0 %v1293, 14
  %v1313 = vpop.permute.xlu0 %1312
  %1314 = vrot.lane.b32.xlu0 %v1294, 14
  %v1315 = vpop.permute.xlu0 %1314
  %1316 = vrot.lane.b32.xlu0 %v1295, 14
  %v1317 = vpop.permute.xlu0 %1316
  %1318 = vrot.lane.b32.xlu0 %v1296, 14
  %v1319 = vpop.permute.xlu0 %1318
  %1320 = vrot.lane.b32.xlu0 %v1297, 14
  %v1321 = vpop.permute.xlu0 %1320
  %vm1322 = vcmask 113664
  %v1323 = vsel %vm1322, %v1307, %v1309
  %v1324 = vsel %vm1322, %v1309, %v1311
  %v1325 = vsel %vm1322, %v1311, %v1313
  %v1326 = vsel %vm1322, %v1315, %v1317
  %v1327 = vsel %vm1322, %v1317, %v1319
  %v1328 = vsel %vm1322, %v1319, %v1321
  %1337 = vst.msk [vmem:[#allocation3 + $0x1d8] sm:$0xff] %vm896, %v1307
  %1338 = vst [vmem:[#allocation3 + $0x1e0] sm:$0xff] %v1323
  %1339 = vst [vmem:[#allocation3 + $0x1e8] sm:$0xff] %v1324
  %1340 = vst.msk [vmem:[#allocation3 + $0x1f0] sm:$0xff] %vm900, %v1325
  %1341 = vst.msk [vmem:[#allocation3 + $0x210] sm:$0xff] %vm896, %v1315
  %1342 = vst [vmem:[#allocation3 + $0x218] sm:$0xff] %v1326
  %1343 = vst [vmem:[#allocation3 + $0x220] sm:$0xff] %v1327
  %1344 = vst.msk [vmem:[#allocation3 + $0x228] sm:$0xff] %vm900, %v1328
  %v1345 = vld [vmem:[#allocation2] sm:$0xff]
  %v1346 = vld [vmem:[#allocation2 + $0x8] sm:$0xff]
  %v1347 = vld [vmem:[#allocation2 + $0x10] sm:$0xff]
  %v1348 = vld [vmem:[#allocation2 + $0x18] sm:$0xff]
  %v1349 = vld [vmem:[#allocation2 + $0x20] sm:$0xff]
  %v1350 = vld [vmem:[#allocation2 + $0x28] sm:$0xff]
  %v1351 = vld [vmem:[#allocation2 + $0x30] sm:$0xff]
  %v1352 = vld [vmem:[#allocation2 + $0x38] sm:$0xff]
  %1361 = vrot.lane.b32.xlu0 %v1345, 123
  %v1362 = vpop.permute.xlu0 %1361
  %1363 = vrot.lane.b32.xlu0 %v1346, 123
  %v1364 = vpop.permute.xlu0 %1363
  %1365 = vrot.lane.b32.xlu0 %v1347, 123
  %v1366 = vpop.permute.xlu0 %1365
  %1367 = vrot.lane.b32.xlu0 %v1348, 123
  %v1368 = vpop.permute.xlu0 %1367
  %1369 = vrot.lane.b32.xlu0 %v1349, 123
  %v1370 = vpop.permute.xlu0 %1369
  %1371 = vrot.lane.b32.xlu0 %v1350, 123
  %v1372 = vpop.permute.xlu0 %1371
  %1373 = vrot.lane.b32.xlu0 %v1351, 123
  %v1374 = vpop.permute.xlu0 %1373
  %1375 = vrot.lane.b32.xlu0 %v1352, 123
  %v1376 = vpop.permute.xlu0 %1375
  %vm1377 = vcmask 1006592
  %v1378 = vsel %vm1377, %v1362, %v1364
  %v1379 = vsel %vm1377, %v1364, %v1366
  %v1380 = vsel %vm1377, %v1366, %v1368
  %v1381 = vsel %vm1377, %v1370, %v1372
  %v1382 = vsel %vm1377, %v1372, %v1374
  %v1383 = vsel %vm1377, %v1374, %v1376
  %1392 = vst [vmem:[#allocation3 + $0x230] sm:$0xff] %v1378
  %1393 = vst [vmem:[#allocation3 + $0x238] sm:$0xff] %v1379
  %1394 = vst [vmem:[#allocation3 + $0x240] sm:$0xff] %v1380
  %1395 = vst.msk [vmem:[#allocation3 + $0x248] sm:$0xff] %vm844, %v1368
  %1396 = vst [vmem:[#allocation3 + $0x268] sm:$0xff] %v1381
  %1397 = vst [vmem:[#allocation3 + $0x270] sm:$0xff] %v1382
  %1398 = vst [vmem:[#allocation3 + $0x278] sm:$0xff] %v1383
  %1399 = vst.msk [vmem:[#allocation3 + $0x280] sm:$0xff] %vm844, %v1376
  %v1400 = vld [vmem:[%s820] sm:$0xff]
  %v1401 = vld [vmem:[%s820 + $0x8] sm:$0xff]
  %v1402 = vld [vmem:[%s820 + $0x10] sm:$0xff]
  %v1403 = vld [vmem:[%s820 + $0x18] sm:$0xff]
  %v1404 = vld [vmem:[%s820 + $0x20] sm:$0xff]
  %v1405 = vld [vmem:[%s820 + $0x28] sm:$0xff]
  %v1406 = vld [vmem:[%s820 + $0x30] sm:$0xff]
  %v1407 = vld [vmem:[%s820 + $0x38] sm:$0xff]
  %1416 = vrot.lane.b32.xlu0 %v1400, 13
  %v1417 = vpop.permute.xlu0 %1416
  %1418 = vrot.lane.b32.xlu0 %v1401, 13
  %v1419 = vpop.permute.xlu0 %1418
  %1420 = vrot.lane.b32.xlu0 %v1402, 13
  %v1421 = vpop.permute.xlu0 %1420
  %1422 = vrot.lane.b32.xlu0 %v1403, 13
  %v1423 = vpop.permute.xlu0 %1422
  %1424 = vrot.lane.b32.xlu0 %v1404, 13
  %v1425 = vpop.permute.xlu0 %1424
  %1426 = vrot.lane.b32.xlu0 %v1405, 13
  %v1427 = vpop.permute.xlu0 %1426
  %1428 = vrot.lane.b32.xlu0 %v1406, 13
  %v1429 = vpop.permute.xlu0 %1428
  %1430 = vrot.lane.b32.xlu0 %v1407, 13
  %v1431 = vpop.permute.xlu0 %1430
  %vm1432 = vcmask 105472
  %v1433 = vsel %vm1432, %v1417, %v1419
  %v1434 = vsel %vm1432, %v1419, %v1421
  %v1435 = vsel %vm1432, %v1421, %v1423
  %v1436 = vsel %vm1432, %v1425, %v1427
  %v1437 = vsel %vm1432, %v1427, %v1429
  %v1438 = vsel %vm1432, %v1429, %v1431
  %1447 = vst.msk [vmem:[#allocation3 + $0x248] sm:$0xff] %vm896, %v1417
  %1448 = vst [vmem:[#allocation3 + $0x250] sm:$0xff] %v1433
  %1449 = vst [vmem:[#allocation3 + $0x258] sm:$0xff] %v1434
  %1450 = vst.msk [vmem:[#allocation3 + $0x260] sm:$0xff] %vm900, %v1435
  %1451 = vst.msk [vmem:[#allocation3 + $0x280] sm:$0xff] %vm896, %v1425
  %1452 = vst [vmem:[#allocation3 + $0x288] sm:$0xff] %v1436
  %1453 = vst [vmem:[#allocation3 + $0x290] sm:$0xff] %v1437
  %1454 = vst.msk [vmem:[#allocation3 + $0x298] sm:$0xff] %vm900, %v1438
  %v1455 = vld [vmem:[#allocation2] sm:$0xff]
  %v1456 = vld [vmem:[#allocation2 + $0x8] sm:$0xff]
  %v1457 = vld [vmem:[#allocation2 + $0x10] sm:$0xff]
  %v1458 = vld [vmem:[#allocation2 + $0x18] sm:$0xff]
  %v1459 = vld [vmem:[#allocation2 + $0x20] sm:$0xff]
  %v1460 = vld [vmem:[#allocation2 + $0x28] sm:$0xff]
  %v1461 = vld [vmem:[#allocation2 + $0x30] sm:$0xff]
  %v1462 = vld [vmem:[#allocation2 + $0x38] sm:$0xff]
  %1471 = vrot.lane.b32.xlu0 %v1455, 122
  %v1472 = vpop.permute.xlu0 %1471
  %1473 = vrot.lane.b32.xlu0 %v1456, 122
  %v1474 = vpop.permute.xlu0 %1473
  %1475 = vrot.lane.b32.xlu0 %v1457, 122
  %v1476 = vpop.permute.xlu0 %1475
  %1477 = vrot.lane.b32.xlu0 %v1458, 122
  %v1478 = vpop.permute.xlu0 %1477
  %1479 = vrot.lane.b32.xlu0 %v1459, 122
  %v1480 = vpop.permute.xlu0 %1479
  %1481 = vrot.lane.b32.xlu0 %v1460, 122
  %v1482 = vpop.permute.xlu0 %1481
  %1483 = vrot.lane.b32.xlu0 %v1461, 122
  %v1484 = vpop.permute.xlu0 %1483
  %1485 = vrot.lane.b32.xlu0 %v1462, 122
  %v1486 = vpop.permute.xlu0 %1485
  %vm1487 = vcmask 998400
  %v1488 = vsel %vm1487, %v1472, %v1474
  %v1489 = vsel %vm1487, %v1474, %v1476
  %v1490 = vsel %vm1487, %v1476, %v1478
  %v1491 = vsel %vm1487, %v1480, %v1482
  %v1492 = vsel %vm1487, %v1482, %v1484
  %v1493 = vsel %vm1487, %v1484, %v1486
  %1502 = vst [vmem:[#allocation3 + $0x2a0] sm:$0xff] %v1488
  %1503 = vst [vmem:[#allocation3 + $0x2a8] sm:$0xff] %v1489
  %1504 = vst [vmem:[#allocation3 + $0x2b0] sm:$0xff] %v1490
  %1505 = vst.msk [vmem:[#allocation3 + $0x2b8] sm:$0xff] %vm844, %v1478
  %1506 = vst [vmem:[#allocation3 + $0x2d8] sm:$0xff] %v1491
  %1507 = vst [vmem:[#allocation3 + $0x2e0] sm:$0xff] %v1492
  %1508 = vst [vmem:[#allocation3 + $0x2e8] sm:$0xff] %v1493
  %1509 = vst.msk [vmem:[#allocation3 + $0x2f0] sm:$0xff] %vm844, %v1486
  %v1510 = vld [vmem:[%s820] sm:$0xff]
  %v1511 = vld [vmem:[%s820 + $0x8] sm:$0xff]
  %v1512 = vld [vmem:[%s820 + $0x10] sm:$0xff]
  %v1513 = vld [vmem:[%s820 + $0x18] sm:$0xff]
  %v1514 = vld [vmem:[%s820 + $0x20] sm:$0xff]
  %v1515 = vld [vmem:[%s820 + $0x28] sm:$0xff]
  %v1516 = vld [vmem:[%s820 + $0x30] sm:$0xff]
  %v1517 = vld [vmem:[%s820 + $0x38] sm:$0xff]
  %1526 = vrot.lane.b32.xlu0 %v1510, 12
  %v1527 = vpop.permute.xlu0 %1526
  %1528 = vrot.lane.b32.xlu0 %v1511, 12
  %v1529 = vpop.permute.xlu0 %1528
  %1530 = vrot.lane.b32.xlu0 %v1512, 12
  %v1531 = vpop.permute.xlu0 %1530
  %1532 = vrot.lane.b32.xlu0 %v1513, 12
  %v1533 = vpop.permute.xlu0 %1532
  %1534 = vrot.lane.b32.xlu0 %v1514, 12
  %v1535 = vpop.permute.xlu0 %1534
  %1536 = vrot.lane.b32.xlu0 %v1515, 12
  %v1537 = vpop.permute.xlu0 %1536
  %1538 = vrot.lane.b32.xlu0 %v1516, 12
  %v1539 = vpop.permute.xlu0 %1538
  %1540 = vrot.lane.b32.xlu0 %v1517, 12
  %v1541 = vpop.permute.xlu0 %1540
  %vm1542 = vcmask 97280
  %v1543 = vsel %vm1542, %v1527, %v1529
  %v1544 = vsel %vm1542, %v1529, %v1531
  %v1545 = vsel %vm1542, %v1531, %v1533
  %v1546 = vsel %vm1542, %v1535, %v1537
  %v1547 = vsel %vm1542, %v1537, %v1539
  %v1548 = vsel %vm1542, %v1539, %v1541
  %1557 = vst.msk [vmem:[#allocation3 + $0x2b8] sm:$0xff] %vm896, %v1527
  %1558 = vst [vmem:[#allocation3 + $0x2c0] sm:$0xff] %v1543
  %1559 = vst [vmem:[#allocation3 + $0x2c8] sm:$0xff] %v1544
  %1560 = vst.msk [vmem:[#allocation3 + $0x2d0] sm:$0xff] %vm900, %v1545
  %1561 = vst.msk [vmem:[#allocation3 + $0x2f0] sm:$0xff] %vm896, %v1535
  %1562 = vst [vmem:[#allocation3 + $0x2f8] sm:$0xff] %v1546
  %1563 = vst [vmem:[#allocation3 + $0x300] sm:$0xff] %v1547
  %1564 = vst.msk [vmem:[#allocation3 + $0x308] sm:$0xff] %vm900, %v1548
  %v1565 = vld [vmem:[#allocation2] sm:$0xff]
  %v1566 = vld [vmem:[#allocation2 + $0x8] sm:$0xff]
  %v1567 = vld [vmem:[#allocation2 + $0x10] sm:$0xff]
  %v1568 = vld [vmem:[#allocation2 + $0x18] sm:$0xff]
  %v1569 = vld [vmem:[#allocation2 + $0x20] sm:$0xff]
  %v1570 = vld [vmem:[#allocation2 + $0x28] sm:$0xff]
  %v1571 = vld [vmem:[#allocation2 + $0x30] sm:$0xff]
  %v1572 = vld [vmem:[#allocation2 + $0x38] sm:$0xff]
  %1581 = vrot.lane.b32.xlu0 %v1565, 121
  %v1582 = vpop.permute.xlu0 %1581
  %1583 = vrot.lane.b32.xlu0 %v1566, 121
  %v1584 = vpop.permute.xlu0 %1583
  %1585 = vrot.lane.b32.xlu0 %v1567, 121
  %v1586 = vpop.permute.xlu0 %1585
  %1587 = vrot.lane.b32.xlu0 %v1568, 121
  %v1588 = vpop.permute.xlu0 %1587
  %1589 = vrot.lane.b32.xlu0 %v1569, 121
  %v1590 = vpop.permute.xlu0 %1589
  %1591 = vrot.lane.b32.xlu0 %v1570, 121
  %v1592 = vpop.permute.xlu0 %1591
  %1593 = vrot.lane.b32.xlu0 %v1571, 121
  %v1594 = vpop.permute.xlu0 %1593
  %1595 = vrot.lane.b32.xlu0 %v1572, 121
  %v1596 = vpop.permute.xlu0 %1595
  %vm1597 = vcmask 990208
  %v1598 = vsel %vm1597, %v1582, %v1584
  %v1599 = vsel %vm1597, %v1584, %v1586
  %v1600 = vsel %vm1597, %v1586, %v1588
  %v1601 = vsel %vm1597, %v1590, %v1592
  %v1602 = vsel %vm1597, %v1592, %v1594
  %v1603 = vsel %vm1597, %v1594, %v1596
  %1612 = vst [vmem:[#allocation3 + $0x310] sm:$0xff] %v1598
  %1613 = vst [vmem:[#allocation3 + $0x318] sm:$0xff] %v1599
  %1614 = vst [vmem:[#allocation3 + $0x320] sm:$0xff] %v1600
  %1615 = vst.msk [vmem:[#allocation3 + $0x328] sm:$0xff] %vm844, %v1588
  %1616 = vst [vmem:[#allocation3 + $0x348] sm:$0xff] %v1601
  %1617 = vst [vmem:[#allocation3 + $0x350] sm:$0xff] %v1602
  %1618 = vst [vmem:[#allocation3 + $0x358] sm:$0xff] %v1603
  %1619 = vst.msk [vmem:[#allocation3 + $0x360] sm:$0xff] %vm844, %v1596
  %v1620 = vld [vmem:[%s820] sm:$0xff]
  %v1621 = vld [vmem:[%s820 + $0x8] sm:$0xff]
  %v1622 = vld [vmem:[%s820 + $0x10] sm:$0xff]
  %v1623 = vld [vmem:[%s820 + $0x18] sm:$0xff]
  %v1624 = vld [vmem:[%s820 + $0x20] sm:$0xff]
  %v1625 = vld [vmem:[%s820 + $0x28] sm:$0xff]
  %v1626 = vld [vmem:[%s820 + $0x30] sm:$0xff]
  %v1627 = vld [vmem:[%s820 + $0x38] sm:$0xff]
  %1636 = vrot.lane.b32.xlu0 %v1620, 11
  %v1637 = vpop.permute.xlu0 %1636
  %1638 = vrot.lane.b32.xlu0 %v1621, 11
  %v1639 = vpop.permute.xlu0 %1638
  %1640 = vrot.lane.b32.xlu0 %v1622, 11
  %v1641 = vpop.permute.xlu0 %1640
  %1642 = vrot.lane.b32.xlu0 %v1623, 11
  %v1643 = vpop.permute.xlu0 %1642
  %1644 = vrot.lane.b32.xlu0 %v1624, 11
  %v1645 = vpop.permute.xlu0 %1644
  %1646 = vrot.lane.b32.xlu0 %v1625, 11
  %v1647 = vpop.permute.xlu0 %1646
  %1648 = vrot.lane.b32.xlu0 %v1626, 11
  %v1649 = vpop.permute.xlu0 %1648
  %1650 = vrot.lane.b32.xlu0 %v1627, 11
  %v1651 = vpop.permute.xlu0 %1650
  %vm1652 = vcmask 89088
  %v1653 = vsel %vm1652, %v1637, %v1639
  %v1654 = vsel %vm1652, %v1639, %v1641
  %v1655 = vsel %vm1652, %v1641, %v1643
  %v1656 = vsel %vm1652, %v1645, %v1647
  %v1657 = vsel %vm1652, %v1647, %v1649
  %v1658 = vsel %vm1652, %v1649, %v1651
  %1667 = vst.msk [vmem:[#allocation3 + $0x328] sm:$0xff] %vm896, %v1637
  %1668 = vst [vmem:[#allocation3 + $0x330] sm:$0xff] %v1653
  %1669 = vst [vmem:[#allocation3 + $0x338] sm:$0xff] %v1654
  %1670 = vst.msk [vmem:[#allocation3 + $0x340] sm:$0xff] %vm900, %v1655
  %1671 = vst.msk [vmem:[#allocation3 + $0x360] sm:$0xff] %vm896, %v1645
  %1672 = vst [vmem:[#allocation3 + $0x368] sm:$0xff] %v1656
  %1673 = vst [vmem:[#allocation3 + $0x370] sm:$0xff] %v1657
  %1674 = vst.msk [vmem:[#allocation3 + $0x378] sm:$0xff] %vm900, %v1658
  %v1675 = vld [vmem:[#allocation2] sm:$0xff]
  %v1676 = vld [vmem:[#allocation2 + $0x8] sm:$0xff]
  %v1677 = vld [vmem:[#allocation2 + $0x10] sm:$0xff]
  %v1678 = vld [vmem:[#allocation2 + $0x18] sm:$0xff]
  %v1679 = vld [vmem:[#allocation2 + $0x20] sm:$0xff]
  %v1680 = vld [vmem:[#allocation2 + $0x28] sm:$0xff]
  %v1681 = vld [vmem:[#allocation2 + $0x30] sm:$0xff]
  %v1682 = vld [vmem:[#allocation2 + $0x38] sm:$0xff]
  %1691 = vrot.lane.b32.xlu0 %v1675, 120
  %v1692 = vpop.permute.xlu0 %1691
  %1693 = vrot.lane.b32.xlu0 %v1676, 120
  %v1694 = vpop.permute.xlu0 %1693
  %1695 = vrot.lane.b32.xlu0 %v1677, 120
  %v1696 = vpop.permute.xlu0 %1695
  %1697 = vrot.lane.b32.xlu0 %v1678, 120
  %v1698 = vpop.permute.xlu0 %1697
  %1699 = vrot.lane.b32.xlu0 %v1679, 120
  %v1700 = vpop.permute.xlu0 %1699
  %1701 = vrot.lane.b32.xlu0 %v1680, 120
  %v1702 = vpop.permute.xlu0 %1701
  %1703 = vrot.lane.b32.xlu0 %v1681, 120
  %v1704 = vpop.permute.xlu0 %1703
  %1705 = vrot.lane.b32.xlu0 %v1682, 120
  %v1706 = vpop.permute.xlu0 %1705
  %vm1707 = vcmask 982016
  %v1708 = vsel %vm1707, %v1692, %v1694
  %v1709 = vsel %vm1707, %v1694, %v1696
  %v1710 = vsel %vm1707, %v1696, %v1698
  %v1711 = vsel %vm1707, %v1700, %v1702
  %v1712 = vsel %vm1707, %v1702, %v1704
  %v1713 = vsel %vm1707, %v1704, %v1706
  %1722 = vst [vmem:[#allocation3 + $0x380] sm:$0xff] %v1708
  %1723 = vst [vmem:[#allocation3 + $0x388] sm:$0xff] %v1709
  %1724 = vst [vmem:[#allocation3 + $0x390] sm:$0xff] %v1710
  %1725 = vst.msk [vmem:[#allocation3 + $0x398] sm:$0xff] %vm844, %v1698
  %1726 = vst [vmem:[#allocation3 + $0x3b8] sm:$0xff] %v1711
  %1727 = vst [vmem:[#allocation3 + $0x3c0] sm:$0xff] %v1712
  %1728 = vst [vmem:[#allocation3 + $0x3c8] sm:$0xff] %v1713
  %1729 = vst.msk [vmem:[#allocation3 + $0x3d0] sm:$0xff] %vm844, %v1706
  %v1730 = vld [vmem:[%s820] sm:$0xff]
  %v1731 = vld [vmem:[%s820 + $0x8] sm:$0xff]
  %v1732 = vld [vmem:[%s820 + $0x10] sm:$0xff]
  %v1733 = vld [vmem:[%s820 + $0x18] sm:$0xff]
  %v1734 = vld [vmem:[%s820 + $0x20] sm:$0xff]
  %v1735 = vld [vmem:[%s820 + $0x28] sm:$0xff]
  %v1736 = vld [vmem:[%s820 + $0x30] sm:$0xff]
  %v1737 = vld [vmem:[%s820 + $0x38] sm:$0xff]
  %1746 = vrot.lane.b32.xlu0 %v1730, 10
  %v1747 = vpop.permute.xlu0 %1746
  %1748 = vrot.lane.b32.xlu0 %v1731, 10
  %v1749 = vpop.permute.xlu0 %1748
  %1750 = vrot.lane.b32.xlu0 %v1732, 10
  %v1751 = vpop.permute.xlu0 %1750
  %1752 = vrot.lane.b32.xlu0 %v1733, 10
  %v1753 = vpop.permute.xlu0 %1752
  %1754 = vrot.lane.b32.xlu0 %v1734, 10
  %v1755 = vpop.permute.xlu0 %1754
  %1756 = vrot.lane.b32.xlu0 %v1735, 10
  %v1757 = vpop.permute.xlu0 %1756
  %1758 = vrot.lane.b32.xlu0 %v1736, 10
  %v1759 = vpop.permute.xlu0 %1758
  %1760 = vrot.lane.b32.xlu0 %v1737, 10
  %v1761 = vpop.permute.xlu0 %1760
  %vm1762 = vcmask 80896
  %v1763 = vsel %vm1762, %v1747, %v1749
  %v1764 = vsel %vm1762, %v1749, %v1751
  %v1765 = vsel %vm1762, %v1751, %v1753
  %v1766 = vsel %vm1762, %v1755, %v1757
  %v1767 = vsel %vm1762, %v1757, %v1759
  %v1768 = vsel %vm1762, %v1759, %v1761
  %1777 = vst.msk [vmem:[#allocation3 + $0x398] sm:$0xff] %vm896, %v1747
  %1778 = vst [vmem:[#allocation3 + $0x3a0] sm:$0xff] %v1763
  %1779 = vst [vmem:[#allocation3 + $0x3a8] sm:$0xff] %v1764
  %1780 = vst.msk [vmem:[#allocation3 + $0x3b0] sm:$0xff] %vm900, %v1765
  %1781 = vst.msk [vmem:[#allocation3 + $0x3d0] sm:$0xff] %vm896, %v1755
  %1782 = vst [vmem:[#allocation3 + $0x3d8] sm:$0xff] %v1766
  %1783 = vst [vmem:[#allocation3 + $0x3e0] sm:$0xff] %v1767
  %1784 = vst.msk [vmem:[#allocation3 + $0x3e8] sm:$0xff] %vm900, %v1768
  %v1785 = vld [vmem:[#allocation2] sm:$0xff]
  %v1786 = vld [vmem:[#allocation2 + $0x8] sm:$0xff]
  %v1787 = vld [vmem:[#allocation2 + $0x10] sm:$0xff]
  %v1788 = vld [vmem:[#allocation2 + $0x18] sm:$0xff]
  %v1789 = vld [vmem:[#allocation2 + $0x20] sm:$0xff]
  %v1790 = vld [vmem:[#allocation2 + $0x28] sm:$0xff]
  %v1791 = vld [vmem:[#allocation2 + $0x30] sm:$0xff]
  %v1792 = vld [vmem:[#allocation2 + $0x38] sm:$0xff]
  %1801 = vrot.lane.b32.xlu0 %v1785, 119
  %v1802 = vpop.permute.xlu0 %1801
  %1803 = vrot.lane.b32.xlu0 %v1786, 119
  %v1804 = vpop.permute.xlu0 %1803
  %1805 = vrot.lane.b32.xlu0 %v1787, 119
  %v1806 = vpop.permute.xlu0 %1805
  %1807 = vrot.lane.b32.xlu0 %v1788, 119
  %v1808 = vpop.permute.xlu0 %1807
  %1809 = vrot.lane.b32.xlu0 %v1789, 119
  %v1810 = vpop.permute.xlu0 %1809
  %1811 = vrot.lane.b32.xlu0 %v1790, 119
  %v1812 = vpop.permute.xlu0 %1811
  %1813 = vrot.lane.b32.xlu0 %v1791, 119
  %v1814 = vpop.permute.xlu0 %1813
  %1815 = vrot.lane.b32.xlu0 %v1792, 119
  %v1816 = vpop.permute.xlu0 %1815
  %vm1817 = vcmask 973824
  %v1818 = vsel %vm1817, %v1802, %v1804
  %v1819 = vsel %vm1817, %v1804, %v1806
  %v1820 = vsel %vm1817, %v1806, %v1808
  %v1821 = vsel %vm1817, %v1810, %v1812
  %v1822 = vsel %vm1817, %v1812, %v1814
  %v1823 = vsel %vm1817, %v1814, %v1816
  %1832 = vst [vmem:[#allocation3 + $0x3f0] sm:$0xff] %v1818
  %1833 = vst [vmem:[#allocation3 + $0x3f8] sm:$0xff] %v1819
  %1834 = vst [vmem:[#allocation3 + $0x400] sm:$0xff] %v1820
  %1835 = vst.msk [vmem:[#allocation3 + $0x408] sm:$0xff] %vm844, %v1808
  %1836 = vst [vmem:[#allocation3 + $0x428] sm:$0xff] %v1821
  %1837 = vst [vmem:[#allocation3 + $0x430] sm:$0xff] %v1822
  %1838 = vst [vmem:[#allocation3 + $0x438] sm:$0xff] %v1823
  %1839 = vst.msk [vmem:[#allocation3 + $0x440] sm:$0xff] %vm844, %v1816
  %v1840 = vld [vmem:[%s820] sm:$0xff]
  %v1841 = vld [vmem:[%s820 + $0x8] sm:$0xff]
  %v1842 = vld [vmem:[%s820 + $0x10] sm:$0xff]
  %v1843 = vld [vmem:[%s820 + $0x18] sm:$0xff]
  %v1844 = vld [vmem:[%s820 + $0x20] sm:$0xff]
  %v1845 = vld [vmem:[%s820 + $0x28] sm:$0xff]
  %v1846 = vld [vmem:[%s820 + $0x30] sm:$0xff]
  %v1847 = vld [vmem:[%s820 + $0x38] sm:$0xff]
  %1856 = vrot.lane.b32.xlu0 %v1840, 9
  %v1857 = vpop.permute.xlu0 %1856
  %1858 = vrot.lane.b32.xlu0 %v1841, 9
  %v1859 = vpop.permute.xlu0 %1858
  %1860 = vrot.lane.b32.xlu0 %v1842, 9
  %v1861 = vpop.permute.xlu0 %1860
  %1862 = vrot.lane.b32.xlu0 %v1843, 9
  %v1863 = vpop.permute.xlu0 %1862
  %1864 = vrot.lane.b32.xlu0 %v1844, 9
  %v1865 = vpop.permute.xlu0 %1864
  %1866 = vrot.lane.b32.xlu0 %v1845, 9
  %v1867 = vpop.permute.xlu0 %1866
  %1868 = vrot.lane.b32.xlu0 %v1846, 9
  %v1869 = vpop.permute.xlu0 %1868
  %1870 = vrot.lane.b32.xlu0 %v1847, 9
  %v1871 = vpop.permute.xlu0 %1870
  %vm1872 = vcmask 72704
  %v1873 = vsel %vm1872, %v1857, %v1859
  %v1874 = vsel %vm1872, %v1859, %v1861
  %v1875 = vsel %vm1872, %v1861, %v1863
  %v1876 = vsel %vm1872, %v1865, %v1867
  %v1877 = vsel %vm1872, %v1867, %v1869
  %v1878 = vsel %vm1872, %v1869, %v1871
  %1887 = vst.msk [vmem:[#allocation3 + $0x408] sm:$0xff] %vm896, %v1857
  %1888 = vst [vmem:[#allocation3 + $0x410] sm:$0xff] %v1873
  %1889 = vst [vmem:[#allocation3 + $0x418] sm:$0xff] %v1874
  %1890 = vst.msk [vmem:[#allocation3 + $0x420] sm:$0xff] %vm900, %v1875
  %1891 = vst.msk [vmem:[#allocation3 + $0x440] sm:$0xff] %vm896, %v1865
  %1892 = vst [vmem:[#allocation3 + $0x448] sm:$0xff] %v1876
  %1893 = vst [vmem:[#allocation3 + $0x450] sm:$0xff] %v1877
  %1894 = vst.msk [vmem:[#allocation3 + $0x458] sm:$0xff] %vm900, %v1878
  %v1895 = vld [vmem:[#allocation2] sm:$0xff]
  %v1896 = vld [vmem:[#allocation2 + $0x8] sm:$0xff]
  %v1897 = vld [vmem:[#allocation2 + $0x10] sm:$0xff]
  %v1898 = vld [vmem:[#allocation2 + $0x18] sm:$0xff]
  %v1899 = vld [vmem:[#allocation2 + $0x20] sm:$0xff]
  %v1900 = vld [vmem:[#allocation2 + $0x28] sm:$0xff]
  %v1901 = vld [vmem:[#allocation2 + $0x30] sm:$0xff]
  %v1902 = vld [vmem:[#allocation2 + $0x38] sm:$0xff]
  %1911 = vrot.lane.b32.xlu0 %v1895, 118
  %v1912 = vpop.permute.xlu0 %1911
  %1913 = vrot.lane.b32.xlu0 %v1896, 118
  %v1914 = vpop.permute.xlu0 %1913
  %1915 = vrot.lane.b32.xlu0 %v1897, 118
  %v1916 = vpop.permute.xlu0 %1915
  %1917 = vrot.lane.b32.xlu0 %v1898, 118
  %v1918 = vpop.permute.xlu0 %1917
  %1919 = vrot.lane.b32.xlu0 %v1899, 118
  %v1920 = vpop.permute.xlu0 %1919
  %1921 = vrot.lane.b32.xlu0 %v1900, 118
  %v1922 = vpop.permute.xlu0 %1921
  %1923 = vrot.lane.b32.xlu0 %v1901, 118
  %v1924 = vpop.permute.xlu0 %1923
  %1925 = vrot.lane.b32.xlu0 %v1902, 118
  %v1926 = vpop.permute.xlu0 %1925
  %vm1927 = vcmask 965632
  %v1928 = vsel %vm1927, %v1912, %v1914
  %v1929 = vsel %vm1927, %v1914, %v1916
  %v1930 = vsel %vm1927, %v1916, %v1918
  %v1931 = vsel %vm1927, %v1920, %v1922
  %v1932 = vsel %vm1927, %v1922, %v1924
  %v1933 = vsel %vm1927, %v1924, %v1926
  %1942 = vst [vmem:[#allocation3 + $0x460] sm:$0xff] %v1928
  %1943 = vst [vmem:[#allocation3 + $0x468] sm:$0xff] %v1929
  %1944 = vst [vmem:[#allocation3 + $0x470] sm:$0xff] %v1930
  %1945 = vst.msk [vmem:[#allocation3 + $0x478] sm:$0xff] %vm844, %v1918
  %1946 = vst [vmem:[#allocation3 + $0x498] sm:$0xff] %v1931
  %1947 = vst [vmem:[#allocation3 + $0x4a0] sm:$0xff] %v1932
  %1948 = vst [vmem:[#allocation3 + $0x4a8] sm:$0xff] %v1933
  %1949 = vst.msk [vmem:[#allocation3 + $0x4b0] sm:$0xff] %vm844, %v1926
  %v1950 = vld [vmem:[%s820] sm:$0xff]
  %v1951 = vld [vmem:[%s820 + $0x8] sm:$0xff]
  %v1952 = vld [vmem:[%s820 + $0x10] sm:$0xff]
  %v1953 = vld [vmem:[%s820 + $0x18] sm:$0xff]
  %v1954 = vld [vmem:[%s820 + $0x20] sm:$0xff]
  %v1955 = vld [vmem:[%s820 + $0x28] sm:$0xff]
  %v1956 = vld [vmem:[%s820 + $0x30] sm:$0xff]
  %v1957 = vld [vmem:[%s820 + $0x38] sm:$0xff]
  %1966 = vrot.lane.b32.xlu0 %v1950, 8
  %v1967 = vpop.permute.xlu0 %1966
  %1968 = vrot.lane.b32.xlu0 %v1951, 8
  %v1969 = vpop.permute.xlu0 %1968
  %1970 = vrot.lane.b32.xlu0 %v1952, 8
  %v1971 = vpop.permute.xlu0 %1970
  %1972 = vrot.lane.b32.xlu0 %v1953, 8
  %v1973 = vpop.permute.xlu0 %1972
  %1974 = vrot.lane.b32.xlu0 %v1954, 8
  %v1975 = vpop.permute.xlu0 %1974
  %1976 = vrot.lane.b32.xlu0 %v1955, 8
  %v1977 = vpop.permute.xlu0 %1976
  %1978 = vrot.lane.b32.xlu0 %v1956, 8
  %v1979 = vpop.permute.xlu0 %1978
  %1980 = vrot.lane.b32.xlu0 %v1957, 8
  %v1981 = vpop.permute.xlu0 %1980
  %vm1982 = vcmask 64512
  %v1983 = vsel %vm1982, %v1967, %v1969
  %v1984 = vsel %vm1982, %v1969, %v1971
  %v1985 = vsel %vm1982, %v1971, %v1973
  %v1986 = vsel %vm1982, %v1975, %v1977
  %v1987 = vsel %vm1982, %v1977, %v1979
  %v1988 = vsel %vm1982, %v1979, %v1981
  %1997 = vst.msk [vmem:[#allocation3 + $0x478] sm:$0xff] %vm896, %v1967
  %1998 = vst [vmem:[#allocation3 + $0x480] sm:$0xff] %v1983
  %1999 = vst [vmem:[#allocation3 + $0x488] sm:$0xff] %v1984
  %2000 = vst.msk [vmem:[#allocation3 + $0x490] sm:$0xff] %vm900, %v1985
  %2001 = vst.msk [vmem:[#allocation3 + $0x4b0] sm:$0xff] %vm896, %v1975
  %2002 = vst [vmem:[#allocation3 + $0x4b8] sm:$0xff] %v1986
  %2003 = vst [vmem:[#allocation3 + $0x4c0] sm:$0xff] %v1987
  %2004 = vst.msk [vmem:[#allocation3 + $0x4c8] sm:$0xff] %vm900, %v1988
  %v2005 = vld [vmem:[#allocation2] sm:$0xff]
  %v2006 = vld [vmem:[#allocation2 + $0x8] sm:$0xff]
  %v2007 = vld [vmem:[#allocation2 + $0x10] sm:$0xff]
  %v2008 = vld [vmem:[#allocation2 + $0x18] sm:$0xff]
  %v2009 = vld [vmem:[#allocation2 + $0x20] sm:$0xff]
  %v2010 = vld [vmem:[#allocation2 + $0x28] sm:$0xff]
  %v2011 = vld [vmem:[#allocation2 + $0x30] sm:$0xff]
  %v2012 = vld [vmem:[#allocation2 + $0x38] sm:$0xff]
  %2021 = vrot.lane.b32.xlu0 %v2005, 117
  %v2022 = vpop.permute.xlu0 %2021
  %2023 = vrot.lane.b32.xlu0 %v2006, 117
  %v2024 = vpop.permute.xlu0 %2023
  %2025 = vrot.lane.b32.xlu0 %v2007, 117
  %v2026 = vpop.permute.xlu0 %2025
  %2027 = vrot.lane.b32.xlu0 %v2008, 117
  %v2028 = vpop.permute.xlu0 %2027
  %2029 = vrot.lane.b32.xlu0 %v2009, 117
  %v2030 = vpop.permute.xlu0 %2029
  %2031 = vrot.lane.b32.xlu0 %v2010, 117
  %v2032 = vpop.permute.xlu0 %2031
  %2033 = vrot.lane.b32.xlu0 %v2011, 117
  %v2034 = vpop.permute.xlu0 %2033
  %2035 = vrot.lane.b32.xlu0 %v2012, 117
  %v2036 = vpop.permute.xlu0 %2035
  %vm2037 = vcmask 957440
  %v2038 = vsel %vm2037, %v2022, %v2024
  %v2039 = vsel %vm2037, %v2024, %v2026
  %v2040 = vsel %vm2037, %v2026, %v2028
  %v2041 = vsel %vm2037, %v2030, %v2032
  %v2042 = vsel %vm2037, %v2032, %v2034
  %v2043 = vsel %vm2037, %v2034, %v2036
  %2052 = vst [vmem:[#allocation3 + $0x4d0] sm:$0xff] %v2038
  %2053 = vst [vmem:[#allocation3 + $0x4d8] sm:$0xff] %v2039
  %2054 = vst [vmem:[#allocation3 + $0x4e0] sm:$0xff] %v2040
  %2055 = vst.msk [vmem:[#allocation3 + $0x4e8] sm:$0xff] %vm844, %v2028
  %2056 = vst [vmem:[#allocation3 + $0x508] sm:$0xff] %v2041
  %2057 = vst [vmem:[#allocation3 + $0x510] sm:$0xff] %v2042
  %2058 = vst [vmem:[#allocation3 + $0x518] sm:$0xff] %v2043
  %2059 = vst.msk [vmem:[#allocation3 + $0x520] sm:$0xff] %vm844, %v2036
  %v2060 = vld [vmem:[%s820] sm:$0xff]
  %v2061 = vld [vmem:[%s820 + $0x8] sm:$0xff]
  %v2062 = vld [vmem:[%s820 + $0x10] sm:$0xff]
  %v2063 = vld [vmem:[%s820 + $0x18] sm:$0xff]
  %v2064 = vld [vmem:[%s820 + $0x20] sm:$0xff]
  %v2065 = vld [vmem:[%s820 + $0x28] sm:$0xff]
  %v2066 = vld [vmem:[%s820 + $0x30] sm:$0xff]
  %v2067 = vld [vmem:[%s820 + $0x38] sm:$0xff]
  %2076 = vrot.lane.b32.xlu0 %v2060, 7
  %v2077 = vpop.permute.xlu0 %2076
  %2078 = vrot.lane.b32.xlu0 %v2061, 7
  %v2079 = vpop.permute.xlu0 %2078
  %2080 = vrot.lane.b32.xlu0 %v2062, 7
  %v2081 = vpop.permute.xlu0 %2080
  %2082 = vrot.lane.b32.xlu0 %v2063, 7
  %v2083 = vpop.permute.xlu0 %2082
  %2084 = vrot.lane.b32.xlu0 %v2064, 7
  %v2085 = vpop.permute.xlu0 %2084
  %2086 = vrot.lane.b32.xlu0 %v2065, 7
  %v2087 = vpop.permute.xlu0 %2086
  %2088 = vrot.lane.b32.xlu0 %v2066, 7
  %v2089 = vpop.permute.xlu0 %2088
  %2090 = vrot.lane.b32.xlu0 %v2067, 7
  %v2091 = vpop.permute.xlu0 %2090
  %vm2092 = vcmask 56320
  %v2093 = vsel %vm2092, %v2077, %v2079
  %v2094 = vsel %vm2092, %v2079, %v2081
  %v2095 = vsel %vm2092, %v2081, %v2083
  %v2096 = vsel %vm2092, %v2085, %v2087
  %v2097 = vsel %vm2092, %v2087, %v2089
  %v2098 = vsel %vm2092, %v2089, %v2091
  %2107 = vst.msk [vmem:[#allocation3 + $0x4e8] sm:$0xff] %vm896, %v2077
  %2108 = vst [vmem:[#allocation3 + $0x4f0] sm:$0xff] %v2093
  %2109 = vst [vmem:[#allocation3 + $0x4f8] sm:$0xff] %v2094
  %2110 = vst.msk [vmem:[#allocation3 + $0x500] sm:$0xff] %vm900, %v2095
  %2111 = vst.msk [vmem:[#allocation3 + $0x520] sm:$0xff] %vm896, %v2085
  %2112 = vst [vmem:[#allocation3 + $0x528] sm:$0xff] %v2096
  %2113 = vst [vmem:[#allocation3 + $0x530] sm:$0xff] %v2097
  %2114 = vst.msk [vmem:[#allocation3 + $0x538] sm:$0xff] %vm900, %v2098
  %v2115 = vld [vmem:[#allocation2] sm:$0xff]
  %v2116 = vld [vmem:[#allocation2 + $0x8] sm:$0xff]
  %v2117 = vld [vmem:[#allocation2 + $0x10] sm:$0xff]
  %v2118 = vld [vmem:[#allocation2 + $0x18] sm:$0xff]
  %v2119 = vld [vmem:[#allocation2 + $0x20] sm:$0xff]
  %v2120 = vld [vmem:[#allocation2 + $0x28] sm:$0xff]
  %v2121 = vld [vmem:[#allocation2 + $0x30] sm:$0xff]
  %v2122 = vld [vmem:[#allocation2 + $0x38] sm:$0xff]
  %2131 = vrot.lane.b32.xlu0 %v2115, 116
  %v2132 = vpop.permute.xlu0 %2131
  %2133 = vrot.lane.b32.xlu0 %v2116, 116
  %v2134 = vpop.permute.xlu0 %2133
  %2135 = vrot.lane.b32.xlu0 %v2117, 116
  %v2136 = vpop.permute.xlu0 %2135
  %2137 = vrot.lane.b32.xlu0 %v2118, 116
  %v2138 = vpop.permute.xlu0 %2137
  %2139 = vrot.lane.b32.xlu0 %v2119, 116
  %v2140 = vpop.permute.xlu0 %2139
  %2141 = vrot.lane.b32.xlu0 %v2120, 116
  %v2142 = vpop.permute.xlu0 %2141
  %2143 = vrot.lane.b32.xlu0 %v2121, 116
  %v2144 = vpop.permute.xlu0 %2143
  %2145 = vrot.lane.b32.xlu0 %v2122, 116
  %v2146 = vpop.permute.xlu0 %2145
  %vm2147 = vcmask 949248
  %v2148 = vsel %vm2147, %v2132, %v2134
  %v2149 = vsel %vm2147, %v2134, %v2136
  %v2150 = vsel %vm2147, %v2136, %v2138
  %v2151 = vsel %vm2147, %v2140, %v2142
  %v2152 = vsel %vm2147, %v2142, %v2144
  %v2153 = vsel %vm2147, %v2144, %v2146
  %2162 = vst [vmem:[#allocation3 + $0x540] sm:$0xff] %v2148
  %2163 = vst [vmem:[#allocation3 + $0x548] sm:$0xff] %v2149
  %2164 = vst [vmem:[#allocation3 + $0x550] sm:$0xff] %v2150
  %2165 = vst.msk [vmem:[#allocation3 + $0x558] sm:$0xff] %vm844, %v2138
  %2166 = vst [vmem:[#allocation3 + $0x578] sm:$0xff] %v2151
  %2167 = vst [vmem:[#allocation3 + $0x580] sm:$0xff] %v2152
  %2168 = vst [vmem:[#allocation3 + $0x588] sm:$0xff] %v2153
  %2169 = vst.msk [vmem:[#allocation3 + $0x590] sm:$0xff] %vm844, %v2146
  %v2170 = vld [vmem:[%s820] sm:$0xff]
  %v2171 = vld [vmem:[%s820 + $0x8] sm:$0xff]
  %v2172 = vld [vmem:[%s820 + $0x10] sm:$0xff]
  %v2173 = vld [vmem:[%s820 + $0x18] sm:$0xff]
  %v2174 = vld [vmem:[%s820 + $0x20] sm:$0xff]
  %v2175 = vld [vmem:[%s820 + $0x28] sm:$0xff]
  %v2176 = vld [vmem:[%s820 + $0x30] sm:$0xff]
  %v2177 = vld [vmem:[%s820 + $0x38] sm:$0xff]
  %2186 = vrot.lane.b32.xlu0 %v2170, 6
  %v2187 = vpop.permute.xlu0 %2186
  %2188 = vrot.lane.b32.xlu0 %v2171, 6
  %v2189 = vpop.permute.xlu0 %2188
  %2190 = vrot.lane.b32.xlu0 %v2172, 6
  %v2191 = vpop.permute.xlu0 %2190
  %2192 = vrot.lane.b32.xlu0 %v2173, 6
  %v2193 = vpop.permute.xlu0 %2192
  %2194 = vrot.lane.b32.xlu0 %v2174, 6
  %v2195 = vpop.permute.xlu0 %2194
  %2196 = vrot.lane.b32.xlu0 %v2175, 6
  %v2197 = vpop.permute.xlu0 %2196
  %2198 = vrot.lane.b32.xlu0 %v2176, 6
  %v2199 = vpop.permute.xlu0 %2198
  %2200 = vrot.lane.b32.xlu0 %v2177, 6
  %v2201 = vpop.permute.xlu0 %2200
  %vm2202 = vcmask 48128
  %v2203 = vsel %vm2202, %v2187, %v2189
  %v2204 = vsel %vm2202, %v2189, %v2191
  %v2205 = vsel %vm2202, %v2191, %v2193
  %v2206 = vsel %vm2202, %v2195, %v2197
  %v2207 = vsel %vm2202, %v2197, %v2199
  %v2208 = vsel %vm2202, %v2199, %v2201
  %2217 = vst.msk [vmem:[#allocation3 + $0x558] sm:$0xff] %vm896, %v2187
  %2218 = vst [vmem:[#allocation3 + $0x560] sm:$0xff] %v2203
  %2219 = vst [vmem:[#allocation3 + $0x568] sm:$0xff] %v2204
  %2220 = vst.msk [vmem:[#allocation3 + $0x570] sm:$0xff] %vm900, %v2205
  %2221 = vst.msk [vmem:[#allocation3 + $0x590] sm:$0xff] %vm896, %v2195
  %2222 = vst [vmem:[#allocation3 + $0x598] sm:$0xff] %v2206
  %2223 = vst [vmem:[#allocation3 + $0x5a0] sm:$0xff] %v2207
  %2224 = vst.msk [vmem:[#allocation3 + $0x5a8] sm:$0xff] %vm900, %v2208
  %v2225 = vld [vmem:[#allocation2] sm:$0xff]
  %v2226 = vld [vmem:[#allocation2 + $0x8] sm:$0xff]
  %v2227 = vld [vmem:[#allocation2 + $0x10] sm:$0xff]
  %v2228 = vld [vmem:[#allocation2 + $0x18] sm:$0xff]
  %v2229 = vld [vmem:[#allocation2 + $0x20] sm:$0xff]
  %v2230 = vld [vmem:[#allocation2 + $0x28] sm:$0xff]
  %v2231 = vld [vmem:[#allocation2 + $0x30] sm:$0xff]
  %v2232 = vld [vmem:[#allocation2 + $0x38] sm:$0xff]
  %2241 = vrot.lane.b32.xlu0 %v2225, 115
  %v2242 = vpop.permute.xlu0 %2241
  %2243 = vrot.lane.b32.xlu0 %v2226, 115
  %v2244 = vpop.permute.xlu0 %2243
  %2245 = vrot.lane.b32.xlu0 %v2227, 115
  %v2246 = vpop.permute.xlu0 %2245
  %2247 = vrot.lane.b32.xlu0 %v2228, 115
  %v2248 = vpop.permute.xlu0 %2247
  %2249 = vrot.lane.b32.xlu0 %v2229, 115
  %v2250 = vpop.permute.xlu0 %2249
  %2251 = vrot.lane.b32.xlu0 %v2230, 115
  %v2252 = vpop.permute.xlu0 %2251
  %2253 = vrot.lane.b32.xlu0 %v2231, 115
  %v2254 = vpop.permute.xlu0 %2253
  %2255 = vrot.lane.b32.xlu0 %v2232, 115
  %v2256 = vpop.permute.xlu0 %2255
  %vm2257 = vcmask 941056
  %v2258 = vsel %vm2257, %v2242, %v2244
  %v2259 = vsel %vm2257, %v2244, %v2246
  %v2260 = vsel %vm2257, %v2246, %v2248
  %v2261 = vsel %vm2257, %v2250, %v2252
  %v2262 = vsel %vm2257, %v2252, %v2254
  %v2263 = vsel %vm2257, %v2254, %v2256
  %2272 = vst [vmem:[#allocation3 + $0x5b0] sm:$0xff] %v2258
  %2273 = vst [vmem:[#allocation3 + $0x5b8] sm:$0xff] %v2259
  %2274 = vst [vmem:[#allocation3 + $0x5c0] sm:$0xff] %v2260
  %2275 = vst.msk [vmem:[#allocation3 + $0x5c8] sm:$0xff] %vm844, %v2248
  %2276 = vst [vmem:[#allocation3 + $0x5e8] sm:$0xff] %v2261
  %2277 = vst [vmem:[#allocation3 + $0x5f0] sm:$0xff] %v2262
  %2278 = vst [vmem:[#allocation3 + $0x5f8] sm:$0xff] %v2263
  %2279 = vst.msk [vmem:[#allocation3 + $0x600] sm:$0xff] %vm844, %v2256
  %v2280 = vld [vmem:[%s820] sm:$0xff]
  %v2281 = vld [vmem:[%s820 + $0x8] sm:$0xff]
  %v2282 = vld [vmem:[%s820 + $0x10] sm:$0xff]
  %v2283 = vld [vmem:[%s820 + $0x18] sm:$0xff]
  %v2284 = vld [vmem:[%s820 + $0x20] sm:$0xff]
  %v2285 = vld [vmem:[%s820 + $0x28] sm:$0xff]
  %v2286 = vld [vmem:[%s820 + $0x30] sm:$0xff]
  %v2287 = vld [vmem:[%s820 + $0x38] sm:$0xff]
  %2296 = vrot.lane.b32.xlu0 %v2280, 5
  %v2297 = vpop.permute.xlu0 %2296
  %2298 = vrot.lane.b32.xlu0 %v2281, 5
  %v2299 = vpop.permute.xlu0 %2298
  %2300 = vrot.lane.b32.xlu0 %v2282, 5
  %v2301 = vpop.permute.xlu0 %2300
  %2302 = vrot.lane.b32.xlu0 %v2283, 5
  %v2303 = vpop.permute.xlu0 %2302
  %2304 = vrot.lane.b32.xlu0 %v2284, 5
  %v2305 = vpop.permute.xlu0 %2304
  %2306 = vrot.lane.b32.xlu0 %v2285, 5
  %v2307 = vpop.permute.xlu0 %2306
  %2308 = vrot.lane.b32.xlu0 %v2286, 5
  %v2309 = vpop.permute.xlu0 %2308
  %2310 = vrot.lane.b32.xlu0 %v2287, 5
  %v2311 = vpop.permute.xlu0 %2310
  %vm2312 = vcmask 39936
  %v2313 = vsel %vm2312, %v2297, %v2299
  %v2314 = vsel %vm2312, %v2299, %v2301
  %v2315 = vsel %vm2312, %v2301, %v2303
  %v2316 = vsel %vm2312, %v2305, %v2307
  %v2317 = vsel %vm2312, %v2307, %v2309
  %v2318 = vsel %vm2312, %v2309, %v2311
  %2327 = vst.msk [vmem:[#allocation3 + $0x5c8] sm:$0xff] %vm896, %v2297
  %2328 = vst [vmem:[#allocation3 + $0x5d0] sm:$0xff] %v2313
  %2329 = vst [vmem:[#allocation3 + $0x5d8] sm:$0xff] %v2314
  %2330 = vst.msk [vmem:[#allocation3 + $0x5e0] sm:$0xff] %vm900, %v2315
  %2331 = vst.msk [vmem:[#allocation3 + $0x600] sm:$0xff] %vm896, %v2305
  %2332 = vst [vmem:[#allocation3 + $0x608] sm:$0xff] %v2316
  %2333 = vst [vmem:[#allocation3 + $0x610] sm:$0xff] %v2317
  %2334 = vst.msk [vmem:[#allocation3 + $0x618] sm:$0xff] %vm900, %v2318
  %v2335 = vld [vmem:[#allocation2] sm:$0xff]
  %v2336 = vld [vmem:[#allocation2 + $0x8] sm:$0xff]
  %v2337 = vld [vmem:[#allocation2 + $0x10] sm:$0xff]
  %v2338 = vld [vmem:[#allocation2 + $0x18] sm:$0xff]
  %v2339 = vld [vmem:[#allocation2 + $0x20] sm:$0xff]
  %v2340 = vld [vmem:[#allocation2 + $0x28] sm:$0xff]
  %v2341 = vld [vmem:[#allocation2 + $0x30] sm:$0xff]
  %v2342 = vld [vmem:[#allocation2 + $0x38] sm:$0xff]
  %2351 = vrot.lane.b32.xlu0 %v2335, 114
  %v2352 = vpop.permute.xlu0 %2351
  %2353 = vrot.lane.b32.xlu0 %v2336, 114
  %v2354 = vpop.permute.xlu0 %2353
  %2355 = vrot.lane.b32.xlu0 %v2337, 114
  %v2356 = vpop.permute.xlu0 %2355
  %2357 = vrot.lane.b32.xlu0 %v2338, 114
  %v2358 = vpop.permute.xlu0 %2357
  %2359 = vrot.lane.b32.xlu0 %v2339, 114
  %v2360 = vpop.permute.xlu0 %2359
  %2361 = vrot.lane.b32.xlu0 %v2340, 114
  %v2362 = vpop.permute.xlu0 %2361
  %2363 = vrot.lane.b32.xlu0 %v2341, 114
  %v2364 = vpop.permute.xlu0 %2363
  %2365 = vrot.lane.b32.xlu0 %v2342, 114
  %v2366 = vpop.permute.xlu0 %2365
  %vm2367 = vcmask 932864
  %v2368 = vsel %vm2367, %v2352, %v2354
  %v2369 = vsel %vm2367, %v2354, %v2356
  %v2370 = vsel %vm2367, %v2356, %v2358
  %v2371 = vsel %vm2367, %v2360, %v2362
  %v2372 = vsel %vm2367, %v2362, %v2364
  %v2373 = vsel %vm2367, %v2364, %v2366
  %2382 = vst [vmem:[#allocation3 + $0x620] sm:$0xff] %v2368
  %2383 = vst [vmem:[#allocation3 + $0x628] sm:$0xff] %v2369
  %2384 = vst [vmem:[#allocation3 + $0x630] sm:$0xff] %v2370
  %2385 = vst.msk [vmem:[#allocation3 + $0x638] sm:$0xff] %vm844, %v2358
  %2386 = vst [vmem:[#allocation3 + $0x658] sm:$0xff] %v2371
  %2387 = vst [vmem:[#allocation3 + $0x660] sm:$0xff] %v2372
  %2388 = vst [vmem:[#allocation3 + $0x668] sm:$0xff] %v2373
  %2389 = vst.msk [vmem:[#allocation3 + $0x670] sm:$0xff] %vm844, %v2366
  %v2390 = vld [vmem:[%s820] sm:$0xff]
  %v2391 = vld [vmem:[%s820 + $0x8] sm:$0xff]
  %v2392 = vld [vmem:[%s820 + $0x10] sm:$0xff]
  %v2393 = vld [vmem:[%s820 + $0x18] sm:$0xff]
  %v2394 = vld [vmem:[%s820 + $0x20] sm:$0xff]
  %v2395 = vld [vmem:[%s820 + $0x28] sm:$0xff]
  %v2396 = vld [vmem:[%s820 + $0x30] sm:$0xff]
  %v2397 = vld [vmem:[%s820 + $0x38] sm:$0xff]
  %2406 = vrot.lane.b32.xlu0 %v2390, 4
  %v2407 = vpop.permute.xlu0 %2406
  %2408 = vrot.lane.b32.xlu0 %v2391, 4
  %v2409 = vpop.permute.xlu0 %2408
  %2410 = vrot.lane.b32.xlu0 %v2392, 4
  %v2411 = vpop.permute.xlu0 %2410
  %2412 = vrot.lane.b32.xlu0 %v2393, 4
  %v2413 = vpop.permute.xlu0 %2412
  %2414 = vrot.lane.b32.xlu0 %v2394, 4
  %v2415 = vpop.permute.xlu0 %2414
  %2416 = vrot.lane.b32.xlu0 %v2395, 4
  %v2417 = vpop.permute.xlu0 %2416
  %2418 = vrot.lane.b32.xlu0 %v2396, 4
  %v2419 = vpop.permute.xlu0 %2418
  %2420 = vrot.lane.b32.xlu0 %v2397, 4
  %v2421 = vpop.permute.xlu0 %2420
  %vm2422 = vcmask 31744
  %v2423 = vsel %vm2422, %v2407, %v2409
  %v2424 = vsel %vm2422, %v2409, %v2411
  %v2425 = vsel %vm2422, %v2411, %v2413
  %v2426 = vsel %vm2422, %v2415, %v2417
  %v2427 = vsel %vm2422, %v2417, %v2419
  %v2428 = vsel %vm2422, %v2419, %v2421
  %2437 = vst.msk [vmem:[#allocation3 + $0x638] sm:$0xff] %vm896, %v2407
  %2438 = vst [vmem:[#allocation3 + $0x640] sm:$0xff] %v2423
  %2439 = vst [vmem:[#allocation3 + $0x648] sm:$0xff] %v2424
  %2440 = vst.msk [vmem:[#allocation3 + $0x650] sm:$0xff] %vm900, %v2425
  %2441 = vst.msk [vmem:[#allocation3 + $0x670] sm:$0xff] %vm896, %v2415
  %2442 = vst [vmem:[#allocation3 + $0x678] sm:$0xff] %v2426
  %2443 = vst [vmem:[#allocation3 + $0x680] sm:$0xff] %v2427
  %2444 = vst.msk [vmem:[#allocation3 + $0x688] sm:$0xff] %vm900, %v2428
  %v2445 = vld [vmem:[#allocation2] sm:$0xff]
  %v2446 = vld [vmem:[#allocation2 + $0x8] sm:$0xff]
  %v2447 = vld [vmem:[#allocation2 + $0x10] sm:$0xff]
  %v2448 = vld [vmem:[#allocation2 + $0x18] sm:$0xff]
  %v2449 = vld [vmem:[#allocation2 + $0x20] sm:$0xff]
  %v2450 = vld [vmem:[#allocation2 + $0x28] sm:$0xff]
  %v2451 = vld [vmem:[#allocation2 + $0x30] sm:$0xff]
  %v2452 = vld [vmem:[#allocation2 + $0x38] sm:$0xff]
  %2461 = vrot.lane.b32.xlu0 %v2445, 113
  %v2462 = vpop.permute.xlu0 %2461
  %2463 = vrot.lane.b32.xlu0 %v2446, 113
  %v2464 = vpop.permute.xlu0 %2463
  %2465 = vrot.lane.b32.xlu0 %v2447, 113
  %v2466 = vpop.permute.xlu0 %2465
  %2467 = vrot.lane.b32.xlu0 %v2448, 113
  %v2468 = vpop.permute.xlu0 %2467
  %2469 = vrot.lane.b32.xlu0 %v2449, 113
  %v2470 = vpop.permute.xlu0 %2469
  %2471 = vrot.lane.b32.xlu0 %v2450, 113
  %v2472 = vpop.permute.xlu0 %2471
  %2473 = vrot.lane.b32.xlu0 %v2451, 113
  %v2474 = vpop.permute.xlu0 %2473
  %2475 = vrot.lane.b32.xlu0 %v2452, 113
  %v2476 = vpop.permute.xlu0 %2475
  %vm2477 = vcmask 924672
  %v2478 = vsel %vm2477, %v2462, %v2464
  %v2479 = vsel %vm2477, %v2464, %v2466
  %v2480 = vsel %vm2477, %v2466, %v2468
  %v2481 = vsel %vm2477, %v2470, %v2472
  %v2482 = vsel %vm2477, %v2472, %v2474
  %v2483 = vsel %vm2477, %v2474, %v2476
  %2492 = vst [vmem:[#allocation3 + $0x690] sm:$0xff] %v2478
  %2493 = vst [vmem:[#allocation3 + $0x698] sm:$0xff] %v2479
  %2494 = vst [vmem:[#allocation3 + $0x6a0] sm:$0xff] %v2480
  %2495 = vst.msk [vmem:[#allocation3 + $0x6a8] sm:$0xff] %vm844, %v2468
  %2496 = vst [vmem:[#allocation3 + $0x6c8] sm:$0xff] %v2481
  %2497 = vst [vmem:[#allocation3 + $0x6d0] sm:$0xff] %v2482
  %2498 = vst [vmem:[#allocation3 + $0x6d8] sm:$0xff] %v2483
  %2499 = vst.msk [vmem:[#allocation3 + $0x6e0] sm:$0xff] %vm844, %v2476
  %v2500 = vld [vmem:[%s820] sm:$0xff]
  %v2501 = vld [vmem:[%s820 + $0x8] sm:$0xff]
  %v2502 = vld [vmem:[%s820 + $0x10] sm:$0xff]
  %v2503 = vld [vmem:[%s820 + $0x18] sm:$0xff]
  %v2504 = vld [vmem:[%s820 + $0x20] sm:$0xff]
  %v2505 = vld [vmem:[%s820 + $0x28] sm:$0xff]
  %v2506 = vld [vmem:[%s820 + $0x30] sm:$0xff]
  %v2507 = vld [vmem:[%s820 + $0x38] sm:$0xff]
  %2516 = vrot.lane.b32.xlu0 %v2500, 3
  %v2517 = vpop.permute.xlu0 %2516
  %2518 = vrot.lane.b32.xlu0 %v2501, 3
  %v2519 = vpop.permute.xlu0 %2518
  %2520 = vrot.lane.b32.xlu0 %v2502, 3
  %v2521 = vpop.permute.xlu0 %2520
  %2522 = vrot.lane.b32.xlu0 %v2503, 3
  %v2523 = vpop.permute.xlu0 %2522
  %2524 = vrot.lane.b32.xlu0 %v2504, 3
  %v2525 = vpop.permute.xlu0 %2524
  %2526 = vrot.lane.b32.xlu0 %v2505, 3
  %v2527 = vpop.permute.xlu0 %2526
  %2528 = vrot.lane.b32.xlu0 %v2506, 3
  %v2529 = vpop.permute.xlu0 %2528
  %2530 = vrot.lane.b32.xlu0 %v2507, 3
  %v2531 = vpop.permute.xlu0 %2530
  %vm2532 = vcmask 23552
  %v2533 = vsel %vm2532, %v2517, %v2519
  %v2534 = vsel %vm2532, %v2519, %v2521
  %v2535 = vsel %vm2532, %v2521, %v2523
  %v2536 = vsel %vm2532, %v2525, %v2527
  %v2537 = vsel %vm2532, %v2527, %v2529
  %v2538 = vsel %vm2532, %v2529, %v2531
  %2547 = vst.msk [vmem:[#allocation3 + $0x6a8] sm:$0xff] %vm896, %v2517
  %2548 = vst [vmem:[#allocation3 + $0x6b0] sm:$0xff] %v2533
  %2549 = vst [vmem:[#allocation3 + $0x6b8] sm:$0xff] %v2534
  %2550 = vst.msk [vmem:[#allocation3 + $0x6c0] sm:$0xff] %vm900, %v2535
  %2551 = vst.msk [vmem:[#allocation3 + $0x6e0] sm:$0xff] %vm896, %v2525
  %2552 = vst [vmem:[#allocation3 + $0x6e8] sm:$0xff] %v2536
  %2553 = vst [vmem:[#allocation3 + $0x6f0] sm:$0xff] %v2537
  %2554 = vst.msk [vmem:[#allocation3 + $0x6f8] sm:$0xff] %vm900, %v2538
  %v2555 = vld [vmem:[#allocation2] sm:$0xff]
  %v2556 = vld [vmem:[#allocation2 + $0x8] sm:$0xff]
  %v2557 = vld [vmem:[#allocation2 + $0x10] sm:$0xff]
  %v2558 = vld [vmem:[#allocation2 + $0x18] sm:$0xff]
  %v2559 = vld [vmem:[#allocation2 + $0x20] sm:$0xff]
  %v2560 = vld [vmem:[#allocation2 + $0x28] sm:$0xff]
  %v2561 = vld [vmem:[#allocation2 + $0x30] sm:$0xff]
  %v2562 = vld [vmem:[#allocation2 + $0x38] sm:$0xff]
  %2571 = vrot.lane.b32.xlu0 %v2555, 112
  %v2572 = vpop.permute.xlu0 %2571
  %2573 = vrot.lane.b32.xlu0 %v2556, 112
  %v2574 = vpop.permute.xlu0 %2573
  %2575 = vrot.lane.b32.xlu0 %v2557, 112
  %v2576 = vpop.permute.xlu0 %2575
  %2577 = vrot.lane.b32.xlu0 %v2558, 112
  %v2578 = vpop.permute.xlu0 %2577
  %2579 = vrot.lane.b32.xlu0 %v2559, 112
  %v2580 = vpop.permute.xlu0 %2579
  %2581 = vrot.lane.b32.xlu0 %v2560, 112
  %v2582 = vpop.permute.xlu0 %2581
  %2583 = vrot.lane.b32.xlu0 %v2561, 112
  %v2584 = vpop.permute.xlu0 %2583
  %2585 = vrot.lane.b32.xlu0 %v2562, 112
  %v2586 = vpop.permute.xlu0 %2585
  %vm2587 = vcmask 916480
  %v2588 = vsel %vm2587, %v2572, %v2574
  %v2589 = vsel %vm2587, %v2574, %v2576
  %v2590 = vsel %vm2587, %v2576, %v2578
  %v2591 = vsel %vm2587, %v2580, %v2582
  %v2592 = vsel %vm2587, %v2582, %v2584
  %v2593 = vsel %vm2587, %v2584, %v2586
  %2602 = vst [vmem:[#allocation3 + $0x700] sm:$0xff] %v2588
  %2603 = vst [vmem:[#allocation3 + $0x708] sm:$0xff] %v2589
  %2604 = vst [vmem:[#allocation3 + $0x710] sm:$0xff] %v2590
  %2605 = vst.msk [vmem:[#allocation3 + $0x718] sm:$0xff] %vm844, %v2578
  %2606 = vst [vmem:[#allocation3 + $0x738] sm:$0xff] %v2591
  %2607 = vst [vmem:[#allocation3 + $0x740] sm:$0xff] %v2592
  %2608 = vst [vmem:[#allocation3 + $0x748] sm:$0xff] %v2593
  %2609 = vst.msk [vmem:[#allocation3 + $0x750] sm:$0xff] %vm844, %v2586
  %v2610 = vld [vmem:[%s820] sm:$0xff]
  %v2611 = vld [vmem:[%s820 + $0x8] sm:$0xff]
  %v2612 = vld [vmem:[%s820 + $0x10] sm:$0xff]
  %v2613 = vld [vmem:[%s820 + $0x18] sm:$0xff]
  %v2614 = vld [vmem:[%s820 + $0x20] sm:$0xff]
  %v2615 = vld [vmem:[%s820 + $0x28] sm:$0xff]
  %v2616 = vld [vmem:[%s820 + $0x30] sm:$0xff]
  %v2617 = vld [vmem:[%s820 + $0x38] sm:$0xff]
  %2626 = vrot.lane.b32.xlu0 %v2610, 2
  %v2627 = vpop.permute.xlu0 %2626
  %2628 = vrot.lane.b32.xlu0 %v2611, 2
  %v2629 = vpop.permute.xlu0 %2628
  %2630 = vrot.lane.b32.xlu0 %v2612, 2
  %v2631 = vpop.permute.xlu0 %2630
  %2632 = vrot.lane.b32.xlu0 %v2613, 2
  %v2633 = vpop.permute.xlu0 %2632
  %2634 = vrot.lane.b32.xlu0 %v2614, 2
  %v2635 = vpop.permute.xlu0 %2634
  %2636 = vrot.lane.b32.xlu0 %v2615, 2
  %v2637 = vpop.permute.xlu0 %2636
  %2638 = vrot.lane.b32.xlu0 %v2616, 2
  %v2639 = vpop.permute.xlu0 %2638
  %2640 = vrot.lane.b32.xlu0 %v2617, 2
  %v2641 = vpop.permute.xlu0 %2640
  %vm2642 = vcmask 15360
  %v2643 = vsel %vm2642, %v2627, %v2629
  %v2644 = vsel %vm2642, %v2629, %v2631
  %v2645 = vsel %vm2642, %v2631, %v2633
  %v2646 = vsel %vm2642, %v2635, %v2637
  %v2647 = vsel %vm2642, %v2637, %v2639
  %v2648 = vsel %vm2642, %v2639, %v2641
  %2657 = vst.msk [vmem:[#allocation3 + $0x718] sm:$0xff] %vm896, %v2627
  %2658 = vst [vmem:[#allocation3 + $0x720] sm:$0xff] %v2643
  %2659 = vst [vmem:[#allocation3 + $0x728] sm:$0xff] %v2644
  %2660 = vst.msk [vmem:[#allocation3 + $0x730] sm:$0xff] %vm900, %v2645
  %2661 = vst.msk [vmem:[#allocation3 + $0x750] sm:$0xff] %vm896, %v2635
  %2662 = vst [vmem:[#allocation3 + $0x758] sm:$0xff] %v2646
  %2663 = vst [vmem:[#allocation3 + $0x760] sm:$0xff] %v2647
  %2664 = vst.msk [vmem:[#allocation3 + $0x768] sm:$0xff] %vm900, %v2648
  %v2665 = vld [vmem:[#allocation2] sm:$0xff]
  %v2666 = vld [vmem:[#allocation2 + $0x8] sm:$0xff]
  %v2667 = vld [vmem:[#allocation2 + $0x10] sm:$0xff]
  %v2668 = vld [vmem:[#allocation2 + $0x18] sm:$0xff]
  %v2669 = vld [vmem:[#allocation2 + $0x20] sm:$0xff]
  %v2670 = vld [vmem:[#allocation2 + $0x28] sm:$0xff]
  %v2671 = vld [vmem:[#allocation2 + $0x30] sm:$0xff]
  %v2672 = vld [vmem:[#allocation2 + $0x38] sm:$0xff]
  %2681 = vrot.lane.b32.xlu0 %v2665, 111
  %v2682 = vpop.permute.xlu0 %2681
  %2683 = vrot.lane.b32.xlu0 %v2666, 111
  %v2684 = vpop.permute.xlu0 %2683
  %2685 = vrot.lane.b32.xlu0 %v2667, 111
  %v2686 = vpop.permute.xlu0 %2685
  %2687 = vrot.lane.b32.xlu0 %v2668, 111
  %v2688 = vpop.permute.xlu0 %2687
  %2689 = vrot.lane.b32.xlu0 %v2669, 111
  %v2690 = vpop.permute.xlu0 %2689
  %2691 = vrot.lane.b32.xlu0 %v2670, 111
  %v2692 = vpop.permute.xlu0 %2691
  %2693 = vrot.lane.b32.xlu0 %v2671, 111
  %v2694 = vpop.permute.xlu0 %2693
  %2695 = vrot.lane.b32.xlu0 %v2672, 111
  %v2696 = vpop.permute.xlu0 %2695
  %vm2697 = vcmask 908288
  %v2698 = vsel %vm2697, %v2682, %v2684
  %v2699 = vsel %vm2697, %v2684, %v2686
  %v2700 = vsel %vm2697, %v2686, %v2688
  %v2701 = vsel %vm2697, %v2690, %v2692
  %v2702 = vsel %vm2697, %v2692, %v2694
  %v2703 = vsel %vm2697, %v2694, %v2696
  %2712 = vst [vmem:[#allocation3 + $0x770] sm:$0xff] %v2698
  %2713 = vst [vmem:[#allocation3 + $0x778] sm:$0xff] %v2699
  %2714 = vst [vmem:[#allocation3 + $0x780] sm:$0xff] %v2700
  %2715 = vst.msk [vmem:[#allocation3 + $0x788] sm:$0xff] %vm844, %v2688
  %2716 = vst [vmem:[#allocation3 + $0x7a8] sm:$0xff] %v2701
  %2717 = vst [vmem:[#allocation3 + $0x7b0] sm:$0xff] %v2702
  %2718 = vst [vmem:[#allocation3 + $0x7b8] sm:$0xff] %v2703
  %2719 = vst.msk [vmem:[#allocation3 + $0x7c0] sm:$0xff] %vm844, %v2696
  %v2720 = vld [vmem:[%s820] sm:$0xff]
  %v2721 = vld [vmem:[%s820 + $0x8] sm:$0xff]
  %v2722 = vld [vmem:[%s820 + $0x10] sm:$0xff]
  %v2723 = vld [vmem:[%s820 + $0x18] sm:$0xff]
  %v2724 = vld [vmem:[%s820 + $0x20] sm:$0xff]
  %v2725 = vld [vmem:[%s820 + $0x28] sm:$0xff]
  %v2726 = vld [vmem:[%s820 + $0x30] sm:$0xff]
  %v2727 = vld [vmem:[%s820 + $0x38] sm:$0xff]
  %2736 = vrot.lane.b32.xlu0 %v2720, 1
  %v2737 = vpop.permute.xlu0 %2736
  %2738 = vrot.lane.b32.xlu0 %v2721, 1
  %v2739 = vpop.permute.xlu0 %2738
  %2740 = vrot.lane.b32.xlu0 %v2722, 1
  %v2741 = vpop.permute.xlu0 %2740
  %2742 = vrot.lane.b32.xlu0 %v2723, 1
  %v2743 = vpop.permute.xlu0 %2742
  %2744 = vrot.lane.b32.xlu0 %v2724, 1
  %v2745 = vpop.permute.xlu0 %2744
  %2746 = vrot.lane.b32.xlu0 %v2725, 1
  %v2747 = vpop.permute.xlu0 %2746
  %2748 = vrot.lane.b32.xlu0 %v2726, 1
  %v2749 = vpop.permute.xlu0 %2748
  %2750 = vrot.lane.b32.xlu0 %v2727, 1
  %v2751 = vpop.permute.xlu0 %2750
  %vm2752 = vcmask 7168
  %v2753 = vsel %vm2752, %v2737, %v2739
  %v2754 = vsel %vm2752, %v2739, %v2741
  %v2755 = vsel %vm2752, %v2741, %v2743
  %v2756 = vsel %vm2752, %v2745, %v2747
  %v2757 = vsel %vm2752, %v2747, %v2749
  %v2758 = vsel %vm2752, %v2749, %v2751
  %2767 = vst.msk [vmem:[#allocation3 + $0x788] sm:$0xff] %vm896, %v2737
  %2768 = vst [vmem:[#allocation3 + $0x790] sm:$0xff] %v2753
  %2769 = vst [vmem:[#allocation3 + $0x798] sm:$0xff] %v2754
  %2770 = vst.msk [vmem:[#allocation3 + $0x7a0] sm:$0xff] %vm900, %v2755
  %2771 = vst.msk [vmem:[#allocation3 + $0x7c0] sm:$0xff] %vm896, %v2745
  %2772 = vst [vmem:[#allocation3 + $0x7c8] sm:$0xff] %v2756
  %2773 = vst [vmem:[#allocation3 + $0x7d0] sm:$0xff] %v2757
  %2774 = vst.msk [vmem:[#allocation3 + $0x7d8] sm:$0xff] %vm900, %v2758
  %v2775 = vld [vmem:[#allocation2] sm:$0xff]
  %v2776 = vld [vmem:[#allocation2 + $0x8] sm:$0xff]
  %v2777 = vld [vmem:[#allocation2 + $0x10] sm:$0xff]
  %v2778 = vld [vmem:[#allocation2 + $0x18] sm:$0xff]
  %v2779 = vld [vmem:[#allocation2 + $0x20] sm:$0xff]
  %v2780 = vld [vmem:[#allocation2 + $0x28] sm:$0xff]
  %v2781 = vld [vmem:[#allocation2 + $0x30] sm:$0xff]
  %v2782 = vld [vmem:[#allocation2 + $0x38] sm:$0xff]
  %2791 = vrot.lane.b32.xlu0 %v2775, 110
  %v2792 = vpop.permute.xlu0 %2791
  %2793 = vrot.lane.b32.xlu0 %v2776, 110
  %v2794 = vpop.permute.xlu0 %2793
  %2795 = vrot.lane.b32.xlu0 %v2777, 110
  %v2796 = vpop.permute.xlu0 %2795
  %2797 = vrot.lane.b32.xlu0 %v2778, 110
  %v2798 = vpop.permute.xlu0 %2797
  %2799 = vrot.lane.b32.xlu0 %v2779, 110
  %v2800 = vpop.permute.xlu0 %2799
  %2801 = vrot.lane.b32.xlu0 %v2780, 110
  %v2802 = vpop.permute.xlu0 %2801
  %2803 = vrot.lane.b32.xlu0 %v2781, 110
  %v2804 = vpop.permute.xlu0 %2803
  %2805 = vrot.lane.b32.xlu0 %v2782, 110
  %v2806 = vpop.permute.xlu0 %2805
  %vm2807 = vcmask 900096
  %v2808 = vsel %vm2807, %v2792, %v2794
  %v2809 = vsel %vm2807, %v2794, %v2796
  %v2810 = vsel %vm2807, %v2796, %v2798
  %v2811 = vsel %vm2807, %v2800, %v2802
  %v2812 = vsel %vm2807, %v2802, %v2804
  %v2813 = vsel %vm2807, %v2804, %v2806
  %2822 = vst [vmem:[#allocation3 + $0x7e0] sm:$0xff] %v2808
  %2823 = vst [vmem:[#allocation3 + $0x7e8] sm:$0xff] %v2809
  %2824 = vst [vmem:[#allocation3 + $0x7f0] sm:$0xff] %v2810
  %2825 = vst.msk [vmem:[#allocation3 + $0x7f8] sm:$0xff] %vm844, %v2798
  %2826 = vst [vmem:[#allocation3 + $0x818] sm:$0xff] %v2811
  %2827 = vst [vmem:[#allocation3 + $0x820] sm:$0xff] %v2812
  %2828 = vst [vmem:[#allocation3 + $0x828] sm:$0xff] %v2813
  %2829 = vst.msk [vmem:[#allocation3 + $0x830] sm:$0xff] %vm844, %v2806
  %v2830 = vld [vmem:[%s820] sm:$0xff]
  %v2831 = vld [vmem:[%s820 + $0x8] sm:$0xff]
  %v2832 = vld [vmem:[%s820 + $0x10] sm:$0xff]
  %v2833 = vld [vmem:[%s820 + $0x18] sm:$0xff]
  %v2834 = vld [vmem:[%s820 + $0x20] sm:$0xff]
  %v2835 = vld [vmem:[%s820 + $0x28] sm:$0xff]
  %v2836 = vld [vmem:[%s820 + $0x30] sm:$0xff]
  %v2837 = vld [vmem:[%s820 + $0x38] sm:$0xff]
  %2838 = vst.msk [vmem:[#allocation3 + $0x7f8] sm:$0xff] %vm896, %v2830
  %2839 = vst [vmem:[#allocation3 + $0x800] sm:$0xff] %v2831
  %2840 = vst [vmem:[#allocation3 + $0x808] sm:$0xff] %v2832
  %2841 = vst.msk [vmem:[#allocation3 + $0x810] sm:$0xff] %vm900, %v2833
  %2842 = vst.msk [vmem:[#allocation3 + $0x830] sm:$0xff] %vm896, %v2834
  %2843 = vst [vmem:[#allocation3 + $0x838] sm:$0xff] %v2835
  %2844 = vst [vmem:[#allocation3 + $0x840] sm:$0xff] %v2836
  %2845 = vst.msk [vmem:[#allocation3 + $0x848] sm:$0xff] %vm900, %v2837
  %v2846 = vld [vmem:[#allocation2] sm:$0xff]
  %v2847 = vld [vmem:[#allocation2 + $0x8] sm:$0xff]
  %v2848 = vld [vmem:[#allocation2 + $0x10] sm:$0xff]
  %v2849 = vld [vmem:[#allocation2 + $0x18] sm:$0xff]
  %v2850 = vld [vmem:[#allocation2 + $0x20] sm:$0xff]
  %v2851 = vld [vmem:[#allocation2 + $0x28] sm:$0xff]
  %v2852 = vld [vmem:[#allocation2 + $0x30] sm:$0xff]
  %v2853 = vld [vmem:[#allocation2 + $0x38] sm:$0xff]
  %2862 = vrot.lane.b32.xlu0 %v2846, 109
  %v2863 = vpop.permute.xlu0 %2862
  %2864 = vrot.lane.b32.xlu0 %v2847, 109
  %v2865 = vpop.permute.xlu0 %2864
  %2866 = vrot.lane.b32.xlu0 %v2848, 109
  %v2867 = vpop.permute.xlu0 %2866
  %2868 = vrot.lane.b32.xlu0 %v2849, 109
  %v2869 = vpop.permute.xlu0 %2868
  %2870 = vrot.lane.b32.xlu0 %v2850, 109
  %v2871 = vpop.permute.xlu0 %2870
  %2872 = vrot.lane.b32.xlu0 %v2851, 109
  %v2873 = vpop.permute.xlu0 %2872
  %2874 = vrot.lane.b32.xlu0 %v2852, 109
  %v2875 = vpop.permute.xlu0 %2874
  %2876 = vrot.lane.b32.xlu0 %v2853, 109
  %v2877 = vpop.permute.xlu0 %2876
  %vm2878 = vcmask 891904
  %v2879 = vsel %vm2878, %v2863, %v2865
  %v2880 = vsel %vm2878, %v2865, %v2867
  %v2881 = vsel %vm2878, %v2867, %v2869
  %v2882 = vsel %vm2878, %v2871, %v2873
  %v2883 = vsel %vm2878, %v2873, %v2875
  %v2884 = vsel %vm2878, %v2875, %v2877
  %2893 = vst [vmem:[#allocation3 + $0x850] sm:$0xff] %v2879
  %2894 = vst [vmem:[#allocation3 + $0x858] sm:$0xff] %v2880
  %2895 = vst [vmem:[#allocation3 + $0x860] sm:$0xff] %v2881
  %2896 = vst.msk [vmem:[#allocation3 + $0x868] sm:$0xff] %vm844, %v2869
  %2897 = vst [vmem:[#allocation3 + $0x888] sm:$0xff] %v2882
  %2898 = vst [vmem:[#allocation3 + $0x890] sm:$0xff] %v2883
  %2899 = vst [vmem:[#allocation3 + $0x898] sm:$0xff] %v2884
  %2900 = vst.msk [vmem:[#allocation3 + $0x8a0] sm:$0xff] %vm844, %v2877
  %v2901 = vld [vmem:[%s820] sm:$0xff]
  %v2902 = vld [vmem:[%s820 + $0x8] sm:$0xff]
  %v2903 = vld [vmem:[%s820 + $0x10] sm:$0xff]
  %v2904 = vld [vmem:[%s820 + $0x18] sm:$0xff]
  %v2905 = vld [vmem:[%s820 + $0x20] sm:$0xff]
  %v2906 = vld [vmem:[%s820 + $0x28] sm:$0xff]
  %v2907 = vld [vmem:[%s820 + $0x30] sm:$0xff]
  %v2908 = vld [vmem:[%s820 + $0x38] sm:$0xff]
  %2917 = vrot.lane.b32.xlu0 %v2901, 127
  %v2918 = vpop.permute.xlu0 %2917
  %2919 = vrot.lane.b32.xlu0 %v2902, 127
  %v2920 = vpop.permute.xlu0 %2919
  %2921 = vrot.lane.b32.xlu0 %v2903, 127
  %v2922 = vpop.permute.xlu0 %2921
  %2923 = vrot.lane.b32.xlu0 %v2904, 127
  %v2924 = vpop.permute.xlu0 %2923
  %2925 = vrot.lane.b32.xlu0 %v2905, 127
  %v2926 = vpop.permute.xlu0 %2925
  %2927 = vrot.lane.b32.xlu0 %v2906, 127
  %v2928 = vpop.permute.xlu0 %2927
  %2929 = vrot.lane.b32.xlu0 %v2907, 127
  %v2930 = vpop.permute.xlu0 %2929
  %2931 = vrot.lane.b32.xlu0 %v2908, 127
  %v2932 = vpop.permute.xlu0 %2931
  %v2933 = vsel %vm938, %v2918, %v2920
  %v2934 = vsel %vm938, %v2920, %v2922
  %v2935 = vsel %vm938, %v2922, %v2924
  %v2936 = vsel %vm938, %v2926, %v2928
  %v2937 = vsel %vm938, %v2928, %v2930
  %v2938 = vsel %vm938, %v2930, %v2932
  %2947 = vst.msk [vmem:[#allocation3 + $0x868] sm:$0xff] %vm896, %v2933
  %2948 = vst [vmem:[#allocation3 + $0x870] sm:$0xff] %v2934
  %2949 = vst [vmem:[#allocation3 + $0x878] sm:$0xff] %v2935
  %2950 = vst.msk [vmem:[#allocation3 + $0x880] sm:$0xff] %vm900, %v2924
  %2951 = vst.msk [vmem:[#allocation3 + $0x8a0] sm:$0xff] %vm896, %v2936
  %2952 = vst [vmem:[#allocation3 + $0x8a8] sm:$0xff] %v2937
  %2953 = vst [vmem:[#allocation3 + $0x8b0] sm:$0xff] %v2938
  %2954 = vst.msk [vmem:[#allocation3 + $0x8b8] sm:$0xff] %vm900, %v2932
  %v2955 = vld [vmem:[#allocation2] sm:$0xff]
  %v2956 = vld [vmem:[#allocation2 + $0x8] sm:$0xff]
  %v2957 = vld [vmem:[#allocation2 + $0x10] sm:$0xff]
  %v2958 = vld [vmem:[#allocation2 + $0x18] sm:$0xff]
  %v2959 = vld [vmem:[#allocation2 + $0x20] sm:$0xff]
  %v2960 = vld [vmem:[#allocation2 + $0x28] sm:$0xff]
  %v2961 = vld [vmem:[#allocation2 + $0x30] sm:$0xff]
  %v2962 = vld [vmem:[#allocation2 + $0x38] sm:$0xff]
  %2971 = vrot.lane.b32.xlu0 %v2955, 108
  %v2972 = vpop.permute.xlu0 %2971
  %2973 = vrot.lane.b32.xlu0 %v2956, 108
  %v2974 = vpop.permute.xlu0 %2973
  %2975 = vrot.lane.b32.xlu0 %v2957, 108
  %v2976 = vpop.permute.xlu0 %2975
  %2977 = vrot.lane.b32.xlu0 %v2958, 108
  %v2978 = vpop.permute.xlu0 %2977
  %2979 = vrot.lane.b32.xlu0 %v2959, 108
  %v2980 = vpop.permute.xlu0 %2979
  %2981 = vrot.lane.b32.xlu0 %v2960, 108
  %v2982 = vpop.permute.xlu0 %2981
  %2983 = vrot.lane.b32.xlu0 %v2961, 108
  %v2984 = vpop.permute.xlu0 %2983
  %2985 = vrot.lane.b32.xlu0 %v2962, 108
  %v2986 = vpop.permute.xlu0 %2985
  %vm2987 = vcmask 883712
  %v2988 = vsel %vm2987, %v2972, %v2974
  %v2989 = vsel %vm2987, %v2974, %v2976
  %v2990 = vsel %vm2987, %v2976, %v2978
  %v2991 = vsel %vm2987, %v2980, %v2982
  %v2992 = vsel %vm2987, %v2982, %v2984
  %v2993 = vsel %vm2987, %v2984, %v2986
  %3002 = vst [vmem:[#allocation3 + $0x8c0] sm:$0xff] %v2988
  %3003 = vst [vmem:[#allocation3 + $0x8c8] sm:$0xff] %v2989
  %3004 = vst [vmem:[#allocation3 + $0x8d0] sm:$0xff] %v2990
  %3005 = vst.msk [vmem:[#allocation3 + $0x8d8] sm:$0xff] %vm844, %v2978
  %3006 = vst [vmem:[#allocation3 + $0x8f8] sm:$0xff] %v2991
  %3007 = vst [vmem:[#allocation3 + $0x900] sm:$0xff] %v2992
  %3008 = vst [vmem:[#allocation3 + $0x908] sm:$0xff] %v2993
  %3009 = vst.msk [vmem:[#allocation3 + $0x910] sm:$0xff] %vm844, %v2986
  %v3010 = vld [vmem:[%s820] sm:$0xff]
  %v3011 = vld [vmem:[%s820 + $0x8] sm:$0xff]
  %v3012 = vld [vmem:[%s820 + $0x10] sm:$0xff]
  %v3013 = vld [vmem:[%s820 + $0x18] sm:$0xff]
  %v3014 = vld [vmem:[%s820 + $0x20] sm:$0xff]
  %v3015 = vld [vmem:[%s820 + $0x28] sm:$0xff]
  %v3016 = vld [vmem:[%s820 + $0x30] sm:$0xff]
  %v3017 = vld [vmem:[%s820 + $0x38] sm:$0xff]
  %3026 = vrot.lane.b32.xlu0 %v3010, 126
  %v3027 = vpop.permute.xlu0 %3026
  %3028 = vrot.lane.b32.xlu0 %v3011, 126
  %v3029 = vpop.permute.xlu0 %3028
  %3030 = vrot.lane.b32.xlu0 %v3012, 126
  %v3031 = vpop.permute.xlu0 %3030
  %3032 = vrot.lane.b32.xlu0 %v3013, 126
  %v3033 = vpop.permute.xlu0 %3032
  %3034 = vrot.lane.b32.xlu0 %v3014, 126
  %v3035 = vpop.permute.xlu0 %3034
  %3036 = vrot.lane.b32.xlu0 %v3015, 126
  %v3037 = vpop.permute.xlu0 %3036
  %3038 = vrot.lane.b32.xlu0 %v3016, 126
  %v3039 = vpop.permute.xlu0 %3038
  %3040 = vrot.lane.b32.xlu0 %v3017, 126
  %v3041 = vpop.permute.xlu0 %3040
  %v3042 = vsel %vm1048, %v3027, %v3029
  %v3043 = vsel %vm1048, %v3029, %v3031
  %v3044 = vsel %vm1048, %v3031, %v3033
  %v3045 = vsel %vm1048, %v3035, %v3037
  %v3046 = vsel %vm1048, %v3037, %v3039
  %v3047 = vsel %vm1048, %v3039, %v3041
  %3056 = vst.msk [vmem:[#allocation3 + $0x8d8] sm:$0xff] %vm896, %v3042
  %3057 = vst [vmem:[#allocation3 + $0x8e0] sm:$0xff] %v3043
  %3058 = vst [vmem:[#allocation3 + $0x8e8] sm:$0xff] %v3044
  %3059 = vst.msk [vmem:[#allocation3 + $0x8f0] sm:$0xff] %vm900, %v3033
  %3060 = vst.msk [vmem:[#allocation3 + $0x910] sm:$0xff] %vm896, %v3045
  %3061 = vst [vmem:[#allocation3 + $0x918] sm:$0xff] %v3046
  %3062 = vst [vmem:[#allocation3 + $0x920] sm:$0xff] %v3047
  %3063 = vst.msk [vmem:[#allocation3 + $0x928] sm:$0xff] %vm900, %v3041
  %v3064 = vld [vmem:[#allocation2] sm:$0xff]
  %v3065 = vld [vmem:[#allocation2 + $0x8] sm:$0xff]
  %v3066 = vld [vmem:[#allocation2 + $0x10] sm:$0xff]
  %v3067 = vld [vmem:[#allocation2 + $0x18] sm:$0xff]
  %v3068 = vld [vmem:[#allocation2 + $0x20] sm:$0xff]
  %v3069 = vld [vmem:[#allocation2 + $0x28] sm:$0xff]
  %v3070 = vld [vmem:[#allocation2 + $0x30] sm:$0xff]
  %v3071 = vld [vmem:[#allocation2 + $0x38] sm:$0xff]
  %3080 = vrot.lane.b32.xlu0 %v3064, 107
  %v3081 = vpop.permute.xlu0 %3080
  %3082 = vrot.lane.b32.xlu0 %v3065, 107
  %v3083 = vpop.permute.xlu0 %3082
  %3084 = vrot.lane.b32.xlu0 %v3066, 107
  %v3085 = vpop.permute.xlu0 %3084
  %3086 = vrot.lane.b32.xlu0 %v3067, 107
  %v3087 = vpop.permute.xlu0 %3086
  %3088 = vrot.lane.b32.xlu0 %v3068, 107
  %v3089 = vpop.permute.xlu0 %3088
  %3090 = vrot.lane.b32.xlu0 %v3069, 107
  %v3091 = vpop.permute.xlu0 %3090
  %3092 = vrot.lane.b32.xlu0 %v3070, 107
  %v3093 = vpop.permute.xlu0 %3092
  %3094 = vrot.lane.b32.xlu0 %v3071, 107
  %v3095 = vpop.permute.xlu0 %3094
  %vm3096 = vcmask 875520
  %v3097 = vsel %vm3096, %v3081, %v3083
  %v3098 = vsel %vm3096, %v3083, %v3085
  %v3099 = vsel %vm3096, %v3085, %v3087
  %v3100 = vsel %vm3096, %v3089, %v3091
  %v3101 = vsel %vm3096, %v3091, %v3093
  %v3102 = vsel %vm3096, %v3093, %v3095
  %3111 = vst [vmem:[#allocation3 + $0x930] sm:$0xff] %v3097
  %3112 = vst [vmem:[#allocation3 + $0x938] sm:$0xff] %v3098
  %3113 = vst [vmem:[#allocation3 + $0x940] sm:$0xff] %v3099
  %3114 = vst.msk [vmem:[#allocation3 + $0x948] sm:$0xff] %vm844, %v3087
  %3115 = vst [vmem:[#allocation3 + $0x968] sm:$0xff] %v3100
  %3116 = vst [vmem:[#allocation3 + $0x970] sm:$0xff] %v3101
  %3117 = vst [vmem:[#allocation3 + $0x978] sm:$0xff] %v3102
  %3118 = vst.msk [vmem:[#allocation3 + $0x980] sm:$0xff] %vm844, %v3095
  %v3119 = vld [vmem:[%s820] sm:$0xff]
  %v3120 = vld [vmem:[%s820 + $0x8] sm:$0xff]
  %v3121 = vld [vmem:[%s820 + $0x10] sm:$0xff]
  %v3122 = vld [vmem:[%s820 + $0x18] sm:$0xff]
  %v3123 = vld [vmem:[%s820 + $0x20] sm:$0xff]
  %v3124 = vld [vmem:[%s820 + $0x28] sm:$0xff]
  %v3125 = vld [vmem:[%s820 + $0x30] sm:$0xff]
  %v3126 = vld [vmem:[%s820 + $0x38] sm:$0xff]
  %3135 = vrot.lane.b32.xlu0 %v3119, 125
  %v3136 = vpop.permute.xlu0 %3135
  %3137 = vrot.lane.b32.xlu0 %v3120, 125
  %v3138 = vpop.permute.xlu0 %3137
  %3139 = vrot.lane.b32.xlu0 %v3121, 125
  %v3140 = vpop.permute.xlu0 %3139
  %3141 = vrot.lane.b32.xlu0 %v3122, 125
  %v3142 = vpop.permute.xlu0 %3141
  %3143 = vrot.lane.b32.xlu0 %v3123, 125
  %v3144 = vpop.permute.xlu0 %3143
  %3145 = vrot.lane.b32.xlu0 %v3124, 125
  %v3146 = vpop.permute.xlu0 %3145
  %3147 = vrot.lane.b32.xlu0 %v3125, 125
  %v3148 = vpop.permute.xlu0 %3147
  %3149 = vrot.lane.b32.xlu0 %v3126, 125
  %v3150 = vpop.permute.xlu0 %3149
  %v3151 = vsel %vm1157, %v3136, %v3138
  %v3152 = vsel %vm1157, %v3138, %v3140
  %v3153 = vsel %vm1157, %v3140, %v3142
  %v3154 = vsel %vm1157, %v3144, %v3146
  %v3155 = vsel %vm1157, %v3146, %v3148
  %v3156 = vsel %vm1157, %v3148, %v3150
  %3165 = vst.msk [vmem:[#allocation3 + $0x948] sm:$0xff] %vm896, %v3151
  %3166 = vst [vmem:[#allocation3 + $0x950] sm:$0xff] %v3152
  %3167 = vst [vmem:[#allocation3 + $0x958] sm:$0xff] %v3153
  %3168 = vst.msk [vmem:[#allocation3 + $0x960] sm:$0xff] %vm900, %v3142
  %3169 = vst.msk [vmem:[#allocation3 + $0x980] sm:$0xff] %vm896, %v3154
  %3170 = vst [vmem:[#allocation3 + $0x988] sm:$0xff] %v3155
  %3171 = vst [vmem:[#allocation3 + $0x990] sm:$0xff] %v3156
  %3172 = vst.msk [vmem:[#allocation3 + $0x998] sm:$0xff] %vm900, %v3150
  %v3173 = vld [vmem:[#allocation2] sm:$0xff]
  %v3174 = vld [vmem:[#allocation2 + $0x8] sm:$0xff]
  %v3175 = vld [vmem:[#allocation2 + $0x10] sm:$0xff]
  %v3176 = vld [vmem:[#allocation2 + $0x18] sm:$0xff]
  %v3177 = vld [vmem:[#allocation2 + $0x20] sm:$0xff]
  %v3178 = vld [vmem:[#allocation2 + $0x28] sm:$0xff]
  %v3179 = vld [vmem:[#allocation2 + $0x30] sm:$0xff]
  %v3180 = vld [vmem:[#allocation2 + $0x38] sm:$0xff]
  %3189 = vrot.lane.b32.xlu0 %v3173, 106
  %v3190 = vpop.permute.xlu0 %3189
  %3191 = vrot.lane.b32.xlu0 %v3174, 106
  %v3192 = vpop.permute.xlu0 %3191
  %3193 = vrot.lane.b32.xlu0 %v3175, 106
  %v3194 = vpop.permute.xlu0 %3193
  %3195 = vrot.lane.b32.xlu0 %v3176, 106
  %v3196 = vpop.permute.xlu0 %3195
  %3197 = vrot.lane.b32.xlu0 %v3177, 106
  %v3198 = vpop.permute.xlu0 %3197
  %3199 = vrot.lane.b32.xlu0 %v3178, 106
  %v3200 = vpop.permute.xlu0 %3199
  %3201 = vrot.lane.b32.xlu0 %v3179, 106
  %v3202 = vpop.permute.xlu0 %3201
  %3203 = vrot.lane.b32.xlu0 %v3180, 106
  %v3204 = vpop.permute.xlu0 %3203
  %vm3205 = vcmask 867328
  %v3206 = vsel %vm3205, %v3190, %v3192
  %v3207 = vsel %vm3205, %v3192, %v3194
  %v3208 = vsel %vm3205, %v3194, %v3196
  %v3209 = vsel %vm3205, %v3198, %v3200
  %v3210 = vsel %vm3205, %v3200, %v3202
  %v3211 = vsel %vm3205, %v3202, %v3204
  %3220 = vst [vmem:[#allocation3 + $0x9a0] sm:$0xff] %v3206
  %3221 = vst [vmem:[#allocation3 + $0x9a8] sm:$0xff] %v3207
  %3222 = vst [vmem:[#allocation3 + $0x9b0] sm:$0xff] %v3208
  %3223 = vst.msk [vmem:[#allocation3 + $0x9b8] sm:$0xff] %vm844, %v3196
  %3224 = vst [vmem:[#allocation3 + $0x9d8] sm:$0xff] %v3209
  %3225 = vst [vmem:[#allocation3 + $0x9e0] sm:$0xff] %v3210
  %3226 = vst [vmem:[#allocation3 + $0x9e8] sm:$0xff] %v3211
  %3227 = vst.msk [vmem:[#allocation3 + $0x9f0] sm:$0xff] %vm844, %v3204
  %v3228 = vld [vmem:[%s820] sm:$0xff]
  %v3229 = vld [vmem:[%s820 + $0x8] sm:$0xff]
  %v3230 = vld [vmem:[%s820 + $0x10] sm:$0xff]
  %v3231 = vld [vmem:[%s820 + $0x18] sm:$0xff]
  %v3232 = vld [vmem:[%s820 + $0x20] sm:$0xff]
  %v3233 = vld [vmem:[%s820 + $0x28] sm:$0xff]
  %v3234 = vld [vmem:[%s820 + $0x30] sm:$0xff]
  %v3235 = vld [vmem:[%s820 + $0x38] sm:$0xff]
  %3244 = vrot.lane.b32.xlu0 %v3228, 124
  %v3245 = vpop.permute.xlu0 %3244
  %3246 = vrot.lane.b32.xlu0 %v3229, 124
  %v3247 = vpop.permute.xlu0 %3246
  %3248 = vrot.lane.b32.xlu0 %v3230, 124
  %v3249 = vpop.permute.xlu0 %3248
  %3250 = vrot.lane.b32.xlu0 %v3231, 124
  %v3251 = vpop.permute.xlu0 %3250
  %3252 = vrot.lane.b32.xlu0 %v3232, 124
  %v3253 = vpop.permute.xlu0 %3252
  %3254 = vrot.lane.b32.xlu0 %v3233, 124
  %v3255 = vpop.permute.xlu0 %3254
  %3256 = vrot.lane.b32.xlu0 %v3234, 124
  %v3257 = vpop.permute.xlu0 %3256
  %3258 = vrot.lane.b32.xlu0 %v3235, 124
  %v3259 = vpop.permute.xlu0 %3258
  %v3260 = vsel %vm1267, %v3245, %v3247
  %v3261 = vsel %vm1267, %v3247, %v3249
  %v3262 = vsel %vm1267, %v3249, %v3251
  %v3263 = vsel %vm1267, %v3253, %v3255
  %v3264 = vsel %vm1267, %v3255, %v3257
  %v3265 = vsel %vm1267, %v3257, %v3259
  %3274 = vst.msk [vmem:[#allocation3 + $0x9b8] sm:$0xff] %vm896, %v3260
  %3275 = vst [vmem:[#allocation3 + $0x9c0] sm:$0xff] %v3261
  %3276 = vst [vmem:[#allocation3 + $0x9c8] sm:$0xff] %v3262
  %3277 = vst.msk [vmem:[#allocation3 + $0x9d0] sm:$0xff] %vm900, %v3251
  %3278 = vst.msk [vmem:[#allocation3 + $0x9f0] sm:$0xff] %vm896, %v3263
  %3279 = vst [vmem:[#allocation3 + $0x9f8] sm:$0xff] %v3264
  %3280 = vst [vmem:[#allocation3 + $0xa00] sm:$0xff] %v3265
  %3281 = vst.msk [vmem:[#allocation3 + $0xa08] sm:$0xff] %vm900, %v3259
  %v3282 = vld [vmem:[#allocation2] sm:$0xff]
  %v3283 = vld [vmem:[#allocation2 + $0x8] sm:$0xff]
  %v3284 = vld [vmem:[#allocation2 + $0x10] sm:$0xff]
  %v3285 = vld [vmem:[#allocation2 + $0x18] sm:$0xff]
  %v3286 = vld [vmem:[#allocation2 + $0x20] sm:$0xff]
  %v3287 = vld [vmem:[#allocation2 + $0x28] sm:$0xff]
  %v3288 = vld [vmem:[#allocation2 + $0x30] sm:$0xff]
  %v3289 = vld [vmem:[#allocation2 + $0x38] sm:$0xff]
  %3298 = vrot.lane.b32.xlu0 %v3282, 105
  %v3299 = vpop.permute.xlu0 %3298
  %3300 = vrot.lane.b32.xlu0 %v3283, 105
  %v3301 = vpop.permute.xlu0 %3300
  %3302 = vrot.lane.b32.xlu0 %v3284, 105
  %v3303 = vpop.permute.xlu0 %3302
  %3304 = vrot.lane.b32.xlu0 %v3285, 105
  %v3305 = vpop.permute.xlu0 %3304
  %3306 = vrot.lane.b32.xlu0 %v3286, 105
  %v3307 = vpop.permute.xlu0 %3306
  %3308 = vrot.lane.b32.xlu0 %v3287, 105
  %v3309 = vpop.permute.xlu0 %3308
  %3310 = vrot.lane.b32.xlu0 %v3288, 105
  %v3311 = vpop.permute.xlu0 %3310
  %3312 = vrot.lane.b32.xlu0 %v3289, 105
  %v3313 = vpop.permute.xlu0 %3312
  %vm3314 = vcmask 859136
  %v3315 = vsel %vm3314, %v3299, %v3301
  %v3316 = vsel %vm3314, %v3301, %v3303
  %v3317 = vsel %vm3314, %v3303, %v3305
  %v3318 = vsel %vm3314, %v3307, %v3309
  %v3319 = vsel %vm3314, %v3309, %v3311
  %v3320 = vsel %vm3314, %v3311, %v3313
  %3329 = vst [vmem:[#allocation3 + $0xa10] sm:$0xff] %v3315
  %3330 = vst [vmem:[#allocation3 + $0xa18] sm:$0xff] %v3316
  %3331 = vst [vmem:[#allocation3 + $0xa20] sm:$0xff] %v3317
  %3332 = vst.msk [vmem:[#allocation3 + $0xa28] sm:$0xff] %vm844, %v3305
  %3333 = vst [vmem:[#allocation3 + $0xa48] sm:$0xff] %v3318
  %3334 = vst [vmem:[#allocation3 + $0xa50] sm:$0xff] %v3319
  %3335 = vst [vmem:[#allocation3 + $0xa58] sm:$0xff] %v3320
  %3336 = vst.msk [vmem:[#allocation3 + $0xa60] sm:$0xff] %vm844, %v3313
  %v3337 = vld [vmem:[%s820] sm:$0xff]
  %v3338 = vld [vmem:[%s820 + $0x8] sm:$0xff]
  %v3339 = vld [vmem:[%s820 + $0x10] sm:$0xff]
  %v3340 = vld [vmem:[%s820 + $0x18] sm:$0xff]
  %v3341 = vld [vmem:[%s820 + $0x20] sm:$0xff]
  %v3342 = vld [vmem:[%s820 + $0x28] sm:$0xff]
  %v3343 = vld [vmem:[%s820 + $0x30] sm:$0xff]
  %v3344 = vld [vmem:[%s820 + $0x38] sm:$0xff]
  %3353 = vrot.lane.b32.xlu0 %v3337, 123
  %v3354 = vpop.permute.xlu0 %3353
  %3355 = vrot.lane.b32.xlu0 %v3338, 123
  %v3356 = vpop.permute.xlu0 %3355
  %3357 = vrot.lane.b32.xlu0 %v3339, 123
  %v3358 = vpop.permute.xlu0 %3357
  %3359 = vrot.lane.b32.xlu0 %v3340, 123
  %v3360 = vpop.permute.xlu0 %3359
  %3361 = vrot.lane.b32.xlu0 %v3341, 123
  %v3362 = vpop.permute.xlu0 %3361
  %3363 = vrot.lane.b32.xlu0 %v3342, 123
  %v3364 = vpop.permute.xlu0 %3363
  %3365 = vrot.lane.b32.xlu0 %v3343, 123
  %v3366 = vpop.permute.xlu0 %3365
  %3367 = vrot.lane.b32.xlu0 %v3344, 123
  %v3368 = vpop.permute.xlu0 %3367
  %v3369 = vsel %vm1377, %v3354, %v3356
  %v3370 = vsel %vm1377, %v3356, %v3358
  %v3371 = vsel %vm1377, %v3358, %v3360
  %v3372 = vsel %vm1377, %v3362, %v3364
  %v3373 = vsel %vm1377, %v3364, %v3366
  %v3374 = vsel %vm1377, %v3366, %v3368
  %3383 = vst.msk [vmem:[#allocation3 + $0xa28] sm:$0xff] %vm896, %v3369
  %3384 = vst [vmem:[#allocation3 + $0xa30] sm:$0xff] %v3370
  %3385 = vst [vmem:[#allocation3 + $0xa38] sm:$0xff] %v3371
  %3386 = vst.msk [vmem:[#allocation3 + $0xa40] sm:$0xff] %vm900, %v3360
  %3387 = vst.msk [vmem:[#allocation3 + $0xa60] sm:$0xff] %vm896, %v3372
  %3388 = vst [vmem:[#allocation3 + $0xa68] sm:$0xff] %v3373
  %3389 = vst [vmem:[#allocation3 + $0xa70] sm:$0xff] %v3374
  %3390 = vst.msk [vmem:[#allocation3 + $0xa78] sm:$0xff] %vm900, %v3368
  %v3391 = vld [vmem:[#allocation2] sm:$0xff]
  %v3392 = vld [vmem:[#allocation2 + $0x8] sm:$0xff]
  %v3393 = vld [vmem:[#allocation2 + $0x10] sm:$0xff]
  %v3394 = vld [vmem:[#allocation2 + $0x18] sm:$0xff]
  %v3395 = vld [vmem:[#allocation2 + $0x20] sm:$0xff]
  %v3396 = vld [vmem:[#allocation2 + $0x28] sm:$0xff]
  %v3397 = vld [vmem:[#allocation2 + $0x30] sm:$0xff]
  %v3398 = vld [vmem:[#allocation2 + $0x38] sm:$0xff]
  %3407 = vrot.lane.b32.xlu0 %v3391, 104
  %v3408 = vpop.permute.xlu0 %3407
  %3409 = vrot.lane.b32.xlu0 %v3392, 104
  %v3410 = vpop.permute.xlu0 %3409
  %3411 = vrot.lane.b32.xlu0 %v3393, 104
  %v3412 = vpop.permute.xlu0 %3411
  %3413 = vrot.lane.b32.xlu0 %v3394, 104
  %v3414 = vpop.permute.xlu0 %3413
  %3415 = vrot.lane.b32.xlu0 %v3395, 104
  %v3416 = vpop.permute.xlu0 %3415
  %3417 = vrot.lane.b32.xlu0 %v3396, 104
  %v3418 = vpop.permute.xlu0 %3417
  %3419 = vrot.lane.b32.xlu0 %v3397, 104
  %v3420 = vpop.permute.xlu0 %3419
  %3421 = vrot.lane.b32.xlu0 %v3398, 104
  %v3422 = vpop.permute.xlu0 %3421
  %vm3423 = vcmask 850944
  %v3424 = vsel %vm3423, %v3408, %v3410
  %v3425 = vsel %vm3423, %v3410, %v3412
  %v3426 = vsel %vm3423, %v3412, %v3414
  %v3427 = vsel %vm3423, %v3416, %v3418
  %v3428 = vsel %vm3423, %v3418, %v3420
  %v3429 = vsel %vm3423, %v3420, %v3422
  %3438 = vst [vmem:[#allocation3 + $0xa80] sm:$0xff] %v3424
  %3439 = vst [vmem:[#allocation3 + $0xa88] sm:$0xff] %v3425
  %3440 = vst [vmem:[#allocation3 + $0xa90] sm:$0xff] %v3426
  %3441 = vst.msk [vmem:[#allocation3 + $0xa98] sm:$0xff] %vm844, %v3414
  %3442 = vst [vmem:[#allocation3 + $0xab8] sm:$0xff] %v3427
  %3443 = vst [vmem:[#allocation3 + $0xac0] sm:$0xff] %v3428
  %3444 = vst [vmem:[#allocation3 + $0xac8] sm:$0xff] %v3429
  %3445 = vst.msk [vmem:[#allocation3 + $0xad0] sm:$0xff] %vm844, %v3422
  %v3446 = vld [vmem:[%s820] sm:$0xff]
  %v3447 = vld [vmem:[%s820 + $0x8] sm:$0xff]
  %v3448 = vld [vmem:[%s820 + $0x10] sm:$0xff]
  %v3449 = vld [vmem:[%s820 + $0x18] sm:$0xff]
  %v3450 = vld [vmem:[%s820 + $0x20] sm:$0xff]
  %v3451 = vld [vmem:[%s820 + $0x28] sm:$0xff]
  %v3452 = vld [vmem:[%s820 + $0x30] sm:$0xff]
  %v3453 = vld [vmem:[%s820 + $0x38] sm:$0xff]
  %3462 = vrot.lane.b32.xlu0 %v3446, 122
  %v3463 = vpop.permute.xlu0 %3462
  %3464 = vrot.lane.b32.xlu0 %v3447, 122
  %v3465 = vpop.permute.xlu0 %3464
  %3466 = vrot.lane.b32.xlu0 %v3448, 122
  %v3467 = vpop.permute.xlu0 %3466
  %3468 = vrot.lane.b32.xlu0 %v3449, 122
  %v3469 = vpop.permute.xlu0 %3468
  %3470 = vrot.lane.b32.xlu0 %v3450, 122
  %v3471 = vpop.permute.xlu0 %3470
  %3472 = vrot.lane.b32.xlu0 %v3451, 122
  %v3473 = vpop.permute.xlu0 %3472
  %3474 = vrot.lane.b32.xlu0 %v3452, 122
  %v3475 = vpop.permute.xlu0 %3474
  %3476 = vrot.lane.b32.xlu0 %v3453, 122
  %v3477 = vpop.permute.xlu0 %3476
  %v3478 = vsel %vm1487, %v3463, %v3465
  %v3479 = vsel %vm1487, %v3465, %v3467
  %v3480 = vsel %vm1487, %v3467, %v3469
  %v3481 = vsel %vm1487, %v3471, %v3473
  %v3482 = vsel %vm1487, %v3473, %v3475
  %v3483 = vsel %vm1487, %v3475, %v3477
  %3492 = vst.msk [vmem:[#allocation3 + $0xa98] sm:$0xff] %vm896, %v3478
  %3493 = vst [vmem:[#allocation3 + $0xaa0] sm:$0xff] %v3479
  %3494 = vst [vmem:[#allocation3 + $0xaa8] sm:$0xff] %v3480
  %3495 = vst.msk [vmem:[#allocation3 + $0xab0] sm:$0xff] %vm900, %v3469
  %3496 = vst.msk [vmem:[#allocation3 + $0xad0] sm:$0xff] %vm896, %v3481
  %3497 = vst [vmem:[#allocation3 + $0xad8] sm:$0xff] %v3482
  %3498 = vst [vmem:[#allocation3 + $0xae0] sm:$0xff] %v3483
  %3499 = vst.msk [vmem:[#allocation3 + $0xae8] sm:$0xff] %vm900, %v3477
  %v3500 = vld [vmem:[#allocation2] sm:$0xff]
  %v3501 = vld [vmem:[#allocation2 + $0x8] sm:$0xff]
  %v3502 = vld [vmem:[#allocation2 + $0x10] sm:$0xff]
  %v3503 = vld [vmem:[#allocation2 + $0x18] sm:$0xff]
  %v3504 = vld [vmem:[#allocation2 + $0x20] sm:$0xff]
  %v3505 = vld [vmem:[#allocation2 + $0x28] sm:$0xff]
  %v3506 = vld [vmem:[#allocation2 + $0x30] sm:$0xff]
  %v3507 = vld [vmem:[#allocation2 + $0x38] sm:$0xff]
  %3516 = vrot.lane.b32.xlu0 %v3500, 103
  %v3517 = vpop.permute.xlu0 %3516
  %3518 = vrot.lane.b32.xlu0 %v3501, 103
  %v3519 = vpop.permute.xlu0 %3518
  %3520 = vrot.lane.b32.xlu0 %v3502, 103
  %v3521 = vpop.permute.xlu0 %3520
  %3522 = vrot.lane.b32.xlu0 %v3503, 103
  %v3523 = vpop.permute.xlu0 %3522
  %3524 = vrot.lane.b32.xlu0 %v3504, 103
  %v3525 = vpop.permute.xlu0 %3524
  %3526 = vrot.lane.b32.xlu0 %v3505, 103
  %v3527 = vpop.permute.xlu0 %3526
  %3528 = vrot.lane.b32.xlu0 %v3506, 103
  %v3529 = vpop.permute.xlu0 %3528
  %3530 = vrot.lane.b32.xlu0 %v3507, 103
  %v3531 = vpop.permute.xlu0 %3530
  %vm3532 = vcmask 842752
  %v3533 = vsel %vm3532, %v3517, %v3519
  %v3534 = vsel %vm3532, %v3519, %v3521
  %v3535 = vsel %vm3532, %v3521, %v3523
  %v3536 = vsel %vm3532, %v3525, %v3527
  %v3537 = vsel %vm3532, %v3527, %v3529
  %v3538 = vsel %vm3532, %v3529, %v3531
  %3547 = vst [vmem:[#allocation3 + $0xaf0] sm:$0xff] %v3533
  %3548 = vst [vmem:[#allocation3 + $0xaf8] sm:$0xff] %v3534
  %3549 = vst [vmem:[#allocation3 + $0xb00] sm:$0xff] %v3535
  %3550 = vst.msk [vmem:[#allocation3 + $0xb08] sm:$0xff] %vm844, %v3523
  %3551 = vst [vmem:[#allocation3 + $0xb28] sm:$0xff] %v3536
  %3552 = vst [vmem:[#allocation3 + $0xb30] sm:$0xff] %v3537
  %3553 = vst [vmem:[#allocation3 + $0xb38] sm:$0xff] %v3538
  %3554 = vst.msk [vmem:[#allocation3 + $0xb40] sm:$0xff] %vm844, %v3531
  %v3555 = vld [vmem:[%s820] sm:$0xff]
  %v3556 = vld [vmem:[%s820 + $0x8] sm:$0xff]
  %v3557 = vld [vmem:[%s820 + $0x10] sm:$0xff]
  %v3558 = vld [vmem:[%s820 + $0x18] sm:$0xff]
  %v3559 = vld [vmem:[%s820 + $0x20] sm:$0xff]
  %v3560 = vld [vmem:[%s820 + $0x28] sm:$0xff]
  %v3561 = vld [vmem:[%s820 + $0x30] sm:$0xff]
  %v3562 = vld [vmem:[%s820 + $0x38] sm:$0xff]
  %3571 = vrot.lane.b32.xlu0 %v3555, 121
  %v3572 = vpop.permute.xlu0 %3571
  %3573 = vrot.lane.b32.xlu0 %v3556, 121
  %v3574 = vpop.permute.xlu0 %3573
  %3575 = vrot.lane.b32.xlu0 %v3557, 121
  %v3576 = vpop.permute.xlu0 %3575
  %3577 = vrot.lane.b32.xlu0 %v3558, 121
  %v3578 = vpop.permute.xlu0 %3577
  %3579 = vrot.lane.b32.xlu0 %v3559, 121
  %v3580 = vpop.permute.xlu0 %3579
  %3581 = vrot.lane.b32.xlu0 %v3560, 121
  %v3582 = vpop.permute.xlu0 %3581
  %3583 = vrot.lane.b32.xlu0 %v3561, 121
  %v3584 = vpop.permute.xlu0 %3583
  %3585 = vrot.lane.b32.xlu0 %v3562, 121
  %v3586 = vpop.permute.xlu0 %3585
  %v3587 = vsel %vm1597, %v3572, %v3574
  %v3588 = vsel %vm1597, %v3574, %v3576
  %v3589 = vsel %vm1597, %v3576, %v3578
  %v3590 = vsel %vm1597, %v3580, %v3582
  %v3591 = vsel %vm1597, %v3582, %v3584
  %v3592 = vsel %vm1597, %v3584, %v3586
  %3601 = vst.msk [vmem:[#allocation3 + $0xb08] sm:$0xff] %vm896, %v3587
  %3602 = vst [vmem:[#allocation3 + $0xb10] sm:$0xff] %v3588
  %3603 = vst [vmem:[#allocation3 + $0xb18] sm:$0xff] %v3589
  %3604 = vst.msk [vmem:[#allocation3 + $0xb20] sm:$0xff] %vm900, %v3578
  %3605 = vst.msk [vmem:[#allocation3 + $0xb40] sm:$0xff] %vm896, %v3590
  %3606 = vst [vmem:[#allocation3 + $0xb48] sm:$0xff] %v3591
  %3607 = vst [vmem:[#allocation3 + $0xb50] sm:$0xff] %v3592
  %3608 = vst.msk [vmem:[#allocation3 + $0xb58] sm:$0xff] %vm900, %v3586
  %v3609 = vld [vmem:[#allocation2] sm:$0xff]
  %v3610 = vld [vmem:[#allocation2 + $0x8] sm:$0xff]
  %v3611 = vld [vmem:[#allocation2 + $0x10] sm:$0xff]
  %v3612 = vld [vmem:[#allocation2 + $0x18] sm:$0xff]
  %v3613 = vld [vmem:[#allocation2 + $0x20] sm:$0xff]
  %v3614 = vld [vmem:[#allocation2 + $0x28] sm:$0xff]
  %v3615 = vld [vmem:[#allocation2 + $0x30] sm:$0xff]
  %v3616 = vld [vmem:[#allocation2 + $0x38] sm:$0xff]
  %3625 = vrot.lane.b32.xlu0 %v3609, 102
  %v3626 = vpop.permute.xlu0 %3625
  %3627 = vrot.lane.b32.xlu0 %v3610, 102
  %v3628 = vpop.permute.xlu0 %3627
  %3629 = vrot.lane.b32.xlu0 %v3611, 102
  %v3630 = vpop.permute.xlu0 %3629
  %3631 = vrot.lane.b32.xlu0 %v3612, 102
  %v3632 = vpop.permute.xlu0 %3631
  %3633 = vrot.lane.b32.xlu0 %v3613, 102
  %v3634 = vpop.permute.xlu0 %3633
  %3635 = vrot.lane.b32.xlu0 %v3614, 102
  %v3636 = vpop.permute.xlu0 %3635
  %3637 = vrot.lane.b32.xlu0 %v3615, 102
  %v3638 = vpop.permute.xlu0 %3637
  %3639 = vrot.lane.b32.xlu0 %v3616, 102
  %v3640 = vpop.permute.xlu0 %3639
  %vm3641 = vcmask 834560
  %v3642 = vsel %vm3641, %v3626, %v3628
  %v3643 = vsel %vm3641, %v3628, %v3630
  %v3644 = vsel %vm3641, %v3630, %v3632
  %v3645 = vsel %vm3641, %v3634, %v3636
  %v3646 = vsel %vm3641, %v3636, %v3638
  %v3647 = vsel %vm3641, %v3638, %v3640
  %3656 = vst [vmem:[#allocation3 + $0xb60] sm:$0xff] %v3642
  %3657 = vst [vmem:[#allocation3 + $0xb68] sm:$0xff] %v3643
  %3658 = vst [vmem:[#allocation3 + $0xb70] sm:$0xff] %v3644
  %3659 = vst.msk [vmem:[#allocation3 + $0xb78] sm:$0xff] %vm844, %v3632
  %3660 = vst [vmem:[#allocation3 + $0xb98] sm:$0xff] %v3645
  %3661 = vst [vmem:[#allocation3 + $0xba0] sm:$0xff] %v3646
  %3662 = vst [vmem:[#allocation3 + $0xba8] sm:$0xff] %v3647
  %3663 = vst.msk [vmem:[#allocation3 + $0xbb0] sm:$0xff] %vm844, %v3640
  %v3664 = vld [vmem:[%s820] sm:$0xff]
  %v3665 = vld [vmem:[%s820 + $0x8] sm:$0xff]
  %v3666 = vld [vmem:[%s820 + $0x10] sm:$0xff]
  %v3667 = vld [vmem:[%s820 + $0x18] sm:$0xff]
  %v3668 = vld [vmem:[%s820 + $0x20] sm:$0xff]
  %v3669 = vld [vmem:[%s820 + $0x28] sm:$0xff]
  %v3670 = vld [vmem:[%s820 + $0x30] sm:$0xff]
  %v3671 = vld [vmem:[%s820 + $0x38] sm:$0xff]
  %3680 = vrot.lane.b32.xlu0 %v3664, 120
  %v3681 = vpop.permute.xlu0 %3680
  %3682 = vrot.lane.b32.xlu0 %v3665, 120
  %v3683 = vpop.permute.xlu0 %3682
  %3684 = vrot.lane.b32.xlu0 %v3666, 120
  %v3685 = vpop.permute.xlu0 %3684
  %3686 = vrot.lane.b32.xlu0 %v3667, 120
  %v3687 = vpop.permute.xlu0 %3686
  %3688 = vrot.lane.b32.xlu0 %v3668, 120
  %v3689 = vpop.permute.xlu0 %3688
  %3690 = vrot.lane.b32.xlu0 %v3669, 120
  %v3691 = vpop.permute.xlu0 %3690
  %3692 = vrot.lane.b32.xlu0 %v3670, 120
  %v3693 = vpop.permute.xlu0 %3692
  %3694 = vrot.lane.b32.xlu0 %v3671, 120
  %v3695 = vpop.permute.xlu0 %3694
  %v3696 = vsel %vm1707, %v3681, %v3683
  %v3697 = vsel %vm1707, %v3683, %v3685
  %v3698 = vsel %vm1707, %v3685, %v3687
  %v3699 = vsel %vm1707, %v3689, %v3691
  %v3700 = vsel %vm1707, %v3691, %v3693
  %v3701 = vsel %vm1707, %v3693, %v3695
  %3710 = vst.msk [vmem:[#allocation3 + $0xb78] sm:$0xff] %vm896, %v3696
  %3711 = vst [vmem:[#allocation3 + $0xb80] sm:$0xff] %v3697
  %3712 = vst [vmem:[#allocation3 + $0xb88] sm:$0xff] %v3698
  %3713 = vst.msk [vmem:[#allocation3 + $0xb90] sm:$0xff] %vm900, %v3687
  %3714 = vst.msk [vmem:[#allocation3 + $0xbb0] sm:$0xff] %vm896, %v3699
  %3715 = vst [vmem:[#allocation3 + $0xbb8] sm:$0xff] %v3700
  %3716 = vst [vmem:[#allocation3 + $0xbc0] sm:$0xff] %v3701
  %3717 = vst.msk [vmem:[#allocation3 + $0xbc8] sm:$0xff] %vm900, %v3695
  %v3718 = vld [vmem:[#allocation2] sm:$0xff]
  %v3719 = vld [vmem:[#allocation2 + $0x8] sm:$0xff]
  %v3720 = vld [vmem:[#allocation2 + $0x10] sm:$0xff]
  %v3721 = vld [vmem:[#allocation2 + $0x18] sm:$0xff]
  %v3722 = vld [vmem:[#allocation2 + $0x20] sm:$0xff]
  %v3723 = vld [vmem:[#allocation2 + $0x28] sm:$0xff]
  %v3724 = vld [vmem:[#allocation2 + $0x30] sm:$0xff]
  %v3725 = vld [vmem:[#allocation2 + $0x38] sm:$0xff]
  %3734 = vrot.lane.b32.xlu0 %v3718, 101
  %v3735 = vpop.permute.xlu0 %3734
  %3736 = vrot.lane.b32.xlu0 %v3719, 101
  %v3737 = vpop.permute.xlu0 %3736
  %3738 = vrot.lane.b32.xlu0 %v3720, 101
  %v3739 = vpop.permute.xlu0 %3738
  %3740 = vrot.lane.b32.xlu0 %v3721, 101
  %v3741 = vpop.permute.xlu0 %3740
  %3742 = vrot.lane.b32.xlu0 %v3722, 101
  %v3743 = vpop.permute.xlu0 %3742
  %3744 = vrot.lane.b32.xlu0 %v3723, 101
  %v3745 = vpop.permute.xlu0 %3744
  %3746 = vrot.lane.b32.xlu0 %v3724, 101
  %v3747 = vpop.permute.xlu0 %3746
  %3748 = vrot.lane.b32.xlu0 %v3725, 101
  %v3749 = vpop.permute.xlu0 %3748
  %vm3750 = vcmask 826368
  %v3751 = vsel %vm3750, %v3735, %v3737
  %v3752 = vsel %vm3750, %v3737, %v3739
  %v3753 = vsel %vm3750, %v3739, %v3741
  %v3754 = vsel %vm3750, %v3743, %v3745
  %v3755 = vsel %vm3750, %v3745, %v3747
  %v3756 = vsel %vm3750, %v3747, %v3749
  %3765 = vst [vmem:[#allocation3 + $0xbd0] sm:$0xff] %v3751
  %3766 = vst [vmem:[#allocation3 + $0xbd8] sm:$0xff] %v3752
  %3767 = vst [vmem:[#allocation3 + $0xbe0] sm:$0xff] %v3753
  %3768 = vst.msk [vmem:[#allocation3 + $0xbe8] sm:$0xff] %vm844, %v3741
  %3769 = vst [vmem:[#allocation3 + $0xc08] sm:$0xff] %v3754
  %3770 = vst [vmem:[#allocation3 + $0xc10] sm:$0xff] %v3755
  %3771 = vst [vmem:[#allocation3 + $0xc18] sm:$0xff] %v3756
  %3772 = vst.msk [vmem:[#allocation3 + $0xc20] sm:$0xff] %vm844, %v3749
  %v3773 = vld [vmem:[%s820] sm:$0xff]
  %v3774 = vld [vmem:[%s820 + $0x8] sm:$0xff]
  %v3775 = vld [vmem:[%s820 + $0x10] sm:$0xff]
  %v3776 = vld [vmem:[%s820 + $0x18] sm:$0xff]
  %v3777 = vld [vmem:[%s820 + $0x20] sm:$0xff]
  %v3778 = vld [vmem:[%s820 + $0x28] sm:$0xff]
  %v3779 = vld [vmem:[%s820 + $0x30] sm:$0xff]
  %v3780 = vld [vmem:[%s820 + $0x38] sm:$0xff]
  %3789 = vrot.lane.b32.xlu0 %v3773, 119
  %v3790 = vpop.permute.xlu0 %3789
  %3791 = vrot.lane.b32.xlu0 %v3774, 119
  %v3792 = vpop.permute.xlu0 %3791
  %3793 = vrot.lane.b32.xlu0 %v3775, 119
  %v3794 = vpop.permute.xlu0 %3793
  %3795 = vrot.lane.b32.xlu0 %v3776, 119
  %v3796 = vpop.permute.xlu0 %3795
  %3797 = vrot.lane.b32.xlu0 %v3777, 119
  %v3798 = vpop.permute.xlu0 %3797
  %3799 = vrot.lane.b32.xlu0 %v3778, 119
  %v3800 = vpop.permute.xlu0 %3799
  %3801 = vrot.lane.b32.xlu0 %v3779, 119
  %v3802 = vpop.permute.xlu0 %3801
  %3803 = vrot.lane.b32.xlu0 %v3780, 119
  %v3804 = vpop.permute.xlu0 %3803
  %v3805 = vsel %vm1817, %v3790, %v3792
  %v3806 = vsel %vm1817, %v3792, %v3794
  %v3807 = vsel %vm1817, %v3794, %v3796
  %v3808 = vsel %vm1817, %v3798, %v3800
  %v3809 = vsel %vm1817, %v3800, %v3802
  %v3810 = vsel %vm1817, %v3802, %v3804
  %3819 = vst.msk [vmem:[#allocation3 + $0xbe8] sm:$0xff] %vm896, %v3805
  %3820 = vst [vmem:[#allocation3 + $0xbf0] sm:$0xff] %v3806
  %3821 = vst [vmem:[#allocation3 + $0xbf8] sm:$0xff] %v3807
  %3822 = vst.msk [vmem:[#allocation3 + $0xc00] sm:$0xff] %vm900, %v3796
  %3823 = vst.msk [vmem:[#allocation3 + $0xc20] sm:$0xff] %vm896, %v3808
  %3824 = vst [vmem:[#allocation3 + $0xc28] sm:$0xff] %v3809
  %3825 = vst [vmem:[#allocation3 + $0xc30] sm:$0xff] %v3810
  %3826 = vst.msk [vmem:[#allocation3 + $0xc38] sm:$0xff] %vm900, %v3804
  %v3827 = vld [vmem:[#allocation2] sm:$0xff]
  %v3828 = vld [vmem:[#allocation2 + $0x8] sm:$0xff]
  %v3829 = vld [vmem:[#allocation2 + $0x10] sm:$0xff]
  %v3830 = vld [vmem:[#allocation2 + $0x18] sm:$0xff]
  %v3831 = vld [vmem:[#allocation2 + $0x20] sm:$0xff]
  %v3832 = vld [vmem:[#allocation2 + $0x28] sm:$0xff]
  %v3833 = vld [vmem:[#allocation2 + $0x30] sm:$0xff]
  %v3834 = vld [vmem:[#allocation2 + $0x38] sm:$0xff]
  %3843 = vrot.lane.b32.xlu0 %v3827, 100
  %v3844 = vpop.permute.xlu0 %3843
  %3845 = vrot.lane.b32.xlu0 %v3828, 100
  %v3846 = vpop.permute.xlu0 %3845
  %3847 = vrot.lane.b32.xlu0 %v3829, 100
  %v3848 = vpop.permute.xlu0 %3847
  %3849 = vrot.lane.b32.xlu0 %v3830, 100
  %v3850 = vpop.permute.xlu0 %3849
  %3851 = vrot.lane.b32.xlu0 %v3831, 100
  %v3852 = vpop.permute.xlu0 %3851
  %3853 = vrot.lane.b32.xlu0 %v3832, 100
  %v3854 = vpop.permute.xlu0 %3853
  %3855 = vrot.lane.b32.xlu0 %v3833, 100
  %v3856 = vpop.permute.xlu0 %3855
  %3857 = vrot.lane.b32.xlu0 %v3834, 100
  %v3858 = vpop.permute.xlu0 %3857
  %vm3859 = vcmask 818176
  %v3860 = vsel %vm3859, %v3844, %v3846
  %v3861 = vsel %vm3859, %v3846, %v3848
  %v3862 = vsel %vm3859, %v3848, %v3850
  %v3863 = vsel %vm3859, %v3852, %v3854
  %v3864 = vsel %vm3859, %v3854, %v3856
  %v3865 = vsel %vm3859, %v3856, %v3858
  %3874 = vst [vmem:[#allocation3 + $0xc40] sm:$0xff] %v3860
  %3875 = vst [vmem:[#allocation3 + $0xc48] sm:$0xff] %v3861
  %3876 = vst [vmem:[#allocation3 + $0xc50] sm:$0xff] %v3862
  %3877 = vst.msk [vmem:[#allocation3 + $0xc58] sm:$0xff] %vm844, %v3850
  %3878 = vst [vmem:[#allocation3 + $0xc78] sm:$0xff] %v3863
  %3879 = vst [vmem:[#allocation3 + $0xc80] sm:$0xff] %v3864
  %3880 = vst [vmem:[#allocation3 + $0xc88] sm:$0xff] %v3865
  %3881 = vst.msk [vmem:[#allocation3 + $0xc90] sm:$0xff] %vm844, %v3858
  %v3882 = vld [vmem:[%s820] sm:$0xff]
  %v3883 = vld [vmem:[%s820 + $0x8] sm:$0xff]
  %v3884 = vld [vmem:[%s820 + $0x10] sm:$0xff]
  %v3885 = vld [vmem:[%s820 + $0x18] sm:$0xff]
  %v3886 = vld [vmem:[%s820 + $0x20] sm:$0xff]
  %v3887 = vld [vmem:[%s820 + $0x28] sm:$0xff]
  %v3888 = vld [vmem:[%s820 + $0x30] sm:$0xff]
  %v3889 = vld [vmem:[%s820 + $0x38] sm:$0xff]
  %3898 = vrot.lane.b32.xlu0 %v3882, 118
  %v3899 = vpop.permute.xlu0 %3898
  %3900 = vrot.lane.b32.xlu0 %v3883, 118
  %v3901 = vpop.permute.xlu0 %3900
  %3902 = vrot.lane.b32.xlu0 %v3884, 118
  %v3903 = vpop.permute.xlu0 %3902
  %3904 = vrot.lane.b32.xlu0 %v3885, 118
  %v3905 = vpop.permute.xlu0 %3904
  %3906 = vrot.lane.b32.xlu0 %v3886, 118
  %v3907 = vpop.permute.xlu0 %3906
  %3908 = vrot.lane.b32.xlu0 %v3887, 118
  %v3909 = vpop.permute.xlu0 %3908
  %3910 = vrot.lane.b32.xlu0 %v3888, 118
  %v3911 = vpop.permute.xlu0 %3910
  %3912 = vrot.lane.b32.xlu0 %v3889, 118
  %v3913 = vpop.permute.xlu0 %3912
  %v3914 = vsel %vm1927, %v3899, %v3901
  %v3915 = vsel %vm1927, %v3901, %v3903
  %v3916 = vsel %vm1927, %v3903, %v3905
  %v3917 = vsel %vm1927, %v3907, %v3909
  %v3918 = vsel %vm1927, %v3909, %v3911
  %v3919 = vsel %vm1927, %v3911, %v3913
  %3928 = vst.msk [vmem:[#allocation3 + $0xc58] sm:$0xff] %vm896, %v3914
  %3929 = vst [vmem:[#allocation3 + $0xc60] sm:$0xff] %v3915
  %3930 = vst [vmem:[#allocation3 + $0xc68] sm:$0xff] %v3916
  %3931 = vst.msk [vmem:[#allocation3 + $0xc70] sm:$0xff] %vm900, %v3905
  %3932 = vst.msk [vmem:[#allocation3 + $0xc90] sm:$0xff] %vm896, %v3917
  %3933 = vst [vmem:[#allocation3 + $0xc98] sm:$0xff] %v3918
  %3934 = vst [vmem:[#allocation3 + $0xca0] sm:$0xff] %v3919
  %3935 = vst.msk [vmem:[#allocation3 + $0xca8] sm:$0xff] %vm900, %v3913
  %v3936 = vld [vmem:[#allocation2] sm:$0xff]
  %v3937 = vld [vmem:[#allocation2 + $0x8] sm:$0xff]
  %v3938 = vld [vmem:[#allocation2 + $0x10] sm:$0xff]
  %v3939 = vld [vmem:[#allocation2 + $0x18] sm:$0xff]
  %v3940 = vld [vmem:[#allocation2 + $0x20] sm:$0xff]
  %v3941 = vld [vmem:[#allocation2 + $0x28] sm:$0xff]
  %v3942 = vld [vmem:[#allocation2 + $0x30] sm:$0xff]
  %v3943 = vld [vmem:[#allocation2 + $0x38] sm:$0xff]
  %3952 = vrot.lane.b32.xlu0 %v3936, 99
  %v3953 = vpop.permute.xlu0 %3952
  %3954 = vrot.lane.b32.xlu0 %v3937, 99
  %v3955 = vpop.permute.xlu0 %3954
  %3956 = vrot.lane.b32.xlu0 %v3938, 99
  %v3957 = vpop.permute.xlu0 %3956
  %3958 = vrot.lane.b32.xlu0 %v3939, 99
  %v3959 = vpop.permute.xlu0 %3958
  %3960 = vrot.lane.b32.xlu0 %v3940, 99
  %v3961 = vpop.permute.xlu0 %3960
  %3962 = vrot.lane.b32.xlu0 %v3941, 99
  %v3963 = vpop.permute.xlu0 %3962
  %3964 = vrot.lane.b32.xlu0 %v3942, 99
  %v3965 = vpop.permute.xlu0 %3964
  %3966 = vrot.lane.b32.xlu0 %v3943, 99
  %v3967 = vpop.permute.xlu0 %3966
  %vm3968 = vcmask 809984
  %v3969 = vsel %vm3968, %v3953, %v3955
  %v3970 = vsel %vm3968, %v3955, %v3957
  %v3971 = vsel %vm3968, %v3957, %v3959
  %v3972 = vsel %vm3968, %v3961, %v3963
  %v3973 = vsel %vm3968, %v3963, %v3965
  %v3974 = vsel %vm3968, %v3965, %v3967
  %3983 = vst [vmem:[#allocation3 + $0xcb0] sm:$0xff] %v3969
  %3984 = vst [vmem:[#allocation3 + $0xcb8] sm:$0xff] %v3970
  %3985 = vst [vmem:[#allocation3 + $0xcc0] sm:$0xff] %v3971
  %3986 = vst.msk [vmem:[#allocation3 + $0xcc8] sm:$0xff] %vm844, %v3959
  %3987 = vst [vmem:[#allocation3 + $0xce8] sm:$0xff] %v3972
  %3988 = vst [vmem:[#allocation3 + $0xcf0] sm:$0xff] %v3973
  %3989 = vst [vmem:[#allocation3 + $0xcf8] sm:$0xff] %v3974
  %3990 = vst.msk [vmem:[#allocation3 + $0xd00] sm:$0xff] %vm844, %v3967
  %v3991 = vld [vmem:[%s820] sm:$0xff]
  %v3992 = vld [vmem:[%s820 + $0x8] sm:$0xff]
  %v3993 = vld [vmem:[%s820 + $0x10] sm:$0xff]
  %v3994 = vld [vmem:[%s820 + $0x18] sm:$0xff]
  %v3995 = vld [vmem:[%s820 + $0x20] sm:$0xff]
  %v3996 = vld [vmem:[%s820 + $0x28] sm:$0xff]
  %v3997 = vld [vmem:[%s820 + $0x30] sm:$0xff]
  %v3998 = vld [vmem:[%s820 + $0x38] sm:$0xff]
  %4007 = vrot.lane.b32.xlu0 %v3991, 117
  %v4008 = vpop.permute.xlu0 %4007
  %4009 = vrot.lane.b32.xlu0 %v3992, 117
  %v4010 = vpop.permute.xlu0 %4009
  %4011 = vrot.lane.b32.xlu0 %v3993, 117
  %v4012 = vpop.permute.xlu0 %4011
  %4013 = vrot.lane.b32.xlu0 %v3994, 117
  %v4014 = vpop.permute.xlu0 %4013
  %4015 = vrot.lane.b32.xlu0 %v3995, 117
  %v4016 = vpop.permute.xlu0 %4015
  %4017 = vrot.lane.b32.xlu0 %v3996, 117
  %v4018 = vpop.permute.xlu0 %4017
  %4019 = vrot.lane.b32.xlu0 %v3997, 117
  %v4020 = vpop.permute.xlu0 %4019
  %4021 = vrot.lane.b32.xlu0 %v3998, 117
  %v4022 = vpop.permute.xlu0 %4021
  %v4023 = vsel %vm2037, %v4008, %v4010
  %v4024 = vsel %vm2037, %v4010, %v4012
  %v4025 = vsel %vm2037, %v4012, %v4014
  %v4026 = vsel %vm2037, %v4016, %v4018
  %v4027 = vsel %vm2037, %v4018, %v4020
  %v4028 = vsel %vm2037, %v4020, %v4022
  %4037 = vst.msk [vmem:[#allocation3 + $0xcc8] sm:$0xff] %vm896, %v4023
  %4038 = vst [vmem:[#allocation3 + $0xcd0] sm:$0xff] %v4024
  %4039 = vst [vmem:[#allocation3 + $0xcd8] sm:$0xff] %v4025
  %4040 = vst.msk [vmem:[#allocation3 + $0xce0] sm:$0xff] %vm900, %v4014
  %4041 = vst.msk [vmem:[#allocation3 + $0xd00] sm:$0xff] %vm896, %v4026
  %4042 = vst [vmem:[#allocation3 + $0xd08] sm:$0xff] %v4027
  %4043 = vst [vmem:[#allocation3 + $0xd10] sm:$0xff] %v4028
  %4044 = vst.msk [vmem:[#allocation3 + $0xd18] sm:$0xff] %vm900, %v4022
  %v4045 = vld [vmem:[#allocation2] sm:$0xff]
  %v4046 = vld [vmem:[#allocation2 + $0x8] sm:$0xff]
  %v4047 = vld [vmem:[#allocation2 + $0x10] sm:$0xff]
  %v4048 = vld [vmem:[#allocation2 + $0x18] sm:$0xff]
  %v4049 = vld [vmem:[#allocation2 + $0x20] sm:$0xff]
  %v4050 = vld [vmem:[#allocation2 + $0x28] sm:$0xff]
  %v4051 = vld [vmem:[#allocation2 + $0x30] sm:$0xff]
  %v4052 = vld [vmem:[#allocation2 + $0x38] sm:$0xff]
  %4061 = vrot.lane.b32.xlu0 %v4045, 98
  %v4062 = vpop.permute.xlu0 %4061
  %4063 = vrot.lane.b32.xlu0 %v4046, 98
  %v4064 = vpop.permute.xlu0 %4063
  %4065 = vrot.lane.b32.xlu0 %v4047, 98
  %v4066 = vpop.permute.xlu0 %4065
  %4067 = vrot.lane.b32.xlu0 %v4048, 98
  %v4068 = vpop.permute.xlu0 %4067
  %4069 = vrot.lane.b32.xlu0 %v4049, 98
  %v4070 = vpop.permute.xlu0 %4069
  %4071 = vrot.lane.b32.xlu0 %v4050, 98
  %v4072 = vpop.permute.xlu0 %4071
  %4073 = vrot.lane.b32.xlu0 %v4051, 98
  %v4074 = vpop.permute.xlu0 %4073
  %4075 = vrot.lane.b32.xlu0 %v4052, 98
  %v4076 = vpop.permute.xlu0 %4075
  %vm4077 = vcmask 801792
  %v4078 = vsel %vm4077, %v4062, %v4064
  %v4079 = vsel %vm4077, %v4064, %v4066
  %v4080 = vsel %vm4077, %v4066, %v4068
  %v4081 = vsel %vm4077, %v4070, %v4072
  %v4082 = vsel %vm4077, %v4072, %v4074
  %v4083 = vsel %vm4077, %v4074, %v4076
  %4092 = vst [vmem:[#allocation3 + $0xd20] sm:$0xff] %v4078
  %4093 = vst [vmem:[#allocation3 + $0xd28] sm:$0xff] %v4079
  %4094 = vst [vmem:[#allocation3 + $0xd30] sm:$0xff] %v4080
  %4095 = vst.msk [vmem:[#allocation3 + $0xd38] sm:$0xff] %vm844, %v4068
  %4096 = vst [vmem:[#allocation3 + $0xd58] sm:$0xff] %v4081
  %4097 = vst [vmem:[#allocation3 + $0xd60] sm:$0xff] %v4082
  %4098 = vst [vmem:[#allocation3 + $0xd68] sm:$0xff] %v4083
  %4099 = vst.msk [vmem:[#allocation3 + $0xd70] sm:$0xff] %vm844, %v4076
  %v4100 = vld [vmem:[%s820] sm:$0xff]
  %v4101 = vld [vmem:[%s820 + $0x8] sm:$0xff]
  %v4102 = vld [vmem:[%s820 + $0x10] sm:$0xff]
  %v4103 = vld [vmem:[%s820 + $0x18] sm:$0xff]
  %v4104 = vld [vmem:[%s820 + $0x20] sm:$0xff]
  %v4105 = vld [vmem:[%s820 + $0x28] sm:$0xff]
  %v4106 = vld [vmem:[%s820 + $0x30] sm:$0xff]
  %v4107 = vld [vmem:[%s820 + $0x38] sm:$0xff]
  %4116 = vrot.lane.b32.xlu0 %v4100, 116
  %v4117 = vpop.permute.xlu0 %4116
  %4118 = vrot.lane.b32.xlu0 %v4101, 116
  %v4119 = vpop.permute.xlu0 %4118
  %4120 = vrot.lane.b32.xlu0 %v4102, 116
  %v4121 = vpop.permute.xlu0 %4120
  %4122 = vrot.lane.b32.xlu0 %v4103, 116
  %v4123 = vpop.permute.xlu0 %4122
  %4124 = vrot.lane.b32.xlu0 %v4104, 116
  %v4125 = vpop.permute.xlu0 %4124
  %4126 = vrot.lane.b32.xlu0 %v4105, 116
  %v4127 = vpop.permute.xlu0 %4126
  %4128 = vrot.lane.b32.xlu0 %v4106, 116
  %v4129 = vpop.permute.xlu0 %4128
  %4130 = vrot.lane.b32.xlu0 %v4107, 116
  %v4131 = vpop.permute.xlu0 %4130
  %v4132 = vsel %vm2147, %v4117, %v4119
  %v4133 = vsel %vm2147, %v4119, %v4121
  %v4134 = vsel %vm2147, %v4121, %v4123
  %v4135 = vsel %vm2147, %v4125, %v4127
  %v4136 = vsel %vm2147, %v4127, %v4129
  %v4137 = vsel %vm2147, %v4129, %v4131
  %4146 = vst.msk [vmem:[#allocation3 + $0xd38] sm:$0xff] %vm896, %v4132
  %4147 = vst [vmem:[#allocation3 + $0xd40] sm:$0xff] %v4133
  %4148 = vst [vmem:[#allocation3 + $0xd48] sm:$0xff] %v4134
  %4149 = vst.msk [vmem:[#allocation3 + $0xd50] sm:$0xff] %vm900, %v4123
  %4150 = vst.msk [vmem:[#allocation3 + $0xd70] sm:$0xff] %vm896, %v4135
  %4151 = vst [vmem:[#allocation3 + $0xd78] sm:$0xff] %v4136
  %4152 = vst [vmem:[#allocation3 + $0xd80] sm:$0xff] %v4137
  %4153 = vst.msk [vmem:[#allocation3 + $0xd88] sm:$0xff] %vm900, %v4131
  %v4154 = vld [vmem:[#allocation2] sm:$0xff]
  %v4155 = vld [vmem:[#allocation2 + $0x8] sm:$0xff]
  %v4156 = vld [vmem:[#allocation2 + $0x10] sm:$0xff]
  %v4157 = vld [vmem:[#allocation2 + $0x18] sm:$0xff]
  %v4158 = vld [vmem:[#allocation2 + $0x20] sm:$0xff]
  %v4159 = vld [vmem:[#allocation2 + $0x28] sm:$0xff]
  %v4160 = vld [vmem:[#allocation2 + $0x30] sm:$0xff]
  %v4161 = vld [vmem:[#allocation2 + $0x38] sm:$0xff]
  %4170 = vrot.lane.b32.xlu0 %v4154, 97
  %v4171 = vpop.permute.xlu0 %4170
  %4172 = vrot.lane.b32.xlu0 %v4155, 97
  %v4173 = vpop.permute.xlu0 %4172
  %4174 = vrot.lane.b32.xlu0 %v4156, 97
  %v4175 = vpop.permute.xlu0 %4174
  %4176 = vrot.lane.b32.xlu0 %v4157, 97
  %v4177 = vpop.permute.xlu0 %4176
  %4178 = vrot.lane.b32.xlu0 %v4158, 97
  %v4179 = vpop.permute.xlu0 %4178
  %4180 = vrot.lane.b32.xlu0 %v4159, 97
  %v4181 = vpop.permute.xlu0 %4180
  %4182 = vrot.lane.b32.xlu0 %v4160, 97
  %v4183 = vpop.permute.xlu0 %4182
  %4184 = vrot.lane.b32.xlu0 %v4161, 97
  %v4185 = vpop.permute.xlu0 %4184
  %vm4186 = vcmask 793600
  %v4187 = vsel %vm4186, %v4171, %v4173
  %v4188 = vsel %vm4186, %v4173, %v4175
  %v4189 = vsel %vm4186, %v4175, %v4177
  %v4190 = vsel %vm4186, %v4179, %v4181
  %v4191 = vsel %vm4186, %v4181, %v4183
  %v4192 = vsel %vm4186, %v4183, %v4185
  %4201 = vst [vmem:[#allocation3 + $0xd90] sm:$0xff] %v4187
  %4202 = vst [vmem:[#allocation3 + $0xd98] sm:$0xff] %v4188
  %4203 = vst [vmem:[#allocation3 + $0xda0] sm:$0xff] %v4189
  %4204 = vst.msk [vmem:[#allocation3 + $0xda8] sm:$0xff] %vm844, %v4177
  %4205 = vst [vmem:[#allocation3 + $0xdc8] sm:$0xff] %v4190
  %4206 = vst [vmem:[#allocation3 + $0xdd0] sm:$0xff] %v4191
  %4207 = vst [vmem:[#allocation3 + $0xdd8] sm:$0xff] %v4192
  %4208 = vst.msk [vmem:[#allocation3 + $0xde0] sm:$0xff] %vm844, %v4185
  %v4209 = vld [vmem:[%s820] sm:$0xff]
  %v4210 = vld [vmem:[%s820 + $0x8] sm:$0xff]
  %v4211 = vld [vmem:[%s820 + $0x10] sm:$0xff]
  %v4212 = vld [vmem:[%s820 + $0x18] sm:$0xff]
  %v4213 = vld [vmem:[%s820 + $0x20] sm:$0xff]
  %v4214 = vld [vmem:[%s820 + $0x28] sm:$0xff]
  %v4215 = vld [vmem:[%s820 + $0x30] sm:$0xff]
  %v4216 = vld [vmem:[%s820 + $0x38] sm:$0xff]
  %4225 = vrot.lane.b32.xlu0 %v4209, 115
  %v4226 = vpop.permute.xlu0 %4225
  %4227 = vrot.lane.b32.xlu0 %v4210, 115
  %v4228 = vpop.permute.xlu0 %4227
  %4229 = vrot.lane.b32.xlu0 %v4211, 115
  %v4230 = vpop.permute.xlu0 %4229
  %4231 = vrot.lane.b32.xlu0 %v4212, 115
  %v4232 = vpop.permute.xlu0 %4231
  %4233 = vrot.lane.b32.xlu0 %v4213, 115
  %v4234 = vpop.permute.xlu0 %4233
  %4235 = vrot.lane.b32.xlu0 %v4214, 115
  %v4236 = vpop.permute.xlu0 %4235
  %4237 = vrot.lane.b32.xlu0 %v4215, 115
  %v4238 = vpop.permute.xlu0 %4237
  %4239 = vrot.lane.b32.xlu0 %v4216, 115
  %v4240 = vpop.permute.xlu0 %4239
  %v4241 = vsel %vm2257, %v4226, %v4228
  %v4242 = vsel %vm2257, %v4228, %v4230
  %v4243 = vsel %vm2257, %v4230, %v4232
  %v4244 = vsel %vm2257, %v4234, %v4236
  %v4245 = vsel %vm2257, %v4236, %v4238
  %v4246 = vsel %vm2257, %v4238, %v4240
  %4255 = vst.msk [vmem:[#allocation3 + $0xda8] sm:$0xff] %vm896, %v4241
  %4256 = vst [vmem:[#allocation3 + $0xdb0] sm:$0xff] %v4242
  %4257 = vst [vmem:[#allocation3 + $0xdb8] sm:$0xff] %v4243
  %4258 = vst.msk [vmem:[#allocation3 + $0xdc0] sm:$0xff] %vm900, %v4232
  %4259 = vst.msk [vmem:[#allocation3 + $0xde0] sm:$0xff] %vm896, %v4244
  %4260 = vst [vmem:[#allocation3 + $0xde8] sm:$0xff] %v4245
  %4261 = vst [vmem:[#allocation3 + $0xdf0] sm:$0xff] %v4246
  %4262 = vst.msk [vmem:[#allocation3 + $0xdf8] sm:$0xff] %vm900, %v4240
  %v4263 = vld [vmem:[#allocation3] sm:$0xff]
  %v4264 = vld [vmem:[#allocation3 + $0x8] sm:$0xff]
  %v4265 = vld [vmem:[#allocation3 + $0x10] sm:$0xff]
  %v4266 = vld [vmem:[#allocation3 + $0x18] sm:$0xff]
  %v4267 = vld [vmem:[#allocation3 + $0x20] sm:$0xff]
  %v4268 = vld [vmem:[#allocation3 + $0x28] sm:$0xff]
  %v4269 = vld [vmem:[#allocation3 + $0x30] sm:$0xff]
  %v4270 = vld [vmem:[#allocation3 + $0x38] sm:$0xff]
  %v4271 = vld [vmem:[#allocation3 + $0x40] sm:$0xff]
  %v4272 = vld [vmem:[#allocation3 + $0x48] sm:$0xff]
  %v4273 = vld [vmem:[#allocation3 + $0x50] sm:$0xff]
  %v4274 = vld [vmem:[#allocation3 + $0x58] sm:$0xff]
  %v4275 = vld [vmem:[#allocation3 + $0x60] sm:$0xff]
  %v4276 = vld [vmem:[#allocation3 + $0x68] sm:$0xff]
  %v4277 = vld [vmem:[#allocation3 + $0x70] sm:$0xff]
  %v4278 = vld [vmem:[#allocation3 + $0x78] sm:$0xff]
  %v4279 = vld [vmem:[#allocation3 + $0x80] sm:$0xff]
  %v4280 = vld [vmem:[#allocation3 + $0x88] sm:$0xff]
  %v4281 = vld [vmem:[#allocation3 + $0x90] sm:$0xff]
  %v4282 = vld [vmem:[#allocation3 + $0x98] sm:$0xff]
  %v4283 = vld [vmem:[#allocation3 + $0xa0] sm:$0xff]
  %v4284 = vld [vmem:[#allocation3 + $0xa8] sm:$0xff]
  %v4285 = vld [vmem:[#allocation3 + $0xb0] sm:$0xff]
  %v4286 = vld [vmem:[#allocation3 + $0xb8] sm:$0xff]
  %v4287 = vld [vmem:[#allocation3 + $0xc0] sm:$0xff]
  %v4288 = vld [vmem:[#allocation3 + $0xc8] sm:$0xff]
  %v4289 = vld [vmem:[#allocation3 + $0xd0] sm:$0xff]
  %v4290 = vld [vmem:[#allocation3 + $0xd8] sm:$0xff]
  %v4291 = vld [vmem:[#allocation3 + $0xe0] sm:$0xff]
  %v4292 = vld [vmem:[#allocation3 + $0xe8] sm:$0xff]
  %v4293 = vld [vmem:[#allocation3 + $0xf0] sm:$0xff]
  %v4294 = vld [vmem:[#allocation3 + $0xf8] sm:$0xff]
  %v4295 = vld [vmem:[#allocation3 + $0x100] sm:$0xff]
  %v4296 = vld [vmem:[#allocation3 + $0x108] sm:$0xff]
  %v4297 = vld [vmem:[#allocation3 + $0x110] sm:$0xff]
  %v4298 = vld [vmem:[#allocation3 + $0x118] sm:$0xff]
  %v4299 = vld [vmem:[#allocation3 + $0x120] sm:$0xff]
  %v4300 = vld [vmem:[#allocation3 + $0x128] sm:$0xff]
  %v4301 = vld [vmem:[#allocation3 + $0x130] sm:$0xff]
  %v4302 = vld [vmem:[#allocation3 + $0x138] sm:$0xff]
  %v4303 = vld [vmem:[#allocation3 + $0x140] sm:$0xff]
  %v4304 = vld [vmem:[#allocation3 + $0x148] sm:$0xff]
  %v4305 = vld [vmem:[#allocation3 + $0x150] sm:$0xff]
  %v4306 = vld [vmem:[#allocation3 + $0x158] sm:$0xff]
  %v4307 = vld [vmem:[#allocation3 + $0x160] sm:$0xff]
  %v4308 = vld [vmem:[#allocation3 + $0x168] sm:$0xff]
  %v4309 = vld [vmem:[#allocation3 + $0x170] sm:$0xff]
  %v4310 = vld [vmem:[#allocation3 + $0x178] sm:$0xff]
  %v4311 = vld [vmem:[#allocation3 + $0x180] sm:$0xff]
  %v4312 = vld [vmem:[#allocation3 + $0x188] sm:$0xff]
  %v4313 = vld [vmem:[#allocation3 + $0x190] sm:$0xff]
  %v4314 = vld [vmem:[#allocation3 + $0x198] sm:$0xff]
  %v4315 = vld [vmem:[#allocation3 + $0x1a0] sm:$0xff]
  %v4316 = vld [vmem:[#allocation3 + $0x1a8] sm:$0xff]
  %v4317 = vld [vmem:[#allocation3 + $0x1b0] sm:$0xff]
  %v4318 = vld [vmem:[#allocation3 + $0x1b8] sm:$0xff]
  %v4319 = vld [vmem:[#allocation3 + $0x1c0] sm:$0xff]
  %v4320 = vld [vmem:[#allocation3 + $0x1c8] sm:$0xff]
  %v4321 = vld [vmem:[#allocation3 + $0x1d0] sm:$0xff]
  %v4322 = vld [vmem:[#allocation3 + $0x1d8] sm:$0xff]
  %v4323 = vld [vmem:[#allocation3 + $0x1e0] sm:$0xff]
  %v4324 = vld [vmem:[#allocation3 + $0x1e8] sm:$0xff]
  %v4325 = vld [vmem:[#allocation3 + $0x1f0] sm:$0xff]
  %v4326 = vld [vmem:[#allocation3 + $0x1f8] sm:$0xff]
  %v4327 = vld [vmem:[#allocation3 + $0x200] sm:$0xff]
  %v4328 = vld [vmem:[#allocation3 + $0x208] sm:$0xff]
  %v4329 = vld [vmem:[#allocation3 + $0x210] sm:$0xff]
  %v4330 = vld [vmem:[#allocation3 + $0x218] sm:$0xff]
  %v4331 = vld [vmem:[#allocation3 + $0x220] sm:$0xff]
  %v4332 = vld [vmem:[#allocation3 + $0x228] sm:$0xff]
  %v4333 = vld [vmem:[#allocation3 + $0x230] sm:$0xff]
  %v4334 = vld [vmem:[#allocation3 + $0x238] sm:$0xff]
  %v4335 = vld [vmem:[#allocation3 + $0x240] sm:$0xff]
  %v4336 = vld [vmem:[#allocation3 + $0x248] sm:$0xff]
  %v4337 = vld [vmem:[#allocation3 + $0x250] sm:$0xff]
  %v4338 = vld [vmem:[#allocation3 + $0x258] sm:$0xff]
  %v4339 = vld [vmem:[#allocation3 + $0x260] sm:$0xff]
  %v4340 = vld [vmem:[#allocation3 + $0x268] sm:$0xff]
  %v4341 = vld [vmem:[#allocation3 + $0x270] sm:$0xff]
  %v4342 = vld [vmem:[#allocation3 + $0x278] sm:$0xff]
  %v4343 = vld [vmem:[#allocation3 + $0x280] sm:$0xff]
  %v4344 = vld [vmem:[#allocation3 + $0x288] sm:$0xff]
  %v4345 = vld [vmem:[#allocation3 + $0x290] sm:$0xff]
  %v4346 = vld [vmem:[#allocation3 + $0x298] sm:$0xff]
  %v4347 = vld [vmem:[#allocation3 + $0x2a0] sm:$0xff]
  %v4348 = vld [vmem:[#allocation3 + $0x2a8] sm:$0xff]
  %v4349 = vld [vmem:[#allocation3 + $0x2b0] sm:$0xff]
  %v4350 = vld [vmem:[#allocation3 + $0x2b8] sm:$0xff]
  %v4351 = vld [vmem:[#allocation3 + $0x2c0] sm:$0xff]
  %v4352 = vld [vmem:[#allocation3 + $0x2c8] sm:$0xff]
  %v4353 = vld [vmem:[#allocation3 + $0x2d0] sm:$0xff]
  %v4354 = vld [vmem:[#allocation3 + $0x2d8] sm:$0xff]
  %v4355 = vld [vmem:[#allocation3 + $0x2e0] sm:$0xff]
  %v4356 = vld [vmem:[#allocation3 + $0x2e8] sm:$0xff]
  %v4357 = vld [vmem:[#allocation3 + $0x2f0] sm:$0xff]
  %v4358 = vld [vmem:[#allocation3 + $0x2f8] sm:$0xff]
  %v4359 = vld [vmem:[#allocation3 + $0x300] sm:$0xff]
  %v4360 = vld [vmem:[#allocation3 + $0x308] sm:$0xff]
  %v4361 = vld [vmem:[#allocation3 + $0x310] sm:$0xff]
  %v4362 = vld [vmem:[#allocation3 + $0x318] sm:$0xff]
  %v4363 = vld [vmem:[#allocation3 + $0x320] sm:$0xff]
  %v4364 = vld [vmem:[#allocation3 + $0x328] sm:$0xff]
  %v4365 = vld [vmem:[#allocation3 + $0x330] sm:$0xff]
  %v4366 = vld [vmem:[#allocation3 + $0x338] sm:$0xff]
  %v4367 = vld [vmem:[#allocation3 + $0x340] sm:$0xff]
  %v4368 = vld [vmem:[#allocation3 + $0x348] sm:$0xff]
  %v4369 = vld [vmem:[#allocation3 + $0x350] sm:$0xff]
  %v4370 = vld [vmem:[#allocation3 + $0x358] sm:$0xff]
  %v4371 = vld [vmem:[#allocation3 + $0x360] sm:$0xff]
  %v4372 = vld [vmem:[#allocation3 + $0x368] sm:$0xff]
  %v4373 = vld [vmem:[#allocation3 + $0x370] sm:$0xff]
  %v4374 = vld [vmem:[#allocation3 + $0x378] sm:$0xff]
  %v4375 = vld [vmem:[#allocation3 + $0x380] sm:$0xff]
  %v4376 = vld [vmem:[#allocation3 + $0x388] sm:$0xff]
  %v4377 = vld [vmem:[#allocation3 + $0x390] sm:$0xff]
  %v4378 = vld [vmem:[#allocation3 + $0x398] sm:$0xff]
  %v4379 = vld [vmem:[#allocation3 + $0x3a0] sm:$0xff]
  %v4380 = vld [vmem:[#allocation3 + $0x3a8] sm:$0xff]
  %v4381 = vld [vmem:[#allocation3 + $0x3b0] sm:$0xff]
  %v4382 = vld [vmem:[#allocation3 + $0x3b8] sm:$0xff]
  %v4383 = vld [vmem:[#allocation3 + $0x3c0] sm:$0xff]
  %v4384 = vld [vmem:[#allocation3 + $0x3c8] sm:$0xff]
  %v4385 = vld [vmem:[#allocation3 + $0x3d0] sm:$0xff]
  %v4386 = vld [vmem:[#allocation3 + $0x3d8] sm:$0xff]
  %v4387 = vld [vmem:[#allocation3 + $0x3e0] sm:$0xff]
  %v4388 = vld [vmem:[#allocation3 + $0x3e8] sm:$0xff]
  %v4389 = vld [vmem:[#allocation3 + $0x3f0] sm:$0xff]
  %v4390 = vld [vmem:[#allocation3 + $0x3f8] sm:$0xff]
  %v4391 = vld [vmem:[#allocation3 + $0x400] sm:$0xff]
  %v4392 = vld [vmem:[#allocation3 + $0x408] sm:$0xff]
  %v4393 = vld [vmem:[#allocation3 + $0x410] sm:$0xff]
  %v4394 = vld [vmem:[#allocation3 + $0x418] sm:$0xff]
  %v4395 = vld [vmem:[#allocation3 + $0x420] sm:$0xff]
  %v4396 = vld [vmem:[#allocation3 + $0x428] sm:$0xff]
  %v4397 = vld [vmem:[#allocation3 + $0x430] sm:$0xff]
  %v4398 = vld [vmem:[#allocation3 + $0x438] sm:$0xff]
  %v4399 = vld [vmem:[#allocation3 + $0x440] sm:$0xff]
  %v4400 = vld [vmem:[#allocation3 + $0x448] sm:$0xff]
  %v4401 = vld [vmem:[#allocation3 + $0x450] sm:$0xff]
  %v4402 = vld [vmem:[#allocation3 + $0x458] sm:$0xff]
  %v4403 = vld [vmem:[#allocation3 + $0x460] sm:$0xff]
  %v4404 = vld [vmem:[#allocation3 + $0x468] sm:$0xff]
  %v4405 = vld [vmem:[#allocation3 + $0x470] sm:$0xff]
  %v4406 = vld [vmem:[#allocation3 + $0x478] sm:$0xff]
  %v4407 = vld [vmem:[#allocation3 + $0x480] sm:$0xff]
  %v4408 = vld [vmem:[#allocation3 + $0x488] sm:$0xff]
  %v4409 = vld [vmem:[#allocation3 + $0x490] sm:$0xff]
  %v4410 = vld [vmem:[#allocation3 + $0x498] sm:$0xff]
  %v4411 = vld [vmem:[#allocation3 + $0x4a0] sm:$0xff]
  %v4412 = vld [vmem:[#allocation3 + $0x4a8] sm:$0xff]
  %v4413 = vld [vmem:[#allocation3 + $0x4b0] sm:$0xff]
  %v4414 = vld [vmem:[#allocation3 + $0x4b8] sm:$0xff]
  %v4415 = vld [vmem:[#allocation3 + $0x4c0] sm:$0xff]
  %v4416 = vld [vmem:[#allocation3 + $0x4c8] sm:$0xff]
  %v4417 = vld [vmem:[#allocation3 + $0x4d0] sm:$0xff]
  %v4418 = vld [vmem:[#allocation3 + $0x4d8] sm:$0xff]
  %v4419 = vld [vmem:[#allocation3 + $0x4e0] sm:$0xff]
  %v4420 = vld [vmem:[#allocation3 + $0x4e8] sm:$0xff]
  %v4421 = vld [vmem:[#allocation3 + $0x4f0] sm:$0xff]
  %v4422 = vld [vmem:[#allocation3 + $0x4f8] sm:$0xff]
  %v4423 = vld [vmem:[#allocation3 + $0x500] sm:$0xff]
  %v4424 = vld [vmem:[#allocation3 + $0x508] sm:$0xff]
  %v4425 = vld [vmem:[#allocation3 + $0x510] sm:$0xff]
  %v4426 = vld [vmem:[#allocation3 + $0x518] sm:$0xff]
  %v4427 = vld [vmem:[#allocation3 + $0x520] sm:$0xff]
  %v4428 = vld [vmem:[#allocation3 + $0x528] sm:$0xff]
  %v4429 = vld [vmem:[#allocation3 + $0x530] sm:$0xff]
  %v4430 = vld [vmem:[#allocation3 + $0x538] sm:$0xff]
  %v4431 = vld [vmem:[#allocation3 + $0x540] sm:$0xff]
  %v4432 = vld [vmem:[#allocation3 + $0x548] sm:$0xff]
  %v4433 = vld [vmem:[#allocation3 + $0x550] sm:$0xff]
  %v4434 = vld [vmem:[#allocation3 + $0x558] sm:$0xff]
  %v4435 = vld [vmem:[#allocation3 + $0x560] sm:$0xff]
  %v4436 = vld [vmem:[#allocation3 + $0x568] sm:$0xff]
  %v4437 = vld [vmem:[#allocation3 + $0x570] sm:$0xff]
  %v4438 = vld [vmem:[#allocation3 + $0x578] sm:$0xff]
  %v4439 = vld [vmem:[#allocation3 + $0x580] sm:$0xff]
  %v4440 = vld [vmem:[#allocation3 + $0x588] sm:$0xff]
  %v4441 = vld [vmem:[#allocation3 + $0x590] sm:$0xff]
  %v4442 = vld [vmem:[#allocation3 + $0x598] sm:$0xff]
  %v4443 = vld [vmem:[#allocation3 + $0x5a0] sm:$0xff]
  %v4444 = vld [vmem:[#allocation3 + $0x5a8] sm:$0xff]
  %v4445 = vld [vmem:[#allocation3 + $0x5b0] sm:$0xff]
  %v4446 = vld [vmem:[#allocation3 + $0x5b8] sm:$0xff]
  %v4447 = vld [vmem:[#allocation3 + $0x5c0] sm:$0xff]
  %v4448 = vld [vmem:[#allocation3 + $0x5c8] sm:$0xff]
  %v4449 = vld [vmem:[#allocation3 + $0x5d0] sm:$0xff]
  %v4450 = vld [vmem:[#allocation3 + $0x5d8] sm:$0xff]
  %v4451 = vld [vmem:[#allocation3 + $0x5e0] sm:$0xff]
  %v4452 = vld [vmem:[#allocation3 + $0x5e8] sm:$0xff]
  %v4453 = vld [vmem:[#allocation3 + $0x5f0] sm:$0xff]
  %v4454 = vld [vmem:[#allocation3 + $0x5f8] sm:$0xff]
  %v4455 = vld [vmem:[#allocation3 + $0x600] sm:$0xff]
  %v4456 = vld [vmem:[#allocation3 + $0x608] sm:$0xff]
  %v4457 = vld [vmem:[#allocation3 + $0x610] sm:$0xff]
  %v4458 = vld [vmem:[#allocation3 + $0x618] sm:$0xff]
  %v4459 = vld [vmem:[#allocation3 + $0x620] sm:$0xff]
  %v4460 = vld [vmem:[#allocation3 + $0x628] sm:$0xff]
  %v4461 = vld [vmem:[#allocation3 + $0x630] sm:$0xff]
  %v4462 = vld [vmem:[#allocation3 + $0x638] sm:$0xff]
  %v4463 = vld [vmem:[#allocation3 + $0x640] sm:$0xff]
  %v4464 = vld [vmem:[#allocation3 + $0x648] sm:$0xff]
  %v4465 = vld [vmem:[#allocation3 + $0x650] sm:$0xff]
  %v4466 = vld [vmem:[#allocation3 + $0x658] sm:$0xff]
  %v4467 = vld [vmem:[#allocation3 + $0x660] sm:$0xff]
  %v4468 = vld [vmem:[#allocation3 + $0x668] sm:$0xff]
  %v4469 = vld [vmem:[#allocation3 + $0x670] sm:$0xff]
  %v4470 = vld [vmem:[#allocation3 + $0x678] sm:$0xff]
  %v4471 = vld [vmem:[#allocation3 + $0x680] sm:$0xff]
  %v4472 = vld [vmem:[#allocation3 + $0x688] sm:$0xff]
  %v4473 = vld [vmem:[#allocation3 + $0x690] sm:$0xff]
  %v4474 = vld [vmem:[#allocation3 + $0x698] sm:$0xff]
  %v4475 = vld [vmem:[#allocation3 + $0x6a0] sm:$0xff]
  %v4476 = vld [vmem:[#allocation3 + $0x6a8] sm:$0xff]
  %v4477 = vld [vmem:[#allocation3 + $0x6b0] sm:$0xff]
  %v4478 = vld [vmem:[#allocation3 + $0x6b8] sm:$0xff]
  %v4479 = vld [vmem:[#allocation3 + $0x6c0] sm:$0xff]
  %v4480 = vld [vmem:[#allocation3 + $0x6c8] sm:$0xff]
  %v4481 = vld [vmem:[#allocation3 + $0x6d0] sm:$0xff]
  %v4482 = vld [vmem:[#allocation3 + $0x6d8] sm:$0xff]
  %v4483 = vld [vmem:[#allocation3 + $0x6e0] sm:$0xff]
  %v4484 = vld [vmem:[#allocation3 + $0x6e8] sm:$0xff]
  %v4485 = vld [vmem:[#allocation3 + $0x6f0] sm:$0xff]
  %v4486 = vld [vmem:[#allocation3 + $0x6f8] sm:$0xff]
  %v4487 = vld [vmem:[#allocation3 + $0x700] sm:$0xff]
  %v4488 = vld [vmem:[#allocation3 + $0x708] sm:$0xff]
  %v4489 = vld [vmem:[#allocation3 + $0x710] sm:$0xff]
  %v4490 = vld [vmem:[#allocation3 + $0x718] sm:$0xff]
  %v4491 = vld [vmem:[#allocation3 + $0x720] sm:$0xff]
  %v4492 = vld [vmem:[#allocation3 + $0x728] sm:$0xff]
  %v4493 = vld [vmem:[#allocation3 + $0x730] sm:$0xff]
  %v4494 = vld [vmem:[#allocation3 + $0x738] sm:$0xff]
  %v4495 = vld [vmem:[#allocation3 + $0x740] sm:$0xff]
  %v4496 = vld [vmem:[#allocation3 + $0x748] sm:$0xff]
  %v4497 = vld [vmem:[#allocation3 + $0x750] sm:$0xff]
  %v4498 = vld [vmem:[#allocation3 + $0x758] sm:$0xff]
  %v4499 = vld [vmem:[#allocation3 + $0x760] sm:$0xff]
  %v4500 = vld [vmem:[#allocation3 + $0x768] sm:$0xff]
  %v4501 = vld [vmem:[#allocation3 + $0x770] sm:$0xff]
  %v4502 = vld [vmem:[#allocation3 + $0x778] sm:$0xff]
  %v4503 = vld [vmem:[#allocation3 + $0x780] sm:$0xff]
  %v4504 = vld [vmem:[#allocation3 + $0x788] sm:$0xff]
  %v4505 = vld [vmem:[#allocation3 + $0x790] sm:$0xff]
  %v4506 = vld [vmem:[#allocation3 + $0x798] sm:$0xff]
  %v4507 = vld [vmem:[#allocation3 + $0x7a0] sm:$0xff]
  %v4508 = vld [vmem:[#allocation3 + $0x7a8] sm:$0xff]
  %v4509 = vld [vmem:[#allocation3 + $0x7b0] sm:$0xff]
  %v4510 = vld [vmem:[#allocation3 + $0x7b8] sm:$0xff]
  %v4511 = vld [vmem:[#allocation3 + $0x7c0] sm:$0xff]
  %v4512 = vld [vmem:[#allocation3 + $0x7c8] sm:$0xff]
  %v4513 = vld [vmem:[#allocation3 + $0x7d0] sm:$0xff]
  %v4514 = vld [vmem:[#allocation3 + $0x7d8] sm:$0xff]
  %v4515 = vld [vmem:[#allocation3 + $0x7e0] sm:$0xff]
  %v4516 = vld [vmem:[#allocation3 + $0x7e8] sm:$0xff]
  %v4517 = vld [vmem:[#allocation3 + $0x7f0] sm:$0xff]
  %v4518 = vld [vmem:[#allocation3 + $0x7f8] sm:$0xff]
  %v4519 = vld [vmem:[#allocation3 + $0x800] sm:$0xff]
  %v4520 = vld [vmem:[#allocation3 + $0x808] sm:$0xff]
  %v4521 = vld [vmem:[#allocation3 + $0x810] sm:$0xff]
  %v4522 = vld [vmem:[#allocation3 + $0x818] sm:$0xff]
  %v4523 = vld [vmem:[#allocation3 + $0x820] sm:$0xff]
  %v4524 = vld [vmem:[#allocation3 + $0x828] sm:$0xff]
  %v4525 = vld [vmem:[#allocation3 + $0x830] sm:$0xff]
  %v4526 = vld [vmem:[#allocation3 + $0x838] sm:$0xff]
  %v4527 = vld [vmem:[#allocation3 + $0x840] sm:$0xff]
  %v4528 = vld [vmem:[#allocation3 + $0x848] sm:$0xff]
  %v4529 = vld [vmem:[#allocation3 + $0x850] sm:$0xff]
  %v4530 = vld [vmem:[#allocation3 + $0x858] sm:$0xff]
  %v4531 = vld [vmem:[#allocation3 + $0x860] sm:$0xff]
  %v4532 = vld [vmem:[#allocation3 + $0x868] sm:$0xff]
  %v4533 = vld [vmem:[#allocation3 + $0x870] sm:$0xff]
  %v4534 = vld [vmem:[#allocation3 + $0x878] sm:$0xff]
  %v4535 = vld [vmem:[#allocation3 + $0x880] sm:$0xff]
  %v4536 = vld [vmem:[#allocation3 + $0x888] sm:$0xff]
  %v4537 = vld [vmem:[#allocation3 + $0x890] sm:$0xff]
  %v4538 = vld [vmem:[#allocation3 + $0x898] sm:$0xff]
  %v4539 = vld [vmem:[#allocation3 + $0x8a0] sm:$0xff]
  %v4540 = vld [vmem:[#allocation3 + $0x8a8] sm:$0xff]
  %v4541 = vld [vmem:[#allocation3 + $0x8b0] sm:$0xff]
  %v4542 = vld [vmem:[#allocation3 + $0x8b8] sm:$0xff]
  %v4543 = vld [vmem:[#allocation3 + $0x8c0] sm:$0xff]
  %v4544 = vld [vmem:[#allocation3 + $0x8c8] sm:$0xff]
  %v4545 = vld [vmem:[#allocation3 + $0x8d0] sm:$0xff]
  %v4546 = vld [vmem:[#allocation3 + $0x8d8] sm:$0xff]
  %v4547 = vld [vmem:[#allocation3 + $0x8e0] sm:$0xff]
  %v4548 = vld [vmem:[#allocation3 + $0x8e8] sm:$0xff]
  %v4549 = vld [vmem:[#allocation3 + $0x8f0] sm:$0xff]
  %v4550 = vld [vmem:[#allocation3 + $0x8f8] sm:$0xff]
  %v4551 = vld [vmem:[#allocation3 + $0x900] sm:$0xff]
  %v4552 = vld [vmem:[#allocation3 + $0x908] sm:$0xff]
  %v4553 = vld [vmem:[#allocation3 + $0x910] sm:$0xff]
  %v4554 = vld [vmem:[#allocation3 + $0x918] sm:$0xff]
  %v4555 = vld [vmem:[#allocation3 + $0x920] sm:$0xff]
  %v4556 = vld [vmem:[#allocation3 + $0x928] sm:$0xff]
  %v4557 = vld [vmem:[#allocation3 + $0x930] sm:$0xff]
  %v4558 = vld [vmem:[#allocation3 + $0x938] sm:$0xff]
  %v4559 = vld [vmem:[#allocation3 + $0x940] sm:$0xff]
  %v4560 = vld [vmem:[#allocation3 + $0x948] sm:$0xff]
  %v4561 = vld [vmem:[#allocation3 + $0x950] sm:$0xff]
  %v4562 = vld [vmem:[#allocation3 + $0x958] sm:$0xff]
  %v4563 = vld [vmem:[#allocation3 + $0x960] sm:$0xff]
  %v4564 = vld [vmem:[#allocation3 + $0x968] sm:$0xff]
  %v4565 = vld [vmem:[#allocation3 + $0x970] sm:$0xff]
  %v4566 = vld [vmem:[#allocation3 + $0x978] sm:$0xff]
  %v4567 = vld [vmem:[#allocation3 + $0x980] sm:$0xff]
  %v4568 = vld [vmem:[#allocation3 + $0x988] sm:$0xff]
  %v4569 = vld [vmem:[#allocation3 + $0x990] sm:$0xff]
  %v4570 = vld [vmem:[#allocation3 + $0x998] sm:$0xff]
  %v4571 = vld [vmem:[#allocation3 + $0x9a0] sm:$0xff]
  %v4572 = vld [vmem:[#allocation3 + $0x9a8] sm:$0xff]
  %v4573 = vld [vmem:[#allocation3 + $0x9b0] sm:$0xff]
  %v4574 = vld [vmem:[#allocation3 + $0x9b8] sm:$0xff]
  %v4575 = vld [vmem:[#allocation3 + $0x9c0] sm:$0xff]
  %v4576 = vld [vmem:[#allocation3 + $0x9c8] sm:$0xff]
  %v4577 = vld [vmem:[#allocation3 + $0x9d0] sm:$0xff]
  %v4578 = vld [vmem:[#allocation3 + $0x9d8] sm:$0xff]
  %v4579 = vld [vmem:[#allocation3 + $0x9e0] sm:$0xff]
  %v4580 = vld [vmem:[#allocation3 + $0x9e8] sm:$0xff]
  %v4581 = vld [vmem:[#allocation3 + $0x9f0] sm:$0xff]
  %v4582 = vld [vmem:[#allocation3 + $0x9f8] sm:$0xff]
  %v4583 = vld [vmem:[#allocation3 + $0xa00] sm:$0xff]
  %v4584 = vld [vmem:[#allocation3 + $0xa08] sm:$0xff]
  %v4585 = vld [vmem:[#allocation3 + $0xa10] sm:$0xff]
  %v4586 = vld [vmem:[#allocation3 + $0xa18] sm:$0xff]
  %v4587 = vld [vmem:[#allocation3 + $0xa20] sm:$0xff]
  %v4588 = vld [vmem:[#allocation3 + $0xa28] sm:$0xff]
  %v4589 = vld [vmem:[#allocation3 + $0xa30] sm:$0xff]
  %v4590 = vld [vmem:[#allocation3 + $0xa38] sm:$0xff]
  %v4591 = vld [vmem:[#allocation3 + $0xa40] sm:$0xff]
  %v4592 = vld [vmem:[#allocation3 + $0xa48] sm:$0xff]
  %v4593 = vld [vmem:[#allocation3 + $0xa50] sm:$0xff]
  %v4594 = vld [vmem:[#allocation3 + $0xa58] sm:$0xff]
  %v4595 = vld [vmem:[#allocation3 + $0xa60] sm:$0xff]
  %v4596 = vld [vmem:[#allocation3 + $0xa68] sm:$0xff]
  %v4597 = vld [vmem:[#allocation3 + $0xa70] sm:$0xff]
  %v4598 = vld [vmem:[#allocation3 + $0xa78] sm:$0xff]
  %v4599 = vld [vmem:[#allocation3 + $0xa80] sm:$0xff]
  %v4600 = vld [vmem:[#allocation3 + $0xa88] sm:$0xff]
  %v4601 = vld [vmem:[#allocation3 + $0xa90] sm:$0xff]
  %v4602 = vld [vmem:[#allocation3 + $0xa98] sm:$0xff]
  %v4603 = vld [vmem:[#allocation3 + $0xaa0] sm:$0xff]
  %v4604 = vld [vmem:[#allocation3 + $0xaa8] sm:$0xff]
  %v4605 = vld [vmem:[#allocation3 + $0xab0] sm:$0xff]
  %v4606 = vld [vmem:[#allocation3 + $0xab8] sm:$0xff]
  %v4607 = vld [vmem:[#allocation3 + $0xac0] sm:$0xff]
  %v4608 = vld [vmem:[#allocation3 + $0xac8] sm:$0xff]
  %v4609 = vld [vmem:[#allocation3 + $0xad0] sm:$0xff]
  %v4610 = vld [vmem:[#allocation3 + $0xad8] sm:$0xff]
  %v4611 = vld [vmem:[#allocation3 + $0xae0] sm:$0xff]
  %v4612 = vld [vmem:[#allocation3 + $0xae8] sm:$0xff]
  %v4613 = vld [vmem:[#allocation3 + $0xaf0] sm:$0xff]
  %v4614 = vld [vmem:[#allocation3 + $0xaf8] sm:$0xff]
  %v4615 = vld [vmem:[#allocation3 + $0xb00] sm:$0xff]
  %v4616 = vld [vmem:[#allocation3 + $0xb08] sm:$0xff]
  %v4617 = vld [vmem:[#allocation3 + $0xb10] sm:$0xff]
  %v4618 = vld [vmem:[#allocation3 + $0xb18] sm:$0xff]
  %v4619 = vld [vmem:[#allocation3 + $0xb20] sm:$0xff]
  %v4620 = vld [vmem:[#allocation3 + $0xb28] sm:$0xff]
  %v4621 = vld [vmem:[#allocation3 + $0xb30] sm:$0xff]
  %v4622 = vld [vmem:[#allocation3 + $0xb38] sm:$0xff]
  %v4623 = vld [vmem:[#allocation3 + $0xb40] sm:$0xff]
  %v4624 = vld [vmem:[#allocation3 + $0xb48] sm:$0xff]
  %v4625 = vld [vmem:[#allocation3 + $0xb50] sm:$0xff]
  %v4626 = vld [vmem:[#allocation3 + $0xb58] sm:$0xff]
  %v4627 = vld [vmem:[#allocation3 + $0xb60] sm:$0xff]
  %v4628 = vld [vmem:[#allocation3 + $0xb68] sm:$0xff]
  %v4629 = vld [vmem:[#allocation3 + $0xb70] sm:$0xff]
  %v4630 = vld [vmem:[#allocation3 + $0xb78] sm:$0xff]
  %v4631 = vld [vmem:[#allocation3 + $0xb80] sm:$0xff]
  %v4632 = vld [vmem:[#allocation3 + $0xb88] sm:$0xff]
  %v4633 = vld [vmem:[#allocation3 + $0xb90] sm:$0xff]
  %v4634 = vld [vmem:[#allocation3 + $0xb98] sm:$0xff]
  %v4635 = vld [vmem:[#allocation3 + $0xba0] sm:$0xff]
  %v4636 = vld [vmem:[#allocation3 + $0xba8] sm:$0xff]
  %v4637 = vld [vmem:[#allocation3 + $0xbb0] sm:$0xff]
  %v4638 = vld [vmem:[#allocation3 + $0xbb8] sm:$0xff]
  %v4639 = vld [vmem:[#allocation3 + $0xbc0] sm:$0xff]
  %v4640 = vld [vmem:[#allocation3 + $0xbc8] sm:$0xff]
  %v4641 = vld [vmem:[#allocation3 + $0xbd0] sm:$0xff]
  %v4642 = vld [vmem:[#allocation3 + $0xbd8] sm:$0xff]
  %v4643 = vld [vmem:[#allocation3 + $0xbe0] sm:$0xff]
  %v4644 = vld [vmem:[#allocation3 + $0xbe8] sm:$0xff]
  %v4645 = vld [vmem:[#allocation3 + $0xbf0] sm:$0xff]
  %v4646 = vld [vmem:[#allocation3 + $0xbf8] sm:$0xff]
  %v4647 = vld [vmem:[#allocation3 + $0xc00] sm:$0xff]
  %v4648 = vld [vmem:[#allocation3 + $0xc08] sm:$0xff]
  %v4649 = vld [vmem:[#allocation3 + $0xc10] sm:$0xff]
  %v4650 = vld [vmem:[#allocation3 + $0xc18] sm:$0xff]
  %v4651 = vld [vmem:[#allocation3 + $0xc20] sm:$0xff]
  %v4652 = vld [vmem:[#allocation3 + $0xc28] sm:$0xff]
  %v4653 = vld [vmem:[#allocation3 + $0xc30] sm:$0xff]
  %v4654 = vld [vmem:[#allocation3 + $0xc38] sm:$0xff]
  %v4655 = vld [vmem:[#allocation3 + $0xc40] sm:$0xff]
  %v4656 = vld [vmem:[#allocation3 + $0xc48] sm:$0xff]
  %v4657 = vld [vmem:[#allocation3 + $0xc50] sm:$0xff]
  %v4658 = vld [vmem:[#allocation3 + $0xc58] sm:$0xff]
  %v4659 = vld [vmem:[#allocation3 + $0xc60] sm:$0xff]
  %v4660 = vld [vmem:[#allocation3 + $0xc68] sm:$0xff]
  %v4661 = vld [vmem:[#allocation3 + $0xc70] sm:$0xff]
  %v4662 = vld [vmem:[#allocation3 + $0xc78] sm:$0xff]
  %v4663 = vld [vmem:[#allocation3 + $0xc80] sm:$0xff]
  %v4664 = vld [vmem:[#allocation3 + $0xc88] sm:$0xff]
  %v4665 = vld [vmem:[#allocation3 + $0xc90] sm:$0xff]
  %v4666 = vld [vmem:[#allocation3 + $0xc98] sm:$0xff]
  %v4667 = vld [vmem:[#allocation3 + $0xca0] sm:$0xff]
  %v4668 = vld [vmem:[#allocation3 + $0xca8] sm:$0xff]
  %v4669 = vld [vmem:[#allocation3 + $0xcb0] sm:$0xff]
  %v4670 = vld [vmem:[#allocation3 + $0xcb8] sm:$0xff]
  %v4671 = vld [vmem:[#allocation3 + $0xcc0] sm:$0xff]
  %v4672 = vld [vmem:[#allocation3 + $0xcc8] sm:$0xff]
  %v4673 = vld [vmem:[#allocation3 + $0xcd0] sm:$0xff]
  %v4674 = vld [vmem:[#allocation3 + $0xcd8] sm:$0xff]
  %v4675 = vld [vmem:[#allocation3 + $0xce0] sm:$0xff]
  %v4676 = vld [vmem:[#allocation3 + $0xce8] sm:$0xff]
  %v4677 = vld [vmem:[#allocation3 + $0xcf0] sm:$0xff]
  %v4678 = vld [vmem:[#allocation3 + $0xcf8] sm:$0xff]
  %v4679 = vld [vmem:[#allocation3 + $0xd00] sm:$0xff]
  %v4680 = vld [vmem:[#allocation3 + $0xd08] sm:$0xff]
  %v4681 = vld [vmem:[#allocation3 + $0xd10] sm:$0xff]
  %v4682 = vld [vmem:[#allocation3 + $0xd18] sm:$0xff]
  %v4683 = vld [vmem:[#allocation3 + $0xd20] sm:$0xff]
  %v4684 = vld [vmem:[#allocation3 + $0xd28] sm:$0xff]
  %v4685 = vld [vmem:[#allocation3 + $0xd30] sm:$0xff]
  %v4686 = vld [vmem:[#allocation3 + $0xd38] sm:$0xff]
  %v4687 = vld [vmem:[#allocation3 + $0xd40] sm:$0xff]
  %v4688 = vld [vmem:[#allocation3 + $0xd48] sm:$0xff]
  %v4689 = vld [vmem:[#allocation3 + $0xd50] sm:$0xff]
  %v4690 = vld [vmem:[#allocation3 + $0xd58] sm:$0xff]
  %v4691 = vld [vmem:[#allocation3 + $0xd60] sm:$0xff]
  %v4692 = vld [vmem:[#allocation3 + $0xd68] sm:$0xff]
  %v4693 = vld [vmem:[#allocation3 + $0xd70] sm:$0xff]
  %v4694 = vld [vmem:[#allocation3 + $0xd78] sm:$0xff]
  %v4695 = vld [vmem:[#allocation3 + $0xd80] sm:$0xff]
  %v4696 = vld [vmem:[#allocation3 + $0xd88] sm:$0xff]
  %v4697 = vld [vmem:[#allocation3 + $0xd90] sm:$0xff]
  %v4698 = vld [vmem:[#allocation3 + $0xd98] sm:$0xff]
  %v4699 = vld [vmem:[#allocation3 + $0xda0] sm:$0xff]
  %v4700 = vld [vmem:[#allocation3 + $0xda8] sm:$0xff]
  %v4701 = vld [vmem:[#allocation3 + $0xdb0] sm:$0xff]
  %v4702 = vld [vmem:[#allocation3 + $0xdb8] sm:$0xff]
  %v4703 = vld [vmem:[#allocation3 + $0xdc0] sm:$0xff]
  %v4704 = vld [vmem:[#allocation3 + $0xdc8] sm:$0xff]
  %v4705 = vld [vmem:[#allocation3 + $0xdd0] sm:$0xff]
  %v4706 = vld [vmem:[#allocation3 + $0xdd8] sm:$0xff]
  %v4707 = vld [vmem:[#allocation3 + $0xde0] sm:$0xff]
  %v4708 = vld [vmem:[#allocation3 + $0xde8] sm:$0xff]
  %v4709 = vld [vmem:[#allocation3 + $0xdf0] sm:$0xff]
  %v4710 = vld [vmem:[#allocation3 + $0xdf8] sm:$0xff]
  %4712 = vset.pattern.permute.xlu0 64
  %4713 = vperm.xlu0 %4712, %v56
  %v4714 = vpop.permute.xlu0 %4713
  %4717 = vset.pattern.permute.xlu0 64
  %4718 = vperm.xlu0 %4717, %v57
  %v4719 = vpop.permute.xlu0 %4718
  %4722 = vset.pattern.permute.xlu0 64
  %4723 = vperm.xlu0 %4722, %v58
  %v4724 = vpop.permute.xlu0 %4723
  %4727 = vset.pattern.permute.xlu0 64
  %4728 = vperm.xlu0 %4727, %v59
  %v4729 = vpop.permute.xlu0 %4728
  %4732 = vset.pattern.permute.xlu0 64
  %4733 = vperm.xlu0 %4732, %v60
  %v4734 = vpop.permute.xlu0 %4733
  %4737 = vset.pattern.permute.xlu0 64
  %4738 = vperm.xlu0 %4737, %v61
  %v4739 = vpop.permute.xlu0 %4738
  %4742 = vset.pattern.permute.xlu0 64
  %4743 = vperm.xlu0 %4742, %v62
  %v4744 = vpop.permute.xlu0 %4743
  %4747 = vset.pattern.permute.xlu0 64
  %4748 = vperm.xlu0 %4747, %v63
  %v4749 = vpop.permute.xlu0 %4748
  %4751 = vmatpush.msra.mxu0 %v4368
  %4752 = vmatpush.msra.mxu0 %v4361
  %4753 = vmatpush.msra.mxu0 %v4354
  %4754 = vmatpush.msra.mxu0 %v4347
  %4755 = vmatpush.msra.mxu0 %v4340
  %4756 = vmatpush.msra.mxu0 %v4333
  %4757 = vmatpush.msra.mxu0 %v4326
  %4758 = vmatpush.msra.mxu0 %v4319
  %4759 = vmatpush.msra.mxu0 %v4312
  %4760 = vmatpush.msra.mxu0 %v4305
  %4761 = vmatpush.msra.mxu0 %v4298
  %4762 = vmatpush.msra.mxu0 %v4291
  %4763 = vmatpush.msra.mxu0 %v4284
  %4764 = vmatpush.msra.mxu0 %v4277
  %4765 = vmatpush.msra.mxu0 %v4270
  %4766 = vmatpush.msra.mxu0 %v4263
  %4767 = vmatmul.f32.gmra.mxu0 %v24
  %v4768 = vpop.f32.mrf.mxu0
  %v4769 = vadd.f32 %v4714, %v4768
  %4770 = vmatmul.f32.gmra.mxu0 %v28
  %v4771 = vpop.f32.mrf.mxu0
  %v4772 = vadd.f32 %v4719, %v4771
  %4773 = vmatmul.f32.gmra.mxu0 %v32
  %v4774 = vpop.f32.mrf.mxu0
  %v4775 = vadd.f32 %v4724, %v4774
  %4776 = vmatmul.f32.gmra.mxu0 %v36
  %v4777 = vpop.f32.mrf.mxu0
  %v4778 = vadd.f32 %v4729, %v4777
  %4779 = vmatmul.f32.gmra.mxu0 %v40
  %v4780 = vpop.f32.mrf.mxu0
  %v4781 = vadd.f32 %v4734, %v4780
  %4782 = vmatmul.f32.gmra.mxu0 %v44
  %v4783 = vpop.f32.mrf.mxu0
  %v4784 = vadd.f32 %v4739, %v4783
  %4785 = vmatmul.f32.gmra.mxu0 %v48
  %v4786 = vpop.f32.mrf.mxu0
  %v4787 = vadd.f32 %v4744, %v4786
  %4788 = vmatmul.f32.gmra.mxu0 %v52
  %v4789 = vpop.f32.mrf.mxu0
  %v4790 = vadd.f32 %v4749, %v4789
  %4791 = vdwg.mxu0
  %4792 = vmatpush.msra.mxu0 %v4480
  %4793 = vmatpush.msra.mxu0 %v4473
  %4794 = vmatpush.msra.mxu0 %v4466
  %4795 = vmatpush.msra.mxu0 %v4459
  %4796 = vmatpush.msra.mxu0 %v4452
  %4797 = vmatpush.msra.mxu0 %v4445
  %4798 = vmatpush.msra.mxu0 %v4438
  %4799 = vmatpush.msra.mxu0 %v4431
  %4800 = vmatpush.msra.mxu0 %v4424
  %4801 = vmatpush.msra.mxu0 %v4417
  %4802 = vmatpush.msra.mxu0 %v4410
  %4803 = vmatpush.msra.mxu0 %v4403
  %4804 = vmatpush.msra.mxu0 %v4396
  %4805 = vmatpush.msra.mxu0 %v4389
  %4806 = vmatpush.msra.mxu0 %v4382
  %4807 = vmatpush.msra.mxu0 %v4375
  %4808 = vmatmul.f32.gmra.mxu0 %v25
  %v4809 = vpop.f32.mrf.mxu0
  %v4810 = vadd.f32 %v4769, %v4809
  %4811 = vmatmul.f32.gmra.mxu0 %v29
  %v4812 = vpop.f32.mrf.mxu0
  %v4813 = vadd.f32 %v4772, %v4812
  %4814 = vmatmul.f32.gmra.mxu0 %v33
  %v4815 = vpop.f32.mrf.mxu0
  %v4816 = vadd.f32 %v4775, %v4815
  %4817 = vmatmul.f32.gmra.mxu0 %v37
  %v4818 = vpop.f32.mrf.mxu0
  %v4819 = vadd.f32 %v4778, %v4818
  %4820 = vmatmul.f32.gmra.mxu0 %v41
  %v4821 = vpop.f32.mrf.mxu0
  %v4822 = vadd.f32 %v4781, %v4821
  %4823 = vmatmul.f32.gmra.mxu0 %v45
  %v4824 = vpop.f32.mrf.mxu0
  %v4825 = vadd.f32 %v4784, %v4824
  %4826 = vmatmul.f32.gmra.mxu0 %v49
  %v4827 = vpop.f32.mrf.mxu0
  %v4828 = vadd.f32 %v4787, %v4827
  %4829 = vmatmul.f32.gmra.mxu0 %v53
  %v4830 = vpop.f32.mrf.mxu0
  %v4831 = vadd.f32 %v4790, %v4830
  %4832 = vdwg.mxu0
  %4833 = vmatpush.msra.mxu0 %v4592
  %4834 = vmatpush.msra.mxu0 %v4585
  %4835 = vmatpush.msra.mxu0 %v4578
  %4836 = vmatpush.msra.mxu0 %v4571
  %4837 = vmatpush.msra.mxu0 %v4564
  %4838 = vmatpush.msra.mxu0 %v4557
  %4839 = vmatpush.msra.mxu0 %v4550
  %4840 = vmatpush.msra.mxu0 %v4543
  %4841 = vmatpush.msra.mxu0 %v4536
  %4842 = vmatpush.msra.mxu0 %v4529
  %4843 = vmatpush.msra.mxu0 %v4522
  %4844 = vmatpush.msra.mxu0 %v4515
  %4845 = vmatpush.msra.mxu0 %v4508
  %4846 = vmatpush.msra.mxu0 %v4501
  %4847 = vmatpush.msra.mxu0 %v4494
  %4848 = vmatpush.msra.mxu0 %v4487
  %4849 = vmatmul.f32.gmra.mxu0 %v26
  %v4850 = vpop.f32.mrf.mxu0
  %v4851 = vadd.f32 %v4810, %v4850
  %4852 = vmatmul.f32.gmra.mxu0 %v30
  %v4853 = vpop.f32.mrf.mxu0
  %v4854 = vadd.f32 %v4813, %v4853
  %4855 = vmatmul.f32.gmra.mxu0 %v34
  %v4856 = vpop.f32.mrf.mxu0
  %v4857 = vadd.f32 %v4816, %v4856
  %4858 = vmatmul.f32.gmra.mxu0 %v38
  %v4859 = vpop.f32.mrf.mxu0
  %v4860 = vadd.f32 %v4819, %v4859
  %4861 = vmatmul.f32.gmra.mxu0 %v42
  %v4862 = vpop.f32.mrf.mxu0
  %v4863 = vadd.f32 %v4822, %v4862
  %4864 = vmatmul.f32.gmra.mxu0 %v46
  %v4865 = vpop.f32.mrf.mxu0
  %v4866 = vadd.f32 %v4825, %v4865
  %4867 = vmatmul.f32.gmra.mxu0 %v50
  %v4868 = vpop.f32.mrf.mxu0
  %v4869 = vadd.f32 %v4828, %v4868
  %4870 = vmatmul.f32.gmra.mxu0 %v54
  %v4871 = vpop.f32.mrf.mxu0
  %v4872 = vadd.f32 %v4831, %v4871
  %4873 = vdwg.mxu0
  %4874 = vmatpush.msra.mxu0 %v4704
  %4875 = vmatpush.msra.mxu0 %v4697
  %4876 = vmatpush.msra.mxu0 %v4690
  %4877 = vmatpush.msra.mxu0 %v4683
  %4878 = vmatpush.msra.mxu0 %v4676
  %4879 = vmatpush.msra.mxu0 %v4669
  %4880 = vmatpush.msra.mxu0 %v4662
  %4881 = vmatpush.msra.mxu0 %v4655
  %4882 = vmatpush.msra.mxu0 %v4648
  %4883 = vmatpush.msra.mxu0 %v4641
  %4884 = vmatpush.msra.mxu0 %v4634
  %4885 = vmatpush.msra.mxu0 %v4627
  %4886 = vmatpush.msra.mxu0 %v4620
  %4887 = vmatpush.msra.mxu0 %v4613
  %4888 = vmatpush.msra.mxu0 %v4606
  %4889 = vmatpush.msra.mxu0 %v4599
  %4890 = vmatmul.f32.gmra.mxu0 %v27
  %v4891 = vpop.f32.mrf.mxu0
  %v4892 = vadd.f32 %v4851, %v4891
  %4893 = vmatmul.f32.gmra.mxu0 %v31
  %v4894 = vpop.f32.mrf.mxu0
  %v4895 = vadd.f32 %v4854, %v4894
  %4896 = vmatmul.f32.gmra.mxu0 %v35
  %v4897 = vpop.f32.mrf.mxu0
  %v4898 = vadd.f32 %v4857, %v4897
  %4899 = vmatmul.f32.gmra.mxu0 %v39
  %v4900 = vpop.f32.mrf.mxu0
  %v4901 = vadd.f32 %v4860, %v4900
  %4902 = vmatmul.f32.gmra.mxu0 %v43
  %v4903 = vpop.f32.mrf.mxu0
  %v4904 = vadd.f32 %v4863, %v4903
  %4905 = vmatmul.f32.gmra.mxu0 %v47
  %v4906 = vpop.f32.mrf.mxu0
  %v4907 = vadd.f32 %v4866, %v4906
  %4908 = vmatmul.f32.gmra.mxu0 %v51
  %v4909 = vpop.f32.mrf.mxu0
  %v4910 = vadd.f32 %v4869, %v4909
  %4911 = vmatmul.f32.gmra.mxu0 %v55
  %v4912 = vpop.f32.mrf.mxu0
  %v4913 = vadd.f32 %v4872, %v4912
  %4914 = vdwg.mxu0
  %4915 = vmatpush.msra.mxu0 %v4369
  %4916 = vmatpush.msra.mxu0 %v4362
  %4917 = vmatpush.msra.mxu0 %v4355
  %4918 = vmatpush.msra.mxu0 %v4348
  %4919 = vmatpush.msra.mxu0 %v4341
  %4920 = vmatpush.msra.mxu0 %v4334
  %4921 = vmatpush.msra.mxu0 %v4327
  %4922 = vmatpush.msra.mxu0 %v4320
  %4923 = vmatpush.msra.mxu0 %v4313
  %4924 = vmatpush.msra.mxu0 %v4306
  %4925 = vmatpush.msra.mxu0 %v4299
  %4926 = vmatpush.msra.mxu0 %v4292
  %4927 = vmatpush.msra.mxu0 %v4285
  %4928 = vmatpush.msra.mxu0 %v4278
  %4929 = vmatpush.msra.mxu0 %v4271
  %4930 = vmatpush.msra.mxu0 %v4264
  %4931 = vmatmul.f32.gmra.mxu0 %v24
  %v4932 = vpop.f32.mrf.mxu0
  %v4933 = vadd.f32 %v4714, %v4932
  %4934 = vmatmul.f32.gmra.mxu0 %v28
  %v4935 = vpop.f32.mrf.mxu0
  %v4936 = vadd.f32 %v4719, %v4935
  %4937 = vmatmul.f32.gmra.mxu0 %v32
  %v4938 = vpop.f32.mrf.mxu0
  %v4939 = vadd.f32 %v4724, %v4938
  %4940 = vmatmul.f32.gmra.mxu0 %v36
  %v4941 = vpop.f32.mrf.mxu0
  %v4942 = vadd.f32 %v4729, %v4941
  %4943 = vmatmul.f32.gmra.mxu0 %v40
  %v4944 = vpop.f32.mrf.mxu0
  %v4945 = vadd.f32 %v4734, %v4944
  %4946 = vmatmul.f32.gmra.mxu0 %v44
  %v4947 = vpop.f32.mrf.mxu0
  %v4948 = vadd.f32 %v4739, %v4947
  %4949 = vmatmul.f32.gmra.mxu0 %v48
  %v4950 = vpop.f32.mrf.mxu0
  %v4951 = vadd.f32 %v4744, %v4950
  %4952 = vmatmul.f32.gmra.mxu0 %v52
  %v4953 = vpop.f32.mrf.mxu0
  %v4954 = vadd.f32 %v4749, %v4953
  %4955 = vdwg.mxu0
  %4956 = vmatpush.msra.mxu0 %v4481
  %4957 = vmatpush.msra.mxu0 %v4474
  %4958 = vmatpush.msra.mxu0 %v4467
  %4959 = vmatpush.msra.mxu0 %v4460
  %4960 = vmatpush.msra.mxu0 %v4453
  %4961 = vmatpush.msra.mxu0 %v4446
  %4962 = vmatpush.msra.mxu0 %v4439
  %4963 = vmatpush.msra.mxu0 %v4432
  %4964 = vmatpush.msra.mxu0 %v4425
  %4965 = vmatpush.msra.mxu0 %v4418
  %4966 = vmatpush.msra.mxu0 %v4411
  %4967 = vmatpush.msra.mxu0 %v4404
  %4968 = vmatpush.msra.mxu0 %v4397
  %4969 = vmatpush.msra.mxu0 %v4390
  %4970 = vmatpush.msra.mxu0 %v4383
  %4971 = vmatpush.msra.mxu0 %v4376
  %4972 = vmatmul.f32.gmra.mxu0 %v25
  %v4973 = vpop.f32.mrf.mxu0
  %v4974 = vadd.f32 %v4933, %v4973
  %4975 = vmatmul.f32.gmra.mxu0 %v29
  %v4976 = vpop.f32.mrf.mxu0
  %v4977 = vadd.f32 %v4936, %v4976
  %4978 = vmatmul.f32.gmra.mxu0 %v33
  %v4979 = vpop.f32.mrf.mxu0
  %v4980 = vadd.f32 %v4939, %v4979
  %4981 = vmatmul.f32.gmra.mxu0 %v37
  %v4982 = vpop.f32.mrf.mxu0
  %v4983 = vadd.f32 %v4942, %v4982
  %4984 = vmatmul.f32.gmra.mxu0 %v41
  %v4985 = vpop.f32.mrf.mxu0
  %v4986 = vadd.f32 %v4945, %v4985
  %4987 = vmatmul.f32.gmra.mxu0 %v45
  %v4988 = vpop.f32.mrf.mxu0
  %v4989 = vadd.f32 %v4948, %v4988
  %4990 = vmatmul.f32.gmra.mxu0 %v49
  %v4991 = vpop.f32.mrf.mxu0
  %v4992 = vadd.f32 %v4951, %v4991
  %4993 = vmatmul.f32.gmra.mxu0 %v53
  %v4994 = vpop.f32.mrf.mxu0
  %v4995 = vadd.f32 %v4954, %v4994
  %4996 = vdwg.mxu0
  %4997 = vmatpush.msra.mxu0 %v4593
  %4998 = vmatpush.msra.mxu0 %v4586
  %4999 = vmatpush.msra.mxu0 %v4579
  %5000 = vmatpush.msra.mxu0 %v4572
  %5001 = vmatpush.msra.mxu0 %v4565
  %5002 = vmatpush.msra.mxu0 %v4558
  %5003 = vmatpush.msra.mxu0 %v4551
  %5004 = vmatpush.msra.mxu0 %v4544
  %5005 = vmatpush.msra.mxu0 %v4537
  %5006 = vmatpush.msra.mxu0 %v4530
  %5007 = vmatpush.msra.mxu0 %v4523
  %5008 = vmatpush.msra.mxu0 %v4516
  %5009 = vmatpush.msra.mxu0 %v4509
  %5010 = vmatpush.msra.mxu0 %v4502
  %5011 = vmatpush.msra.mxu0 %v4495
  %5012 = vmatpush.msra.mxu0 %v4488
  %5013 = vmatmul.f32.gmra.mxu0 %v26
  %v5014 = vpop.f32.mrf.mxu0
  %v5015 = vadd.f32 %v4974, %v5014
  %5016 = vmatmul.f32.gmra.mxu0 %v30
  %v5017 = vpop.f32.mrf.mxu0
  %v5018 = vadd.f32 %v4977, %v5017
  %5019 = vmatmul.f32.gmra.mxu0 %v34
  %v5020 = vpop.f32.mrf.mxu0
  %v5021 = vadd.f32 %v4980, %v5020
  %5022 = vmatmul.f32.gmra.mxu0 %v38
  %v5023 = vpop.f32.mrf.mxu0
  %v5024 = vadd.f32 %v4983, %v5023
  %5025 = vmatmul.f32.gmra.mxu0 %v42
  %v5026 = vpop.f32.mrf.mxu0
  %v5027 = vadd.f32 %v4986, %v5026
  %5028 = vmatmul.f32.gmra.mxu0 %v46
  %v5029 = vpop.f32.mrf.mxu0
  %v5030 = vadd.f32 %v4989, %v5029
  %5031 = vmatmul.f32.gmra.mxu0 %v50
  %v5032 = vpop.f32.mrf.mxu0
  %v5033 = vadd.f32 %v4992, %v5032
  %5034 = vmatmul.f32.gmra.mxu0 %v54
  %v5035 = vpop.f32.mrf.mxu0
  %v5036 = vadd.f32 %v4995, %v5035
  %5037 = vdwg.mxu0
  %5038 = vmatpush.msra.mxu0 %v4705
  %5039 = vmatpush.msra.mxu0 %v4698
  %5040 = vmatpush.msra.mxu0 %v4691
  %5041 = vmatpush.msra.mxu0 %v4684
  %5042 = vmatpush.msra.mxu0 %v4677
  %5043 = vmatpush.msra.mxu0 %v4670
  %5044 = vmatpush.msra.mxu0 %v4663
  %5045 = vmatpush.msra.mxu0 %v4656
  %5046 = vmatpush.msra.mxu0 %v4649
  %5047 = vmatpush.msra.mxu0 %v4642
  %5048 = vmatpush.msra.mxu0 %v4635
  %5049 = vmatpush.msra.mxu0 %v4628
  %5050 = vmatpush.msra.mxu0 %v4621
  %5051 = vmatpush.msra.mxu0 %v4614
  %5052 = vmatpush.msra.mxu0 %v4607
  %5053 = vmatpush.msra.mxu0 %v4600
  %5054 = vmatmul.f32.gmra.mxu0 %v27
  %v5055 = vpop.f32.mrf.mxu0
  %v5056 = vadd.f32 %v5015, %v5055
  %5057 = vmatmul.f32.gmra.mxu0 %v31
  %v5058 = vpop.f32.mrf.mxu0
  %v5059 = vadd.f32 %v5018, %v5058
  %5060 = vmatmul.f32.gmra.mxu0 %v35
  %v5061 = vpop.f32.mrf.mxu0
  %v5062 = vadd.f32 %v5021, %v5061
  %5063 = vmatmul.f32.gmra.mxu0 %v39
  %v5064 = vpop.f32.mrf.mxu0
  %v5065 = vadd.f32 %v5024, %v5064
  %5066 = vmatmul.f32.gmra.mxu0 %v43
  %v5067 = vpop.f32.mrf.mxu0
  %v5068 = vadd.f32 %v5027, %v5067
  %5069 = vmatmul.f32.gmra.mxu0 %v47
  %v5070 = vpop.f32.mrf.mxu0
  %v5071 = vadd.f32 %v5030, %v5070
  %5072 = vmatmul.f32.gmra.mxu0 %v51
  %v5073 = vpop.f32.mrf.mxu0
  %v5074 = vadd.f32 %v5033, %v5073
  %5075 = vmatmul.f32.gmra.mxu0 %v55
  %v5076 = vpop.f32.mrf.mxu0
  %v5077 = vadd.f32 %v5036, %v5076
  %5078 = vdwg.mxu0
  %5079 = vmatpush.msra.mxu0 %v4370
  %5080 = vmatpush.msra.mxu0 %v4363
  %5081 = vmatpush.msra.mxu0 %v4356
  %5082 = vmatpush.msra.mxu0 %v4349
  %5083 = vmatpush.msra.mxu0 %v4342
  %5084 = vmatpush.msra.mxu0 %v4335
  %5085 = vmatpush.msra.mxu0 %v4328
  %5086 = vmatpush.msra.mxu0 %v4321
  %5087 = vmatpush.msra.mxu0 %v4314
  %5088 = vmatpush.msra.mxu0 %v4307
  %5089 = vmatpush.msra.mxu0 %v4300
  %5090 = vmatpush.msra.mxu0 %v4293
  %5091 = vmatpush.msra.mxu0 %v4286
  %5092 = vmatpush.msra.mxu0 %v4279
  %5093 = vmatpush.msra.mxu0 %v4272
  %5094 = vmatpush.msra.mxu0 %v4265
  %5095 = vmatmul.f32.gmra.mxu0 %v24
  %v5096 = vpop.f32.mrf.mxu0
  %v5097 = vadd.f32 %v4714, %v5096
  %5098 = vmatmul.f32.gmra.mxu0 %v28
  %v5099 = vpop.f32.mrf.mxu0
  %v5100 = vadd.f32 %v4719, %v5099
  %5101 = vmatmul.f32.gmra.mxu0 %v32
  %v5102 = vpop.f32.mrf.mxu0
  %v5103 = vadd.f32 %v4724, %v5102
  %5104 = vmatmul.f32.gmra.mxu0 %v36
  %v5105 = vpop.f32.mrf.mxu0
  %v5106 = vadd.f32 %v4729, %v5105
  %5107 = vmatmul.f32.gmra.mxu0 %v40
  %v5108 = vpop.f32.mrf.mxu0
  %v5109 = vadd.f32 %v4734, %v5108
  %5110 = vmatmul.f32.gmra.mxu0 %v44
  %v5111 = vpop.f32.mrf.mxu0
  %v5112 = vadd.f32 %v4739, %v5111
  %5113 = vmatmul.f32.gmra.mxu0 %v48
  %v5114 = vpop.f32.mrf.mxu0
  %v5115 = vadd.f32 %v4744, %v5114
  %5116 = vmatmul.f32.gmra.mxu0 %v52
  %v5117 = vpop.f32.mrf.mxu0
  %v5118 = vadd.f32 %v4749, %v5117
  %5119 = vdwg.mxu0
  %5120 = vmatpush.msra.mxu0 %v4482
  %5121 = vmatpush.msra.mxu0 %v4475
  %5122 = vmatpush.msra.mxu0 %v4468
  %5123 = vmatpush.msra.mxu0 %v4461
  %5124 = vmatpush.msra.mxu0 %v4454
  %5125 = vmatpush.msra.mxu0 %v4447
  %5126 = vmatpush.msra.mxu0 %v4440
  %5127 = vmatpush.msra.mxu0 %v4433
  %5128 = vmatpush.msra.mxu0 %v4426
  %5129 = vmatpush.msra.mxu0 %v4419
  %5130 = vmatpush.msra.mxu0 %v4412
  %5131 = vmatpush.msra.mxu0 %v4405
  %5132 = vmatpush.msra.mxu0 %v4398
  %5133 = vmatpush.msra.mxu0 %v4391
  %5134 = vmatpush.msra.mxu0 %v4384
  %5135 = vmatpush.msra.mxu0 %v4377
  %5136 = vmatmul.f32.gmra.mxu0 %v25
  %v5137 = vpop.f32.mrf.mxu0
  %v5138 = vadd.f32 %v5097, %v5137
  %5139 = vmatmul.f32.gmra.mxu0 %v29
  %v5140 = vpop.f32.mrf.mxu0
  %v5141 = vadd.f32 %v5100, %v5140
  %5142 = vmatmul.f32.gmra.mxu0 %v33
  %v5143 = vpop.f32.mrf.mxu0
  %v5144 = vadd.f32 %v5103, %v5143
  %5145 = vmatmul.f32.gmra.mxu0 %v37
  %v5146 = vpop.f32.mrf.mxu0
  %v5147 = vadd.f32 %v5106, %v5146
  %5148 = vmatmul.f32.gmra.mxu0 %v41
  %v5149 = vpop.f32.mrf.mxu0
  %v5150 = vadd.f32 %v5109, %v5149
  %5151 = vmatmul.f32.gmra.mxu0 %v45
  %v5152 = vpop.f32.mrf.mxu0
  %v5153 = vadd.f32 %v5112, %v5152
  %5154 = vmatmul.f32.gmra.mxu0 %v49
  %v5155 = vpop.f32.mrf.mxu0
  %v5156 = vadd.f32 %v5115, %v5155
  %5157 = vmatmul.f32.gmra.mxu0 %v53
  %v5158 = vpop.f32.mrf.mxu0
  %v5159 = vadd.f32 %v5118, %v5158
  %5160 = vdwg.mxu0
  %5161 = vmatpush.msra.mxu0 %v4594
  %5162 = vmatpush.msra.mxu0 %v4587
  %5163 = vmatpush.msra.mxu0 %v4580
  %5164 = vmatpush.msra.mxu0 %v4573
  %5165 = vmatpush.msra.mxu0 %v4566
  %5166 = vmatpush.msra.mxu0 %v4559
  %5167 = vmatpush.msra.mxu0 %v4552
  %5168 = vmatpush.msra.mxu0 %v4545
  %5169 = vmatpush.msra.mxu0 %v4538
  %5170 = vmatpush.msra.mxu0 %v4531
  %5171 = vmatpush.msra.mxu0 %v4524
  %5172 = vmatpush.msra.mxu0 %v4517
  %5173 = vmatpush.msra.mxu0 %v4510
  %5174 = vmatpush.msra.mxu0 %v4503
  %5175 = vmatpush.msra.mxu0 %v4496
  %5176 = vmatpush.msra.mxu0 %v4489
  %5177 = vmatmul.f32.gmra.mxu0 %v26
  %v5178 = vpop.f32.mrf.mxu0
  %v5179 = vadd.f32 %v5138, %v5178
  %5180 = vmatmul.f32.gmra.mxu0 %v30
  %v5181 = vpop.f32.mrf.mxu0
  %v5182 = vadd.f32 %v5141, %v5181
  %5183 = vmatmul.f32.gmra.mxu0 %v34
  %v5184 = vpop.f32.mrf.mxu0
  %v5185 = vadd.f32 %v5144, %v5184
  %5186 = vmatmul.f32.gmra.mxu0 %v38
  %v5187 = vpop.f32.mrf.mxu0
  %v5188 = vadd.f32 %v5147, %v5187
  %5189 = vmatmul.f32.gmra.mxu0 %v42
  %v5190 = vpop.f32.mrf.mxu0
  %v5191 = vadd.f32 %v5150, %v5190
  %5192 = vmatmul.f32.gmra.mxu0 %v46
  %v5193 = vpop.f32.mrf.mxu0
  %v5194 = vadd.f32 %v5153, %v5193
  %5195 = vmatmul.f32.gmra.mxu0 %v50
  %v5196 = vpop.f32.mrf.mxu0
  %v5197 = vadd.f32 %v5156, %v5196
  %5198 = vmatmul.f32.gmra.mxu0 %v54
  %v5199 = vpop.f32.mrf.mxu0
  %v5200 = vadd.f32 %v5159, %v5199
  %5201 = vdwg.mxu0
  %5202 = vmatpush.msra.mxu0 %v4706
  %5203 = vmatpush.msra.mxu0 %v4699
  %5204 = vmatpush.msra.mxu0 %v4692
  %5205 = vmatpush.msra.mxu0 %v4685
  %5206 = vmatpush.msra.mxu0 %v4678
  %5207 = vmatpush.msra.mxu0 %v4671
  %5208 = vmatpush.msra.mxu0 %v4664
  %5209 = vmatpush.msra.mxu0 %v4657
  %5210 = vmatpush.msra.mxu0 %v4650
  %5211 = vmatpush.msra.mxu0 %v4643
  %5212 = vmatpush.msra.mxu0 %v4636
  %5213 = vmatpush.msra.mxu0 %v4629
  %5214 = vmatpush.msra.mxu0 %v4622
  %5215 = vmatpush.msra.mxu0 %v4615
  %5216 = vmatpush.msra.mxu0 %v4608
  %5217 = vmatpush.msra.mxu0 %v4601
  %5218 = vmatmul.f32.gmra.mxu0 %v27
  %v5219 = vpop.f32.mrf.mxu0
  %v5220 = vadd.f32 %v5179, %v5219
  %5221 = vmatmul.f32.gmra.mxu0 %v31
  %v5222 = vpop.f32.mrf.mxu0
  %v5223 = vadd.f32 %v5182, %v5222
  %5224 = vmatmul.f32.gmra.mxu0 %v35
  %v5225 = vpop.f32.mrf.mxu0
  %v5226 = vadd.f32 %v5185, %v5225
  %5227 = vmatmul.f32.gmra.mxu0 %v39
  %v5228 = vpop.f32.mrf.mxu0
  %v5229 = vadd.f32 %v5188, %v5228
  %5230 = vmatmul.f32.gmra.mxu0 %v43
  %v5231 = vpop.f32.mrf.mxu0
  %v5232 = vadd.f32 %v5191, %v5231
  %5233 = vmatmul.f32.gmra.mxu0 %v47
  %v5234 = vpop.f32.mrf.mxu0
  %v5235 = vadd.f32 %v5194, %v5234
  %5236 = vmatmul.f32.gmra.mxu0 %v51
  %v5237 = vpop.f32.mrf.mxu0
  %v5238 = vadd.f32 %v5197, %v5237
  %5239 = vmatmul.f32.gmra.mxu0 %v55
  %v5240 = vpop.f32.mrf.mxu0
  %v5241 = vadd.f32 %v5200, %v5240
  %5242 = vdwg.mxu0
  %5243 = vmatpush.msra.mxu0 %v4371
  %5244 = vmatpush.msra.mxu0 %v4364
  %5245 = vmatpush.msra.mxu0 %v4357
  %5246 = vmatpush.msra.mxu0 %v4350
  %5247 = vmatpush.msra.mxu0 %v4343
  %5248 = vmatpush.msra.mxu0 %v4336
  %5249 = vmatpush.msra.mxu0 %v4329
  %5250 = vmatpush.msra.mxu0 %v4322
  %5251 = vmatpush.msra.mxu0 %v4315
  %5252 = vmatpush.msra.mxu0 %v4308
  %5253 = vmatpush.msra.mxu0 %v4301
  %5254 = vmatpush.msra.mxu0 %v4294
  %5255 = vmatpush.msra.mxu0 %v4287
  %5256 = vmatpush.msra.mxu0 %v4280
  %5257 = vmatpush.msra.mxu0 %v4273
  %5258 = vmatpush.msra.mxu0 %v4266
  %5259 = vmatmul.f32.gmra.mxu0 %v24
  %v5260 = vpop.f32.mrf.mxu0
  %v5261 = vadd.f32 %v4714, %v5260
  %5262 = vmatmul.f32.gmra.mxu0 %v28
  %v5263 = vpop.f32.mrf.mxu0
  %v5264 = vadd.f32 %v4719, %v5263
  %5265 = vmatmul.f32.gmra.mxu0 %v32
  %v5266 = vpop.f32.mrf.mxu0
  %v5267 = vadd.f32 %v4724, %v5266
  %5268 = vmatmul.f32.gmra.mxu0 %v36
  %v5269 = vpop.f32.mrf.mxu0
  %v5270 = vadd.f32 %v4729, %v5269
  %5271 = vmatmul.f32.gmra.mxu0 %v40
  %v5272 = vpop.f32.mrf.mxu0
  %v5273 = vadd.f32 %v4734, %v5272
  %5274 = vmatmul.f32.gmra.mxu0 %v44
  %v5275 = vpop.f32.mrf.mxu0
  %v5276 = vadd.f32 %v4739, %v5275
  %5277 = vmatmul.f32.gmra.mxu0 %v48
  %v5278 = vpop.f32.mrf.mxu0
  %v5279 = vadd.f32 %v4744, %v5278
  %5280 = vmatmul.f32.gmra.mxu0 %v52
  %v5281 = vpop.f32.mrf.mxu0
  %v5282 = vadd.f32 %v4749, %v5281
  %5283 = vdwg.mxu0
  %5284 = vmatpush.msra.mxu0 %v4483
  %5285 = vmatpush.msra.mxu0 %v4476
  %5286 = vmatpush.msra.mxu0 %v4469
  %5287 = vmatpush.msra.mxu0 %v4462
  %5288 = vmatpush.msra.mxu0 %v4455
  %5289 = vmatpush.msra.mxu0 %v4448
  %5290 = vmatpush.msra.mxu0 %v4441
  %5291 = vmatpush.msra.mxu0 %v4434
  %5292 = vmatpush.msra.mxu0 %v4427
  %5293 = vmatpush.msra.mxu0 %v4420
  %5294 = vmatpush.msra.mxu0 %v4413
  %5295 = vmatpush.msra.mxu0 %v4406
  %5296 = vmatpush.msra.mxu0 %v4399
  %5297 = vmatpush.msra.mxu0 %v4392
  %5298 = vmatpush.msra.mxu0 %v4385
  %5299 = vmatpush.msra.mxu0 %v4378
  %5300 = vmatmul.f32.gmra.mxu0 %v25
  %v5301 = vpop.f32.mrf.mxu0
  %v5302 = vadd.f32 %v5261, %v5301
  %5303 = vmatmul.f32.gmra.mxu0 %v29
  %v5304 = vpop.f32.mrf.mxu0
  %v5305 = vadd.f32 %v5264, %v5304
  %5306 = vmatmul.f32.gmra.mxu0 %v33
  %v5307 = vpop.f32.mrf.mxu0
  %v5308 = vadd.f32 %v5267, %v5307
  %5309 = vmatmul.f32.gmra.mxu0 %v37
  %v5310 = vpop.f32.mrf.mxu0
  %v5311 = vadd.f32 %v5270, %v5310
  %5312 = vmatmul.f32.gmra.mxu0 %v41
  %v5313 = vpop.f32.mrf.mxu0
  %v5314 = vadd.f32 %v5273, %v5313
  %5315 = vmatmul.f32.gmra.mxu0 %v45
  %v5316 = vpop.f32.mrf.mxu0
  %v5317 = vadd.f32 %v5276, %v5316
  %5318 = vmatmul.f32.gmra.mxu0 %v49
  %v5319 = vpop.f32.mrf.mxu0
  %v5320 = vadd.f32 %v5279, %v5319
  %5321 = vmatmul.f32.gmra.mxu0 %v53
  %v5322 = vpop.f32.mrf.mxu0
  %v5323 = vadd.f32 %v5282, %v5322
  %5324 = vdwg.mxu0
  %5325 = vmatpush.msra.mxu0 %v4595
  %5326 = vmatpush.msra.mxu0 %v4588
  %5327 = vmatpush.msra.mxu0 %v4581
  %5328 = vmatpush.msra.mxu0 %v4574
  %5329 = vmatpush.msra.mxu0 %v4567
  %5330 = vmatpush.msra.mxu0 %v4560
  %5331 = vmatpush.msra.mxu0 %v4553
  %5332 = vmatpush.msra.mxu0 %v4546
  %5333 = vmatpush.msra.mxu0 %v4539
  %5334 = vmatpush.msra.mxu0 %v4532
  %5335 = vmatpush.msra.mxu0 %v4525
  %5336 = vmatpush.msra.mxu0 %v4518
  %5337 = vmatpush.msra.mxu0 %v4511
  %5338 = vmatpush.msra.mxu0 %v4504
  %5339 = vmatpush.msra.mxu0 %v4497
  %5340 = vmatpush.msra.mxu0 %v4490
  %5341 = vmatmul.f32.gmra.mxu0 %v26
  %v5342 = vpop.f32.mrf.mxu0
  %v5343 = vadd.f32 %v5302, %v5342
  %5344 = vmatmul.f32.gmra.mxu0 %v30
  %v5345 = vpop.f32.mrf.mxu0
  %v5346 = vadd.f32 %v5305, %v5345
  %5347 = vmatmul.f32.gmra.mxu0 %v34
  %v5348 = vpop.f32.mrf.mxu0
  %v5349 = vadd.f32 %v5308, %v5348
  %5350 = vmatmul.f32.gmra.mxu0 %v38
  %v5351 = vpop.f32.mrf.mxu0
  %v5352 = vadd.f32 %v5311, %v5351
  %5353 = vmatmul.f32.gmra.mxu0 %v42
  %v5354 = vpop.f32.mrf.mxu0
  %v5355 = vadd.f32 %v5314, %v5354
  %5356 = vmatmul.f32.gmra.mxu0 %v46
  %v5357 = vpop.f32.mrf.mxu0
  %v5358 = vadd.f32 %v5317, %v5357
  %5359 = vmatmul.f32.gmra.mxu0 %v50
  %v5360 = vpop.f32.mrf.mxu0
  %v5361 = vadd.f32 %v5320, %v5360
  %5362 = vmatmul.f32.gmra.mxu0 %v54
  %v5363 = vpop.f32.mrf.mxu0
  %v5364 = vadd.f32 %v5323, %v5363
  %5365 = vdwg.mxu0
  %5366 = vmatpush.msra.mxu0 %v4707
  %5367 = vmatpush.msra.mxu0 %v4700
  %5368 = vmatpush.msra.mxu0 %v4693
  %5369 = vmatpush.msra.mxu0 %v4686
  %5370 = vmatpush.msra.mxu0 %v4679
  %5371 = vmatpush.msra.mxu0 %v4672
  %5372 = vmatpush.msra.mxu0 %v4665
  %5373 = vmatpush.msra.mxu0 %v4658
  %5374 = vmatpush.msra.mxu0 %v4651
  %5375 = vmatpush.msra.mxu0 %v4644
  %5376 = vmatpush.msra.mxu0 %v4637
  %5377 = vmatpush.msra.mxu0 %v4630
  %5378 = vmatpush.msra.mxu0 %v4623
  %5379 = vmatpush.msra.mxu0 %v4616
  %5380 = vmatpush.msra.mxu0 %v4609
  %5381 = vmatpush.msra.mxu0 %v4602
  %5382 = vmatmul.f32.gmra.mxu0 %v27
  %v5383 = vpop.f32.mrf.mxu0
  %v5384 = vadd.f32 %v5343, %v5383
  %5385 = vmatmul.f32.gmra.mxu0 %v31
  %v5386 = vpop.f32.mrf.mxu0
  %v5387 = vadd.f32 %v5346, %v5386
  %5388 = vmatmul.f32.gmra.mxu0 %v35
  %v5389 = vpop.f32.mrf.mxu0
  %v5390 = vadd.f32 %v5349, %v5389
  %5391 = vmatmul.f32.gmra.mxu0 %v39
  %v5392 = vpop.f32.mrf.mxu0
  %v5393 = vadd.f32 %v5352, %v5392
  %5394 = vmatmul.f32.gmra.mxu0 %v43
  %v5395 = vpop.f32.mrf.mxu0
  %v5396 = vadd.f32 %v5355, %v5395
  %5397 = vmatmul.f32.gmra.mxu0 %v47
  %v5398 = vpop.f32.mrf.mxu0
  %v5399 = vadd.f32 %v5358, %v5398
  %5400 = vmatmul.f32.gmra.mxu0 %v51
  %v5401 = vpop.f32.mrf.mxu0
  %v5402 = vadd.f32 %v5361, %v5401
  %5403 = vmatmul.f32.gmra.mxu0 %v55
  %v5404 = vpop.f32.mrf.mxu0
  %v5405 = vadd.f32 %v5364, %v5404
  %5406 = vdwg.mxu0
  %5407 = vmatpush.msra.mxu0 %v4372
  %5408 = vmatpush.msra.mxu0 %v4365
  %5409 = vmatpush.msra.mxu0 %v4358
  %5410 = vmatpush.msra.mxu0 %v4351
  %5411 = vmatpush.msra.mxu0 %v4344
  %5412 = vmatpush.msra.mxu0 %v4337
  %5413 = vmatpush.msra.mxu0 %v4330
  %5414 = vmatpush.msra.mxu0 %v4323
  %5415 = vmatpush.msra.mxu0 %v4316
  %5416 = vmatpush.msra.mxu0 %v4309
  %5417 = vmatpush.msra.mxu0 %v4302
  %5418 = vmatpush.msra.mxu0 %v4295
  %5419 = vmatpush.msra.mxu0 %v4288
  %5420 = vmatpush.msra.mxu0 %v4281
  %5421 = vmatpush.msra.mxu0 %v4274
  %5422 = vmatpush.msra.mxu0 %v4267
  %5423 = vmatmul.f32.gmra.mxu0 %v24
  %v5424 = vpop.f32.mrf.mxu0
  %v5425 = vadd.f32 %v4714, %v5424
  %5426 = vmatmul.f32.gmra.mxu0 %v28
  %v5427 = vpop.f32.mrf.mxu0
  %v5428 = vadd.f32 %v4719, %v5427
  %5429 = vmatmul.f32.gmra.mxu0 %v32
  %v5430 = vpop.f32.mrf.mxu0
  %v5431 = vadd.f32 %v4724, %v5430
  %5432 = vmatmul.f32.gmra.mxu0 %v36
  %v5433 = vpop.f32.mrf.mxu0
  %v5434 = vadd.f32 %v4729, %v5433
  %5435 = vmatmul.f32.gmra.mxu0 %v40
  %v5436 = vpop.f32.mrf.mxu0
  %v5437 = vadd.f32 %v4734, %v5436
  %5438 = vmatmul.f32.gmra.mxu0 %v44
  %v5439 = vpop.f32.mrf.mxu0
  %v5440 = vadd.f32 %v4739, %v5439
  %5441 = vmatmul.f32.gmra.mxu0 %v48
  %v5442 = vpop.f32.mrf.mxu0
  %v5443 = vadd.f32 %v4744, %v5442
  %5444 = vmatmul.f32.gmra.mxu0 %v52
  %v5445 = vpop.f32.mrf.mxu0
  %v5446 = vadd.f32 %v4749, %v5445
  %5447 = vdwg.mxu0
  %5448 = vmatpush.msra.mxu0 %v4484
  %5449 = vmatpush.msra.mxu0 %v4477
  %5450 = vmatpush.msra.mxu0 %v4470
  %5451 = vmatpush.msra.mxu0 %v4463
  %5452 = vmatpush.msra.mxu0 %v4456
  %5453 = vmatpush.msra.mxu0 %v4449
  %5454 = vmatpush.msra.mxu0 %v4442
  %5455 = vmatpush.msra.mxu0 %v4435
  %5456 = vmatpush.msra.mxu0 %v4428
  %5457 = vmatpush.msra.mxu0 %v4421
  %5458 = vmatpush.msra.mxu0 %v4414
  %5459 = vmatpush.msra.mxu0 %v4407
  %5460 = vmatpush.msra.mxu0 %v4400
  %5461 = vmatpush.msra.mxu0 %v4393
  %5462 = vmatpush.msra.mxu0 %v4386
  %5463 = vmatpush.msra.mxu0 %v4379
  %5464 = vmatmul.f32.gmra.mxu0 %v25
  %v5465 = vpop.f32.mrf.mxu0
  %v5466 = vadd.f32 %v5425, %v5465
  %5467 = vmatmul.f32.gmra.mxu0 %v29
  %v5468 = vpop.f32.mrf.mxu0
  %v5469 = vadd.f32 %v5428, %v5468
  %5470 = vmatmul.f32.gmra.mxu0 %v33
  %v5471 = vpop.f32.mrf.mxu0
  %v5472 = vadd.f32 %v5431, %v5471
  %5473 = vmatmul.f32.gmra.mxu0 %v37
  %v5474 = vpop.f32.mrf.mxu0
  %v5475 = vadd.f32 %v5434, %v5474
  %5476 = vmatmul.f32.gmra.mxu0 %v41
  %v5477 = vpop.f32.mrf.mxu0
  %v5478 = vadd.f32 %v5437, %v5477
  %5479 = vmatmul.f32.gmra.mxu0 %v45
  %v5480 = vpop.f32.mrf.mxu0
  %v5481 = vadd.f32 %v5440, %v5480
  %5482 = vmatmul.f32.gmra.mxu0 %v49
  %v5483 = vpop.f32.mrf.mxu0
  %v5484 = vadd.f32 %v5443, %v5483
  %5485 = vmatmul.f32.gmra.mxu0 %v53
  %v5486 = vpop.f32.mrf.mxu0
  %v5487 = vadd.f32 %v5446, %v5486
  %5488 = vdwg.mxu0
  %5489 = vmatpush.msra.mxu0 %v4596
  %5490 = vmatpush.msra.mxu0 %v4589
  %5491 = vmatpush.msra.mxu0 %v4582
  %5492 = vmatpush.msra.mxu0 %v4575
  %5493 = vmatpush.msra.mxu0 %v4568
  %5494 = vmatpush.msra.mxu0 %v4561
  %5495 = vmatpush.msra.mxu0 %v4554
  %5496 = vmatpush.msra.mxu0 %v4547
  %5497 = vmatpush.msra.mxu0 %v4540
  %5498 = vmatpush.msra.mxu0 %v4533
  %5499 = vmatpush.msra.mxu0 %v4526
  %5500 = vmatpush.msra.mxu0 %v4519
  %5501 = vmatpush.msra.mxu0 %v4512
  %5502 = vmatpush.msra.mxu0 %v4505
  %5503 = vmatpush.msra.mxu0 %v4498
  %5504 = vmatpush.msra.mxu0 %v4491
  %5505 = vmatmul.f32.gmra.mxu0 %v26
  %v5506 = vpop.f32.mrf.mxu0
  %v5507 = vadd.f32 %v5466, %v5506
  %5508 = vmatmul.f32.gmra.mxu0 %v30
  %v5509 = vpop.f32.mrf.mxu0
  %v5510 = vadd.f32 %v5469, %v5509
  %5511 = vmatmul.f32.gmra.mxu0 %v34
  %v5512 = vpop.f32.mrf.mxu0
  %v5513 = vadd.f32 %v5472, %v5512
  %5514 = vmatmul.f32.gmra.mxu0 %v38
  %v5515 = vpop.f32.mrf.mxu0
  %v5516 = vadd.f32 %v5475, %v5515
  %5517 = vmatmul.f32.gmra.mxu0 %v42
  %v5518 = vpop.f32.mrf.mxu0
  %v5519 = vadd.f32 %v5478, %v5518
  %5520 = vmatmul.f32.gmra.mxu0 %v46
  %v5521 = vpop.f32.mrf.mxu0
  %v5522 = vadd.f32 %v5481, %v5521
  %5523 = vmatmul.f32.gmra.mxu0 %v50
  %v5524 = vpop.f32.mrf.mxu0
  %v5525 = vadd.f32 %v5484, %v5524
  %5526 = vmatmul.f32.gmra.mxu0 %v54
  %v5527 = vpop.f32.mrf.mxu0
  %v5528 = vadd.f32 %v5487, %v5527
  %5529 = vdwg.mxu0
  %5530 = vmatpush.msra.mxu0 %v4708
  %5531 = vmatpush.msra.mxu0 %v4701
  %5532 = vmatpush.msra.mxu0 %v4694
  %5533 = vmatpush.msra.mxu0 %v4687
  %5534 = vmatpush.msra.mxu0 %v4680
  %5535 = vmatpush.msra.mxu0 %v4673
  %5536 = vmatpush.msra.mxu0 %v4666
  %5537 = vmatpush.msra.mxu0 %v4659
  %5538 = vmatpush.msra.mxu0 %v4652
  %5539 = vmatpush.msra.mxu0 %v4645
  %5540 = vmatpush.msra.mxu0 %v4638
  %5541 = vmatpush.msra.mxu0 %v4631
  %5542 = vmatpush.msra.mxu0 %v4624
  %5543 = vmatpush.msra.mxu0 %v4617
  %5544 = vmatpush.msra.mxu0 %v4610
  %5545 = vmatpush.msra.mxu0 %v4603
  %5546 = vmatmul.f32.gmra.mxu0 %v27
  %v5547 = vpop.f32.mrf.mxu0
  %v5548 = vadd.f32 %v5507, %v5547
  %5549 = vmatmul.f32.gmra.mxu0 %v31
  %v5550 = vpop.f32.mrf.mxu0
  %v5551 = vadd.f32 %v5510, %v5550
  %5552 = vmatmul.f32.gmra.mxu0 %v35
  %v5553 = vpop.f32.mrf.mxu0
  %v5554 = vadd.f32 %v5513, %v5553
  %5555 = vmatmul.f32.gmra.mxu0 %v39
  %v5556 = vpop.f32.mrf.mxu0
  %v5557 = vadd.f32 %v5516, %v5556
  %5558 = vmatmul.f32.gmra.mxu0 %v43
  %v5559 = vpop.f32.mrf.mxu0
  %v5560 = vadd.f32 %v5519, %v5559
  %5561 = vmatmul.f32.gmra.mxu0 %v47
  %v5562 = vpop.f32.mrf.mxu0
  %v5563 = vadd.f32 %v5522, %v5562
  %5564 = vmatmul.f32.gmra.mxu0 %v51
  %v5565 = vpop.f32.mrf.mxu0
  %v5566 = vadd.f32 %v5525, %v5565
  %5567 = vmatmul.f32.gmra.mxu0 %v55
  %v5568 = vpop.f32.mrf.mxu0
  %v5569 = vadd.f32 %v5528, %v5568
  %5570 = vdwg.mxu0
  %5571 = vmatpush.msra.mxu0 %v4373
  %5572 = vmatpush.msra.mxu0 %v4366
  %5573 = vmatpush.msra.mxu0 %v4359
  %5574 = vmatpush.msra.mxu0 %v4352
  %5575 = vmatpush.msra.mxu0 %v4345
  %5576 = vmatpush.msra.mxu0 %v4338
  %5577 = vmatpush.msra.mxu0 %v4331
  %5578 = vmatpush.msra.mxu0 %v4324
  %5579 = vmatpush.msra.mxu0 %v4317
  %5580 = vmatpush.msra.mxu0 %v4310
  %5581 = vmatpush.msra.mxu0 %v4303
  %5582 = vmatpush.msra.mxu0 %v4296
  %5583 = vmatpush.msra.mxu0 %v4289
  %5584 = vmatpush.msra.mxu0 %v4282
  %5585 = vmatpush.msra.mxu0 %v4275
  %5586 = vmatpush.msra.mxu0 %v4268
  %5587 = vmatmul.f32.gmra.mxu0 %v24
  %v5588 = vpop.f32.mrf.mxu0
  %v5589 = vadd.f32 %v4714, %v5588
  %5590 = vmatmul.f32.gmra.mxu0 %v28
  %v5591 = vpop.f32.mrf.mxu0
  %v5592 = vadd.f32 %v4719, %v5591
  %5593 = vmatmul.f32.gmra.mxu0 %v32
  %v5594 = vpop.f32.mrf.mxu0
  %v5595 = vadd.f32 %v4724, %v5594
  %5596 = vmatmul.f32.gmra.mxu0 %v36
  %v5597 = vpop.f32.mrf.mxu0
  %v5598 = vadd.f32 %v4729, %v5597
  %5599 = vmatmul.f32.gmra.mxu0 %v40
  %v5600 = vpop.f32.mrf.mxu0
  %v5601 = vadd.f32 %v4734, %v5600
  %5602 = vmatmul.f32.gmra.mxu0 %v44
  %v5603 = vpop.f32.mrf.mxu0
  %v5604 = vadd.f32 %v4739, %v5603
  %5605 = vmatmul.f32.gmra.mxu0 %v48
  %v5606 = vpop.f32.mrf.mxu0
  %v5607 = vadd.f32 %v4744, %v5606
  %5608 = vmatmul.f32.gmra.mxu0 %v52
  %v5609 = vpop.f32.mrf.mxu0
  %v5610 = vadd.f32 %v4749, %v5609
  %5611 = vdwg.mxu0
  %5612 = vmatpush.msra.mxu0 %v4485
  %5613 = vmatpush.msra.mxu0 %v4478
  %5614 = vmatpush.msra.mxu0 %v4471
  %5615 = vmatpush.msra.mxu0 %v4464
  %5616 = vmatpush.msra.mxu0 %v4457
  %5617 = vmatpush.msra.mxu0 %v4450
  %5618 = vmatpush.msra.mxu0 %v4443
  %5619 = vmatpush.msra.mxu0 %v4436
  %5620 = vmatpush.msra.mxu0 %v4429
  %5621 = vmatpush.msra.mxu0 %v4422
  %5622 = vmatpush.msra.mxu0 %v4415
  %5623 = vmatpush.msra.mxu0 %v4408
  %5624 = vmatpush.msra.mxu0 %v4401
  %5625 = vmatpush.msra.mxu0 %v4394
  %5626 = vmatpush.msra.mxu0 %v4387
  %5627 = vmatpush.msra.mxu0 %v4380
  %5628 = vmatmul.f32.gmra.mxu0 %v25
  %v5629 = vpop.f32.mrf.mxu0
  %v5630 = vadd.f32 %v5589, %v5629
  %5631 = vmatmul.f32.gmra.mxu0 %v29
  %v5632 = vpop.f32.mrf.mxu0
  %v5633 = vadd.f32 %v5592, %v5632
  %5634 = vmatmul.f32.gmra.mxu0 %v33
  %v5635 = vpop.f32.mrf.mxu0
  %v5636 = vadd.f32 %v5595, %v5635
  %5637 = vmatmul.f32.gmra.mxu0 %v37
  %v5638 = vpop.f32.mrf.mxu0
  %v5639 = vadd.f32 %v5598, %v5638
  %5640 = vmatmul.f32.gmra.mxu0 %v41
  %v5641 = vpop.f32.mrf.mxu0
  %v5642 = vadd.f32 %v5601, %v5641
  %5643 = vmatmul.f32.gmra.mxu0 %v45
  %v5644 = vpop.f32.mrf.mxu0
  %v5645 = vadd.f32 %v5604, %v5644
  %5646 = vmatmul.f32.gmra.mxu0 %v49
  %v5647 = vpop.f32.mrf.mxu0
  %v5648 = vadd.f32 %v5607, %v5647
  %5649 = vmatmul.f32.gmra.mxu0 %v53
  %v5650 = vpop.f32.mrf.mxu0
  %v5651 = vadd.f32 %v5610, %v5650
  %5652 = vdwg.mxu0
  %5653 = vmatpush.msra.mxu0 %v4597
  %5654 = vmatpush.msra.mxu0 %v4590
  %5655 = vmatpush.msra.mxu0 %v4583
  %5656 = vmatpush.msra.mxu0 %v4576
  %5657 = vmatpush.msra.mxu0 %v4569
  %5658 = vmatpush.msra.mxu0 %v4562
  %5659 = vmatpush.msra.mxu0 %v4555
  %5660 = vmatpush.msra.mxu0 %v4548
  %5661 = vmatpush.msra.mxu0 %v4541
  %5662 = vmatpush.msra.mxu0 %v4534
  %5663 = vmatpush.msra.mxu0 %v4527
  %5664 = vmatpush.msra.mxu0 %v4520
  %5665 = vmatpush.msra.mxu0 %v4513
  %5666 = vmatpush.msra.mxu0 %v4506
  %5667 = vmatpush.msra.mxu0 %v4499
  %5668 = vmatpush.msra.mxu0 %v4492
  %5669 = vmatmul.f32.gmra.mxu0 %v26
  %v5670 = vpop.f32.mrf.mxu0
  %v5671 = vadd.f32 %v5630, %v5670
  %5672 = vmatmul.f32.gmra.mxu0 %v30
  %v5673 = vpop.f32.mrf.mxu0
  %v5674 = vadd.f32 %v5633, %v5673
  %5675 = vmatmul.f32.gmra.mxu0 %v34
  %v5676 = vpop.f32.mrf.mxu0
  %v5677 = vadd.f32 %v5636, %v5676
  %5678 = vmatmul.f32.gmra.mxu0 %v38
  %v5679 = vpop.f32.mrf.mxu0
  %v5680 = vadd.f32 %v5639, %v5679
  %5681 = vmatmul.f32.gmra.mxu0 %v42
  %v5682 = vpop.f32.mrf.mxu0
  %v5683 = vadd.f32 %v5642, %v5682
  %5684 = vmatmul.f32.gmra.mxu0 %v46
  %v5685 = vpop.f32.mrf.mxu0
  %v5686 = vadd.f32 %v5645, %v5685
  %5687 = vmatmul.f32.gmra.mxu0 %v50
  %v5688 = vpop.f32.mrf.mxu0
  %v5689 = vadd.f32 %v5648, %v5688
  %5690 = vmatmul.f32.gmra.mxu0 %v54
  %v5691 = vpop.f32.mrf.mxu0
  %v5692 = vadd.f32 %v5651, %v5691
  %5693 = vdwg.mxu0
  %5694 = vmatpush.msra.mxu0 %v4709
  %5695 = vmatpush.msra.mxu0 %v4702
  %5696 = vmatpush.msra.mxu0 %v4695
  %5697 = vmatpush.msra.mxu0 %v4688
  %5698 = vmatpush.msra.mxu0 %v4681
  %5699 = vmatpush.msra.mxu0 %v4674
  %5700 = vmatpush.msra.mxu0 %v4667
  %5701 = vmatpush.msra.mxu0 %v4660
  %5702 = vmatpush.msra.mxu0 %v4653
  %5703 = vmatpush.msra.mxu0 %v4646
  %5704 = vmatpush.msra.mxu0 %v4639
  %5705 = vmatpush.msra.mxu0 %v4632
  %5706 = vmatpush.msra.mxu0 %v4625
  %5707 = vmatpush.msra.mxu0 %v4618
  %5708 = vmatpush.msra.mxu0 %v4611
  %5709 = vmatpush.msra.mxu0 %v4604
  %5710 = vmatmul.f32.gmra.mxu0 %v27
  %v5711 = vpop.f32.mrf.mxu0
  %v5712 = vadd.f32 %v5671, %v5711
  %5713 = vmatmul.f32.gmra.mxu0 %v31
  %v5714 = vpop.f32.mrf.mxu0
  %v5715 = vadd.f32 %v5674, %v5714
  %5716 = vmatmul.f32.gmra.mxu0 %v35
  %v5717 = vpop.f32.mrf.mxu0
  %v5718 = vadd.f32 %v5677, %v5717
  %5719 = vmatmul.f32.gmra.mxu0 %v39
  %v5720 = vpop.f32.mrf.mxu0
  %v5721 = vadd.f32 %v5680, %v5720
  %5722 = vmatmul.f32.gmra.mxu0 %v43
  %v5723 = vpop.f32.mrf.mxu0
  %v5724 = vadd.f32 %v5683, %v5723
  %5725 = vmatmul.f32.gmra.mxu0 %v47
  %v5726 = vpop.f32.mrf.mxu0
  %v5727 = vadd.f32 %v5686, %v5726
  %5728 = vmatmul.f32.gmra.mxu0 %v51
  %v5729 = vpop.f32.mrf.mxu0
  %v5730 = vadd.f32 %v5689, %v5729
  %5731 = vmatmul.f32.gmra.mxu0 %v55
  %v5732 = vpop.f32.mrf.mxu0
  %v5733 = vadd.f32 %v5692, %v5732
  %5734 = vdwg.mxu0
  %5735 = vmatpush.msra.mxu0 %v4374
  %5736 = vmatpush.msra.mxu0 %v4367
  %5737 = vmatpush.msra.mxu0 %v4360
  %5738 = vmatpush.msra.mxu0 %v4353
  %5739 = vmatpush.msra.mxu0 %v4346
  %5740 = vmatpush.msra.mxu0 %v4339
  %5741 = vmatpush.msra.mxu0 %v4332
  %5742 = vmatpush.msra.mxu0 %v4325
  %5743 = vmatpush.msra.mxu0 %v4318
  %5744 = vmatpush.msra.mxu0 %v4311
  %5745 = vmatpush.msra.mxu0 %v4304
  %5746 = vmatpush.msra.mxu0 %v4297
  %5747 = vmatpush.msra.mxu0 %v4290
  %5748 = vmatpush.msra.mxu0 %v4283
  %5749 = vmatpush.msra.mxu0 %v4276
  %5750 = vmatpush.msra.mxu0 %v4269
  %5751 = vmatmul.f32.gmra.mxu0 %v24
  %v5752 = vpop.f32.mrf.mxu0
  %v5753 = vadd.f32 %v4714, %v5752
  %5754 = vmatmul.f32.gmra.mxu0 %v28
  %v5755 = vpop.f32.mrf.mxu0
  %v5756 = vadd.f32 %v4719, %v5755
  %5757 = vmatmul.f32.gmra.mxu0 %v32
  %v5758 = vpop.f32.mrf.mxu0
  %v5759 = vadd.f32 %v4724, %v5758
  %5760 = vmatmul.f32.gmra.mxu0 %v36
  %v5761 = vpop.f32.mrf.mxu0
  %v5762 = vadd.f32 %v4729, %v5761
  %5763 = vmatmul.f32.gmra.mxu0 %v40
  %v5764 = vpop.f32.mrf.mxu0
  %v5765 = vadd.f32 %v4734, %v5764
  %5766 = vmatmul.f32.gmra.mxu0 %v44
  %v5767 = vpop.f32.mrf.mxu0
  %v5768 = vadd.f32 %v4739, %v5767
  %5769 = vmatmul.f32.gmra.mxu0 %v48
  %v5770 = vpop.f32.mrf.mxu0
  %v5771 = vadd.f32 %v4744, %v5770
  %5772 = vmatmul.f32.gmra.mxu0 %v52
  %v5773 = vpop.f32.mrf.mxu0
  %v5774 = vadd.f32 %v4749, %v5773
  %5775 = vdwg.mxu0
  %5776 = vmatpush.msra.mxu0 %v4486
  %5777 = vmatpush.msra.mxu0 %v4479
  %5778 = vmatpush.msra.mxu0 %v4472
  %5779 = vmatpush.msra.mxu0 %v4465
  %5780 = vmatpush.msra.mxu0 %v4458
  %5781 = vmatpush.msra.mxu0 %v4451
  %5782 = vmatpush.msra.mxu0 %v4444
  %5783 = vmatpush.msra.mxu0 %v4437
  %5784 = vmatpush.msra.mxu0 %v4430
  %5785 = vmatpush.msra.mxu0 %v4423
  %5786 = vmatpush.msra.mxu0 %v4416
  %5787 = vmatpush.msra.mxu0 %v4409
  %5788 = vmatpush.msra.mxu0 %v4402
  %5789 = vmatpush.msra.mxu0 %v4395
  %5790 = vmatpush.msra.mxu0 %v4388
  %5791 = vmatpush.msra.mxu0 %v4381
  %5792 = vmatmul.f32.gmra.mxu0 %v25
  %v5793 = vpop.f32.mrf.mxu0
  %v5794 = vadd.f32 %v5753, %v5793
  %5795 = vmatmul.f32.gmra.mxu0 %v29
  %v5796 = vpop.f32.mrf.mxu0
  %v5797 = vadd.f32 %v5756, %v5796
  %5798 = vmatmul.f32.gmra.mxu0 %v33
  %v5799 = vpop.f32.mrf.mxu0
  %v5800 = vadd.f32 %v5759, %v5799
  %5801 = vmatmul.f32.gmra.mxu0 %v37
  %v5802 = vpop.f32.mrf.mxu0
  %v5803 = vadd.f32 %v5762, %v5802
  %5804 = vmatmul.f32.gmra.mxu0 %v41
  %v5805 = vpop.f32.mrf.mxu0
  %v5806 = vadd.f32 %v5765, %v5805
  %5807 = vmatmul.f32.gmra.mxu0 %v45
  %v5808 = vpop.f32.mrf.mxu0
  %v5809 = vadd.f32 %v5768, %v5808
  %5810 = vmatmul.f32.gmra.mxu0 %v49
  %v5811 = vpop.f32.mrf.mxu0
  %v5812 = vadd.f32 %v5771, %v5811
  %5813 = vmatmul.f32.gmra.mxu0 %v53
  %v5814 = vpop.f32.mrf.mxu0
  %v5815 = vadd.f32 %v5774, %v5814
  %5816 = vdwg.mxu0
  %5817 = vmatpush.msra.mxu0 %v4598
  %5818 = vmatpush.msra.mxu0 %v4591
  %5819 = vmatpush.msra.mxu0 %v4584
  %5820 = vmatpush.msra.mxu0 %v4577
  %5821 = vmatpush.msra.mxu0 %v4570
  %5822 = vmatpush.msra.mxu0 %v4563
  %5823 = vmatpush.msra.mxu0 %v4556
  %5824 = vmatpush.msra.mxu0 %v4549
  %5825 = vmatpush.msra.mxu0 %v4542
  %5826 = vmatpush.msra.mxu0 %v4535
  %5827 = vmatpush.msra.mxu0 %v4528
  %5828 = vmatpush.msra.mxu0 %v4521
  %5829 = vmatpush.msra.mxu0 %v4514
  %5830 = vmatpush.msra.mxu0 %v4507
  %5831 = vmatpush.msra.mxu0 %v4500
  %5832 = vmatpush.msra.mxu0 %v4493
  %5833 = vmatmul.f32.gmra.mxu0 %v26
  %v5834 = vpop.f32.mrf.mxu0
  %v5835 = vadd.f32 %v5794, %v5834
  %5836 = vmatmul.f32.gmra.mxu0 %v30
  %v5837 = vpop.f32.mrf.mxu0
  %v5838 = vadd.f32 %v5797, %v5837
  %5839 = vmatmul.f32.gmra.mxu0 %v34
  %v5840 = vpop.f32.mrf.mxu0
  %v5841 = vadd.f32 %v5800, %v5840
  %5842 = vmatmul.f32.gmra.mxu0 %v38
  %v5843 = vpop.f32.mrf.mxu0
  %v5844 = vadd.f32 %v5803, %v5843
  %5845 = vmatmul.f32.gmra.mxu0 %v42
  %v5846 = vpop.f32.mrf.mxu0
  %v5847 = vadd.f32 %v5806, %v5846
  %5848 = vmatmul.f32.gmra.mxu0 %v46
  %v5849 = vpop.f32.mrf.mxu0
  %v5850 = vadd.f32 %v5809, %v5849
  %5851 = vmatmul.f32.gmra.mxu0 %v50
  %v5852 = vpop.f32.mrf.mxu0
  %v5853 = vadd.f32 %v5812, %v5852
  %5854 = vmatmul.f32.gmra.mxu0 %v54
  %v5855 = vpop.f32.mrf.mxu0
  %v5856 = vadd.f32 %v5815, %v5855
  %5857 = vdwg.mxu0
  %5858 = vmatpush.msra.mxu0 %v4710
  %5859 = vmatpush.msra.mxu0 %v4703
  %5860 = vmatpush.msra.mxu0 %v4696
  %5861 = vmatpush.msra.mxu0 %v4689
  %5862 = vmatpush.msra.mxu0 %v4682
  %5863 = vmatpush.msra.mxu0 %v4675
  %5864 = vmatpush.msra.mxu0 %v4668
  %5865 = vmatpush.msra.mxu0 %v4661
  %5866 = vmatpush.msra.mxu0 %v4654
  %5867 = vmatpush.msra.mxu0 %v4647
  %5868 = vmatpush.msra.mxu0 %v4640
  %5869 = vmatpush.msra.mxu0 %v4633
  %5870 = vmatpush.msra.mxu0 %v4626
  %5871 = vmatpush.msra.mxu0 %v4619
  %5872 = vmatpush.msra.mxu0 %v4612
  %5873 = vmatpush.msra.mxu0 %v4605
  %5874 = vmatmul.f32.gmra.mxu0 %v27
  %v5875 = vpop.f32.mrf.mxu0
  %v5876 = vadd.f32 %v5835, %v5875
  %5877 = vmatmul.f32.gmra.mxu0 %v31
  %v5878 = vpop.f32.mrf.mxu0
  %v5879 = vadd.f32 %v5838, %v5878
  %5880 = vmatmul.f32.gmra.mxu0 %v35
  %v5881 = vpop.f32.mrf.mxu0
  %v5882 = vadd.f32 %v5841, %v5881
  %5883 = vmatmul.f32.gmra.mxu0 %v39
  %v5884 = vpop.f32.mrf.mxu0
  %v5885 = vadd.f32 %v5844, %v5884
  %5886 = vmatmul.f32.gmra.mxu0 %v43
  %v5887 = vpop.f32.mrf.mxu0
  %v5888 = vadd.f32 %v5847, %v5887
  %5889 = vmatmul.f32.gmra.mxu0 %v47
  %v5890 = vpop.f32.mrf.mxu0
  %v5891 = vadd.f32 %v5850, %v5890
  %5892 = vmatmul.f32.gmra.mxu0 %v51
  %v5893 = vpop.f32.mrf.mxu0
  %v5894 = vadd.f32 %v5853, %v5893
  %5895 = vmatmul.f32.gmra.mxu0 %v55
  %v5896 = vpop.f32.mrf.mxu0
  %v5897 = vadd.f32 %v5856, %v5896
  %5898 = vdwg.mxu0
  %vm5899 = vcmp.gt.f32.partialorder %v4892, 0.0
  %vm5900 = vcmp.gt.f32.partialorder %v5056, 0.0
  %vm5901 = vcmp.gt.f32.partialorder %v5220, 0.0
  %vm5902 = vcmp.gt.f32.partialorder %v5384, 0.0
  %vm5903 = vcmp.gt.f32.partialorder %v5548, 0.0
  %vm5904 = vcmp.gt.f32.partialorder %v5712, 0.0
  %vm5905 = vcmp.gt.f32.partialorder %v5876, 0.0
  %vm5906 = vcmp.gt.f32.partialorder %v4895, 0.0
  %vm5907 = vcmp.gt.f32.partialorder %v5059, 0.0
  %vm5908 = vcmp.gt.f32.partialorder %v5223, 0.0
  %vm5909 = vcmp.gt.f32.partialorder %v5387, 0.0
  %vm5910 = vcmp.gt.f32.partialorder %v5551, 0.0
  %vm5911 = vcmp.gt.f32.partialorder %v5715, 0.0
  %vm5912 = vcmp.gt.f32.partialorder %v5879, 0.0
  %vm5913 = vcmp.gt.f32.partialorder %v4898, 0.0
  %vm5914 = vcmp.gt.f32.partialorder %v5062, 0.0
  %vm5915 = vcmp.gt.f32.partialorder %v5226, 0.0
  %vm5916 = vcmp.gt.f32.partialorder %v5390, 0.0
  %vm5917 = vcmp.gt.f32.partialorder %v5554, 0.0
  %vm5918 = vcmp.gt.f32.partialorder %v5718, 0.0
  %vm5919 = vcmp.gt.f32.partialorder %v5882, 0.0
  %vm5920 = vcmp.gt.f32.partialorder %v4901, 0.0
  %vm5921 = vcmp.gt.f32.partialorder %v5065, 0.0
  %vm5922 = vcmp.gt.f32.partialorder %v5229, 0.0
  %vm5923 = vcmp.gt.f32.partialorder %v5393, 0.0
  %vm5924 = vcmp.gt.f32.partialorder %v5557, 0.0
  %vm5925 = vcmp.gt.f32.partialorder %v5721, 0.0
  %vm5926 = vcmp.gt.f32.partialorder %v5885, 0.0
  %vm5927 = vcmp.gt.f32.partialorder %v4904, 0.0
  %vm5928 = vcmp.gt.f32.partialorder %v5068, 0.0
  %vm5929 = vcmp.gt.f32.partialorder %v5232, 0.0
  %vm5930 = vcmp.gt.f32.partialorder %v5396, 0.0
  %vm5931 = vcmp.gt.f32.partialorder %v5560, 0.0
  %vm5932 = vcmp.gt.f32.partialorder %v5724, 0.0
  %vm5933 = vcmp.gt.f32.partialorder %v5888, 0.0
  %vm5934 = vcmp.gt.f32.partialorder %v4907, 0.0
  %vm5935 = vcmp.gt.f32.partialorder %v5071, 0.0
  %vm5936 = vcmp.gt.f32.partialorder %v5235, 0.0
  %vm5937 = vcmp.gt.f32.partialorder %v5399, 0.0
  %vm5938 = vcmp.gt.f32.partialorder %v5563, 0.0
  %vm5939 = vcmp.gt.f32.partialorder %v5727, 0.0
  %vm5940 = vcmp.gt.f32.partialorder %v5891, 0.0
  %vm5941 = vcmp.gt.f32.partialorder %v4910, 0.0
  %vm5942 = vcmp.gt.f32.partialorder %v5074, 0.0
  %vm5943 = vcmp.gt.f32.partialorder %v5238, 0.0
  %vm5944 = vcmp.gt.f32.partialorder %v5402, 0.0
  %vm5945 = vcmp.gt.f32.partialorder %v5566, 0.0
  %vm5946 = vcmp.gt.f32.partialorder %v5730, 0.0
  %vm5947 = vcmp.gt.f32.partialorder %v5894, 0.0
  %vm5948 = vcmp.gt.f32.partialorder %v4913, 0.0
  %vm5949 = vcmp.gt.f32.partialorder %v5077, 0.0
  %vm5950 = vcmp.gt.f32.partialorder %v5241, 0.0
  %vm5951 = vcmp.gt.f32.partialorder %v5405, 0.0
  %vm5952 = vcmp.gt.f32.partialorder %v5569, 0.0
  %vm5953 = vcmp.gt.f32.partialorder %v5733, 0.0
  %vm5954 = vcmp.gt.f32.partialorder %v5897, 0.0
  %v5955 = vmin.f32 %v4892, 0.0
  %v5956 = vmin.f32 %v5056, 0.0
  %v5957 = vmin.f32 %v5220, 0.0
  %v5958 = vmin.f32 %v5384, 0.0
  %v5959 = vmin.f32 %v5548, 0.0
  %v5960 = vmin.f32 %v5712, 0.0
  %v5961 = vmin.f32 %v5876, 0.0
  %v5962 = vmin.f32 %v4895, 0.0
  %v5963 = vmin.f32 %v5059, 0.0
  %v5964 = vmin.f32 %v5223, 0.0
  %v5965 = vmin.f32 %v5387, 0.0
  %v5966 = vmin.f32 %v5551, 0.0
  %v5967 = vmin.f32 %v5715, 0.0
  %v5968 = vmin.f32 %v5879, 0.0
  %v5969 = vmin.f32 %v4898, 0.0
  %v5970 = vmin.f32 %v5062, 0.0
  %v5971 = vmin.f32 %v5226, 0.0
  %v5972 = vmin.f32 %v5390, 0.0
  %v5973 = vmin.f32 %v5554, 0.0
  %v5974 = vmin.f32 %v5718, 0.0
  %v5975 = vmin.f32 %v5882, 0.0
  %v5976 = vmin.f32 %v4901, 0.0
  %v5977 = vmin.f32 %v5065, 0.0
  %v5978 = vmin.f32 %v5229, 0.0
  %v5979 = vmin.f32 %v5393, 0.0
  %v5980 = vmin.f32 %v5557, 0.0
  %v5981 = vmin.f32 %v5721, 0.0
  %v5982 = vmin.f32 %v5885, 0.0
  %v5983 = vmin.f32 %v4904, 0.0
  %v5984 = vmin.f32 %v5068, 0.0
  %v5985 = vmin.f32 %v5232, 0.0
  %v5986 = vmin.f32 %v5396, 0.0
  %v5987 = vmin.f32 %v5560, 0.0
  %v5988 = vmin.f32 %v5724, 0.0
  %v5989 = vmin.f32 %v5888, 0.0
  %v5990 = vmin.f32 %v4907, 0.0
  %v5991 = vmin.f32 %v5071, 0.0
  %v5992 = vmin.f32 %v5235, 0.0
  %v5993 = vmin.f32 %v5399, 0.0
  %v5994 = vmin.f32 %v5563, 0.0
  %v5995 = vmin.f32 %v5727, 0.0
  %v5996 = vmin.f32 %v5891, 0.0
  %v5997 = vmin.f32 %v4910, 0.0
  %v5998 = vmin.f32 %v5074, 0.0
  %v5999 = vmin.f32 %v5238, 0.0
  %v6000 = vmin.f32 %v5402, 0.0
  %v6001 = vmin.f32 %v5566, 0.0
  %v6002 = vmin.f32 %v5730, 0.0
  %v6003 = vmin.f32 %v5894, 0.0
  %v6004 = vmin.f32 %v4913, 0.0
  %v6005 = vmin.f32 %v5077, 0.0
  %v6006 = vmin.f32 %v5241, 0.0
  %v6007 = vmin.f32 %v5405, 0.0
  %v6008 = vmin.f32 %v5569, 0.0
  %v6009 = vmin.f32 %v5733, 0.0
  %v6010 = vmin.f32 %v5897, 0.0
  %v6011 = vmul.f32 %v5955, 1.442695
  %v6012 = vpow.pop %v6011
  %v6013 = vmul.f32 %v5956, 1.442695
  %v6014 = vpow.pop %v6013
  %v6015 = vmul.f32 %v5957, 1.442695
  %v6016 = vpow.pop %v6015
  %v6017 = vmul.f32 %v5958, 1.442695
  %v6018 = vpow.pop %v6017
  %v6019 = vmul.f32 %v5959, 1.442695
  %v6020 = vpow.pop %v6019
  %v6021 = vmul.f32 %v5960, 1.442695
  %v6022 = vpow.pop %v6021
  %v6023 = vmul.f32 %v5961, 1.442695
  %v6024 = vpow.pop %v6023
  %v6025 = vmul.f32 %v5962, 1.442695
  %v6026 = vpow.pop %v6025
  %v6027 = vmul.f32 %v5963, 1.442695
  %v6028 = vpow.pop %v6027
  %v6029 = vmul.f32 %v5964, 1.442695
  %v6030 = vpow.pop %v6029
  %v6031 = vmul.f32 %v5965, 1.442695
  %v6032 = vpow.pop %v6031
  %v6033 = vmul.f32 %v5966, 1.442695
  %v6034 = vpow.pop %v6033
  %v6035 = vmul.f32 %v5967, 1.442695
  %v6036 = vpow.pop %v6035
  %v6037 = vmul.f32 %v5968, 1.442695
  %v6038 = vpow.pop %v6037
  %v6039 = vmul.f32 %v5969, 1.442695
  %v6040 = vpow.pop %v6039
  %v6041 = vmul.f32 %v5970, 1.442695
  %v6042 = vpow.pop %v6041
  %v6043 = vmul.f32 %v5971, 1.442695
  %v6044 = vpow.pop %v6043
  %v6045 = vmul.f32 %v5972, 1.442695
  %v6046 = vpow.pop %v6045
  %v6047 = vmul.f32 %v5973, 1.442695
  %v6048 = vpow.pop %v6047
  %v6049 = vmul.f32 %v5974, 1.442695
  %v6050 = vpow.pop %v6049
  %v6051 = vmul.f32 %v5975, 1.442695
  %v6052 = vpow.pop %v6051
  %v6053 = vmul.f32 %v5976, 1.442695
  %v6054 = vpow.pop %v6053
  %v6055 = vmul.f32 %v5977, 1.442695
  %v6056 = vpow.pop %v6055
  %v6057 = vmul.f32 %v5978, 1.442695
  %v6058 = vpow.pop %v6057
  %v6059 = vmul.f32 %v5979, 1.442695
  %v6060 = vpow.pop %v6059
  %v6061 = vmul.f32 %v5980, 1.442695
  %v6062 = vpow.pop %v6061
  %v6063 = vmul.f32 %v5981, 1.442695
  %v6064 = vpow.pop %v6063
  %v6065 = vmul.f32 %v5982, 1.442695
  %v6066 = vpow.pop %v6065
  %v6067 = vmul.f32 %v5983, 1.442695
  %v6068 = vpow.pop %v6067
  %v6069 = vmul.f32 %v5984, 1.442695
  %v6070 = vpow.pop %v6069
  %v6071 = vmul.f32 %v5985, 1.442695
  %v6072 = vpow.pop %v6071
  %v6073 = vmul.f32 %v5986, 1.442695
  %v6074 = vpow.pop %v6073
  %v6075 = vmul.f32 %v5987, 1.442695
  %v6076 = vpow.pop %v6075
  %v6077 = vmul.f32 %v5988, 1.442695
  %v6078 = vpow.pop %v6077
  %v6079 = vmul.f32 %v5989, 1.442695
  %v6080 = vpow.pop %v6079
  %v6081 = vmul.f32 %v5990, 1.442695
  %v6082 = vpow.pop %v6081
  %v6083 = vmul.f32 %v5991, 1.442695
  %v6084 = vpow.pop %v6083
  %v6085 = vmul.f32 %v5992, 1.442695
  %v6086 = vpow.pop %v6085
  %v6087 = vmul.f32 %v5993, 1.442695
  %v6088 = vpow.pop %v6087
  %v6089 = vmul.f32 %v5994, 1.442695
  %v6090 = vpow.pop %v6089
  %v6091 = vmul.f32 %v5995, 1.442695
  %v6092 = vpow.pop %v6091
  %v6093 = vmul.f32 %v5996, 1.442695
  %v6094 = vpow.pop %v6093
  %v6095 = vmul.f32 %v5997, 1.442695
  %v6096 = vpow.pop %v6095
  %v6097 = vmul.f32 %v5998, 1.442695
  %v6098 = vpow.pop %v6097
  %v6099 = vmul.f32 %v5999, 1.442695
  %v6100 = vpow.pop %v6099
  %v6101 = vmul.f32 %v6000, 1.442695
  %v6102 = vpow.pop %v6101
  %v6103 = vmul.f32 %v6001, 1.442695
  %v6104 = vpow.pop %v6103
  %v6105 = vmul.f32 %v6002, 1.442695
  %v6106 = vpow.pop %v6105
  %v6107 = vmul.f32 %v6003, 1.442695
  %v6108 = vpow.pop %v6107
  %v6109 = vmul.f32 %v6004, 1.442695
  %v6110 = vpow.pop %v6109
  %v6111 = vmul.f32 %v6005, 1.442695
  %v6112 = vpow.pop %v6111
  %v6113 = vmul.f32 %v6006, 1.442695
  %v6114 = vpow.pop %v6113
  %v6115 = vmul.f32 %v6007, 1.442695
  %v6116 = vpow.pop %v6115
  %v6117 = vmul.f32 %v6008, 1.442695
  %v6118 = vpow.pop %v6117
  %v6119 = vmul.f32 %v6009, 1.442695
  %v6120 = vpow.pop %v6119
  %v6121 = vmul.f32 %v6010, 1.442695
  %v6122 = vpow.pop %v6121
  %v6123 = vsub.f32 %v6012, 1.0
  %v6124 = vsub.f32 %v6014, 1.0
  %v6125 = vsub.f32 %v6016, 1.0
  %v6126 = vsub.f32 %v6018, 1.0
  %v6127 = vsub.f32 %v6020, 1.0
  %v6128 = vsub.f32 %v6022, 1.0
  %v6129 = vsub.f32 %v6024, 1.0
  %v6130 = vsub.f32 %v6026, 1.0
  %v6131 = vsub.f32 %v6028, 1.0
  %v6132 = vsub.f32 %v6030, 1.0
  %v6133 = vsub.f32 %v6032, 1.0
  %v6134 = vsub.f32 %v6034, 1.0
  %v6135 = vsub.f32 %v6036, 1.0
  %v6136 = vsub.f32 %v6038, 1.0
  %v6137 = vsub.f32 %v6040, 1.0
  %v6138 = vsub.f32 %v6042, 1.0
  %v6139 = vsub.f32 %v6044, 1.0
  %v6140 = vsub.f32 %v6046, 1.0
  %v6141 = vsub.f32 %v6048, 1.0
  %v6142 = vsub.f32 %v6050, 1.0
  %v6143 = vsub.f32 %v6052, 1.0
  %v6144 = vsub.f32 %v6054, 1.0
  %v6145 = vsub.f32 %v6056, 1.0
  %v6146 = vsub.f32 %v6058, 1.0
  %v6147 = vsub.f32 %v6060, 1.0
  %v6148 = vsub.f32 %v6062, 1.0
  %v6149 = vsub.f32 %v6064, 1.0
  %v6150 = vsub.f32 %v6066, 1.0
  %v6151 = vsub.f32 %v6068, 1.0
  %v6152 = vsub.f32 %v6070, 1.0
  %v6153 = vsub.f32 %v6072, 1.0
  %v6154 = vsub.f32 %v6074, 1.0
  %v6155 = vsub.f32 %v6076, 1.0
  %v6156 = vsub.f32 %v6078, 1.0
  %v6157 = vsub.f32 %v6080, 1.0
  %v6158 = vsub.f32 %v6082, 1.0
  %v6159 = vsub.f32 %v6084, 1.0
  %v6160 = vsub.f32 %v6086, 1.0
  %v6161 = vsub.f32 %v6088, 1.0
  %v6162 = vsub.f32 %v6090, 1.0
  %v6163 = vsub.f32 %v6092, 1.0
  %v6164 = vsub.f32 %v6094, 1.0
  %v6165 = vsub.f32 %v6096, 1.0
  %v6166 = vsub.f32 %v6098, 1.0
  %v6167 = vsub.f32 %v6100, 1.0
  %v6168 = vsub.f32 %v6102, 1.0
  %v6169 = vsub.f32 %v6104, 1.0
  %v6170 = vsub.f32 %v6106, 1.0
  %v6171 = vsub.f32 %v6108, 1.0
  %v6172 = vsub.f32 %v6110, 1.0
  %v6173 = vsub.f32 %v6112, 1.0
  %v6174 = vsub.f32 %v6114, 1.0
  %v6175 = vsub.f32 %v6116, 1.0
  %v6176 = vsub.f32 %v6118, 1.0
  %v6177 = vsub.f32 %v6120, 1.0
  %v6178 = vsub.f32 %v6122, 1.0
  %v6179 = vsel %vm5899, %v4892, %v6123
  %v6180 = vsel %vm5900, %v5056, %v6124
  %v6181 = vsel %vm5901, %v5220, %v6125
  %v6182 = vsel %vm5902, %v5384, %v6126
  %v6183 = vsel %vm5903, %v5548, %v6127
  %v6184 = vsel %vm5904, %v5712, %v6128
  %v6185 = vsel %vm5905, %v5876, %v6129
  %v6186 = vsel %vm5906, %v4895, %v6130
  %v6187 = vsel %vm5907, %v5059, %v6131
  %v6188 = vsel %vm5908, %v5223, %v6132
  %v6189 = vsel %vm5909, %v5387, %v6133
  %v6190 = vsel %vm5910, %v5551, %v6134
  %v6191 = vsel %vm5911, %v5715, %v6135
  %v6192 = vsel %vm5912, %v5879, %v6136
  %v6193 = vsel %vm5913, %v4898, %v6137
  %v6194 = vsel %vm5914, %v5062, %v6138
  %v6195 = vsel %vm5915, %v5226, %v6139
  %v6196 = vsel %vm5916, %v5390, %v6140
  %v6197 = vsel %vm5917, %v5554, %v6141
  %v6198 = vsel %vm5918, %v5718, %v6142
  %v6199 = vsel %vm5919, %v5882, %v6143
  %v6200 = vsel %vm5920, %v4901, %v6144
  %v6201 = vsel %vm5921, %v5065, %v6145
  %v6202 = vsel %vm5922, %v5229, %v6146
  %v6203 = vsel %vm5923, %v5393, %v6147
  %v6204 = vsel %vm5924, %v5557, %v6148
  %v6205 = vsel %vm5925, %v5721, %v6149
  %v6206 = vsel %vm5926, %v5885, %v6150
  %v6207 = vsel %vm5927, %v4904, %v6151
  %v6208 = vsel %vm5928, %v5068, %v6152
  %v6209 = vsel %vm5929, %v5232, %v6153
  %v6210 = vsel %vm5930, %v5396, %v6154
  %v6211 = vsel %vm5931, %v5560, %v6155
  %v6212 = vsel %vm5932, %v5724, %v6156
  %v6213 = vsel %vm5933, %v5888, %v6157
  %v6214 = vsel %vm5934, %v4907, %v6158
  %v6215 = vsel %vm5935, %v5071, %v6159
  %v6216 = vsel %vm5936, %v5235, %v6160
  %v6217 = vsel %vm5937, %v5399, %v6161
  %v6218 = vsel %vm5938, %v5563, %v6162
  %v6219 = vsel %vm5939, %v5727, %v6163
  %v6220 = vsel %vm5940, %v5891, %v6164
  %v6221 = vsel %vm5941, %v4910, %v6165
  %v6222 = vsel %vm5942, %v5074, %v6166
  %v6223 = vsel %vm5943, %v5238, %v6167
  %v6224 = vsel %vm5944, %v5402, %v6168
  %v6225 = vsel %vm5945, %v5566, %v6169
  %v6226 = vsel %vm5946, %v5730, %v6170
  %v6227 = vsel %vm5947, %v5894, %v6171
  %v6228 = vsel %vm5948, %v4913, %v6172
  %v6229 = vsel %vm5949, %v5077, %v6173
  %v6230 = vsel %vm5950, %v5241, %v6174
  %v6231 = vsel %vm5951, %v5405, %v6175
  %v6232 = vsel %vm5952, %v5569, %v6176
  %v6233 = vsel %vm5953, %v5733, %v6177
  %v6234 = vsel %vm5954, %v5897, %v6178
  %6235 = vst [vmem:[#allocation4] sm:$0xff] %v6179
  %6236 = vst [vmem:[#allocation4 + $0x8] sm:$0xff] %v6180
  %6237 = vst [vmem:[#allocation4 + $0x10] sm:$0xff] %v6181
  %6238 = vst [vmem:[#allocation4 + $0x18] sm:$0xff] %v6182
  %6239 = vst [vmem:[#allocation4 + $0x20] sm:$0xff] %v6183
  %6240 = vst [vmem:[#allocation4 + $0x28] sm:$0xff] %v6184
  %6241 = vst.msk [vmem:[#allocation4 + $0x30] sm:$0xff] %vm900, %v6185
  %6242 = vst [vmem:[#allocation4 + $0x38] sm:$0xff] %v6186
  %6243 = vst [vmem:[#allocation4 + $0x40] sm:$0xff] %v6187
  %6244 = vst [vmem:[#allocation4 + $0x48] sm:$0xff] %v6188
  %6245 = vst [vmem:[#allocation4 + $0x50] sm:$0xff] %v6189
  %6246 = vst [vmem:[#allocation4 + $0x58] sm:$0xff] %v6190
  %6247 = vst [vmem:[#allocation4 + $0x60] sm:$0xff] %v6191
  %6248 = vst.msk [vmem:[#allocation4 + $0x68] sm:$0xff] %vm900, %v6192
  %6249 = vst [vmem:[#allocation4 + $0x70] sm:$0xff] %v6193
  %6250 = vst [vmem:[#allocation4 + $0x78] sm:$0xff] %v6194
  %6251 = vst [vmem:[#allocation4 + $0x80] sm:$0xff] %v6195
  %6252 = vst [vmem:[#allocation4 + $0x88] sm:$0xff] %v6196
  %6253 = vst [vmem:[#allocation4 + $0x90] sm:$0xff] %v6197
  %6254 = vst [vmem:[#allocation4 + $0x98] sm:$0xff] %v6198
  %6255 = vst.msk [vmem:[#allocation4 + $0xa0] sm:$0xff] %vm900, %v6199
  %6256 = vst [vmem:[#allocation4 + $0xa8] sm:$0xff] %v6200
  %6257 = vst [vmem:[#allocation4 + $0xb0] sm:$0xff] %v6201
  %6258 = vst [vmem:[#allocation4 + $0xb8] sm:$0xff] %v6202
  %6259 = vst [vmem:[#allocation4 + $0xc0] sm:$0xff] %v6203
  %6260 = vst [vmem:[#allocation4 + $0xc8] sm:$0xff] %v6204
  %6261 = vst [vmem:[#allocation4 + $0xd0] sm:$0xff] %v6205
  %6262 = vst.msk [vmem:[#allocation4 + $0xd8] sm:$0xff] %vm900, %v6206
  %6263 = vst [vmem:[#allocation4 + $0xe0] sm:$0xff] %v6207
  %6264 = vst [vmem:[#allocation4 + $0xe8] sm:$0xff] %v6208
  %6265 = vst [vmem:[#allocation4 + $0xf0] sm:$0xff] %v6209
  %6266 = vst [vmem:[#allocation4 + $0xf8] sm:$0xff] %v6210
  %6267 = vst [vmem:[#allocation4 + $0x100] sm:$0xff] %v6211
  %6268 = vst [vmem:[#allocation4 + $0x108] sm:$0xff] %v6212
  %6269 = vst.msk [vmem:[#allocation4 + $0x110] sm:$0xff] %vm900, %v6213
  %6270 = vst [vmem:[#allocation4 + $0x118] sm:$0xff] %v6214
  %6271 = vst [vmem:[#allocation4 + $0x120] sm:$0xff] %v6215
  %6272 = vst [vmem:[#allocation4 + $0x128] sm:$0xff] %v6216
  %6273 = vst [vmem:[#allocation4 + $0x130] sm:$0xff] %v6217
  %6274 = vst [vmem:[#allocation4 + $0x138] sm:$0xff] %v6218
  %6275 = vst [vmem:[#allocation4 + $0x140] sm:$0xff] %v6219
  %6276 = vst.msk [vmem:[#allocation4 + $0x148] sm:$0xff] %vm900, %v6220
  %6277 = vst [vmem:[#allocation4 + $0x150] sm:$0xff] %v6221
  %6278 = vst [vmem:[#allocation4 + $0x158] sm:$0xff] %v6222
  %6279 = vst [vmem:[#allocation4 + $0x160] sm:$0xff] %v6223
  %6280 = vst [vmem:[#allocation4 + $0x168] sm:$0xff] %v6224
  %6281 = vst [vmem:[#allocation4 + $0x170] sm:$0xff] %v6225
  %6282 = vst [vmem:[#allocation4 + $0x178] sm:$0xff] %v6226
  %6283 = vst.msk [vmem:[#allocation4 + $0x180] sm:$0xff] %vm900, %v6227
  %6284 = vst [vmem:[#allocation4 + $0x188] sm:$0xff] %v6228
  %6285 = vst [vmem:[#allocation4 + $0x190] sm:$0xff] %v6229
  %6286 = vst [vmem:[#allocation4 + $0x198] sm:$0xff] %v6230
  %6287 = vst [vmem:[#allocation4 + $0x1a0] sm:$0xff] %v6231
  %6288 = vst [vmem:[#allocation4 + $0x1a8] sm:$0xff] %v6232
  %6289 = vst [vmem:[#allocation4 + $0x1b0] sm:$0xff] %v6233
  %6290 = vst.msk [vmem:[#allocation4 + $0x1b8] sm:$0xff] %vm900, %v6234
  %v6291 = vadd.f32 %v6179, %v6180
  %v6292 = vadd.f32 %v6291, %v6181
  %v6293 = vadd.f32 %v6292, %v6182
  %v6294 = vadd.f32 %v6293, %v6183
  %v6295 = vadd.f32 %v6294, %v6184
  %v6296 = vsel %vm900, %v6185, 0.0
  %v6297 = vadd.f32 %v6295, %v6296
  %6298 = vadd.xlane.f32.xlu0 %v6297
  %v6299 = vpop.xlane.xlu0 %6298
  %v6300 = vadd.f32 %v6186, %v6187
  %v6301 = vadd.f32 %v6300, %v6188
  %v6302 = vadd.f32 %v6301, %v6189
  %v6303 = vadd.f32 %v6302, %v6190
  %v6304 = vadd.f32 %v6303, %v6191
  %v6305 = vsel %vm900, %v6192, 0.0
  %v6306 = vadd.f32 %v6304, %v6305
  %6307 = vadd.xlane.f32.xlu0 %v6306
  %v6308 = vpop.xlane.xlu0 %6307
  %v6309 = vadd.f32 %v6193, %v6194
  %v6310 = vadd.f32 %v6309, %v6195
  %v6311 = vadd.f32 %v6310, %v6196
  %v6312 = vadd.f32 %v6311, %v6197
  %v6313 = vadd.f32 %v6312, %v6198
  %v6314 = vsel %vm900, %v6199, 0.0
  %v6315 = vadd.f32 %v6313, %v6314
  %6316 = vadd.xlane.f32.xlu0 %v6315
  %v6317 = vpop.xlane.xlu0 %6316
  %v6318 = vadd.f32 %v6200, %v6201
  %v6319 = vadd.f32 %v6318, %v6202
  %v6320 = vadd.f32 %v6319, %v6203
  %v6321 = vadd.f32 %v6320, %v6204
  %v6322 = vadd.f32 %v6321, %v6205
  %v6323 = vsel %vm900, %v6206, 0.0
  %v6324 = vadd.f32 %v6322, %v6323
  %6325 = vadd.xlane.f32.xlu0 %v6324
  %v6326 = vpop.xlane.xlu0 %6325
  %v6327 = vadd.f32 %v6207, %v6208
  %v6328 = vadd.f32 %v6327, %v6209
  %v6329 = vadd.f32 %v6328, %v6210
  %v6330 = vadd.f32 %v6329, %v6211
  %v6331 = vadd.f32 %v6330, %v6212
  %v6332 = vsel %vm900, %v6213, 0.0
  %v6333 = vadd.f32 %v6331, %v6332
  %6334 = vadd.xlane.f32.xlu0 %v6333
  %v6335 = vpop.xlane.xlu0 %6334
  %v6336 = vadd.f32 %v6214, %v6215
  %v6337 = vadd.f32 %v6336, %v6216
  %v6338 = vadd.f32 %v6337, %v6217
  %v6339 = vadd.f32 %v6338, %v6218
  %v6340 = vadd.f32 %v6339, %v6219
  %v6341 = vsel %vm900, %v6220, 0.0
  %v6342 = vadd.f32 %v6340, %v6341
  %6343 = vadd.xlane.f32.xlu0 %v6342
  %v6344 = vpop.xlane.xlu0 %6343
  %v6345 = vadd.f32 %v6221, %v6222
  %v6346 = vadd.f32 %v6345, %v6223
  %v6347 = vadd.f32 %v6346, %v6224
  %v6348 = vadd.f32 %v6347, %v6225
  %v6349 = vadd.f32 %v6348, %v6226
  %v6350 = vsel %vm900, %v6227, 0.0
  %v6351 = vadd.f32 %v6349, %v6350
  %6352 = vadd.xlane.f32.xlu0 %v6351
  %v6353 = vpop.xlane.xlu0 %6352
  %v6354 = vadd.f32 %v6228, %v6229
  %v6355 = vadd.f32 %v6354, %v6230
  %v6356 = vadd.f32 %v6355, %v6231
  %v6357 = vadd.f32 %v6356, %v6232
  %v6358 = vadd.f32 %v6357, %v6233
  %v6359 = vsel %vm900, %v6234, 0.0
  %v6360 = vadd.f32 %v6358, %v6359
  %6361 = vadd.xlane.f32.xlu0 %v6360
  %v6362 = vpop.xlane.xlu0 %6361
  %v6363 = vmul.f32 %v6179, %v6179
  %v6364 = vmul.f32 %v6180, %v6180
  %v6365 = vmul.f32 %v6181, %v6181
  %v6366 = vmul.f32 %v6182, %v6182
  %v6367 = vmul.f32 %v6183, %v6183
  %v6368 = vmul.f32 %v6184, %v6184
  %v6369 = vmul.f32 %v6185, %v6185
  %v6370 = vmul.f32 %v6186, %v6186
  %v6371 = vmul.f32 %v6187, %v6187
  %v6372 = vmul.f32 %v6188, %v6188
  %v6373 = vmul.f32 %v6189, %v6189
  %v6374 = vmul.f32 %v6190, %v6190
  %v6375 = vmul.f32 %v6191, %v6191
  %v6376 = vmul.f32 %v6192, %v6192
  %v6377 = vmul.f32 %v6193, %v6193
  %v6378 = vmul.f32 %v6194, %v6194
  %v6379 = vmul.f32 %v6195, %v6195
  %v6380 = vmul.f32 %v6196, %v6196
  %v6381 = vmul.f32 %v6197, %v6197
  %v6382 = vmul.f32 %v6198, %v6198
  %v6383 = vmul.f32 %v6199, %v6199
  %v6384 = vmul.f32 %v6200, %v6200
  %v6385 = vmul.f32 %v6201, %v6201
  %v6386 = vmul.f32 %v6202, %v6202
  %v6387 = vmul.f32 %v6203, %v6203
  %v6388 = vmul.f32 %v6204, %v6204
  %v6389 = vmul.f32 %v6205, %v6205
  %v6390 = vmul.f32 %v6206, %v6206
  %v6391 = vmul.f32 %v6207, %v6207
  %v6392 = vmul.f32 %v6208, %v6208
  %v6393 = vmul.f32 %v6209, %v6209
  %v6394 = vmul.f32 %v6210, %v6210
  %v6395 = vmul.f32 %v6211, %v6211
  %v6396 = vmul.f32 %v6212, %v6212
  %v6397 = vmul.f32 %v6213, %v6213
  %v6398 = vmul.f32 %v6214, %v6214
  %v6399 = vmul.f32 %v6215, %v6215
  %v6400 = vmul.f32 %v6216, %v6216
  %v6401 = vmul.f32 %v6217, %v6217
  %v6402 = vmul.f32 %v6218, %v6218
  %v6403 = vmul.f32 %v6219, %v6219
  %v6404 = vmul.f32 %v6220, %v6220
  %v6405 = vmul.f32 %v6221, %v6221
  %v6406 = vmul.f32 %v6222, %v6222
  %v6407 = vmul.f32 %v6223, %v6223
  %v6408 = vmul.f32 %v6224, %v6224
  %v6409 = vmul.f32 %v6225, %v6225
  %v6410 = vmul.f32 %v6226, %v6226
  %v6411 = vmul.f32 %v6227, %v6227
  %v6412 = vmul.f32 %v6228, %v6228
  %v6413 = vmul.f32 %v6229, %v6229
  %v6414 = vmul.f32 %v6230, %v6230
  %v6415 = vmul.f32 %v6231, %v6231
  %v6416 = vmul.f32 %v6232, %v6232
  %v6417 = vmul.f32 %v6233, %v6233
  %v6418 = vmul.f32 %v6234, %v6234
  %v6419 = vadd.f32 %v6363, %v6364
  %v6420 = vadd.f32 %v6419, %v6365
  %v6421 = vadd.f32 %v6420, %v6366
  %v6422 = vadd.f32 %v6421, %v6367
  %v6423 = vadd.f32 %v6422, %v6368
  %v6424 = vsel %vm900, %v6369, 0.0
  %v6425 = vadd.f32 %v6423, %v6424
  %6426 = vadd.xlane.f32.xlu0 %v6425
  %v6427 = vpop.xlane.xlu0 %6426
  %v6428 = vadd.f32 %v6370, %v6371
  %v6429 = vadd.f32 %v6428, %v6372
  %v6430 = vadd.f32 %v6429, %v6373
  %v6431 = vadd.f32 %v6430, %v6374
  %v6432 = vadd.f32 %v6431, %v6375
  %v6433 = vsel %vm900, %v6376, 0.0
  %v6434 = vadd.f32 %v6432, %v6433
  %6435 = vadd.xlane.f32.xlu0 %v6434
  %v6436 = vpop.xlane.xlu0 %6435
  %v6437 = vadd.f32 %v6377, %v6378
  %v6438 = vadd.f32 %v6437, %v6379
  %v6439 = vadd.f32 %v6438, %v6380
  %v6440 = vadd.f32 %v6439, %v6381
  %v6441 = vadd.f32 %v6440, %v6382
  %v6442 = vsel %vm900, %v6383, 0.0
  %v6443 = vadd.f32 %v6441, %v6442
  %6444 = vadd.xlane.f32.xlu0 %v6443
  %v6445 = vpop.xlane.xlu0 %6444
  %v6446 = vadd.f32 %v6384, %v6385
  %v6447 = vadd.f32 %v6446, %v6386
  %v6448 = vadd.f32 %v6447, %v6387
  %v6449 = vadd.f32 %v6448, %v6388
  %v6450 = vadd.f32 %v6449, %v6389
  %v6451 = vsel %vm900, %v6390, 0.0
  %v6452 = vadd.f32 %v6450, %v6451
  %6453 = vadd.xlane.f32.xlu0 %v6452
  %v6454 = vpop.xlane.xlu0 %6453
  %v6455 = vadd.f32 %v6391, %v6392
  %v6456 = vadd.f32 %v6455, %v6393
  %v6457 = vadd.f32 %v6456, %v6394
  %v6458 = vadd.f32 %v6457, %v6395
  %v6459 = vadd.f32 %v6458, %v6396
  %v6460 = vsel %vm900, %v6397, 0.0
  %v6461 = vadd.f32 %v6459, %v6460
  %6462 = vadd.xlane.f32.xlu0 %v6461
  %v6463 = vpop.xlane.xlu0 %6462
  %v6464 = vadd.f32 %v6398, %v6399
  %v6465 = vadd.f32 %v6464, %v6400
  %v6466 = vadd.f32 %v6465, %v6401
  %v6467 = vadd.f32 %v6466, %v6402
  %v6468 = vadd.f32 %v6467, %v6403
  %v6469 = vsel %vm900, %v6404, 0.0
  %v6470 = vadd.f32 %v6468, %v6469
  %6471 = vadd.xlane.f32.xlu0 %v6470
  %v6472 = vpop.xlane.xlu0 %6471
  %v6473 = vadd.f32 %v6405, %v6406
  %v6474 = vadd.f32 %v6473, %v6407
  %v6475 = vadd.f32 %v6474, %v6408
  %v6476 = vadd.f32 %v6475, %v6409
  %v6477 = vadd.f32 %v6476, %v6410
  %v6478 = vsel %vm900, %v6411, 0.0
  %v6479 = vadd.f32 %v6477, %v6478
  %6480 = vadd.xlane.f32.xlu0 %v6479
  %v6481 = vpop.xlane.xlu0 %6480
  %v6482 = vadd.f32 %v6412, %v6413
  %v6483 = vadd.f32 %v6482, %v6414
  %v6484 = vadd.f32 %v6483, %v6415
  %v6485 = vadd.f32 %v6484, %v6416
  %v6486 = vadd.f32 %v6485, %v6417
  %v6487 = vsel %vm900, %v6418, 0.0
  %v6488 = vadd.f32 %v6486, %v6487
  %6489 = vadd.xlane.f32.xlu0 %v6488
  %v6490 = vpop.xlane.xlu0 %6489
  %v6491 = vsel %vm2752, %v6299, %v6427
  %v6492 = vsel %vm2752, %v6308, %v6436
  %v6493 = vsel %vm2752, %v6317, %v6445
  %v6494 = vsel %vm2752, %v6326, %v6454
  %v6495 = vsel %vm2752, %v6335, %v6463
  %v6496 = vsel %vm2752, %v6344, %v6472
  %v6497 = vsel %vm2752, %v6353, %v6481
  %v6498 = vsel %vm2752, %v6362, %v6490
  %vm6499 = vcmask 523264
  %v6500 = vsel %vm6499, %v56, 0
  %v6502 = vsel %vm6499, %v57, 0
  %v6504 = vsel %vm6499, %v58, 0
  %v6506 = vsel %vm6499, %v59, 0
  %v6508 = vsel %vm6499, %v60, 0
  %v6510 = vsel %vm6499, %v61, 0
  %v6512 = vsel %vm6499, %v62, 0
  %v6514 = vsel %vm6499, %v63, 0
  %6516 = vmatpush.msra.mxu0 0.0
  %6517 = vmatpush.msra.mxu0 0.0
  %6518 = vmatpush.msra.mxu0 0.0
  %6519 = vmatpush.msra.mxu0 0.0
  %6520 = vmatpush.msra.mxu0 0.0
  %6521 = vmatpush.msra.mxu0 0.0
  %6522 = vmatpush.msra.mxu0 0.0
  %6523 = vmatpush.msra.mxu0 0.0
  %6524 = vmatpush.msra.mxu0 %v6498
  %6525 = vmatpush.msra.mxu0 %v6497
  %6526 = vmatpush.msra.mxu0 %v6496
  %6527 = vmatpush.msra.mxu0 %v6495
  %6528 = vmatpush.msra.mxu0 %v6494
  %6529 = vmatpush.msra.mxu0 %v6493
  %6530 = vmatpush.msra.mxu0 %v6492
  %6531 = vmatpush.msra.mxu0 %v6491
  %6532 = vmatmul.f32.gmra.mxu0 %v6500
  %v6533 = vpop.f32.mrf.mxu0
  %v6534 = vadd.f32 0.0, %v6533
  %6535 = vmatmul.f32.gmra.mxu0 %v6502
  %v6536 = vpop.f32.mrf.mxu0
  %v6537 = vadd.f32 0.0, %v6536
  %6538 = vmatmul.f32.gmra.mxu0 %v6504
  %v6539 = vpop.f32.mrf.mxu0
  %v6540 = vadd.f32 0.0, %v6539
  %6541 = vmatmul.f32.gmra.mxu0 %v6506
  %v6542 = vpop.f32.mrf.mxu0
  %v6543 = vadd.f32 0.0, %v6542
  %6544 = vmatmul.f32.gmra.mxu0 %v6508
  %v6545 = vpop.f32.mrf.mxu0
  %6546 = vmatmul.f32.gmra.mxu0 %v6510
  %v6547 = vpop.f32.mrf.mxu0
  %6548 = vmatmul.f32.gmra.mxu0 %v6512
  %v6549 = vpop.f32.mrf.mxu0
  %6550 = vmatmul.f32.gmra.mxu0 %v6514
  %v6551 = vpop.f32.mrf.mxu0
  %6552 = vdwg.mxu0
  %v6553 = vmul.f32 %v6534, 7.773632e-05
  %v6554 = vmul.f32 %v6537, 7.773632e-05
  %v6555 = vmul.f32 %v6540, 7.773632e-05
  %v6556 = vmul.f32 %v6543, 7.773632e-05
  %v6557 = vmul.f32 %v6553, %v6553
  %v6558 = vmul.f32 %v6554, %v6554
  %v6559 = vmul.f32 %v6555, %v6555
  %v6560 = vmul.f32 %v6556, %v6556
  %6565 = vrot.lane.b32.xlu0 %v6557, 1
  %v6566 = vpop.permute.xlu0 %6565
  %6567 = vrot.lane.b32.xlu0 %v6558, 1
  %v6568 = vpop.permute.xlu0 %6567
  %6569 = vrot.lane.b32.xlu0 %v6559, 1
  %v6570 = vpop.permute.xlu0 %6569
  %6571 = vrot.lane.b32.xlu0 %v6560, 1
  %v6572 = vpop.permute.xlu0 %6571
  %v6577 = vsub.f32 %v6553, %v6566
  %v6578 = vsub.f32 %v6554, %v6568
  %v6579 = vsub.f32 %v6555, %v6570
  %v6580 = vsub.f32 %v6556, %v6572
  %v6581 = vmax.f32 %v6577, 0.0
  %v6582 = vmax.f32 %v6578, 0.0
  %v6583 = vmax.f32 %v6579, 0.0
  %v6584 = vmax.f32 %v6580, 0.0
  %v6585 = vrsqrt.pop %v6581
  %v6586 = vmul.f32 %v6585, %v6581
  %v6587 = vmul.f32 %v6586, %v6585
  %v6588 = vmul.f32 0.5, %v6587
  %v6589 = vsub.f32 1.5, %v6588
  %v6590 = vmul.f32 %v6585, %v6589
  %vm6591 = vweird.f32 %v6581
  %vm6592 = vweird.f32 %v6585
  %vm6593 = vmor %vm6591, %vm6592
  %v6594 = vsel %vm6593, %v6585, %v6590
  %v6595 = vrsqrt.pop %v6582
  %v6596 = vmul.f32 %v6595, %v6582
  %v6597 = vmul.f32 %v6596, %v6595
  %v6598 = vmul.f32 0.5, %v6597
  %v6599 = vsub.f32 1.5, %v6598
  %v6600 = vmul.f32 %v6595, %v6599
  %vm6601 = vweird.f32 %v6582
  %vm6602 = vweird.f32 %v6595
  %vm6603 = vmor %vm6601, %vm6602
  %v6604 = vsel %vm6603, %v6595, %v6600
  %v6605 = vrsqrt.pop %v6583
  %v6606 = vmul.f32 %v6605, %v6583
  %v6607 = vmul.f32 %v6606, %v6605
  %v6608 = vmul.f32 0.5, %v6607
  %v6609 = vsub.f32 1.5, %v6608
  %v6610 = vmul.f32 %v6605, %v6609
  %vm6611 = vweird.f32 %v6583
  %vm6612 = vweird.f32 %v6605
  %vm6613 = vmor %vm6611, %vm6612
  %v6614 = vsel %vm6613, %v6605, %v6610
  %v6615 = vrsqrt.pop %v6584
  %v6616 = vmul.f32 %v6615, %v6584
  %v6617 = vmul.f32 %v6616, %v6615
  %v6618 = vmul.f32 0.5, %v6617
  %v6619 = vsub.f32 1.5, %v6618
  %v6620 = vmul.f32 %v6615, %v6619
  %vm6621 = vweird.f32 %v6584
  %vm6622 = vweird.f32 %v6615
  %vm6623 = vmor %vm6621, %vm6622
  %v6624 = vsel %vm6623, %v6615, %v6620
  %6629 = vrot.lane.b32.xlu0 %v6594, 64
  %v6630 = vpop.permute.xlu0 %6629
  %6631 = vrot.lane.b32.xlu0 %v6604, 64
  %v6632 = vpop.permute.xlu0 %6631
  %6633 = vrot.lane.b32.xlu0 %v6614, 64
  %v6634 = vpop.permute.xlu0 %6633
  %6635 = vrot.lane.b32.xlu0 %v6624, 64
  %v6636 = vpop.permute.xlu0 %6635
  %v6641 = vmul.f32 %v56, %v6630
  %v6642 = vmul.f32 %v57, %v6632
  %v6643 = vmul.f32 %v58, %v6634
  %v6644 = vmul.f32 %v59, %v6636
  %6649 = vrot.lane.b32.xlu0 %v6641, 63
  %v6650 = vpop.permute.xlu0 %6649
  %6651 = vrot.lane.b32.xlu0 %v6642, 63
  %v6652 = vpop.permute.xlu0 %6651
  %6653 = vrot.lane.b32.xlu0 %v6643, 63
  %v6654 = vpop.permute.xlu0 %6653
  %6655 = vrot.lane.b32.xlu0 %v6644, 63
  %v6656 = vpop.permute.xlu0 %6655
  %v6661 = vmul.f32 %v6553, %v6650
  %v6662 = vmul.f32 %v6554, %v6652
  %v6663 = vmul.f32 %v6555, %v6654
  %v6664 = vmul.f32 %v6556, %v6656
  %6669 = vrot.lane.b32.xlu0 %v6661, 66
  %v6670 = vpop.permute.xlu0 %6669
  %6671 = vrot.lane.b32.xlu0 %v6662, 66
  %v6672 = vpop.permute.xlu0 %6671
  %6673 = vrot.lane.b32.xlu0 %v6663, 66
  %v6674 = vpop.permute.xlu0 %6673
  %6675 = vrot.lane.b32.xlu0 %v6664, 66
  %v6676 = vpop.permute.xlu0 %6675
  %v6681 = vsub.f32 %v56, %v6670
  %v6682 = vsub.f32 %v57, %v6672
  %v6683 = vsub.f32 %v58, %v6674
  %v6684 = vsub.f32 %v59, %v6676
  %v6685 = vld [vmem:[#allocation4] sm:$0xff]
  %v6686 = vld [vmem:[#allocation4 + $0x8] sm:$0xff]
  %v6687 = vld [vmem:[#allocation4 + $0x10] sm:$0xff]
  %v6688 = vld [vmem:[#allocation4 + $0x18] sm:$0xff]
  %v6689 = vld [vmem:[#allocation4 + $0x20] sm:$0xff]
  %v6690 = vld [vmem:[#allocation4 + $0x28] sm:$0xff]
  %v6691 = vld [vmem:[#allocation4 + $0x30] sm:$0xff]
  %v6692 = vld [vmem:[#allocation4 + $0x38] sm:$0xff]
  %v6693 = vld [vmem:[#allocation4 + $0x40] sm:$0xff]
  %v6694 = vld [vmem:[#allocation4 + $0x48] sm:$0xff]
  %v6695 = vld [vmem:[#allocation4 + $0x50] sm:$0xff]
  %v6696 = vld [vmem:[#allocation4 + $0x58] sm:$0xff]
  %v6697 = vld [vmem:[#allocation4 + $0x60] sm:$0xff]
  %v6698 = vld [vmem:[#allocation4 + $0x68] sm:$0xff]
  %v6699 = vld [vmem:[#allocation4 + $0x70] sm:$0xff]
  %v6700 = vld [vmem:[#allocation4 + $0x78] sm:$0xff]
  %v6701 = vld [vmem:[#allocation4 + $0x80] sm:$0xff]
  %v6702 = vld [vmem:[#allocation4 + $0x88] sm:$0xff]
  %v6703 = vld [vmem:[#allocation4 + $0x90] sm:$0xff]
  %v6704 = vld [vmem:[#allocation4 + $0x98] sm:$0xff]
  %v6705 = vld [vmem:[#allocation4 + $0xa0] sm:$0xff]
  %v6706 = vld [vmem:[#allocation4 + $0xa8] sm:$0xff]
  %v6707 = vld [vmem:[#allocation4 + $0xb0] sm:$0xff]
  %v6708 = vld [vmem:[#allocation4 + $0xb8] sm:$0xff]
  %v6709 = vld [vmem:[#allocation4 + $0xc0] sm:$0xff]
  %v6710 = vld [vmem:[#allocation4 + $0xc8] sm:$0xff]
  %v6711 = vld [vmem:[#allocation4 + $0xd0] sm:$0xff]
  %v6712 = vld [vmem:[#allocation4 + $0xd8] sm:$0xff]
  %6713 = vset.pattern.permute.xlu0 65
  %6714 = vperm.xlu0 %6713, %v6641
  %v6715 = vpop.permute.xlu0 %6714
  %6717 = vset.pattern.permute.xlu0 65
  %6718 = vperm.xlu0 %6717, %v6642
  %v6719 = vpop.permute.xlu0 %6718
  %6721 = vset.pattern.permute.xlu0 65
  %6722 = vperm.xlu0 %6721, %v6643
  %v6723 = vpop.permute.xlu0 %6722
  %6725 = vset.pattern.permute.xlu0 65
  %6726 = vperm.xlu0 %6725, %v6644
  %v6727 = vpop.permute.xlu0 %6726
  %v6729 = vmul.f32 %v6685, %v6715
  %v6730 = vmul.f32 %v6686, %v6715
  %v6731 = vmul.f32 %v6687, %v6715
  %v6732 = vmul.f32 %v6688, %v6715
  %v6733 = vmul.f32 %v6689, %v6715
  %v6734 = vmul.f32 %v6690, %v6715
  %v6735 = vmul.f32 %v6691, %v6715
  %v6736 = vmul.f32 %v6692, %v6719
  %v6737 = vmul.f32 %v6693, %v6719
  %v6738 = vmul.f32 %v6694, %v6719
  %v6739 = vmul.f32 %v6695, %v6719
  %v6740 = vmul.f32 %v6696, %v6719
  %v6741 = vmul.f32 %v6697, %v6719
  %v6742 = vmul.f32 %v6698, %v6719
  %v6743 = vmul.f32 %v6699, %v6723
  %v6744 = vmul.f32 %v6700, %v6723
  %v6745 = vmul.f32 %v6701, %v6723
  %v6746 = vmul.f32 %v6702, %v6723
  %v6747 = vmul.f32 %v6703, %v6723
  %v6748 = vmul.f32 %v6704, %v6723
  %v6749 = vmul.f32 %v6705, %v6723
  %v6750 = vmul.f32 %v6706, %v6727
  %v6751 = vmul.f32 %v6707, %v6727
  %v6752 = vmul.f32 %v6708, %v6727
  %v6753 = vmul.f32 %v6709, %v6727
  %v6754 = vmul.f32 %v6710, %v6727
  %v6755 = vmul.f32 %v6711, %v6727
  %v6756 = vmul.f32 %v6712, %v6727
  %6758 = vset.pattern.permute.xlu0 66
  %6759 = vperm.xlu0 %6758, %v6681
  %v6760 = vpop.permute.xlu0 %6759
  %6763 = vset.pattern.permute.xlu0 66
  %6764 = vperm.xlu0 %6763, %v6682
  %v6765 = vpop.permute.xlu0 %6764
  %6768 = vset.pattern.permute.xlu0 66
  %6769 = vperm.xlu0 %6768, %v6683
  %v6770 = vpop.permute.xlu0 %6769
  %6773 = vset.pattern.permute.xlu0 66
  %6774 = vperm.xlu0 %6773, %v6684
  %v6775 = vpop.permute.xlu0 %6774
  %v6777 = vadd.f32 %v6729, %v6760
  %v6778 = vadd.f32 %v6730, %v6760
  %v6779 = vadd.f32 %v6731, %v6760
  %v6780 = vadd.f32 %v6732, %v6760
  %v6781 = vadd.f32 %v6733, %v6760
  %v6782 = vadd.f32 %v6734, %v6760
  %v6783 = vadd.f32 %v6735, %v6760
  %v6784 = vadd.f32 %v6736, %v6765
  %v6785 = vadd.f32 %v6737, %v6765
  %v6786 = vadd.f32 %v6738, %v6765
  %v6787 = vadd.f32 %v6739, %v6765
  %v6788 = vadd.f32 %v6740, %v6765
  %v6789 = vadd.f32 %v6741, %v6765
  %v6790 = vadd.f32 %v6742, %v6765
  %v6791 = vadd.f32 %v6743, %v6770
  %v6792 = vadd.f32 %v6744, %v6770
  %v6793 = vadd.f32 %v6745, %v6770
  %v6794 = vadd.f32 %v6746, %v6770
  %v6795 = vadd.f32 %v6747, %v6770
  %v6796 = vadd.f32 %v6748, %v6770
  %v6797 = vadd.f32 %v6749, %v6770
  %v6798 = vadd.f32 %v6750, %v6775
  %v6799 = vadd.f32 %v6751, %v6775
  %v6800 = vadd.f32 %v6752, %v6775
  %v6801 = vadd.f32 %v6753, %v6775
  %v6802 = vadd.f32 %v6754, %v6775
  %v6803 = vadd.f32 %v6755, %v6775
  %v6804 = vadd.f32 %v6756, %v6775
  %v6805 = vmax.f32 %v6777, %v6791
  %v6806 = vmax.f32 %v6778, %v6792
  %v6807 = vmax.f32 %v6779, %v6793
  %v6808 = vmax.f32 %v6780, %v6794
  %v6809 = vmax.f32 %v6781, %v6795
  %v6810 = vmax.f32 %v6782, %v6796
  %v6811 = vmax.f32 %v6783, %v6797
  %v6812 = vmax.f32 %v6784, %v6798
  %v6813 = vmax.f32 %v6785, %v6799
  %v6814 = vmax.f32 %v6786, %v6800
  %v6815 = vmax.f32 %v6787, %v6801
  %v6816 = vmax.f32 %v6788, %v6802
  %v6817 = vmax.f32 %v6789, %v6803
  %v6818 = vmax.f32 %v6790, %v6804
  %6833 = vrot.lane.b32.xlu0 %v6805, 127
  %v6834 = vpop.permute.xlu0 %6833
  %6835 = vrot.lane.b32.xlu0 %v6806, 127
  %v6836 = vpop.permute.xlu0 %6835
  %6837 = vrot.lane.b32.xlu0 %v6807, 127
  %v6838 = vpop.permute.xlu0 %6837
  %6839 = vrot.lane.b32.xlu0 %v6808, 127
  %v6840 = vpop.permute.xlu0 %6839
  %6841 = vrot.lane.b32.xlu0 %v6809, 127
  %v6842 = vpop.permute.xlu0 %6841
  %6843 = vrot.lane.b32.xlu0 %v6810, 127
  %v6844 = vpop.permute.xlu0 %6843
  %6845 = vrot.lane.b32.xlu0 %v6811, 127
  %v6846 = vpop.permute.xlu0 %6845
  %6847 = vrot.lane.b32.xlu0 %v6812, 127
  %v6848 = vpop.permute.xlu0 %6847
  %6849 = vrot.lane.b32.xlu0 %v6813, 127
  %v6850 = vpop.permute.xlu0 %6849
  %6851 = vrot.lane.b32.xlu0 %v6814, 127
  %v6852 = vpop.permute.xlu0 %6851
  %6853 = vrot.lane.b32.xlu0 %v6815, 127
  %v6854 = vpop.permute.xlu0 %6853
  %6855 = vrot.lane.b32.xlu0 %v6816, 127
  %v6856 = vpop.permute.xlu0 %6855
  %6857 = vrot.lane.b32.xlu0 %v6817, 127
  %v6858 = vpop.permute.xlu0 %6857
  %6859 = vrot.lane.b32.xlu0 %v6818, 127
  %v6860 = vpop.permute.xlu0 %6859
  %v6861 = vsel %vm938, %v6834, %v6836
  %v6862 = vsel %vm938, %v6836, %v6838
  %v6863 = vsel %vm938, %v6838, %v6840
  %v6864 = vsel %vm938, %v6840, %v6842
  %v6865 = vsel %vm938, %v6842, %v6844
  %v6866 = vsel %vm938, %v6844, %v6846
  %v6867 = vsel %vm938, %v6848, %v6850
  %v6868 = vsel %vm938, %v6850, %v6852
  %v6869 = vsel %vm938, %v6852, %v6854
  %v6870 = vsel %vm938, %v6854, %v6856
  %v6871 = vsel %vm938, %v6856, %v6858
  %v6872 = vsel %vm938, %v6858, %v6860
  %v6887 = vmax.f32 %v6805, %v6861
  %v6888 = vmax.f32 %v6806, %v6862
  %v6889 = vmax.f32 %v6807, %v6863
  %v6890 = vmax.f32 %v6808, %v6864
  %v6891 = vmax.f32 %v6809, %v6865
  %v6892 = vmax.f32 %v6810, %v6866
  %v6893 = vmax.f32 %v6811, %v6846
  %v6894 = vmax.f32 %v6812, %v6867
  %v6895 = vmax.f32 %v6813, %v6868
  %v6896 = vmax.f32 %v6814, %v6869
  %v6897 = vmax.f32 %v6815, %v6870
  %v6898 = vmax.f32 %v6816, %v6871
  %v6899 = vmax.f32 %v6817, %v6872
  %v6900 = vmax.f32 %v6818, %v6860
  %v6901 = vld [vmem:[%s3] sm:$0xff]
  %v6902 = vld [vmem:[%s3 + $0x8] sm:$0xff]
  %v6903 = vld [vmem:[%s3 + $0x10] sm:$0xff]
  %v6904 = vld [vmem:[%s3 + $0x18] sm:$0xff]
  %v6905 = vld [vmem:[%s3 + $0x20] sm:$0xff]
  %v6906 = vld [vmem:[%s3 + $0x28] sm:$0xff]
  %v6907 = vld [vmem:[%s3 + $0x30] sm:$0xff]
  %v6908 = vld [vmem:[%s3 + $0x38] sm:$0xff]
  %v6909 = vld [vmem:[%s3 + $0x40] sm:$0xff]
  %v6910 = vld [vmem:[%s3 + $0x48] sm:$0xff]
  %v6911 = vld [vmem:[%s3 + $0x50] sm:$0xff]
  %v6912 = vld [vmem:[%s3 + $0x58] sm:$0xff]
  %v6913 = vld [vmem:[%s3 + $0x60] sm:$0xff]
  %v6914 = vld [vmem:[%s3 + $0x68] sm:$0xff]
  %v6915 = vld [vmem:[%s3 + $0x70] sm:$0xff]
  %v6916 = vld [vmem:[%s3 + $0x78] sm:$0xff]
  %v6917 = vld [vmem:[%s3 + $0x80] sm:$0xff]
  %v6918 = vld [vmem:[%s3 + $0x88] sm:$0xff]
  %v6919 = vld [vmem:[%s3 + $0x90] sm:$0xff]
  %v6920 = vld [vmem:[%s3 + $0x98] sm:$0xff]
  %v6921 = vld [vmem:[%s3 + $0xa0] sm:$0xff]
  %v6922 = vld [vmem:[%s3 + $0xa8] sm:$0xff]
  %v6923 = vld [vmem:[%s3 + $0xb0] sm:$0xff]
  %v6924 = vld [vmem:[%s3 + $0xb8] sm:$0xff]
  %v6925 = vld [vmem:[%s3 + $0xc0] sm:$0xff]
  %v6926 = vld [vmem:[%s3 + $0xc8] sm:$0xff]
  %v6927 = vld [vmem:[%s3 + $0xd0] sm:$0xff]
  %v6928 = vld [vmem:[%s3 + $0xd8] sm:$0xff]
  %v6929 = vld [vmem:[%s3 + $0xe0] sm:$0xff]
  %v6930 = vld [vmem:[%s3 + $0xe8] sm:$0xff]
  %v6931 = vld [vmem:[%s3 + $0xf0] sm:$0xff]
  %v6932 = vld [vmem:[%s3 + $0xf8] sm:$0xff]
  %v6933 = vld [vmem:[%s3 + $0x100] sm:$0xff]
  %v6934 = vld [vmem:[%s3 + $0x108] sm:$0xff]
  %v6935 = vld [vmem:[%s3 + $0x110] sm:$0xff]
  %v6936 = vld [vmem:[%s3 + $0x118] sm:$0xff]
  %v6937 = vld [vmem:[%s3 + $0x120] sm:$0xff]
  %v6938 = vld [vmem:[%s3 + $0x128] sm:$0xff]
  %v6939 = vld [vmem:[%s3 + $0x130] sm:$0xff]
  %v6940 = vld [vmem:[%s3 + $0x138] sm:$0xff]
  %v6941 = vld [vmem:[%s3 + $0x140] sm:$0xff]
  %v6942 = vld [vmem:[%s3 + $0x148] sm:$0xff]
  %v6943 = vld [vmem:[%s3 + $0x150] sm:$0xff]
  %v6944 = vld [vmem:[%s3 + $0x158] sm:$0xff]
  %v6945 = vld [vmem:[%s3 + $0x160] sm:$0xff]
  %v6946 = vld [vmem:[%s3 + $0x168] sm:$0xff]
  %v6947 = vld [vmem:[%s3 + $0x170] sm:$0xff]
  %v6948 = vld [vmem:[%s3 + $0x178] sm:$0xff]
  %v6949 = vld [vmem:[%s3 + $0x180] sm:$0xff]
  %v6950 = vld [vmem:[%s3 + $0x188] sm:$0xff]
  %v6951 = vld [vmem:[%s3 + $0x190] sm:$0xff]
  %v6952 = vld [vmem:[%s3 + $0x198] sm:$0xff]
  %v6953 = vld [vmem:[%s3 + $0x1a0] sm:$0xff]
  %v6954 = vld [vmem:[%s3 + $0x1a8] sm:$0xff]
  %v6955 = vld [vmem:[%s3 + $0x1b0] sm:$0xff]
  %v6956 = vld [vmem:[%s3 + $0x1b8] sm:$0xff]
  %v6957 = vld [vmem:[%s3 + $0x1c0] sm:$0xff]
  %v6958 = vld [vmem:[%s3 + $0x1c8] sm:$0xff]
  %v6959 = vld [vmem:[%s3 + $0x1d0] sm:$0xff]
  %v6960 = vld [vmem:[%s3 + $0x1d8] sm:$0xff]
  %v6961 = vld [vmem:[%s3 + $0x1e0] sm:$0xff]
  %v6962 = vld [vmem:[%s3 + $0x1e8] sm:$0xff]
  %v6963 = vld [vmem:[%s3 + $0x1f0] sm:$0xff]
  %v6964 = vld [vmem:[%s3 + $0x1f8] sm:$0xff]
  %v6965 = vld [vmem:[%s3 + $0x200] sm:$0xff]
  %v6966 = vld [vmem:[%s3 + $0x208] sm:$0xff]
  %v6967 = vld [vmem:[%s3 + $0x210] sm:$0xff]
  %v6968 = vld [vmem:[%s3 + $0x218] sm:$0xff]
  %v6969 = vld [vmem:[%s3 + $0x220] sm:$0xff]
  %v6970 = vld [vmem:[%s3 + $0x228] sm:$0xff]
  %v6971 = vld [vmem:[%s3 + $0x230] sm:$0xff]
  %v6972 = vld [vmem:[%s3 + $0x238] sm:$0xff]
  %v6973 = vld [vmem:[%s3 + $0x240] sm:$0xff]
  %v6974 = vld [vmem:[%s3 + $0x248] sm:$0xff]
  %v6975 = vld [vmem:[%s3 + $0x250] sm:$0xff]
  %v6976 = vld [vmem:[%s3 + $0x258] sm:$0xff]
  %v6977 = vld [vmem:[%s3 + $0x260] sm:$0xff]
  %v6978 = vld [vmem:[%s3 + $0x268] sm:$0xff]
  %v6979 = vld [vmem:[%s3 + $0x270] sm:$0xff]
  %v6980 = vld [vmem:[%s3 + $0x278] sm:$0xff]
  %v6981 = vld [vmem:[%s3 + $0x280] sm:$0xff]
  %v6982 = vld [vmem:[%s3 + $0x288] sm:$0xff]
  %v6983 = vld [vmem:[%s3 + $0x290] sm:$0xff]
  %v6984 = vld [vmem:[%s3 + $0x298] sm:$0xff]
  %v6985 = vld [vmem:[%s3 + $0x2a0] sm:$0xff]
  %v6986 = vld [vmem:[%s3 + $0x2a8] sm:$0xff]
  %v6987 = vld [vmem:[%s3 + $0x2b0] sm:$0xff]
  %v6988 = vld [vmem:[%s3 + $0x2b8] sm:$0xff]
  %v6989 = vld [vmem:[%s3 + $0x2c0] sm:$0xff]
  %v6990 = vld [vmem:[%s3 + $0x2c8] sm:$0xff]
  %v6991 = vld [vmem:[%s3 + $0x2d0] sm:$0xff]
  %v6992 = vld [vmem:[%s3 + $0x2d8] sm:$0xff]
  %v6993 = vld [vmem:[%s3 + $0x2e0] sm:$0xff]
  %v6994 = vld [vmem:[%s3 + $0x2e8] sm:$0xff]
  %v6995 = vld [vmem:[%s3 + $0x2f0] sm:$0xff]
  %v6996 = vld [vmem:[%s3 + $0x2f8] sm:$0xff]
  %v6997 = vld [vmem:[%s3 + $0x300] sm:$0xff]
  %v6998 = vld [vmem:[%s3 + $0x308] sm:$0xff]
  %v6999 = vld [vmem:[%s3 + $0x310] sm:$0xff]
  %v7000 = vld [vmem:[%s3 + $0x318] sm:$0xff]
  %v7001 = vld [vmem:[%s3 + $0x320] sm:$0xff]
  %v7002 = vld [vmem:[%s3 + $0x328] sm:$0xff]
  %v7003 = vld [vmem:[%s3 + $0x330] sm:$0xff]
  %v7004 = vld [vmem:[%s3 + $0x338] sm:$0xff]
  %v7005 = vld [vmem:[%s3 + $0x340] sm:$0xff]
  %v7006 = vld [vmem:[%s3 + $0x348] sm:$0xff]
  %v7007 = vld [vmem:[%s3 + $0x350] sm:$0xff]
  %v7008 = vld [vmem:[%s3 + $0x358] sm:$0xff]
  %v7009 = vld [vmem:[%s3 + $0x360] sm:$0xff]
  %v7010 = vld [vmem:[%s3 + $0x368] sm:$0xff]
  %v7011 = vld [vmem:[%s3 + $0x370] sm:$0xff]
  %v7012 = vld [vmem:[%s3 + $0x378] sm:$0xff]
  %v7013 = vld [vmem:[%s3 + $0x380] sm:$0xff]
  %v7014 = vld [vmem:[%s3 + $0x388] sm:$0xff]
  %v7015 = vld [vmem:[%s3 + $0x390] sm:$0xff]
  %v7016 = vld [vmem:[%s3 + $0x398] sm:$0xff]
  %v7017 = vld [vmem:[%s3 + $0x3a0] sm:$0xff]
  %v7018 = vld [vmem:[%s3 + $0x3a8] sm:$0xff]
  %v7019 = vld [vmem:[%s3 + $0x3b0] sm:$0xff]
  %v7020 = vld [vmem:[%s3 + $0x3b8] sm:$0xff]
  %v7021 = vld [vmem:[%s3 + $0x3c0] sm:$0xff]
  %v7022 = vld [vmem:[%s3 + $0x3c8] sm:$0xff]
  %v7023 = vld [vmem:[%s3 + $0x3d0] sm:$0xff]
  %v7024 = vld [vmem:[%s3 + $0x3d8] sm:$0xff]
  %v7025 = vld [vmem:[%s3 + $0x3e0] sm:$0xff]
  %v7026 = vld [vmem:[%s3 + $0x3e8] sm:$0xff]
  %v7027 = vld [vmem:[%s3 + $0x3f0] sm:$0xff]
  %v7028 = vld [vmem:[%s3 + $0x3f8] sm:$0xff]
  %v7029 = vld [vmem:[%s3 + $0x400] sm:$0xff]
  %v7030 = vld [vmem:[%s3 + $0x408] sm:$0xff]
  %v7031 = vld [vmem:[%s3 + $0x410] sm:$0xff]
  %v7032 = vld [vmem:[%s3 + $0x418] sm:$0xff]
  %v7033 = vld [vmem:[%s3 + $0x420] sm:$0xff]
  %v7034 = vld [vmem:[%s3 + $0x428] sm:$0xff]
  %v7035 = vld [vmem:[%s3 + $0x430] sm:$0xff]
  %v7036 = vld [vmem:[%s3 + $0x438] sm:$0xff]
  %v7037 = vld [vmem:[%s3 + $0x440] sm:$0xff]
  %v7038 = vld [vmem:[%s3 + $0x448] sm:$0xff]
  %v7039 = vld [vmem:[%s3 + $0x450] sm:$0xff]
  %v7040 = vld [vmem:[%s3 + $0x458] sm:$0xff]
  %v7041 = vld [vmem:[%s3 + $0x460] sm:$0xff]
  %v7042 = vld [vmem:[%s3 + $0x468] sm:$0xff]
  %v7043 = vld [vmem:[%s3 + $0x470] sm:$0xff]
  %v7044 = vld [vmem:[%s3 + $0x478] sm:$0xff]
  %v7045 = vld [vmem:[%s3 + $0x480] sm:$0xff]
  %v7046 = vld [vmem:[%s3 + $0x488] sm:$0xff]
  %v7047 = vld [vmem:[%s3 + $0x490] sm:$0xff]
  %v7048 = vld [vmem:[%s3 + $0x498] sm:$0xff]
  %v7049 = vld [vmem:[%s3 + $0x4a0] sm:$0xff]
  %v7050 = vld [vmem:[%s3 + $0x4a8] sm:$0xff]
  %v7051 = vld [vmem:[%s3 + $0x4b0] sm:$0xff]
  %v7052 = vld [vmem:[%s3 + $0x4b8] sm:$0xff]
  %v7053 = vld [vmem:[%s3 + $0x4c0] sm:$0xff]
  %v7054 = vld [vmem:[%s3 + $0x4c8] sm:$0xff]
  %v7055 = vld [vmem:[%s3 + $0x4d0] sm:$0xff]
  %v7056 = vld [vmem:[%s3 + $0x4d8] sm:$0xff]
  %v7057 = vld [vmem:[%s3 + $0x4e0] sm:$0xff]
  %v7058 = vld [vmem:[%s3 + $0x4e8] sm:$0xff]
  %v7059 = vld [vmem:[%s3 + $0x4f0] sm:$0xff]
  %v7060 = vld [vmem:[%s3 + $0x4f8] sm:$0xff]
  %v7061 = vld [vmem:[%s3 + $0x500] sm:$0xff]
  %v7062 = vld [vmem:[%s3 + $0x508] sm:$0xff]
  %v7063 = vld [vmem:[%s3 + $0x510] sm:$0xff]
  %v7064 = vld [vmem:[%s3 + $0x518] sm:$0xff]
  %v7065 = vld [vmem:[%s3 + $0x520] sm:$0xff]
  %v7066 = vld [vmem:[%s3 + $0x528] sm:$0xff]
  %v7067 = vld [vmem:[%s3 + $0x530] sm:$0xff]
  %v7068 = vld [vmem:[%s3 + $0x538] sm:$0xff]
  %v7069 = vld [vmem:[%s3 + $0x540] sm:$0xff]
  %v7070 = vld [vmem:[%s3 + $0x548] sm:$0xff]
  %v7071 = vld [vmem:[%s3 + $0x550] sm:$0xff]
  %v7072 = vld [vmem:[%s3 + $0x558] sm:$0xff]
  %v7073 = vld [vmem:[%s3 + $0x560] sm:$0xff]
  %v7074 = vld [vmem:[%s3 + $0x568] sm:$0xff]
  %v7075 = vld [vmem:[%s3 + $0x570] sm:$0xff]
  %v7076 = vld [vmem:[%s3 + $0x578] sm:$0xff]
  %v7077 = vld [vmem:[%s3 + $0x580] sm:$0xff]
  %v7078 = vld [vmem:[%s3 + $0x588] sm:$0xff]
  %v7079 = vld [vmem:[%s3 + $0x590] sm:$0xff]
  %v7080 = vld [vmem:[%s3 + $0x598] sm:$0xff]
  %v7081 = vld [vmem:[%s3 + $0x5a0] sm:$0xff]
  %v7082 = vld [vmem:[%s3 + $0x5a8] sm:$0xff]
  %v7083 = vld [vmem:[%s3 + $0x5b0] sm:$0xff]
  %v7084 = vld [vmem:[%s3 + $0x5b8] sm:$0xff]
  %v7085 = vld [vmem:[%s3 + $0x5c0] sm:$0xff]
  %v7086 = vld [vmem:[%s3 + $0x5c8] sm:$0xff]
  %v7087 = vld [vmem:[%s3 + $0x5d0] sm:$0xff]
  %v7088 = vld [vmem:[%s3 + $0x5d8] sm:$0xff]
  %v7089 = vld [vmem:[%s3 + $0x5e0] sm:$0xff]
  %v7090 = vld [vmem:[%s3 + $0x5e8] sm:$0xff]
  %v7091 = vld [vmem:[%s3 + $0x5f0] sm:$0xff]
  %v7092 = vld [vmem:[%s3 + $0x5f8] sm:$0xff]
  %v7093 = vld [vmem:[%s3 + $0x600] sm:$0xff]
  %v7094 = vld [vmem:[%s3 + $0x608] sm:$0xff]
  %v7095 = vld [vmem:[%s3 + $0x610] sm:$0xff]
  %v7096 = vld [vmem:[%s3 + $0x618] sm:$0xff]
  %v7097 = vld [vmem:[%s3 + $0x620] sm:$0xff]
  %v7098 = vld [vmem:[%s3 + $0x628] sm:$0xff]
  %v7099 = vld [vmem:[%s3 + $0x630] sm:$0xff]
  %v7100 = vld [vmem:[%s3 + $0x638] sm:$0xff]
  %v7101 = vld [vmem:[%s3 + $0x640] sm:$0x7]
  %v7102 = vld [vmem:[%s3 + $0x648] sm:$0x7]
  %vm7103 = vcmask 285696
  %v7105 = vsel %vm7103, %v6893, 0
  %v7108 = vsel %vm7103, %v6900, 0
  %vm7110 = vcmask 1042432
  %v7112 = vsel %vm7110, %v7101, 0
  %v7115 = vsel %vm7110, %v7102, 0
  %7117 = vmatpush.msra.mxu0 %v6931
  %7118 = vmatpush.msra.mxu0 %v6929
  %7119 = vmatpush.msra.mxu0 %v6927
  %7120 = vmatpush.msra.mxu0 %v6925
  %7121 = vmatpush.msra.mxu0 %v6923
  %7122 = vmatpush.msra.mxu0 %v6921
  %7123 = vmatpush.msra.mxu0 %v6919
  %7124 = vmatpush.msra.mxu0 %v6917
  %7125 = vmatpush.msra.mxu0 %v6915
  %7126 = vmatpush.msra.mxu0 %v6913
  %7127 = vmatpush.msra.mxu0 %v6911
  %7128 = vmatpush.msra.mxu0 %v6909
  %7129 = vmatpush.msra.mxu0 %v6907
  %7130 = vmatpush.msra.mxu0 %v6905
  %7131 = vmatpush.msra.mxu0 %v6903
  %7132 = vmatpush.msra.mxu0 %v6901
  %7133 = vmatmul.f32.gmra.mxu0 %v6887
  %v7134 = vpop.f32.mrf.mxu0
  %v7135 = vadd.f32 0.0, %v7134
  %7136 = vmatmul.f32.gmra.mxu0 %v6894
  %v7137 = vpop.f32.mrf.mxu0
  %v7138 = vadd.f32 0.0, %v7137
  %7139 = vdwg.mxu0
  %7140 = vmatpush.msra.mxu0 %v6963
  %7141 = vmatpush.msra.mxu0 %v6961
  %7142 = vmatpush.msra.mxu0 %v6959
  %7143 = vmatpush.msra.mxu0 %v6957
  %7144 = vmatpush.msra.mxu0 %v6955
  %7145 = vmatpush.msra.mxu0 %v6953
  %7146 = vmatpush.msra.mxu0 %v6951
  %7147 = vmatpush.msra.mxu0 %v6949
  %7148 = vmatpush.msra.mxu0 %v6947
  %7149 = vmatpush.msra.mxu0 %v6945
  %7150 = vmatpush.msra.mxu0 %v6943
  %7151 = vmatpush.msra.mxu0 %v6941
  %7152 = vmatpush.msra.mxu0 %v6939
  %7153 = vmatpush.msra.mxu0 %v6937
  %7154 = vmatpush.msra.mxu0 %v6935
  %7155 = vmatpush.msra.mxu0 %v6933
  %7156 = vmatmul.f32.gmra.mxu0 %v6888
  %v7157 = vpop.f32.mrf.mxu0
  %v7158 = vadd.f32 %v7135, %v7157
  %7159 = vmatmul.f32.gmra.mxu0 %v6895
  %v7160 = vpop.f32.mrf.mxu0
  %v7161 = vadd.f32 %v7138, %v7160
  %7162 = vdwg.mxu0
  %7163 = vmatpush.msra.mxu0 %v6995
  %7164 = vmatpush.msra.mxu0 %v6993
  %7165 = vmatpush.msra.mxu0 %v6991
  %7166 = vmatpush.msra.mxu0 %v6989
  %7167 = vmatpush.msra.mxu0 %v6987
  %7168 = vmatpush.msra.mxu0 %v6985
  %7169 = vmatpush.msra.mxu0 %v6983
  %7170 = vmatpush.msra.mxu0 %v6981
  %7171 = vmatpush.msra.mxu0 %v6979
  %7172 = vmatpush.msra.mxu0 %v6977
  %7173 = vmatpush.msra.mxu0 %v6975
  %7174 = vmatpush.msra.mxu0 %v6973
  %7175 = vmatpush.msra.mxu0 %v6971
  %7176 = vmatpush.msra.mxu0 %v6969
  %7177 = vmatpush.msra.mxu0 %v6967
  %7178 = vmatpush.msra.mxu0 %v6965
  %7179 = vmatmul.f32.gmra.mxu0 %v6889
  %v7180 = vpop.f32.mrf.mxu0
  %v7181 = vadd.f32 %v7158, %v7180
  %7182 = vmatmul.f32.gmra.mxu0 %v6896
  %v7183 = vpop.f32.mrf.mxu0
  %v7184 = vadd.f32 %v7161, %v7183
  %7185 = vdwg.mxu0
  %7186 = vmatpush.msra.mxu0 %v7027
  %7187 = vmatpush.msra.mxu0 %v7025
  %7188 = vmatpush.msra.mxu0 %v7023
  %7189 = vmatpush.msra.mxu0 %v7021
  %7190 = vmatpush.msra.mxu0 %v7019
  %7191 = vmatpush.msra.mxu0 %v7017
  %7192 = vmatpush.msra.mxu0 %v7015
  %7193 = vmatpush.msra.mxu0 %v7013
  %7194 = vmatpush.msra.mxu0 %v7011
  %7195 = vmatpush.msra.mxu0 %v7009
  %7196 = vmatpush.msra.mxu0 %v7007
  %7197 = vmatpush.msra.mxu0 %v7005
  %7198 = vmatpush.msra.mxu0 %v7003
  %7199 = vmatpush.msra.mxu0 %v7001
  %7200 = vmatpush.msra.mxu0 %v6999
  %7201 = vmatpush.msra.mxu0 %v6997
  %7202 = vmatmul.f32.gmra.mxu0 %v6890
  %v7203 = vpop.f32.mrf.mxu0
  %v7204 = vadd.f32 %v7181, %v7203
  %7205 = vmatmul.f32.gmra.mxu0 %v6897
  %v7206 = vpop.f32.mrf.mxu0
  %v7207 = vadd.f32 %v7184, %v7206
  %7208 = vdwg.mxu0
  %7209 = vmatpush.msra.mxu0 %v7059
  %7210 = vmatpush.msra.mxu0 %v7057
  %7211 = vmatpush.msra.mxu0 %v7055
  %7212 = vmatpush.msra.mxu0 %v7053
  %7213 = vmatpush.msra.mxu0 %v7051
  %7214 = vmatpush.msra.mxu0 %v7049
  %7215 = vmatpush.msra.mxu0 %v7047
  %7216 = vmatpush.msra.mxu0 %v7045
  %7217 = vmatpush.msra.mxu0 %v7043
  %7218 = vmatpush.msra.mxu0 %v7041
  %7219 = vmatpush.msra.mxu0 %v7039
  %7220 = vmatpush.msra.mxu0 %v7037
  %7221 = vmatpush.msra.mxu0 %v7035
  %7222 = vmatpush.msra.mxu0 %v7033
  %7223 = vmatpush.msra.mxu0 %v7031
  %7224 = vmatpush.msra.mxu0 %v7029
  %7225 = vmatmul.f32.gmra.mxu0 %v6891
  %v7226 = vpop.f32.mrf.mxu0
  %v7227 = vadd.f32 %v7204, %v7226
  %7228 = vmatmul.f32.gmra.mxu0 %v6898
  %v7229 = vpop.f32.mrf.mxu0
  %v7230 = vadd.f32 %v7207, %v7229
  %7231 = vdwg.mxu0
  %7232 = vmatpush.msra.mxu0 %v7091
  %7233 = vmatpush.msra.mxu0 %v7089
  %7234 = vmatpush.msra.mxu0 %v7087
  %7235 = vmatpush.msra.mxu0 %v7085
  %7236 = vmatpush.msra.mxu0 %v7083
  %7237 = vmatpush.msra.mxu0 %v7081
  %7238 = vmatpush.msra.mxu0 %v7079
  %7239 = vmatpush.msra.mxu0 %v7077
  %7240 = vmatpush.msra.mxu0 %v7075
  %7241 = vmatpush.msra.mxu0 %v7073
  %7242 = vmatpush.msra.mxu0 %v7071
  %7243 = vmatpush.msra.mxu0 %v7069
  %7244 = vmatpush.msra.mxu0 %v7067
  %7245 = vmatpush.msra.mxu0 %v7065
  %7246 = vmatpush.msra.mxu0 %v7063
  %7247 = vmatpush.msra.mxu0 %v7061
  %7248 = vmatmul.f32.gmra.mxu0 %v6892
  %v7249 = vpop.f32.mrf.mxu0
  %v7250 = vadd.f32 %v7227, %v7249
  %7251 = vmatmul.f32.gmra.mxu0 %v6899
  %v7252 = vpop.f32.mrf.mxu0
  %v7253 = vadd.f32 %v7230, %v7252
  %7254 = vdwg.mxu0
  %7255 = vmatpush.msra.mxu0 0.0
  %7256 = vmatpush.msra.mxu0 0.0
  %7257 = vmatpush.msra.mxu0 0.0
  %7258 = vmatpush.msra.mxu0 0.0
  %7259 = vmatpush.msra.mxu0 0.0
  %7260 = vmatpush.msra.mxu0 0.0
  %7261 = vmatpush.msra.mxu0 0.0
  %7262 = vmatpush.msra.mxu0 0.0
  %7263 = vmatpush.msra.mxu0 0.0
  %7264 = vmatpush.msra.mxu0 0.0
  %7265 = vmatpush.msra.mxu0 0.0
  %7266 = vmatpush.msra.mxu0 %v7112
  %7267 = vmatpush.msra.mxu0 %v7099
  %7268 = vmatpush.msra.mxu0 %v7097
  %7269 = vmatpush.msra.mxu0 %v7095
  %7270 = vmatpush.msra.mxu0 %v7093
  %7271 = vmatmul.f32.gmra.mxu0 %v7105
  %v7272 = vpop.f32.mrf.mxu0
  %v7273 = vadd.f32 %v7250, %v7272
  %7274 = vmatmul.f32.gmra.mxu0 %v7108
  %v7275 = vpop.f32.mrf.mxu0
  %v7276 = vadd.f32 %v7253, %v7275
  %7277 = vdwg.mxu0
  %7278 = vmatpush.msra.mxu0 %v6932
  %7279 = vmatpush.msra.mxu0 %v6930
  %7280 = vmatpush.msra.mxu0 %v6928
  %7281 = vmatpush.msra.mxu0 %v6926
  %7282 = vmatpush.msra.mxu0 %v6924
  %7283 = vmatpush.msra.mxu0 %v6922
  %7284 = vmatpush.msra.mxu0 %v6920
  %7285 = vmatpush.msra.mxu0 %v6918
  %7286 = vmatpush.msra.mxu0 %v6916
  %7287 = vmatpush.msra.mxu0 %v6914
  %7288 = vmatpush.msra.mxu0 %v6912
  %7289 = vmatpush.msra.mxu0 %v6910
  %7290 = vmatpush.msra.mxu0 %v6908
  %7291 = vmatpush.msra.mxu0 %v6906
  %7292 = vmatpush.msra.mxu0 %v6904
  %7293 = vmatpush.msra.mxu0 %v6902
  %7294 = vmatmul.f32.gmra.mxu0 %v6887
  %v7295 = vpop.f32.mrf.mxu0
  %v7296 = vadd.f32 0.0, %v7295
  %7297 = vmatmul.f32.gmra.mxu0 %v6894
  %v7298 = vpop.f32.mrf.mxu0
  %v7299 = vadd.f32 0.0, %v7298
  %7300 = vdwg.mxu0
  %7301 = vmatpush.msra.mxu0 %v6964
  %7302 = vmatpush.msra.mxu0 %v6962
  %7303 = vmatpush.msra.mxu0 %v6960
  %7304 = vmatpush.msra.mxu0 %v6958
  %7305 = vmatpush.msra.mxu0 %v6956
  %7306 = vmatpush.msra.mxu0 %v6954
  %7307 = vmatpush.msra.mxu0 %v6952
  %7308 = vmatpush.msra.mxu0 %v6950
  %7309 = vmatpush.msra.mxu0 %v6948
  %7310 = vmatpush.msra.mxu0 %v6946
  %7311 = vmatpush.msra.mxu0 %v6944
  %7312 = vmatpush.msra.mxu0 %v6942
  %7313 = vmatpush.msra.mxu0 %v6940
  %7314 = vmatpush.msra.mxu0 %v6938
  %7315 = vmatpush.msra.mxu0 %v6936
  %7316 = vmatpush.msra.mxu0 %v6934
  %7317 = vmatmul.f32.gmra.mxu0 %v6888
  %v7318 = vpop.f32.mrf.mxu0
  %v7319 = vadd.f32 %v7296, %v7318
  %7320 = vmatmul.f32.gmra.mxu0 %v6895
  %v7321 = vpop.f32.mrf.mxu0
  %v7322 = vadd.f32 %v7299, %v7321
  %7323 = vdwg.mxu0
  %7324 = vmatpush.msra.mxu0 %v6996
  %7325 = vmatpush.msra.mxu0 %v6994
  %7326 = vmatpush.msra.mxu0 %v6992
  %7327 = vmatpush.msra.mxu0 %v6990
  %7328 = vmatpush.msra.mxu0 %v6988
  %7329 = vmatpush.msra.mxu0 %v6986
  %7330 = vmatpush.msra.mxu0 %v6984
  %7331 = vmatpush.msra.mxu0 %v6982
  %7332 = vmatpush.msra.mxu0 %v6980
  %7333 = vmatpush.msra.mxu0 %v6978
  %7334 = vmatpush.msra.mxu0 %v6976
  %7335 = vmatpush.msra.mxu0 %v6974
  %7336 = vmatpush.msra.mxu0 %v6972
  %7337 = vmatpush.msra.mxu0 %v6970
  %7338 = vmatpush.msra.mxu0 %v6968
  %7339 = vmatpush.msra.mxu0 %v6966
  %7340 = vmatmul.f32.gmra.mxu0 %v6889
  %v7341 = vpop.f32.mrf.mxu0
  %v7342 = vadd.f32 %v7319, %v7341
  %7343 = vmatmul.f32.gmra.mxu0 %v6896
  %v7344 = vpop.f32.mrf.mxu0
  %v7345 = vadd.f32 %v7322, %v7344
  %7346 = vdwg.mxu0
  %7347 = vmatpush.msra.mxu0 %v7028
  %7348 = vmatpush.msra.mxu0 %v7026
  %7349 = vmatpush.msra.mxu0 %v7024
  %7350 = vmatpush.msra.mxu0 %v7022
  %7351 = vmatpush.msra.mxu0 %v7020
  %7352 = vmatpush.msra.mxu0 %v7018
  %7353 = vmatpush.msra.mxu0 %v7016
  %7354 = vmatpush.msra.mxu0 %v7014
  %7355 = vmatpush.msra.mxu0 %v7012
  %7356 = vmatpush.msra.mxu0 %v7010
  %7357 = vmatpush.msra.mxu0 %v7008
  %7358 = vmatpush.msra.mxu0 %v7006
  %7359 = vmatpush.msra.mxu0 %v7004
  %7360 = vmatpush.msra.mxu0 %v7002
  %7361 = vmatpush.msra.mxu0 %v7000
  %7362 = vmatpush.msra.mxu0 %v6998
  %7363 = vmatmul.f32.gmra.mxu0 %v6890
  %v7364 = vpop.f32.mrf.mxu0
  %v7365 = vadd.f32 %v7342, %v7364
  %7366 = vmatmul.f32.gmra.mxu0 %v6897
  %v7367 = vpop.f32.mrf.mxu0
  %v7368 = vadd.f32 %v7345, %v7367
  %7369 = vdwg.mxu0
  %7370 = vmatpush.msra.mxu0 %v7060
  %7371 = vmatpush.msra.mxu0 %v7058
  %7372 = vmatpush.msra.mxu0 %v7056
  %7373 = vmatpush.msra.mxu0 %v7054
  %7374 = vmatpush.msra.mxu0 %v7052
  %7375 = vmatpush.msra.mxu0 %v7050
  %7376 = vmatpush.msra.mxu0 %v7048
  %7377 = vmatpush.msra.mxu0 %v7046
  %7378 = vmatpush.msra.mxu0 %v7044
  %7379 = vmatpush.msra.mxu0 %v7042
  %7380 = vmatpush.msra.mxu0 %v7040
  %7381 = vmatpush.msra.mxu0 %v7038
  %7382 = vmatpush.msra.mxu0 %v7036
  %7383 = vmatpush.msra.mxu0 %v7034
  %7384 = vmatpush.msra.mxu0 %v7032
  %7385 = vmatpush.msra.mxu0 %v7030
  %7386 = vmatmul.f32.gmra.mxu0 %v6891
  %v7387 = vpop.f32.mrf.mxu0
  %v7388 = vadd.f32 %v7365, %v7387
  %7389 = vmatmul.f32.gmra.mxu0 %v6898
  %v7390 = vpop.f32.mrf.mxu0
  %v7391 = vadd.f32 %v7368, %v7390
  %7392 = vdwg.mxu0
  %7393 = vmatpush.msra.mxu0 %v7092
  %7394 = vmatpush.msra.mxu0 %v7090
  %7395 = vmatpush.msra.mxu0 %v7088
  %7396 = vmatpush.msra.mxu0 %v7086
  %7397 = vmatpush.msra.mxu0 %v7084
  %7398 = vmatpush.msra.mxu0 %v7082
  %7399 = vmatpush.msra.mxu0 %v7080
  %7400 = vmatpush.msra.mxu0 %v7078
  %7401 = vmatpush.msra.mxu0 %v7076
  %7402 = vmatpush.msra.mxu0 %v7074
  %7403 = vmatpush.msra.mxu0 %v7072
  %7404 = vmatpush.msra.mxu0 %v7070
  %7405 = vmatpush.msra.mxu0 %v7068
  %7406 = vmatpush.msra.mxu0 %v7066
  %7407 = vmatpush.msra.mxu0 %v7064
  %7408 = vmatpush.msra.mxu0 %v7062
  %7409 = vmatmul.f32.gmra.mxu0 %v6892
  %v7410 = vpop.f32.mrf.mxu0
  %v7411 = vadd.f32 %v7388, %v7410
  %7412 = vmatmul.f32.gmra.mxu0 %v6899
  %v7413 = vpop.f32.mrf.mxu0
  %v7414 = vadd.f32 %v7391, %v7413
  %7415 = vdwg.mxu0
  %7416 = vmatpush.msra.mxu0 0.0
  %7417 = vmatpush.msra.mxu0 0.0
  %7418 = vmatpush.msra.mxu0 0.0
  %7419 = vmatpush.msra.mxu0 0.0
  %7420 = vmatpush.msra.mxu0 0.0
  %7421 = vmatpush.msra.mxu0 0.0
  %7422 = vmatpush.msra.mxu0 0.0
  %7423 = vmatpush.msra.mxu0 0.0
  %7424 = vmatpush.msra.mxu0 0.0
  %7425 = vmatpush.msra.mxu0 0.0
  %7426 = vmatpush.msra.mxu0 0.0
  %7427 = vmatpush.msra.mxu0 %v7115
  %7428 = vmatpush.msra.mxu0 %v7100
  %7429 = vmatpush.msra.mxu0 %v7098
  %7430 = vmatpush.msra.mxu0 %v7096
  %7431 = vmatpush.msra.mxu0 %v7094
  %7432 = vmatmul.f32.gmra.mxu0 %v7105
  %v7433 = vpop.f32.mrf.mxu0
  %v7434 = vadd.f32 %v7411, %v7433
  %7435 = vmatmul.f32.gmra.mxu0 %v7108
  %v7436 = vpop.f32.mrf.mxu0
  %v7437 = vadd.f32 %v7414, %v7436
  %7438 = vdwg.mxu0
  %7439 = vst [vmem:[#allocation5] sm:$0xff] %v7273
  %vm7440 = vcmask 654336
  %7441 = vst.msk [vmem:[#allocation5 + $0x8] sm:$0xff] %vm7440, %v7434
  %7442 = vst [vmem:[#allocation5 + $0x10] sm:$0xff] %v7276
  %7443 = vst.msk [vmem:[#allocation5 + $0x18] sm:$0xff] %vm7440, %v7437
  %v7444 = vld [vmem:[#allocation5] sm:$0xff]
  %v7445 = vld [vmem:[#allocation5 + $0x10] sm:$0xff]
  %7446 = vst.msk [vmem:[#allocation6] sm:$0xff] %vm3750, %v7444
  %7447 = vst.msk [vmem:[#allocation6 + $0x10] sm:$0xff] %vm3750, %v7445
  %v7448 = vld [vmem:[#allocation5] sm:$0xff]
  %v7449 = vld [vmem:[#allocation5 + $0x8] sm:$0xff]
  %v7450 = vld [vmem:[#allocation5 + $0x10] sm:$0xff]
  %v7451 = vld [vmem:[#allocation5 + $0x18] sm:$0xff]
  %7456 = vrot.lane.b32.xlu0 %v7448, 125
  %v7457 = vpop.permute.xlu0 %7456
  %7458 = vrot.lane.b32.xlu0 %v7449, 125
  %v7459 = vpop.permute.xlu0 %7458
  %7460 = vrot.lane.b32.xlu0 %v7450, 125
  %v7461 = vpop.permute.xlu0 %7460
  %7462 = vrot.lane.b32.xlu0 %v7451, 125
  %v7463 = vpop.permute.xlu0 %7462
  %v7464 = vsel %vm1157, %v7457, %v7459
  %v7465 = vsel %vm1157, %v7461, %v7463
  %vm7470 = vcmask 1048360
  %7471 = vst.msk [vmem:[#allocation6] sm:$0xff] %vm7470, %v7464
  %vm7472 = vcmask 605184
  %7473 = vst.msk [vmem:[#allocation6 + $0x8] sm:$0xff] %vm7472, %v7459
  %7474 = vst.msk [vmem:[#allocation6 + $0x10] sm:$0xff] %vm7470, %v7465
  %7475 = vst.msk [vmem:[#allocation6 + $0x18] sm:$0xff] %vm7472, %v7463
  %v7476 = vld [vmem:[#allocation5] sm:$0xff]
  %v7477 = vld [vmem:[#allocation5 + $0x10] sm:$0xff]
  %7480 = vrot.lane.b32.xlu0 %v7476, 127
  %v7481 = vpop.permute.xlu0 %7480
  %7482 = vrot.lane.b32.xlu0 %v7477, 127
  %v7483 = vpop.permute.xlu0 %7482
  %7486 = vst.msk [vmem:[#allocation6 + $0x20] sm:$0xff] %vm3750, %v7481
  %7487 = vst.msk [vmem:[#allocation6 + $0x30] sm:$0xff] %vm3750, %v7483
  %v7488 = vld [vmem:[#allocation5] sm:$0xff]
  %v7489 = vld [vmem:[#allocation5 + $0x8] sm:$0xff]
  %v7490 = vld [vmem:[#allocation5 + $0x10] sm:$0xff]
  %v7491 = vld [vmem:[#allocation5 + $0x18] sm:$0xff]
  %7496 = vrot.lane.b32.xlu0 %v7488, 124
  %v7497 = vpop.permute.xlu0 %7496
  %7498 = vrot.lane.b32.xlu0 %v7489, 124
  %v7499 = vpop.permute.xlu0 %7498
  %7500 = vrot.lane.b32.xlu0 %v7490, 124
  %v7501 = vpop.permute.xlu0 %7500
  %7502 = vrot.lane.b32.xlu0 %v7491, 124
  %v7503 = vpop.permute.xlu0 %7502
  %v7504 = vsel %vm1267, %v7497, %v7499
  %v7505 = vsel %vm1267, %v7501, %v7503
  %7510 = vst.msk [vmem:[#allocation6 + $0x20] sm:$0xff] %vm7470, %v7504
  %7511 = vst.msk [vmem:[#allocation6 + $0x28] sm:$0xff] %vm7472, %v7499
  %7512 = vst.msk [vmem:[#allocation6 + $0x30] sm:$0xff] %vm7470, %v7505
  %7513 = vst.msk [vmem:[#allocation6 + $0x38] sm:$0xff] %vm7472, %v7503
  %v7514 = vld [vmem:[#allocation5] sm:$0xff]
  %v7515 = vld [vmem:[#allocation5 + $0x10] sm:$0xff]
  %7518 = vrot.lane.b32.xlu0 %v7514, 126
  %v7519 = vpop.permute.xlu0 %7518
  %7520 = vrot.lane.b32.xlu0 %v7515, 126
  %v7521 = vpop.permute.xlu0 %7520
  %7524 = vst.msk [vmem:[#allocation6 + $0x40] sm:$0xff] %vm3750, %v7519
  %7525 = vst.msk [vmem:[#allocation6 + $0x50] sm:$0xff] %vm3750, %v7521
  %v7526 = vld [vmem:[#allocation5] sm:$0xff]
  %v7527 = vld [vmem:[#allocation5 + $0x8] sm:$0xff]
  %v7528 = vld [vmem:[#allocation5 + $0x10] sm:$0xff]
  %v7529 = vld [vmem:[#allocation5 + $0x18] sm:$0xff]
  %7534 = vrot.lane.b32.xlu0 %v7526, 123
  %v7535 = vpop.permute.xlu0 %7534
  %7536 = vrot.lane.b32.xlu0 %v7527, 123
  %v7537 = vpop.permute.xlu0 %7536
  %7538 = vrot.lane.b32.xlu0 %v7528, 123
  %v7539 = vpop.permute.xlu0 %7538
  %7540 = vrot.lane.b32.xlu0 %v7529, 123
  %v7541 = vpop.permute.xlu0 %7540
  %v7542 = vsel %vm1377, %v7535, %v7537
  %v7543 = vsel %vm1377, %v7539, %v7541
  %7548 = vst.msk [vmem:[#allocation6 + $0x40] sm:$0xff] %vm7470, %v7542
  %7549 = vst.msk [vmem:[#allocation6 + $0x48] sm:$0xff] %vm7472, %v7537
  %7550 = vst.msk [vmem:[#allocation6 + $0x50] sm:$0xff] %vm7470, %v7543
  %7551 = vst.msk [vmem:[#allocation6 + $0x58] sm:$0xff] %vm7472, %v7541
  %v7552 = vld [vmem:[#allocation5] sm:$0xff]
  %v7553 = vld [vmem:[#allocation5 + $0x10] sm:$0xff]
  %7556 = vrot.lane.b32.xlu0 %v7552, 125
  %v7557 = vpop.permute.xlu0 %7556
  %7558 = vrot.lane.b32.xlu0 %v7553, 125
  %v7559 = vpop.permute.xlu0 %7558
  %7562 = vst.msk [vmem:[#allocation6 + $0x60] sm:$0xff] %vm3750, %v7557
  %7563 = vst.msk [vmem:[#allocation6 + $0x70] sm:$0xff] %vm3750, %v7559
  %v7564 = vld [vmem:[#allocation5] sm:$0xff]
  %v7565 = vld [vmem:[#allocation5 + $0x8] sm:$0xff]
  %v7566 = vld [vmem:[#allocation5 + $0x10] sm:$0xff]
  %v7567 = vld [vmem:[#allocation5 + $0x18] sm:$0xff]
  %7572 = vrot.lane.b32.xlu0 %v7564, 122
  %v7573 = vpop.permute.xlu0 %7572
  %7574 = vrot.lane.b32.xlu0 %v7565, 122
  %v7575 = vpop.permute.xlu0 %7574
  %7576 = vrot.lane.b32.xlu0 %v7566, 122
  %v7577 = vpop.permute.xlu0 %7576
  %7578 = vrot.lane.b32.xlu0 %v7567, 122
  %v7579 = vpop.permute.xlu0 %7578
  %v7580 = vsel %vm1487, %v7573, %v7575
  %v7581 = vsel %vm1487, %v7577, %v7579
  %7586 = vst.msk [vmem:[#allocation6 + $0x60] sm:$0xff] %vm7470, %v7580
  %7587 = vst.msk [vmem:[#allocation6 + $0x68] sm:$0xff] %vm7472, %v7575
  %7588 = vst.msk [vmem:[#allocation6 + $0x70] sm:$0xff] %vm7470, %v7581
  %7589 = vst.msk [vmem:[#allocation6 + $0x78] sm:$0xff] %vm7472, %v7579
  %v7590 = vld [vmem:[#allocation6] sm:$0xff]
  %v7591 = vld [vmem:[#allocation6 + $0x8] sm:$0xff]
  %v7592 = vld [vmem:[#allocation6 + $0x10] sm:$0xff]
  %v7593 = vld [vmem:[#allocation6 + $0x18] sm:$0xff]
  %v7594 = vld [vmem:[#allocation6 + $0x20] sm:$0xff]
  %v7595 = vld [vmem:[#allocation6 + $0x28] sm:$0xff]
  %v7596 = vld [vmem:[#allocation6 + $0x30] sm:$0xff]
  %v7597 = vld [vmem:[#allocation6 + $0x38] sm:$0xff]
  %v7598 = vld [vmem:[#allocation6 + $0x40] sm:$0xff]
  %v7599 = vld [vmem:[#allocation6 + $0x48] sm:$0xff]
  %v7600 = vld [vmem:[#allocation6 + $0x50] sm:$0xff]
  %v7601 = vld [vmem:[#allocation6 + $0x58] sm:$0xff]
  %v7602 = vld [vmem:[#allocation6 + $0x60] sm:$0xff]
  %v7603 = vld [vmem:[#allocation6 + $0x68] sm:$0xff]
  %v7604 = vld [vmem:[#allocation6 + $0x70] sm:$0xff]
  %v7605 = vld [vmem:[#allocation6 + $0x78] sm:$0xff]
  %7606 = vset.pattern.permute.xlu0 115
  %7607 = vperm.xlu0 %7606, %v21
  %v7608 = vpop.permute.xlu0 %7607
  %7610 = vset.pattern.permute.xlu0 115
  %7611 = vperm.xlu0 %7610, %v23
  %v7612 = vpop.permute.xlu0 %7611
  %7614 = vrot.lane.b32.xlu0 %v21, 80
  %v7615 = vpop.permute.xlu0 %7614
  %7616 = vrot.lane.b32.xlu0 %v23, 80
  %v7617 = vpop.permute.xlu0 %7616
  %v7618 = vsel %vm6499, %v7615, 0
  %v7620 = vsel %vm6499, %v7617, 0
  %7622 = vmatpush.msra.mxu0 0.0
  %7623 = vmatpush.msra.mxu0 0.0
  %7624 = vmatpush.msra.mxu0 0.0
  %7625 = vmatpush.msra.mxu0 0.0
  %7626 = vmatpush.msra.mxu0 0.0
  %7627 = vmatpush.msra.mxu0 0.0
  %7628 = vmatpush.msra.mxu0 0.0
  %7629 = vmatpush.msra.mxu0 0.0
  %7630 = vmatpush.msra.mxu0 %v7604
  %7631 = vmatpush.msra.mxu0 %v7602
  %7632 = vmatpush.msra.mxu0 %v7600
  %7633 = vmatpush.msra.mxu0 %v7598
  %7634 = vmatpush.msra.mxu0 %v7596
  %7635 = vmatpush.msra.mxu0 %v7594
  %7636 = vmatpush.msra.mxu0 %v7592
  %7637 = vmatpush.msra.mxu0 %v7590
  %7638 = vmatmul.f32.gmra.mxu0 %v7618
  %v7639 = vpop.f32.mrf.mxu0
  %v7640 = vadd.f32 %v7608, %v7639
  %7641 = vmatmul.f32.gmra.mxu0 %v7620
  %v7642 = vpop.f32.mrf.mxu0
  %v7643 = vadd.f32 %v7612, %v7642
  %7644 = vdwg.mxu0
  %7645 = vmatpush.msra.mxu0 0.0
  %7646 = vmatpush.msra.mxu0 0.0
  %7647 = vmatpush.msra.mxu0 0.0
  %7648 = vmatpush.msra.mxu0 0.0
  %7649 = vmatpush.msra.mxu0 0.0
  %7650 = vmatpush.msra.mxu0 0.0
  %7651 = vmatpush.msra.mxu0 0.0
  %7652 = vmatpush.msra.mxu0 0.0
  %7653 = vmatpush.msra.mxu0 %v7605
  %7654 = vmatpush.msra.mxu0 %v7603
  %7655 = vmatpush.msra.mxu0 %v7601
  %7656 = vmatpush.msra.mxu0 %v7599
  %7657 = vmatpush.msra.mxu0 %v7597
  %7658 = vmatpush.msra.mxu0 %v7595
  %7659 = vmatpush.msra.mxu0 %v7593
  %7660 = vmatpush.msra.mxu0 %v7591
  %7661 = vmatmul.f32.gmra.mxu0 %v7618
  %v7662 = vpop.f32.mrf.mxu0
  %v7663 = vadd.f32 %v7608, %v7662
  %7664 = vmatmul.f32.gmra.mxu0 %v7620
  %v7665 = vpop.f32.mrf.mxu0
  %v7666 = vadd.f32 %v7612, %v7665
  %7667 = vdwg.mxu0
  %vm7668 = vcmp.gt.f32.partialorder %v7640, 0.0
  %vm7669 = vcmp.gt.f32.partialorder %v7663, 0.0
  %vm7670 = vcmp.gt.f32.partialorder %v7643, 0.0
  %vm7671 = vcmp.gt.f32.partialorder %v7666, 0.0
  %v7672 = vmin.f32 %v7640, 0.0
  %v7673 = vmin.f32 %v7663, 0.0
  %v7674 = vmin.f32 %v7643, 0.0
  %v7675 = vmin.f32 %v7666, 0.0
  %v7676 = vmul.f32 %v7672, 1.442695
  %v7677 = vpow.pop %v7676
  %v7678 = vmul.f32 %v7673, 1.442695
  %v7679 = vpow.pop %v7678
  %v7680 = vmul.f32 %v7674, 1.442695
  %v7681 = vpow.pop %v7680
  %v7682 = vmul.f32 %v7675, 1.442695
  %v7683 = vpow.pop %v7682
  %v7684 = vsub.f32 %v7677, 1.0
  %v7685 = vsub.f32 %v7679, 1.0
  %v7686 = vsub.f32 %v7681, 1.0
  %v7687 = vsub.f32 %v7683, 1.0
  %v7688 = vsel %vm7668, %v7640, %v7684
  %v7689 = vsel %vm7669, %v7663, %v7685
  %v7690 = vsel %vm7670, %v7643, %v7686
  %v7691 = vsel %vm7671, %v7666, %v7687
  %v7692 = vsel %vm7472, %v7689, 0.0
  %v7693 = vadd.f32 %v7688, %v7692
  %7694 = vadd.xlane.f32.xlu0 %v7693
  %v7695 = vpop.xlane.xlu0 %7694
  %v7696 = vsel %vm7472, %v7691, 0.0
  %v7697 = vadd.f32 %v7690, %v7696
  %7698 = vadd.xlane.f32.xlu0 %v7697
  %v7699 = vpop.xlane.xlu0 %7698
  %v7700 = vmul.f32 %v7688, %v7688
  %v7701 = vmul.f32 %v7689, %v7689
  %v7702 = vmul.f32 %v7690, %v7690
  %v7703 = vmul.f32 %v7691, %v7691
  %v7704 = vsel %vm7472, %v7701, 0.0
  %v7705 = vadd.f32 %v7700, %v7704
  %7706 = vadd.xlane.f32.xlu0 %v7705
  %v7707 = vpop.xlane.xlu0 %7706
  %v7708 = vsel %vm7472, %v7703, 0.0
  %v7709 = vadd.f32 %v7702, %v7708
  %7710 = vadd.xlane.f32.xlu0 %v7709
  %v7711 = vpop.xlane.xlu0 %7710
  %v7712 = vsel %vm2752, %v7695, %v7707
  %v7713 = vsel %vm2752, %v7699, %v7711
  %7714 = vrot.lane.b32.xlu0 %v21, 96
  %v7715 = vpop.permute.xlu0 %7714
  %7716 = vrot.lane.b32.xlu0 %v23, 96
  %v7717 = vpop.permute.xlu0 %7716
  %v7718 = vsel %vm767, %v7715, 0
  %v7720 = vsel %vm767, %v7717, 0
  %7722 = vmatpush.msra.mxu0 0.0
  %7723 = vmatpush.msra.mxu0 0.0
  %7724 = vmatpush.msra.mxu0 0.0
  %7725 = vmatpush.msra.mxu0 0.0
  %7726 = vmatpush.msra.mxu0 0.0
  %7727 = vmatpush.msra.mxu0 0.0
  %7728 = vmatpush.msra.mxu0 0.0
  %7729 = vmatpush.msra.mxu0 0.0
  %7730 = vmatpush.msra.mxu0 0.0
  %7731 = vmatpush.msra.mxu0 0.0
  %7732 = vmatpush.msra.mxu0 0.0
  %7733 = vmatpush.msra.mxu0 0.0
  %7734 = vmatpush.msra.mxu0 0.0
  %7735 = vmatpush.msra.mxu0 0.0
  %7736 = vmatpush.msra.mxu0 %v7713
  %7737 = vmatpush.msra.mxu0 %v7712
  %7738 = vmatmul.f32.gmra.mxu0 %v7718
  %v7739 = vpop.f32.mrf.mxu0
  %v7740 = vadd.f32 0.0, %v7739
  %7741 = vmatmul.f32.gmra.mxu0 %v7720
  %v7742 = vpop.f32.mrf.mxu0
  %v7743 = vadd.f32 0.0, %v7742
  %7744 = vdwg.mxu0
  %v7745 = vmul.f32 %v7740, 0.0012376237
  %v7746 = vmul.f32 %v7743, 0.0012376237
  %v7747 = vmul.f32 %v7745, %v7745
  %v7748 = vmul.f32 %v7746, %v7746
  %7751 = vrot.lane.b32.xlu0 %v7747, 1
  %v7752 = vpop.permute.xlu0 %7751
  %7753 = vrot.lane.b32.xlu0 %v7748, 1
  %v7754 = vpop.permute.xlu0 %7753
  %v7757 = vsub.f32 %v7745, %v7752
  %v7758 = vsub.f32 %v7746, %v7754
  %v7759 = vmax.f32 %v7757, 0.0
  %v7760 = vmax.f32 %v7758, 0.0
  %v7761 = vrsqrt.pop %v7759
  %v7762 = vmul.f32 %v7761, %v7759
  %v7763 = vmul.f32 %v7762, %v7761
  %v7764 = vmul.f32 0.5, %v7763
  %v7765 = vsub.f32 1.5, %v7764
  %v7766 = vmul.f32 %v7761, %v7765
  %vm7767 = vweird.f32 %v7759
  %vm7768 = vweird.f32 %v7761
  %vm7769 = vmor %vm7767, %vm7768
  %v7770 = vsel %vm7769, %v7761, %v7766
  %v7771 = vrsqrt.pop %v7760
  %v7772 = vmul.f32 %v7771, %v7760
  %v7773 = vmul.f32 %v7772, %v7771
  %v7774 = vmul.f32 0.5, %v7773
  %v7775 = vsub.f32 1.5, %v7774
  %v7776 = vmul.f32 %v7771, %v7775
  %vm7777 = vweird.f32 %v7760
  %vm7778 = vweird.f32 %v7771
  %vm7779 = vmor %vm7777, %vm7778
  %v7780 = vsel %vm7779, %v7771, %v7776
  %7783 = vrot.lane.b32.xlu0 %v7770, 115
  %v7784 = vpop.permute.xlu0 %7783
  %7785 = vrot.lane.b32.xlu0 %v7780, 115
  %v7786 = vpop.permute.xlu0 %7785
  %v7789 = vmul.f32 %v21, %v7784
  %v7790 = vmul.f32 %v23, %v7786
  %7793 = vrot.lane.b32.xlu0 %v7789, 12
  %v7794 = vpop.permute.xlu0 %7793
  %7795 = vrot.lane.b32.xlu0 %v7790, 12
  %v7796 = vpop.permute.xlu0 %7795
  %v7799 = vmul.f32 %v7745, %v7794
  %v7800 = vmul.f32 %v7746, %v7796
  %7803 = vrot.lane.b32.xlu0 %v7799, 117
  %v7804 = vpop.permute.xlu0 %7803
  %7805 = vrot.lane.b32.xlu0 %v7800, 117
  %v7806 = vpop.permute.xlu0 %7805
  %v7809 = vsub.f32 %v21, %v7804
  %v7810 = vsub.f32 %v23, %v7806
  %7811 = vset.pattern.permute.xlu0 116
  %7812 = vperm.xlu0 %7811, %v7789
  %v7813 = vpop.permute.xlu0 %7812
  %7815 = vset.pattern.permute.xlu0 116
  %7816 = vperm.xlu0 %7815, %v7790
  %v7817 = vpop.permute.xlu0 %7816
  %v7819 = vmul.f32 %v7688, %v7813
  %v7820 = vmul.f32 %v7689, %v7813
  %v7821 = vmul.f32 %v7690, %v7817
  %v7822 = vmul.f32 %v7691, %v7817
  %7824 = vset.pattern.permute.xlu0 117
  %7825 = vperm.xlu0 %7824, %v7809
  %v7826 = vpop.permute.xlu0 %7825
  %7829 = vset.pattern.permute.xlu0 117
  %7830 = vperm.xlu0 %7829, %v7810
  %v7831 = vpop.permute.xlu0 %7830
  %v7833 = vadd.f32 %v7819, %v7826
  %v7834 = vadd.f32 %v7820, %v7826
  %v7835 = vadd.f32 %v7821, %v7831
  %v7836 = vadd.f32 %v7822, %v7831
  %v7837 = vmax.f32 %v7833, %v7835
  %v7838 = vmax.f32 %v7834, %v7836
  %7841 = vrot.lane.b32.xlu0 %v7837, 127
  %v7842 = vpop.permute.xlu0 %7841
  %7843 = vrot.lane.b32.xlu0 %v7838, 127
  %v7844 = vpop.permute.xlu0 %7843
  %v7845 = vsel %vm938, %v7842, %v7844
  %v7848 = vmax.f32 %v7837, %v7845
  %v7849 = vmax.f32 %v7838, %v7844
  %7852 = vrot.lane.b32.xlu0 %v7848, 126
  %v7853 = vpop.permute.xlu0 %7852
  %7854 = vrot.lane.b32.xlu0 %v7849, 126
  %v7855 = vpop.permute.xlu0 %7854
  %v7856 = vsel %vm1048, %v7853, %v7855
  %v7859 = vmax.f32 %v7848, %v7856
  %v7860 = vmax.f32 %v7849, %v7855
  %v7861 = vld [vmem:[%s4] sm:$0xff]
  %v7862 = vld [vmem:[%s4 + $0x8] sm:$0xff]
  %v7863 = vld [vmem:[%s4 + $0x10] sm:$0xff]
  %v7864 = vld [vmem:[%s4 + $0x18] sm:$0xff]
  %v7865 = vld [vmem:[%s4 + $0x20] sm:$0xff]
  %v7866 = vld [vmem:[%s4 + $0x28] sm:$0xff]
  %v7867 = vld [vmem:[%s4 + $0x30] sm:$0xff]
  %v7868 = vld [vmem:[%s4 + $0x38] sm:$0xff]
  %v7869 = vld [vmem:[%s4 + $0x40] sm:$0xff]
  %v7870 = vld [vmem:[%s4 + $0x48] sm:$0xff]
  %v7871 = vld [vmem:[%s4 + $0x50] sm:$0xff]
  %v7872 = vld [vmem:[%s4 + $0x58] sm:$0xff]
  %v7873 = vld [vmem:[%s4 + $0x60] sm:$0xff]
  %v7874 = vld [vmem:[%s4 + $0x68] sm:$0xff]
  %v7875 = vld [vmem:[%s4 + $0x70] sm:$0xff]
  %v7876 = vld [vmem:[%s4 + $0x78] sm:$0xff]
  %v7877 = vld [vmem:[%s4 + $0x80] sm:$0xff]
  %v7878 = vld [vmem:[%s4 + $0x88] sm:$0xff]
  %v7879 = vld [vmem:[%s4 + $0x90] sm:$0xff]
  %v7880 = vld [vmem:[%s4 + $0x98] sm:$0xff]
  %v7881 = vld [vmem:[%s4 + $0xa0] sm:$0xff]
  %v7882 = vld [vmem:[%s4 + $0xa8] sm:$0xff]
  %v7883 = vld [vmem:[%s4 + $0xb0] sm:$0xff]
  %v7884 = vld [vmem:[%s4 + $0xb8] sm:$0xff]
  %v7885 = vld [vmem:[%s4 + $0xc0] sm:$0x7f]
  %vm7886 = vcmask 580608
  %v7888 = vsel %vm7886, %v7860, 0
  %vm7890 = vcmask 1046528
  %v7892 = vsel %vm7890, %v7885, 0
  %7894 = vmatpush.msra.mxu0 %v7876
  %7895 = vmatpush.msra.mxu0 %v7875
  %7896 = vmatpush.msra.mxu0 %v7874
  %7897 = vmatpush.msra.mxu0 %v7873
  %7898 = vmatpush.msra.mxu0 %v7872
  %7899 = vmatpush.msra.mxu0 %v7871
  %7900 = vmatpush.msra.mxu0 %v7870
  %7901 = vmatpush.msra.mxu0 %v7869
  %7902 = vmatpush.msra.mxu0 %v7868
  %7903 = vmatpush.msra.mxu0 %v7867
  %7904 = vmatpush.msra.mxu0 %v7866
  %7905 = vmatpush.msra.mxu0 %v7865
  %7906 = vmatpush.msra.mxu0 %v7864
  %7907 = vmatpush.msra.mxu0 %v7863
  %7908 = vmatpush.msra.mxu0 %v7862
  %7909 = vmatpush.msra.mxu0 %v7861
  %7910 = vmatmul.f32.gmra.mxu0 %v7859
  %v7911 = vpop.f32.mrf.mxu0
  %v7912 = vadd.f32 0.0, %v7911
  %7913 = vdwg.mxu0
  %7914 = vmatpush.msra.mxu0 0.0
  %7915 = vmatpush.msra.mxu0 0.0
  %7916 = vmatpush.msra.mxu0 0.0
  %7917 = vmatpush.msra.mxu0 0.0
  %7918 = vmatpush.msra.mxu0 0.0
  %7919 = vmatpush.msra.mxu0 0.0
  %7920 = vmatpush.msra.mxu0 0.0
  %7921 = vmatpush.msra.mxu0 %v7892
  %7922 = vmatpush.msra.mxu0 %v7884
  %7923 = vmatpush.msra.mxu0 %v7883
  %7924 = vmatpush.msra.mxu0 %v7882
  %7925 = vmatpush.msra.mxu0 %v7881
  %7926 = vmatpush.msra.mxu0 %v7880
  %7927 = vmatpush.msra.mxu0 %v7879
  %7928 = vmatpush.msra.mxu0 %v7878
  %7929 = vmatpush.msra.mxu0 %v7877
  %7930 = vmatmul.f32.gmra.mxu0 %v7888
  %v7931 = vpop.f32.mrf.mxu0
  %v7932 = vadd.f32 %v7912, %v7931
  %7933 = vdwg.mxu0
  %vm7934 = vcmask 408576
  %7935 = vst.msk [vmem:[%s5] sm:$0xff] %vm7934, %v7932
  // Predicated region
  $region22: #{eeg_net_forward.1} parent=0 // pred_check
    _
  $region23: #{eeg_net_forward.1} parent=0 // pred_check_branch
    %7937 = sbr.rel (0) target = $region25
  $region24: #{eeg_net_forward.1} parent=0 // pred_region
    _
  $region25: #{eeg_net_forward.1} parent=0 // pred_fallthru
    _
  // Predicated region
  $region26: #{eeg_net_forward.1} parent=0 // pred_check
    _
  $region27: #{eeg_net_forward.1} parent=0 // pred_check_branch
    %7939 = sbr.rel (0) target = $region29
  $region28: #{eeg_net_forward.1} parent=0 // pred_region
    _
  $region29: #{eeg_net_forward.1} parent=0 // pred_fallthru
    _

</llo_original>
